<compile_context>
chip_gen: v7x
topology: tpu7x:2x2x1
jax: 0.10.0
libtpu: 0.0.40
codegen_flags: <defaults>
</compile_context>

<pallas_src>
import jax
import jax.numpy as jnp
from jax.experimental import pallas as pl
from jax.experimental.pallas import tpu as pltpu

# Interior of the padded scratch starts at sublane (W-axis) offset 8 so the
# per-dy window reads are (8,128)-tile aligned; the dx shifts are pre-applied
# on the channel axis when the scratch is filled.
_W_OFF = 8


def _decoder_ds_kernel(x_ref, w1_ref, s1_ref, t1_ref,
                       w2_ref, s2_ref, t2_ref,
                       w3_ref, s3_ref, t3_ref,
                       out_ref, p1, p2, p3):
    """Single invocation: runs all three deconv+BN+ReLU layers.

    x_ref  : (B, H, W, C0)       input activations, NHWC
    wK_ref : (3, 3*Cin, Cout)    per-dy conv matrices (dx taps stacked on the
                                 channel axis; kernel already flipped for the
                                 conv-transpose -> conv equivalence)
    sK/tK  : (1, Cout)           folded BatchNorm scale / (bias+BN) shift
    out_ref: (B, H, W, C3)
    p1..p3 : (B, H+2, Wpad, 3*Cin) VMEM scratch holding the three dx-shifted,
                                 zero-halo'd copies of the layer input.
    """
    B, H, W, _ = x_ref.shape
    N = B * H * W

    def pad_into(p_ref, val):
        """Write the 3 dx-shifted copies of `val` (B,H,W,Cin) into the padded
        scratch, stacked along channels; zero only the readable halo cells."""
        cin = val.shape[-1]
        dt = p_ref.dtype
        # Halo rows (y = -1 and y = H) over the read window, all channel blocks.
        zrow = jnp.zeros((B, 1, W, 3 * cin), dt)
        p_ref[:, 0:1, _W_OFF:_W_OFF + W, :] = zrow
        p_ref[:, H + 1:H + 2, _W_OFF:_W_OFF + W, :] = zrow
        # Halo columns: x = -1 lives in the dx=0 block's leftmost read column,
        # x = W lives in the dx=2 block's rightmost read column.
        zcol = jnp.zeros((B, H, 1, cin), dt)
        p_ref[:, 1:H + 1, _W_OFF:_W_OFF + 1, 0:cin] = zcol
        p_ref[:, 1:H + 1, _W_OFF + W - 1:_W_OFF + W, 2 * cin:3 * cin] = zcol
        # Three W-shifted copies of the interior, one per dx tap.
        for dx in range(3):
            c0 = _W_OFF + 1 - dx
            p_ref[:, 1:H + 1, c0:c0 + W, dx * cin:(dx + 1) * cin] = val

    def conv3x3(p_ref, w_ref):
        # p_ref: (B, H+2, Wpad, 3*Cin) pre-shifted  |  w_ref: (3, 3*Cin, Cout)
        k = w_ref.shape[1]
        cout = w_ref.shape[-1]
        acc = jnp.zeros((N, cout), jnp.float32)
        for dy in range(3):  # 3 aligned window reads + 3 matmuls (K = 3*Cin)
            patch = p_ref[:, dy:dy + H, _W_OFF:_W_OFF + W, :]
            acc = acc + jnp.dot(patch.reshape(N, k), w_ref[dy],
                                preferred_element_type=jnp.float32)
        return acc

    def bn_relu(acc, s_ref, t_ref):
        # Folded conv-bias + BatchNorm (scale/shift) fused with ReLU.
        return jnp.maximum(acc * s_ref[...] + t_ref[...], 0.0)

    # Layer 1: C0 -> 64
    pad_into(p1, x_ref[...])
    y = bn_relu(conv3x3(p1, w1_ref), s1_ref, t1_ref)

    # Layer 2: 64 -> 32
    pad_into(p2, y.reshape(B, H, W, -1))
    y = bn_relu(conv3x3(p2, w2_ref), s2_ref, t2_ref)

    # Layer 3: 32 -> output_dim
    pad_into(p3, y.reshape(B, H, W, -1))
    y = bn_relu(conv3x3(p3, w3_ref), s3_ref, t3_ref)

    out_ref[...] = y.reshape(B, H, W, -1).astype(out_ref.dtype)


@jax.jit
def decoder_ds_forward(x,
                       w1, b1, g1, be1, m1, v1,
                       w2, b2, g2, be2, m2, v2,
                       w3, b3, g3, be3, m3, v3):
    """x: (B, latent_dim, H, W) NCHW float32. Returns (B, output_dim, H, W)."""
    eps = 1e-5
    B, _, H, W = x.shape

    x_nhwc = jnp.transpose(x, (0, 2, 3, 1)).astype(jnp.float32)

    def taps(w):
        # ConvTranspose2d weight (Cin, Cout, 3, 3) -> (3, 3*Cin, Cout) with the
        # kernel spatially flipped so the transposed conv becomes a plain
        # same-padding 3x3 conv; dx taps are stacked along the K axis.
        cin, cout = w.shape[0], w.shape[1]
        t = jnp.transpose(w[:, :, ::-1, ::-1], (2, 3, 0, 1)).astype(jnp.float32)
        return t.reshape(3, 3 * cin, cout)

    def fold(bias, gamma, beta, mean, var):
        # BN(conv + bias) = conv * s + t  with s, t per output channel.
        s = gamma * jax.lax.rsqrt(var + eps)
        t = (bias - mean) * s + beta
        return (s.reshape(1, -1).astype(jnp.float32),
                t.reshape(1, -1).astype(jnp.float32))

    w1t, w2t, w3t = taps(w1), taps(w2), taps(w3)
    s1, t1 = fold(b1, g1, be1, m1, v1)
    s2, t2 = fold(b2, g2, be2, m2, v2)
    s3, t3 = fold(b3, g3, be3, m3, v3)
    cin1, cin2, cin3 = w1.shape[0], w2.shape[0], w3.shape[0]
    c3 = w3.shape[1]

    pad_w = _W_OFF + W + 8  # room for the +-1 tap windows, multiple of 8
    vmem_spec = pl.BlockSpec(memory_space=pltpu.MemorySpace.VMEM)

    out_nhwc = pl.pallas_call(
        _decoder_ds_kernel,
        out_shape=jax.ShapeDtypeStruct((B, H, W, c3), jnp.float32),
        in_specs=[vmem_spec] * 10,
        out_specs=vmem_spec,
        scratch_shapes=[
            pltpu.VMEM((B, H + 2, pad_w, 3 * cin1), jnp.float32),
            pltpu.VMEM((B, H + 2, pad_w, 3 * cin2), jnp.float32),
            pltpu.VMEM((B, H + 2, pad_w, 3 * cin3), jnp.float32),
        ],
    )(x_nhwc, w1t, s1, t1, w2t, s2, t2, w3t, s3, t3)

    return jnp.transpose(out_nhwc, (0, 3, 1, 2))


# ---------------- pure-JAX reference (literal scatter-form ConvTranspose) ----
def _conv_transpose_ref(x, w, b):
    """nn.ConvTranspose2d(k=3, s=1, p=1) by its scatter definition. NCHW."""
    B, Cin, H, W = x.shape
    Cout = w.shape[1]
    full = jnp.zeros((B, Cout, H + 2, W + 2), jnp.float32)
    for kh in range(3):
        for kw in range(3):
            contrib = jnp.einsum('bchw,cd->bdhw', x, w[:, :, kh, kw],
                                 precision=jax.lax.Precision.HIGHEST)
            full = full.at[:, :, kh:kh + H, kw:kw + W].add(contrib)
    return full[:, :, 1:1 + H, 1:1 + W] + b[None, :, None, None]


def _bn_relu_ref(z, g, be, m, v, eps=1e-5):
    s = (g * jax.lax.rsqrt(v + eps))[None, :, None, None]
    y = (z - m[None, :, None, None]) * s + be[None, :, None, None]
    return jnp.maximum(y, 0.0)


def _reference_forward(x, params):
    (w1, b1, g1, be1, m1, v1,
     w2, b2, g2, be2, m2, v2,
     w3, b3, g3, be3, m3, v3) = params
    y = _bn_relu_ref(_conv_transpose_ref(x, w1, b1), g1, be1, m1, v1)
    y = _bn_relu_ref(_conv_transpose_ref(y, w2, b2), g2, be2, m2, v2)
    y = _bn_relu_ref(_conv_transpose_ref(y, w3, b3), g3, be3, m3, v3)
    return y


if __name__ == "__main__":
    latent_dim, output_dim = 64, 50
    B, H, W = 2, 16, 16

    key = jax.random.PRNGKey(0)
    ks = iter(jax.random.split(key, 24))

    def conv_t_params(cin, cout):
        w = 0.05 * jax.random.normal(next(ks), (cin, cout, 3, 3), jnp.float32)
        b = 0.05 * jax.random.normal(next(ks), (cout,), jnp.float32)
        return w, b

    def bn_params(c):
        g = 1.0 + 0.1 * jax.random.normal(next(ks), (c,), jnp.float32)
        be = 0.1 * jax.random.normal(next(ks), (c,), jnp.float32)
        m = 0.1 * jax.random.normal(next(ks), (c,), jnp.float32)
        v = jax.random.uniform(next(ks), (c,), jnp.float32, 0.5, 1.5)
        return g, be, m, v

    x = jax.random.normal(next(ks), (B, latent_dim, H, W), jnp.float32)
    w1, b1 = conv_t_params(latent_dim, 64)
    g1, be1, m1, v1 = bn_params(64)
    w2, b2 = conv_t_params(64, 32)
    g2, be2, m2, v2 = bn_params(32)
    w3, b3 = conv_t_params(32, output_dim)
    g3, be3, m3, v3 = bn_params(output_dim)

    params = (w1, b1, g1, be1, m1, v1,
              w2, b2, g2, be2, m2, v2,
              w3, b3, g3, be3, m3, v3)

    out = decoder_ds_forward(x, *params)
    out = jax.block_until_ready(out)

    ref = _reference_forward(x, params)
    assert out.shape == (B, output_dim, H, W), out.shape
    max_err = float(jnp.max(jnp.abs(out - ref)))
    # Loose-ish tolerance: in-kernel f32 MXU matmuls may use bf16-pass
    # arithmetic; structural bugs would show up as O(0.1-1) errors.
    assert max_err < 3e-2, f"max abs diff vs reference = {max_err}"

    print("KERNEL_OK")
</pallas_src>

<mosaic_0001>
module attributes {stable_mosaic.version = 11 : i64} {
  func.func @_decoder_ds_kernel(%arg0: memref<2x16x16x64xf32, #tpu.memory_space<vmem>>, %arg1: memref<3x192x64xf32, #tpu.memory_space<vmem>>, %arg2: memref<1x64xf32, #tpu.memory_space<vmem>>, %arg3: memref<1x64xf32, #tpu.memory_space<vmem>>, %arg4: memref<3x192x32xf32, #tpu.memory_space<vmem>>, %arg5: memref<1x32xf32, #tpu.memory_space<vmem>>, %arg6: memref<1x32xf32, #tpu.memory_space<vmem>>, %arg7: memref<3x96x50xf32, #tpu.memory_space<vmem>>, %arg8: memref<1x50xf32, #tpu.memory_space<vmem>>, %arg9: memref<1x50xf32, #tpu.memory_space<vmem>>, %arg10: memref<2x16x16x50xf32, #tpu.memory_space<vmem>>, %arg11: memref<2x18x32x192xf32, #tpu.memory_space<vmem>>, %arg12: memref<2x18x32x192xf32, #tpu.memory_space<vmem>>, %arg13: memref<2x18x32x96xf32, #tpu.memory_space<vmem>>) attributes {dimension_semantics = [], scalar_prefetch = 0 : i64, scratch_operands = 3 : i64, tpu.core_type = #tpu.core_type<tc>} {
    %c0 = arith.constant 0 : index
    %c0_0 = arith.constant 0 : index
    %c0_1 = arith.constant 0 : index
    %c0_2 = arith.constant 0 : index
    %0 = vector.load %arg0[%c0, %c0_0, %c0_1, %c0_2] : memref<2x16x16x64xf32, #tpu.memory_space<vmem>>, vector<2x16x16x64xf32>
    %cst = arith.constant 0.000000e+00 : f32
    %1 = vector.broadcast %cst : f32 to vector<2x1x16x192xf32>
    %c0_3 = arith.constant 0 : index
    %c0_4 = arith.constant 0 : index
    %c8 = arith.constant 8 : index
    %c0_5 = arith.constant 0 : index
    %2 = vector.load %arg11[%c0_3, %c0_4, %c8, %c0_5] : memref<2x18x32x192xf32, #tpu.memory_space<vmem>>, vector<2x1x16x192xf32>
    tpu.vector_store %arg11[%c0_3, %c0_4, %c8, %c0_5], %1 {strides = array<i32>} : memref<2x18x32x192xf32, #tpu.memory_space<vmem>>, vector<2x1x16x192xf32>,
    %c0_6 = arith.constant 0 : index
    %c17 = arith.constant 17 : index
    %c8_7 = arith.constant 8 : index
    %c0_8 = arith.constant 0 : index
    %3 = vector.load %arg11[%c0_6, %c17, %c8_7, %c0_8] : memref<2x18x32x192xf32, #tpu.memory_space<vmem>>, vector<2x1x16x192xf32>
    tpu.vector_store %arg11[%c0_6, %c17, %c8_7, %c0_8], %1 {strides = array<i32>} : memref<2x18x32x192xf32, #tpu.memory_space<vmem>>, vector<2x1x16x192xf32>,
    %cst_9 = arith.constant 0.000000e+00 : f32
    %4 = vector.broadcast %cst_9 : f32 to vector<2x16x1x64xf32>
    %c0_10 = arith.constant 0 : index
    %c1 = arith.constant 1 : index
    %c8_11 = arith.constant 8 : index
    %c0_12 = arith.constant 0 : index
    %5 = vector.load %arg11[%c0_10, %c1, %c8_11, %c0_12] : memref<2x18x32x192xf32, #tpu.memory_space<vmem>>, vector<2x16x1x64xf32>
    tpu.vector_store %arg11[%c0_10, %c1, %c8_11, %c0_12], %4 {strides = array<i32>} : memref<2x18x32x192xf32, #tpu.memory_space<vmem>>, vector<2x16x1x64xf32>,
    %c0_13 = arith.constant 0 : index
    %c1_14 = arith.constant 1 : index
    %c23 = arith.constant 23 : index
    %c128 = arith.constant 128 : index
    %6 = vector.load %arg11[%c0_13, %c1_14, %c23, %c128] : memref<2x18x32x192xf32, #tpu.memory_space<vmem>>, vector<2x16x1x64xf32>
    tpu.vector_store %arg11[%c0_13, %c1_14, %c23, %c128], %4 {strides = array<i32>} : memref<2x18x32x192xf32, #tpu.memory_space<vmem>>, vector<2x16x1x64xf32>,
    %c0_15 = arith.constant 0 : index
    %c1_16 = arith.constant 1 : index
    %c9 = arith.constant 9 : index
    %c0_17 = arith.constant 0 : index
    %7 = vector.load %arg11[%c0_15, %c1_16, %c9, %c0_17] : memref<2x18x32x192xf32, #tpu.memory_space<vmem>>, vector<2x16x16x64xf32>
    tpu.vector_store %arg11[%c0_15, %c1_16, %c9, %c0_17], %0 {strides = array<i32>} : memref<2x18x32x192xf32, #tpu.memory_space<vmem>>, vector<2x16x16x64xf32>,
    %c0_18 = arith.constant 0 : index
    %c1_19 = arith.constant 1 : index
    %c8_20 = arith.constant 8 : index
    %c64 = arith.constant 64 : index
    %8 = vector.load %arg11[%c0_18, %c1_19, %c8_20, %c64] : memref<2x18x32x192xf32, #tpu.memory_space<vmem>>, vector<2x16x16x64xf32>
    tpu.vector_store %arg11[%c0_18, %c1_19, %c8_20, %c64], %0 {strides = array<i32>} : memref<2x18x32x192xf32, #tpu.memory_space<vmem>>, vector<2x16x16x64xf32>,
    %c0_21 = arith.constant 0 : index
    %c1_22 = arith.constant 1 : index
    %c7 = arith.constant 7 : index
    %c128_23 = arith.constant 128 : index
    %9 = vector.load %arg11[%c0_21, %c1_22, %c7, %c128_23] : memref<2x18x32x192xf32, #tpu.memory_space<vmem>>, vector<2x16x16x64xf32>
    tpu.vector_store %arg11[%c0_21, %c1_22, %c7, %c128_23], %0 {strides = array<i32>} : memref<2x18x32x192xf32, #tpu.memory_space<vmem>>, vector<2x16x16x64xf32>,
    %cst_24 = arith.constant 0.000000e+00 : f32
    %10 = vector.broadcast %cst_24 : f32 to vector<512x64xf32>
    %c0_25 = arith.constant 0 : index
    %c0_26 = arith.constant 0 : index
    %c8_27 = arith.constant 8 : index
    %c0_28 = arith.constant 0 : index
    %11 = vector.load %arg11[%c0_25, %c0_26, %c8_27, %c0_28] : memref<2x18x32x192xf32, #tpu.memory_space<vmem>>, vector<2x16x16x192xf32>
    %12 = vector.shape_cast %11 : vector<2x16x16x192xf32> to vector<512x192xf32>
    %c0_29 = arith.constant 0 : index
    %c0_30 = arith.constant 0 : index
    %c0_31 = arith.constant 0 : index
    %13 = vector.load %arg1[%c0_29, %c0_30, %c0_31] : memref<3x192x64xf32, #tpu.memory_space<vmem>>, vector<1x192x64xf32>
    %14 = vector.shape_cast %13 : vector<1x192x64xf32> to vector<192x64xf32>
    %cst_32 = arith.constant dense<0.000000e+00> : vector<512x64xf32>
    %15 = tpu.matmul %12, %14, %cst_32 {dimension_numbers = #tpu.dot_dimension_numbers<[1], [0], [0], [1], [0, 0, 1, 1], [], []>} : vector<512x192xf32>, vector<192x64xf32>, vector<512x64xf32> -> vector<512x64xf32>
    %16 = arith.addf %10, %15 : vector<512x64xf32>
    %c0_33 = arith.constant 0 : index
    %c1_34 = arith.constant 1 : index
    %c8_35 = arith.constant 8 : index
    %c0_36 = arith.constant 0 : index
    %17 = vector.load %arg11[%c0_33, %c1_34, %c8_35, %c0_36] : memref<2x18x32x192xf32, #tpu.memory_space<vmem>>, vector<2x16x16x192xf32>
    %18 = vector.shape_cast %17 : vector<2x16x16x192xf32> to vector<512x192xf32>
    %c1_37 = arith.constant 1 : index
    %c0_38 = arith.constant 0 : index
    %c0_39 = arith.constant 0 : index
    %19 = vector.load %arg1[%c1_37, %c0_38, %c0_39] : memref<3x192x64xf32, #tpu.memory_space<vmem>>, vector<1x192x64xf32>
    %20 = vector.shape_cast %19 : vector<1x192x64xf32> to vector<192x64xf32>
    %cst_40 = arith.constant dense<0.000000e+00> : vector<512x64xf32>
    %21 = tpu.matmul %18, %20, %cst_40 {dimension_numbers = #tpu.dot_dimension_numbers<[1], [0], [0], [1], [0, 0, 1, 1], [], []>} : vector<512x192xf32>, vector<192x64xf32>, vector<512x64xf32> -> vector<512x64xf32>
    %22 = arith.addf %16, %21 : vector<512x64xf32>
    %c0_41 = arith.constant 0 : index
    %c2 = arith.constant 2 : index
    %c8_42 = arith.constant 8 : index
    %c0_43 = arith.constant 0 : index
    %23 = vector.load %arg11[%c0_41, %c2, %c8_42, %c0_43] : memref<2x18x32x192xf32, #tpu.memory_space<vmem>>, vector<2x16x16x192xf32>
    %24 = vector.shape_cast %23 : vector<2x16x16x192xf32> to vector<512x192xf32>
    %c2_44 = arith.constant 2 : index
    %c0_45 = arith.constant 0 : index
    %c0_46 = arith.constant 0 : index
    %25 = vector.load %arg1[%c2_44, %c0_45, %c0_46] : memref<3x192x64xf32, #tpu.memory_space<vmem>>, vector<1x192x64xf32>
    %26 = vector.shape_cast %25 : vector<1x192x64xf32> to vector<192x64xf32>
    %cst_47 = arith.constant dense<0.000000e+00> : vector<512x64xf32>
    %27 = tpu.matmul %24, %26, %cst_47 {dimension_numbers = #tpu.dot_dimension_numbers<[1], [0], [0], [1], [0, 0, 1, 1], [], []>} : vector<512x192xf32>, vector<192x64xf32>, vector<512x64xf32> -> vector<512x64xf32>
    %28 = arith.addf %22, %27 : vector<512x64xf32>
    %c0_48 = arith.constant 0 : index
    %c0_49 = arith.constant 0 : index
    %29 = vector.load %arg2[%c0_48, %c0_49] : memref<1x64xf32, #tpu.memory_space<vmem>>, vector<1x64xf32>
    %30 = vector.broadcast %29 : vector<1x64xf32> to vector<512x64xf32>
    %31 = arith.mulf %28, %30 : vector<512x64xf32>
    %c0_50 = arith.constant 0 : index
    %c0_51 = arith.constant 0 : index
    %32 = vector.load %arg3[%c0_50, %c0_51] : memref<1x64xf32, #tpu.memory_space<vmem>>, vector<1x64xf32>
    %33 = vector.broadcast %32 : vector<1x64xf32> to vector<512x64xf32>
    %34 = arith.addf %31, %33 : vector<512x64xf32>
    %cst_52 = arith.constant 0.000000e+00 : f32
    %35 = vector.broadcast %cst_52 : f32 to vector<512x64xf32>
    %36 = arith.maximumf %34, %35 : vector<512x64xf32>
    %37 = vector.shape_cast %36 : vector<512x64xf32> to vector<2x16x16x64xf32>
    %cst_53 = arith.constant 0.000000e+00 : f32
    %38 = vector.broadcast %cst_53 : f32 to vector<2x1x16x192xf32>
    %c0_54 = arith.constant 0 : index
    %c0_55 = arith.constant 0 : index
    %c8_56 = arith.constant 8 : index
    %c0_57 = arith.constant 0 : index
    %39 = vector.load %arg12[%c0_54, %c0_55, %c8_56, %c0_57] : memref<2x18x32x192xf32, #tpu.memory_space<vmem>>, vector<2x1x16x192xf32>
    tpu.vector_store %arg12[%c0_54, %c0_55, %c8_56, %c0_57], %38 {strides = array<i32>} : memref<2x18x32x192xf32, #tpu.memory_space<vmem>>, vector<2x1x16x192xf32>,
    %c0_58 = arith.constant 0 : index
    %c17_59 = arith.constant 17 : index
    %c8_60 = arith.constant 8 : index
    %c0_61 = arith.constant 0 : index
    %40 = vector.load %arg12[%c0_58, %c17_59, %c8_60, %c0_61] : memref<2x18x32x192xf32, #tpu.memory_space<vmem>>, vector<2x1x16x192xf32>
    tpu.vector_store %arg12[%c0_58, %c17_59, %c8_60, %c0_61], %38 {strides = array<i32>} : memref<2x18x32x192xf32, #tpu.memory_space<vmem>>, vector<2x1x16x192xf32>,
    %cst_62 = arith.constant 0.000000e+00 : f32
    %41 = vector.broadcast %cst_62 : f32 to vector<2x16x1x64xf32>
    %c0_63 = arith.constant 0 : index
    %c1_64 = arith.constant 1 : index
    %c8_65 = arith.constant 8 : index
    %c0_66 = arith.constant 0 : index
    %42 = vector.load %arg12[%c0_63, %c1_64, %c8_65, %c0_66] : memref<2x18x32x192xf32, #tpu.memory_space<vmem>>, vector<2x16x1x64xf32>
    tpu.vector_store %arg12[%c0_63, %c1_64, %c8_65, %c0_66], %41 {strides = array<i32>} : memref<2x18x32x192xf32, #tpu.memory_space<vmem>>, vector<2x16x1x64xf32>,
    %c0_67 = arith.constant 0 : index
    %c1_68 = arith.constant 1 : index
    %c23_69 = arith.constant 23 : index
    %c128_70 = arith.constant 128 : index
    %43 = vector.load %arg12[%c0_67, %c1_68, %c23_69, %c128_70] : memref<2x18x32x192xf32, #tpu.memory_space<vmem>>, vector<2x16x1x64xf32>
    tpu.vector_store %arg12[%c0_67, %c1_68, %c23_69, %c128_70], %41 {strides = array<i32>} : memref<2x18x32x192xf32, #tpu.memory_space<vmem>>, vector<2x16x1x64xf32>,
    %c0_71 = arith.constant 0 : index
    %c1_72 = arith.constant 1 : index
    %c9_73 = arith.constant 9 : index
    %c0_74 = arith.constant 0 : index
    %44 = vector.load %arg12[%c0_71, %c1_72, %c9_73, %c0_74] : memref<2x18x32x192xf32, #tpu.memory_space<vmem>>, vector<2x16x16x64xf32>
    tpu.vector_store %arg12[%c0_71, %c1_72, %c9_73, %c0_74], %37 {strides = array<i32>} : memref<2x18x32x192xf32, #tpu.memory_space<vmem>>, vector<2x16x16x64xf32>,
    %c0_75 = arith.constant 0 : index
    %c1_76 = arith.constant 1 : index
    %c8_77 = arith.constant 8 : index
    %c64_78 = arith.constant 64 : index
    %45 = vector.load %arg12[%c0_75, %c1_76, %c8_77, %c64_78] : memref<2x18x32x192xf32, #tpu.memory_space<vmem>>, vector<2x16x16x64xf32>
    tpu.vector_store %arg12[%c0_75, %c1_76, %c8_77, %c64_78], %37 {strides = array<i32>} : memref<2x18x32x192xf32, #tpu.memory_space<vmem>>, vector<2x16x16x64xf32>,
    %c0_79 = arith.constant 0 : index
    %c1_80 = arith.constant 1 : index
    %c7_81 = arith.constant 7 : index
    %c128_82 = arith.constant 128 : index
    %46 = vector.load %arg12[%c0_79, %c1_80, %c7_81, %c128_82] : memref<2x18x32x192xf32, #tpu.memory_space<vmem>>, vector<2x16x16x64xf32>
    tpu.vector_store %arg12[%c0_79, %c1_80, %c7_81, %c128_82], %37 {strides = array<i32>} : memref<2x18x32x192xf32, #tpu.memory_space<vmem>>, vector<2x16x16x64xf32>,
    %cst_83 = arith.constant 0.000000e+00 : f32
    %47 = vector.broadcast %cst_83 : f32 to vector<512x32xf32>
    %c0_84 = arith.constant 0 : index
    %c0_85 = arith.constant 0 : index
    %c8_86 = arith.constant 8 : index
    %c0_87 = arith.constant 0 : index
    %48 = vector.load %arg12[%c0_84, %c0_85, %c8_86, %c0_87] : memref<2x18x32x192xf32, #tpu.memory_space<vmem>>, vector<2x16x16x192xf32>
    %49 = vector.shape_cast %48 : vector<2x16x16x192xf32> to vector<512x192xf32>
    %c0_88 = arith.constant 0 : index
    %c0_89 = arith.constant 0 : index
    %c0_90 = arith.constant 0 : index
    %50 = vector.load %arg4[%c0_88, %c0_89, %c0_90] : memref<3x192x32xf32, #tpu.memory_space<vmem>>, vector<1x192x32xf32>
    %51 = vector.shape_cast %50 : vector<1x192x32xf32> to vector<192x32xf32>
    %cst_91 = arith.constant dense<0.000000e+00> : vector<512x32xf32>
    %52 = tpu.matmul %49, %51, %cst_91 {dimension_numbers = #tpu.dot_dimension_numbers<[1], [0], [0], [1], [0, 0, 1, 1], [], []>} : vector<512x192xf32>, vector<192x32xf32>, vector<512x32xf32> -> vector<512x32xf32>
    %53 = arith.addf %47, %52 : vector<512x32xf32>
    %c0_92 = arith.constant 0 : index
    %c1_93 = arith.constant 1 : index
    %c8_94 = arith.constant 8 : index
    %c0_95 = arith.constant 0 : index
    %54 = vector.load %arg12[%c0_92, %c1_93, %c8_94, %c0_95] : memref<2x18x32x192xf32, #tpu.memory_space<vmem>>, vector<2x16x16x192xf32>
    %55 = vector.shape_cast %54 : vector<2x16x16x192xf32> to vector<512x192xf32>
    %c1_96 = arith.constant 1 : index
    %c0_97 = arith.constant 0 : index
    %c0_98 = arith.constant 0 : index
    %56 = vector.load %arg4[%c1_96, %c0_97, %c0_98] : memref<3x192x32xf32, #tpu.memory_space<vmem>>, vector<1x192x32xf32>
    %57 = vector.shape_cast %56 : vector<1x192x32xf32> to vector<192x32xf32>
    %cst_99 = arith.constant dense<0.000000e+00> : vector<512x32xf32>
    %58 = tpu.matmul %55, %57, %cst_99 {dimension_numbers = #tpu.dot_dimension_numbers<[1], [0], [0], [1], [0, 0, 1, 1], [], []>} : vector<512x192xf32>, vector<192x32xf32>, vector<512x32xf32> -> vector<512x32xf32>
    %59 = arith.addf %53, %58 : vector<512x32xf32>
    %c0_100 = arith.constant 0 : index
    %c2_101 = arith.constant 2 : index
    %c8_102 = arith.constant 8 : index
    %c0_103 = arith.constant 0 : index
    %60 = vector.load %arg12[%c0_100, %c2_101, %c8_102, %c0_103] : memref<2x18x32x192xf32, #tpu.memory_space<vmem>>, vector<2x16x16x192xf32>
    %61 = vector.shape_cast %60 : vector<2x16x16x192xf32> to vector<512x192xf32>
    %c2_104 = arith.constant 2 : index
    %c0_105 = arith.constant 0 : index
    %c0_106 = arith.constant 0 : index
    %62 = vector.load %arg4[%c2_104, %c0_105, %c0_106] : memref<3x192x32xf32, #tpu.memory_space<vmem>>, vector<1x192x32xf32>
    %63 = vector.shape_cast %62 : vector<1x192x32xf32> to vector<192x32xf32>
    %cst_107 = arith.constant dense<0.000000e+00> : vector<512x32xf32>
    %64 = tpu.matmul %61, %63, %cst_107 {dimension_numbers = #tpu.dot_dimension_numbers<[1], [0], [0], [1], [0, 0, 1, 1], [], []>} : vector<512x192xf32>, vector<192x32xf32>, vector<512x32xf32> -> vector<512x32xf32>
    %65 = arith.addf %59, %64 : vector<512x32xf32>
    %c0_108 = arith.constant 0 : index
    %c0_109 = arith.constant 0 : index
    %66 = vector.load %arg5[%c0_108, %c0_109] : memref<1x32xf32, #tpu.memory_space<vmem>>, vector<1x32xf32>
    %67 = vector.broadcast %66 : vector<1x32xf32> to vector<512x32xf32>
    %68 = arith.mulf %65, %67 : vector<512x32xf32>
    %c0_110 = arith.constant 0 : index
    %c0_111 = arith.constant 0 : index
    %69 = vector.load %arg6[%c0_110, %c0_111] : memref<1x32xf32, #tpu.memory_space<vmem>>, vector<1x32xf32>
    %70 = vector.broadcast %69 : vector<1x32xf32> to vector<512x32xf32>
    %71 = arith.addf %68, %70 : vector<512x32xf32>
    %cst_112 = arith.constant 0.000000e+00 : f32
    %72 = vector.broadcast %cst_112 : f32 to vector<512x32xf32>
    %73 = arith.maximumf %71, %72 : vector<512x32xf32>
    %74 = vector.shape_cast %73 : vector<512x32xf32> to vector<2x16x16x32xf32>
    %cst_113 = arith.constant 0.000000e+00 : f32
    %75 = vector.broadcast %cst_113 : f32 to vector<2x1x16x96xf32>
    %c0_114 = arith.constant 0 : index
    %c0_115 = arith.constant 0 : index
    %c8_116 = arith.constant 8 : index
    %c0_117 = arith.constant 0 : index
    %76 = vector.load %arg13[%c0_114, %c0_115, %c8_116, %c0_117] : memref<2x18x32x96xf32, #tpu.memory_space<vmem>>, vector<2x1x16x96xf32>
    tpu.vector_store %arg13[%c0_114, %c0_115, %c8_116, %c0_117], %75 {strides = array<i32>} : memref<2x18x32x96xf32, #tpu.memory_space<vmem>>, vector<2x1x16x96xf32>,
    %c0_118 = arith.constant 0 : index
    %c17_119 = arith.constant 17 : index
    %c8_120 = arith.constant 8 : index
    %c0_121 = arith.constant 0 : index
    %77 = vector.load %arg13[%c0_118, %c17_119, %c8_120, %c0_121] : memref<2x18x32x96xf32, #tpu.memory_space<vmem>>, vector<2x1x16x96xf32>
    tpu.vector_store %arg13[%c0_118, %c17_119, %c8_120, %c0_121], %75 {strides = array<i32>} : memref<2x18x32x96xf32, #tpu.memory_space<vmem>>, vector<2x1x16x96xf32>,
    %cst_122 = arith.constant 0.000000e+00 : f32
    %78 = vector.broadcast %cst_122 : f32 to vector<2x16x1x32xf32>
    %c0_123 = arith.constant 0 : index
    %c1_124 = arith.constant 1 : index
    %c8_125 = arith.constant 8 : index
    %c0_126 = arith.constant 0 : index
    %79 = vector.load %arg13[%c0_123, %c1_124, %c8_125, %c0_126] : memref<2x18x32x96xf32, #tpu.memory_space<vmem>>, vector<2x16x1x32xf32>
    tpu.vector_store %arg13[%c0_123, %c1_124, %c8_125, %c0_126], %78 {strides = array<i32>} : memref<2x18x32x96xf32, #tpu.memory_space<vmem>>, vector<2x16x1x32xf32>,
    %c0_127 = arith.constant 0 : index
    %c1_128 = arith.constant 1 : index
    %c23_129 = arith.constant 23 : index
    %c64_130 = arith.constant 64 : index
    %80 = vector.load %arg13[%c0_127, %c1_128, %c23_129, %c64_130] : memref<2x18x32x96xf32, #tpu.memory_space<vmem>>, vector<2x16x1x32xf32>
    tpu.vector_store %arg13[%c0_127, %c1_128, %c23_129, %c64_130], %78 {strides = array<i32>} : memref<2x18x32x96xf32, #tpu.memory_space<vmem>>, vector<2x16x1x32xf32>,
    %c0_131 = arith.constant 0 : index
    %c1_132 = arith.constant 1 : index
    %c9_133 = arith.constant 9 : index
    %c0_134 = arith.constant 0 : index
    %81 = vector.load %arg13[%c0_131, %c1_132, %c9_133, %c0_134] : memref<2x18x32x96xf32, #tpu.memory_space<vmem>>, vector<2x16x16x32xf32>
    tpu.vector_store %arg13[%c0_131, %c1_132, %c9_133, %c0_134], %74 {strides = array<i32>} : memref<2x18x32x96xf32, #tpu.memory_space<vmem>>, vector<2x16x16x32xf32>,
    %c0_135 = arith.constant 0 : index
    %c1_136 = arith.constant 1 : index
    %c8_137 = arith.constant 8 : index
    %c32 = arith.constant 32 : index
    %82 = vector.load %arg13[%c0_135, %c1_136, %c8_137, %c32] : memref<2x18x32x96xf32, #tpu.memory_space<vmem>>, vector<2x16x16x32xf32>
    tpu.vector_store %arg13[%c0_135, %c1_136, %c8_137, %c32], %74 {strides = array<i32>} : memref<2x18x32x96xf32, #tpu.memory_space<vmem>>, vector<2x16x16x32xf32>,
    %c0_138 = arith.constant 0 : index
    %c1_139 = arith.constant 1 : index
    %c7_140 = arith.constant 7 : index
    %c64_141 = arith.constant 64 : index
    %83 = vector.load %arg13[%c0_138, %c1_139, %c7_140, %c64_141] : memref<2x18x32x96xf32, #tpu.memory_space<vmem>>, vector<2x16x16x32xf32>
    tpu.vector_store %arg13[%c0_138, %c1_139, %c7_140, %c64_141], %74 {strides = array<i32>} : memref<2x18x32x96xf32, #tpu.memory_space<vmem>>, vector<2x16x16x32xf32>,
    %cst_142 = arith.constant 0.000000e+00 : f32
    %84 = vector.broadcast %cst_142 : f32 to vector<512x50xf32>
    %c0_143 = arith.constant 0 : index
    %c0_144 = arith.constant 0 : index
    %c8_145 = arith.constant 8 : index
    %c0_146 = arith.constant 0 : index
    %85 = vector.load %arg13[%c0_143, %c0_144, %c8_145, %c0_146] : memref<2x18x32x96xf32, #tpu.memory_space<vmem>>, vector<2x16x16x96xf32>
    %86 = vector.shape_cast %85 : vector<2x16x16x96xf32> to vector<512x96xf32>
    %c0_147 = arith.constant 0 : index
    %c0_148 = arith.constant 0 : index
    %c0_149 = arith.constant 0 : index
    %87 = vector.load %arg7[%c0_147, %c0_148, %c0_149] : memref<3x96x50xf32, #tpu.memory_space<vmem>>, vector<1x96x50xf32>
    %88 = vector.shape_cast %87 : vector<1x96x50xf32> to vector<96x50xf32>
    %cst_150 = arith.constant dense<0.000000e+00> : vector<512x50xf32>
    %89 = tpu.matmul %86, %88, %cst_150 {dimension_numbers = #tpu.dot_dimension_numbers<[1], [0], [0], [1], [0, 0, 1, 1], [], []>} : vector<512x96xf32>, vector<96x50xf32>, vector<512x50xf32> -> vector<512x50xf32>
    %90 = arith.addf %84, %89 : vector<512x50xf32>
    %c0_151 = arith.constant 0 : index
    %c1_152 = arith.constant 1 : index
    %c8_153 = arith.constant 8 : index
    %c0_154 = arith.constant 0 : index
    %91 = vector.load %arg13[%c0_151, %c1_152, %c8_153, %c0_154] : memref<2x18x32x96xf32, #tpu.memory_space<vmem>>, vector<2x16x16x96xf32>
    %92 = vector.shape_cast %91 : vector<2x16x16x96xf32> to vector<512x96xf32>
    %c1_155 = arith.constant 1 : index
    %c0_156 = arith.constant 0 : index
    %c0_157 = arith.constant 0 : index
    %93 = vector.load %arg7[%c1_155, %c0_156, %c0_157] : memref<3x96x50xf32, #tpu.memory_space<vmem>>, vector<1x96x50xf32>
    %94 = vector.shape_cast %93 : vector<1x96x50xf32> to vector<96x50xf32>
    %cst_158 = arith.constant dense<0.000000e+00> : vector<512x50xf32>
    %95 = tpu.matmul %92, %94, %cst_158 {dimension_numbers = #tpu.dot_dimension_numbers<[1], [0], [0], [1], [0, 0, 1, 1], [], []>} : vector<512x96xf32>, vector<96x50xf32>, vector<512x50xf32> -> vector<512x50xf32>
    %96 = arith.addf %90, %95 : vector<512x50xf32>
    %c0_159 = arith.constant 0 : index
    %c2_160 = arith.constant 2 : index
    %c8_161 = arith.constant 8 : index
    %c0_162 = arith.constant 0 : index
    %97 = vector.load %arg13[%c0_159, %c2_160, %c8_161, %c0_162] : memref<2x18x32x96xf32, #tpu.memory_space<vmem>>, vector<2x16x16x96xf32>
    %98 = vector.shape_cast %97 : vector<2x16x16x96xf32> to vector<512x96xf32>
    %c2_163 = arith.constant 2 : index
    %c0_164 = arith.constant 0 : index
    %c0_165 = arith.constant 0 : index
    %99 = vector.load %arg7[%c2_163, %c0_164, %c0_165] : memref<3x96x50xf32, #tpu.memory_space<vmem>>, vector<1x96x50xf32>
    %100 = vector.shape_cast %99 : vector<1x96x50xf32> to vector<96x50xf32>
    %cst_166 = arith.constant dense<0.000000e+00> : vector<512x50xf32>
    %101 = tpu.matmul %98, %100, %cst_166 {dimension_numbers = #tpu.dot_dimension_numbers<[1], [0], [0], [1], [0, 0, 1, 1], [], []>} : vector<512x96xf32>, vector<96x50xf32>, vector<512x50xf32> -> vector<512x50xf32>
    %102 = arith.addf %96, %101 : vector<512x50xf32>
    %c0_167 = arith.constant 0 : index
    %c0_168 = arith.constant 0 : index
    %103 = vector.load %arg8[%c0_167, %c0_168] : memref<1x50xf32, #tpu.memory_space<vmem>>, vector<1x50xf32>
    %104 = vector.broadcast %103 : vector<1x50xf32> to vector<512x50xf32>
    %105 = arith.mulf %102, %104 : vector<512x50xf32>
    %c0_169 = arith.constant 0 : index
    %c0_170 = arith.constant 0 : index
    %106 = vector.load %arg9[%c0_169, %c0_170] : memref<1x50xf32, #tpu.memory_space<vmem>>, vector<1x50xf32>
    %107 = vector.broadcast %106 : vector<1x50xf32> to vector<512x50xf32>
    %108 = arith.addf %105, %107 : vector<512x50xf32>
    %cst_171 = arith.constant 0.000000e+00 : f32
    %109 = vector.broadcast %cst_171 : f32 to vector<512x50xf32>
    %110 = arith.maximumf %108, %109 : vector<512x50xf32>
    %111 = vector.shape_cast %110 : vector<512x50xf32> to vector<2x16x16x50xf32>
    %c0_172 = arith.constant 0 : index
    %c0_173 = arith.constant 0 : index
    %c0_174 = arith.constant 0 : index
    %c0_175 = arith.constant 0 : index
    %112 = vector.load %arg10[%c0_172, %c0_173, %c0_174, %c0_175] : memref<2x16x16x50xf32, #tpu.memory_space<vmem>>, vector<2x16x16x50xf32>
    tpu.vector_store %arg10[%c0_172, %c0_173, %c0_174, %c0_175], %111 {strides = array<i32>} : memref<2x16x16x50xf32, #tpu.memory_space<vmem>>, vector<2x16x16x50xf32>,
    return
  }
}

</mosaic_0001>

<llo_original>
// kernel: decoder_ds_forward.1
$region0: #{decoder_ds_forward.1}
  #allocation0 [shape = 'u32[]', space=smem, size = 0x4, offset = 0x4, fixed_abs, tag = 'smem constant byte address 0x4 - core index']
  #allocation1 [shape = 'u32[144,128]{1,0:T(1,128)}', space=vmem, size = 0x12000, scoped, tag = 'internal scratch']
  #allocation2 [shape = 'f32[2,18,32,192]{3,2,1,0:T(8,128)}', space=vmem, size = 0x120000, scoped, tag = 'scratch operand']
  #allocation3 [shape = 'f32[2,18,32,192]{3,2,1,0:T(8,128)}', space=vmem, size = 0x120000, scoped, tag = 'scratch operand']
  #allocation4 [shape = 'f32[2,18,32,96]{3,2,1,0:T(8,128)}', space=vmem, size = 0x90000, scoped, tag = 'scratch operand']
  %s0 = inlined_call_operand.vmem [shape: f32[2,16,16,64], index: 0, kind: input, shape index: {}]
  %s1 = inlined_call_operand.vmem [shape: f32[3,192,64], index: 1, kind: input, shape index: {}]
  %s2 = inlined_call_operand.vmem [shape: f32[1,64], index: 2, kind: input, shape index: {}]
  %s3 = inlined_call_operand.vmem [shape: f32[1,64], index: 3, kind: input, shape index: {}]
  %s4 = inlined_call_operand.vmem [shape: f32[3,192,32], index: 4, kind: input, shape index: {}]
  %s5 = inlined_call_operand.vmem [shape: f32[1,32], index: 5, kind: input, shape index: {}]
  %s6 = inlined_call_operand.vmem [shape: f32[1,32], index: 6, kind: input, shape index: {}]
  %s7 = inlined_call_operand.vmem [shape: f32[3,96,50], index: 7, kind: input, shape index: {}]
  %s8 = inlined_call_operand.vmem [shape: f32[1,50], index: 8, kind: input, shape index: {}]
  %s9 = inlined_call_operand.vmem [shape: f32[1,50], index: 9, kind: input, shape index: {}]
  %s10 = inlined_call_operand.hbm [shape: f32[2,16,16,50], index: 10, kind: output, shape index: {}]
  %s11 = sld [smem:[#allocation0]]
  $region50: #{decoder_ds_forward.1} parent=0
    _
  %s13 = ssub.s32 1, %s11
  %s14 = scalar_select 0, %s13, %s11
  $region1: #{decoder_ds_forward.1} parent=0
    #allocation5 [shape = 'u8[262144]{0}', space=vmem, size = 0x40000, scoped, tag = 'output window, operand 0, single buffered']
    #allocation6 [shape = 's32[1]{0}', space=sflag, size = 0x4, scoped, tag = 'scoped memory for decoder_ds_forward.1']
    %15 = vsyncpa [#allocation6], 0
    // Predicated region
    $region2: #{decoder_ds_forward.1} parent=1 // pred_check
      _
    $region3: #{decoder_ds_forward.1} parent=1 // pred_check_branch
      %17 = sbr.rel (0) target = $region5
    $region4: #{decoder_ds_forward.1} parent=1 // pred_region
      _
    $region5: #{decoder_ds_forward.1} parent=1 // pred_fallthru
      _
    // Predicated region
    $region6: #{decoder_ds_forward.1} parent=1 // pred_check
      _
    $region7: #{decoder_ds_forward.1} parent=1 // pred_check_branch
      %19 = sbr.rel (0) target = $region9
    $region8: #{decoder_ds_forward.1} parent=1 // pred_region
      _
    $region9: #{decoder_ds_forward.1} parent=1 // pred_fallthru
      _
    // Predicated region
    $region10: #{decoder_ds_forward.1} parent=1 // pred_check
      _
    $region11: #{decoder_ds_forward.1} parent=1 // pred_check_branch
      %21 = sbr.rel (0) target = $region13
    $region12: #{decoder_ds_forward.1} parent=1 // pred_region
      _
    $region13: #{decoder_ds_forward.1} parent=1 // pred_fallthru
      _
    // Predicated region
    $region14: #{decoder_ds_forward.1} parent=1 // pred_check
      _
    $region15: #{decoder_ds_forward.1} parent=1 // pred_check_branch
      %23 = sbr.rel (0) target = $region17
    $region16: #{decoder_ds_forward.1} parent=1 // pred_region
      _
    $region17: #{decoder_ds_forward.1} parent=1 // pred_fallthru
      _
    // Predicated region
    $region18: #{decoder_ds_forward.1} parent=1 // pred_check
      _
    $region19: #{decoder_ds_forward.1} parent=1 // pred_check_branch
      %25 = sbr.rel (0) target = $region21
    $region20: #{decoder_ds_forward.1} parent=1 // pred_region
      _
    $region21: #{decoder_ds_forward.1} parent=1 // pred_fallthru
      _
    // Predicated region
    $region22: #{decoder_ds_forward.1} parent=1 // pred_check
      _
    $region23: #{decoder_ds_forward.1} parent=1 // pred_check_branch
      %27 = sbr.rel (0) target = $region25
    $region24: #{decoder_ds_forward.1} parent=1 // pred_region
      _
    $region25: #{decoder_ds_forward.1} parent=1 // pred_fallthru
      _
    // Predicated region
    $region26: #{decoder_ds_forward.1} parent=1 // pred_check
      _
    $region27: #{decoder_ds_forward.1} parent=1 // pred_check_branch
      %29 = sbr.rel (0) target = $region29
    $region28: #{decoder_ds_forward.1} parent=1 // pred_region
      _
    $region29: #{decoder_ds_forward.1} parent=1 // pred_fallthru
      _
    // Predicated region
    $region30: #{decoder_ds_forward.1} parent=1 // pred_check
      _
    $region31: #{decoder_ds_forward.1} parent=1 // pred_check_branch
      %31 = sbr.rel (0) target = $region33
    $region32: #{decoder_ds_forward.1} parent=1 // pred_region
      _
    $region33: #{decoder_ds_forward.1} parent=1 // pred_fallthru
      _
    // Predicated region
    $region34: #{decoder_ds_forward.1} parent=1 // pred_check
      _
    $region35: #{decoder_ds_forward.1} parent=1 // pred_check_branch
      %33 = sbr.rel (0) target = $region37
    $region36: #{decoder_ds_forward.1} parent=1 // pred_region
      _
    $region37: #{decoder_ds_forward.1} parent=1 // pred_fallthru
      _
    // Predicated region
    $region38: #{decoder_ds_forward.1} parent=1 // pred_check
      _
    $region39: #{decoder_ds_forward.1} parent=1 // pred_check_branch
      %35 = sbr.rel (0) target = $region41
    $region40: #{decoder_ds_forward.1} parent=1 // pred_region
      _
    $region41: #{decoder_ds_forward.1} parent=1 // pred_fallthru
      _
    %v36 = vld [vmem:[%s0] sm:$0xff]
    %v37 = vld [vmem:[%s0 + $0x8] sm:$0xff]
    %v38 = vld [vmem:[%s0 + $0x10] sm:$0xff]
    %v39 = vld [vmem:[%s0 + $0x18] sm:$0xff]
    %v40 = vld [vmem:[%s0 + $0x20] sm:$0xff]
    %v41 = vld [vmem:[%s0 + $0x28] sm:$0xff]
    %v42 = vld [vmem:[%s0 + $0x30] sm:$0xff]
    %v43 = vld [vmem:[%s0 + $0x38] sm:$0xff]
    %v44 = vld [vmem:[%s0 + $0x40] sm:$0xff]
    %v45 = vld [vmem:[%s0 + $0x48] sm:$0xff]
    %v46 = vld [vmem:[%s0 + $0x50] sm:$0xff]
    %v47 = vld [vmem:[%s0 + $0x58] sm:$0xff]
    %v48 = vld [vmem:[%s0 + $0x60] sm:$0xff]
    %v49 = vld [vmem:[%s0 + $0x68] sm:$0xff]
    %v50 = vld [vmem:[%s0 + $0x70] sm:$0xff]
    %v51 = vld [vmem:[%s0 + $0x78] sm:$0xff]
    %v52 = vld [vmem:[%s0 + $0x80] sm:$0xff]
    %v53 = vld [vmem:[%s0 + $0x88] sm:$0xff]
    %v54 = vld [vmem:[%s0 + $0x90] sm:$0xff]
    %v55 = vld [vmem:[%s0 + $0x98] sm:$0xff]
    %v56 = vld [vmem:[%s0 + $0xa0] sm:$0xff]
    %v57 = vld [vmem:[%s0 + $0xa8] sm:$0xff]
    %v58 = vld [vmem:[%s0 + $0xb0] sm:$0xff]
    %v59 = vld [vmem:[%s0 + $0xb8] sm:$0xff]
    %v60 = vld [vmem:[%s0 + $0xc0] sm:$0xff]
    %v61 = vld [vmem:[%s0 + $0xc8] sm:$0xff]
    %v62 = vld [vmem:[%s0 + $0xd0] sm:$0xff]
    %v63 = vld [vmem:[%s0 + $0xd8] sm:$0xff]
    %v64 = vld [vmem:[%s0 + $0xe0] sm:$0xff]
    %v65 = vld [vmem:[%s0 + $0xe8] sm:$0xff]
    %v66 = vld [vmem:[%s0 + $0xf0] sm:$0xff]
    %v67 = vld [vmem:[%s0 + $0xf8] sm:$0xff]
    %v68 = vld [vmem:[%s0 + $0x100] sm:$0xff]
    %v69 = vld [vmem:[%s0 + $0x108] sm:$0xff]
    %v70 = vld [vmem:[%s0 + $0x110] sm:$0xff]
    %v71 = vld [vmem:[%s0 + $0x118] sm:$0xff]
    %v72 = vld [vmem:[%s0 + $0x120] sm:$0xff]
    %v73 = vld [vmem:[%s0 + $0x128] sm:$0xff]
    %v74 = vld [vmem:[%s0 + $0x130] sm:$0xff]
    %v75 = vld [vmem:[%s0 + $0x138] sm:$0xff]
    %v76 = vld [vmem:[%s0 + $0x140] sm:$0xff]
    %v77 = vld [vmem:[%s0 + $0x148] sm:$0xff]
    %v78 = vld [vmem:[%s0 + $0x150] sm:$0xff]
    %v79 = vld [vmem:[%s0 + $0x158] sm:$0xff]
    %v80 = vld [vmem:[%s0 + $0x160] sm:$0xff]
    %v81 = vld [vmem:[%s0 + $0x168] sm:$0xff]
    %v82 = vld [vmem:[%s0 + $0x170] sm:$0xff]
    %v83 = vld [vmem:[%s0 + $0x178] sm:$0xff]
    %v84 = vld [vmem:[%s0 + $0x180] sm:$0xff]
    %v85 = vld [vmem:[%s0 + $0x188] sm:$0xff]
    %v86 = vld [vmem:[%s0 + $0x190] sm:$0xff]
    %v87 = vld [vmem:[%s0 + $0x198] sm:$0xff]
    %v88 = vld [vmem:[%s0 + $0x1a0] sm:$0xff]
    %v89 = vld [vmem:[%s0 + $0x1a8] sm:$0xff]
    %v90 = vld [vmem:[%s0 + $0x1b0] sm:$0xff]
    %v91 = vld [vmem:[%s0 + $0x1b8] sm:$0xff]
    %v92 = vld [vmem:[%s0 + $0x1c0] sm:$0xff]
    %v93 = vld [vmem:[%s0 + $0x1c8] sm:$0xff]
    %v94 = vld [vmem:[%s0 + $0x1d0] sm:$0xff]
    %v95 = vld [vmem:[%s0 + $0x1d8] sm:$0xff]
    %v96 = vld [vmem:[%s0 + $0x1e0] sm:$0xff]
    %v97 = vld [vmem:[%s0 + $0x1e8] sm:$0xff]
    %v98 = vld [vmem:[%s0 + $0x1f0] sm:$0xff]
    %v99 = vld [vmem:[%s0 + $0x1f8] sm:$0xff]
    %100 = vst [vmem:[#allocation2 + $0x10] sm:$0xff] 0.0
    %vm101 = vcmask 523264
    %102 = vst.msk [vmem:[#allocation2 + $0x18] sm:$0xff] %vm101, 0.0
    %103 = vst [vmem:[#allocation2 + $0x20] sm:$0xff] 0.0
    %104 = vst.msk [vmem:[#allocation2 + $0x28] sm:$0xff] %vm101, 0.0
    %105 = vst [vmem:[#allocation2 + $0x490] sm:$0xff] 0.0
    %106 = vst.msk [vmem:[#allocation2 + $0x498] sm:$0xff] %vm101, 0.0
    %107 = vst [vmem:[#allocation2 + $0x4a0] sm:$0xff] 0.0
    %108 = vst.msk [vmem:[#allocation2 + $0x4a8] sm:$0xff] %vm101, 0.0
    %s109 = scalar_lea.vmem [#allocation2], 1088
    %110 = vst [vmem:[%s109 + $0x10] sm:$0xff] 0.0
    %111 = vst.msk [vmem:[%s109 + $0x18] sm:$0xff] %vm101, 0.0
    %112 = vst [vmem:[%s109 + $0x20] sm:$0xff] 0.0
    %113 = vst.msk [vmem:[%s109 + $0x28] sm:$0xff] %vm101, 0.0
    %114 = vst [vmem:[%s109 + $0x490] sm:$0xff] 0.0
    %115 = vst.msk [vmem:[%s109 + $0x498] sm:$0xff] %vm101, 0.0
    %116 = vst [vmem:[%s109 + $0x4a0] sm:$0xff] 0.0
    %117 = vst.msk [vmem:[%s109 + $0x4a8] sm:$0xff] %vm101, 0.0
    %s118 = scalar_lea.vmem [#allocation2], 64
    %vm119 = vcmask 516096
    %120 = vst.msk [vmem:[%s118 + $0x10] sm:$0x1] %vm119, 0.0
    %121 = vst.msk [vmem:[%s118 + $0x50] sm:$0x1] %vm119, 0.0
    %122 = vst.msk [vmem:[%s118 + $0x90] sm:$0x1] %vm119, 0.0
    %123 = vst.msk [vmem:[%s118 + $0xd0] sm:$0x1] %vm119, 0.0
    %124 = vst.msk [vmem:[%s118 + $0x110] sm:$0x1] %vm119, 0.0
    %125 = vst.msk [vmem:[%s118 + $0x150] sm:$0x1] %vm119, 0.0
    %126 = vst.msk [vmem:[%s118 + $0x190] sm:$0x1] %vm119, 0.0
    %127 = vst.msk [vmem:[%s118 + $0x1d0] sm:$0x1] %vm119, 0.0
    %128 = vst.msk [vmem:[%s118 + $0x210] sm:$0x1] %vm119, 0.0
    %129 = vst.msk [vmem:[%s118 + $0x250] sm:$0x1] %vm119, 0.0
    %130 = vst.msk [vmem:[%s118 + $0x290] sm:$0x1] %vm119, 0.0
    %131 = vst.msk [vmem:[%s118 + $0x2d0] sm:$0x1] %vm119, 0.0
    %132 = vst.msk [vmem:[%s118 + $0x310] sm:$0x1] %vm119, 0.0
    %133 = vst.msk [vmem:[%s118 + $0x350] sm:$0x1] %vm119, 0.0
    %134 = vst.msk [vmem:[%s118 + $0x390] sm:$0x1] %vm119, 0.0
    %135 = vst.msk [vmem:[%s118 + $0x3d0] sm:$0x1] %vm119, 0.0
    %136 = vst.msk [vmem:[%s118 + $0x490] sm:$0x1] %vm119, 0.0
    %137 = vst.msk [vmem:[%s118 + $0x4d0] sm:$0x1] %vm119, 0.0
    %138 = vst.msk [vmem:[%s118 + $0x510] sm:$0x1] %vm119, 0.0
    %139 = vst.msk [vmem:[%s118 + $0x550] sm:$0x1] %vm119, 0.0
    %140 = vst.msk [vmem:[%s118 + $0x590] sm:$0x1] %vm119, 0.0
    %141 = vst.msk [vmem:[%s118 + $0x5d0] sm:$0x1] %vm119, 0.0
    %142 = vst.msk [vmem:[%s118 + $0x610] sm:$0x1] %vm119, 0.0
    %143 = vst.msk [vmem:[%s118 + $0x650] sm:$0x1] %vm119, 0.0
    %144 = vst.msk [vmem:[%s118 + $0x690] sm:$0x1] %vm119, 0.0
    %145 = vst.msk [vmem:[%s118 + $0x6d0] sm:$0x1] %vm119, 0.0
    %146 = vst.msk [vmem:[%s118 + $0x710] sm:$0x1] %vm119, 0.0
    %147 = vst.msk [vmem:[%s118 + $0x750] sm:$0x1] %vm119, 0.0
    %148 = vst.msk [vmem:[%s118 + $0x790] sm:$0x1] %vm119, 0.0
    %149 = vst.msk [vmem:[%s118 + $0x7d0] sm:$0x1] %vm119, 0.0
    %150 = vst.msk [vmem:[%s118 + $0x810] sm:$0x1] %vm119, 0.0
    %151 = vst.msk [vmem:[%s118 + $0x850] sm:$0x1] %vm119, 0.0
    %152 = vst.msk [vmem:[%s118 + $0x2f] sm:$0x1] %vm119, 0.0
    %153 = vst.msk [vmem:[%s118 + $0x6f] sm:$0x1] %vm119, 0.0
    %154 = vst.msk [vmem:[%s118 + $0xaf] sm:$0x1] %vm119, 0.0
    %155 = vst.msk [vmem:[%s118 + $0xef] sm:$0x1] %vm119, 0.0
    %156 = vst.msk [vmem:[%s118 + $0x12f] sm:$0x1] %vm119, 0.0
    %157 = vst.msk [vmem:[%s118 + $0x16f] sm:$0x1] %vm119, 0.0
    %158 = vst.msk [vmem:[%s118 + $0x1af] sm:$0x1] %vm119, 0.0
    %159 = vst.msk [vmem:[%s118 + $0x1ef] sm:$0x1] %vm119, 0.0
    %160 = vst.msk [vmem:[%s118 + $0x22f] sm:$0x1] %vm119, 0.0
    %161 = vst.msk [vmem:[%s118 + $0x26f] sm:$0x1] %vm119, 0.0
    %162 = vst.msk [vmem:[%s118 + $0x2af] sm:$0x1] %vm119, 0.0
    %163 = vst.msk [vmem:[%s118 + $0x2ef] sm:$0x1] %vm119, 0.0
    %164 = vst.msk [vmem:[%s118 + $0x32f] sm:$0x1] %vm119, 0.0
    %165 = vst.msk [vmem:[%s118 + $0x36f] sm:$0x1] %vm119, 0.0
    %166 = vst.msk [vmem:[%s118 + $0x3af] sm:$0x1] %vm119, 0.0
    %167 = vst.msk [vmem:[%s118 + $0x3ef] sm:$0x1] %vm119, 0.0
    %168 = vst.msk [vmem:[%s118 + $0x4af] sm:$0x1] %vm119, 0.0
    %169 = vst.msk [vmem:[%s118 + $0x4ef] sm:$0x1] %vm119, 0.0
    %170 = vst.msk [vmem:[%s118 + $0x52f] sm:$0x1] %vm119, 0.0
    %171 = vst.msk [vmem:[%s118 + $0x56f] sm:$0x1] %vm119, 0.0
    %172 = vst.msk [vmem:[%s118 + $0x5af] sm:$0x1] %vm119, 0.0
    %173 = vst.msk [vmem:[%s118 + $0x5ef] sm:$0x1] %vm119, 0.0
    %174 = vst.msk [vmem:[%s118 + $0x62f] sm:$0x1] %vm119, 0.0
    %175 = vst.msk [vmem:[%s118 + $0x66f] sm:$0x1] %vm119, 0.0
    %176 = vst.msk [vmem:[%s118 + $0x6af] sm:$0x1] %vm119, 0.0
    %177 = vst.msk [vmem:[%s118 + $0x6ef] sm:$0x1] %vm119, 0.0
    %178 = vst.msk [vmem:[%s118 + $0x72f] sm:$0x1] %vm119, 0.0
    %179 = vst.msk [vmem:[%s118 + $0x76f] sm:$0x1] %vm119, 0.0
    %180 = vst.msk [vmem:[%s118 + $0x7af] sm:$0x1] %vm119, 0.0
    %181 = vst.msk [vmem:[%s118 + $0x7ef] sm:$0x1] %vm119, 0.0
    %182 = vst.msk [vmem:[%s118 + $0x82f] sm:$0x1] %vm119, 0.0
    %183 = vst.msk [vmem:[%s118 + $0x86f] sm:$0x1] %vm119, 0.0
    %vm248 = vcmask 1040384
    %v249 = vrot.slane %v36, 7
    %v250 = vrot.slane %v37, 7
    %v251 = vsel %vm248, %v249, %v250
    %v252 = vrot.slane %v38, 7
    %v253 = vrot.slane %v39, 7
    %v254 = vsel %vm248, %v252, %v253
    %v255 = vrot.slane %v40, 7
    %v256 = vrot.slane %v41, 7
    %v257 = vsel %vm248, %v255, %v256
    %v258 = vrot.slane %v42, 7
    %v259 = vrot.slane %v43, 7
    %v260 = vsel %vm248, %v258, %v259
    %v261 = vrot.slane %v44, 7
    %v262 = vrot.slane %v45, 7
    %v263 = vsel %vm248, %v261, %v262
    %v264 = vrot.slane %v46, 7
    %v265 = vrot.slane %v47, 7
    %v266 = vsel %vm248, %v264, %v265
    %v267 = vrot.slane %v48, 7
    %v268 = vrot.slane %v49, 7
    %v269 = vsel %vm248, %v267, %v268
    %v270 = vrot.slane %v50, 7
    %v271 = vrot.slane %v51, 7
    %v272 = vsel %vm248, %v270, %v271
    %v273 = vrot.slane %v52, 7
    %v274 = vrot.slane %v53, 7
    %v275 = vsel %vm248, %v273, %v274
    %v276 = vrot.slane %v54, 7
    %v277 = vrot.slane %v55, 7
    %v278 = vsel %vm248, %v276, %v277
    %v279 = vrot.slane %v56, 7
    %v280 = vrot.slane %v57, 7
    %v281 = vsel %vm248, %v279, %v280
    %v282 = vrot.slane %v58, 7
    %v283 = vrot.slane %v59, 7
    %v284 = vsel %vm248, %v282, %v283
    %v285 = vrot.slane %v60, 7
    %v286 = vrot.slane %v61, 7
    %v287 = vsel %vm248, %v285, %v286
    %v288 = vrot.slane %v62, 7
    %v289 = vrot.slane %v63, 7
    %v290 = vsel %vm248, %v288, %v289
    %v291 = vrot.slane %v64, 7
    %v292 = vrot.slane %v65, 7
    %v293 = vsel %vm248, %v291, %v292
    %v294 = vrot.slane %v66, 7
    %v295 = vrot.slane %v67, 7
    %v296 = vsel %vm248, %v294, %v295
    %v297 = vrot.slane %v68, 7
    %v298 = vrot.slane %v69, 7
    %v299 = vsel %vm248, %v297, %v298
    %v300 = vrot.slane %v70, 7
    %v301 = vrot.slane %v71, 7
    %v302 = vsel %vm248, %v300, %v301
    %v303 = vrot.slane %v72, 7
    %v304 = vrot.slane %v73, 7
    %v305 = vsel %vm248, %v303, %v304
    %v306 = vrot.slane %v74, 7
    %v307 = vrot.slane %v75, 7
    %v308 = vsel %vm248, %v306, %v307
    %v309 = vrot.slane %v76, 7
    %v310 = vrot.slane %v77, 7
    %v311 = vsel %vm248, %v309, %v310
    %v312 = vrot.slane %v78, 7
    %v313 = vrot.slane %v79, 7
    %v314 = vsel %vm248, %v312, %v313
    %v315 = vrot.slane %v80, 7
    %v316 = vrot.slane %v81, 7
    %v317 = vsel %vm248, %v315, %v316
    %v318 = vrot.slane %v82, 7
    %v319 = vrot.slane %v83, 7
    %v320 = vsel %vm248, %v318, %v319
    %v321 = vrot.slane %v84, 7
    %v322 = vrot.slane %v85, 7
    %v323 = vsel %vm248, %v321, %v322
    %v324 = vrot.slane %v86, 7
    %v325 = vrot.slane %v87, 7
    %v326 = vsel %vm248, %v324, %v325
    %v327 = vrot.slane %v88, 7
    %v328 = vrot.slane %v89, 7
    %v329 = vsel %vm248, %v327, %v328
    %v330 = vrot.slane %v90, 7
    %v331 = vrot.slane %v91, 7
    %v332 = vsel %vm248, %v330, %v331
    %v333 = vrot.slane %v92, 7
    %v334 = vrot.slane %v93, 7
    %v335 = vsel %vm248, %v333, %v334
    %v336 = vrot.slane %v94, 7
    %v337 = vrot.slane %v95, 7
    %v338 = vsel %vm248, %v336, %v337
    %v339 = vrot.slane %v96, 7
    %v340 = vrot.slane %v97, 7
    %v341 = vsel %vm248, %v339, %v340
    %v342 = vrot.slane %v98, 7
    %v343 = vrot.slane %v99, 7
    %v344 = vsel %vm248, %v342, %v343
    %vm441 = vcmask 523265
    %442 = vst.msk [vmem:[%s118 + $0x10] sm:$0xfe] %vm441, %v249
    %443 = vst.msk [vmem:[%s118 + $0x20] sm:$0xff] %vm101, %v251
    %444 = vst.msk [vmem:[%s118 + $0x30] sm:$0x1] %vm119, %v250
    %445 = vst.msk [vmem:[%s118 + $0x50] sm:$0xfe] %vm441, %v252
    %446 = vst.msk [vmem:[%s118 + $0x60] sm:$0xff] %vm101, %v254
    %447 = vst.msk [vmem:[%s118 + $0x70] sm:$0x1] %vm119, %v253
    %448 = vst.msk [vmem:[%s118 + $0x90] sm:$0xfe] %vm441, %v255
    %449 = vst.msk [vmem:[%s118 + $0xa0] sm:$0xff] %vm101, %v257
    %450 = vst.msk [vmem:[%s118 + $0xb0] sm:$0x1] %vm119, %v256
    %451 = vst.msk [vmem:[%s118 + $0xd0] sm:$0xfe] %vm441, %v258
    %452 = vst.msk [vmem:[%s118 + $0xe0] sm:$0xff] %vm101, %v260
    %453 = vst.msk [vmem:[%s118 + $0xf0] sm:$0x1] %vm119, %v259
    %454 = vst.msk [vmem:[%s118 + $0x110] sm:$0xfe] %vm441, %v261
    %455 = vst.msk [vmem:[%s118 + $0x120] sm:$0xff] %vm101, %v263
    %456 = vst.msk [vmem:[%s118 + $0x130] sm:$0x1] %vm119, %v262
    %457 = vst.msk [vmem:[%s118 + $0x150] sm:$0xfe] %vm441, %v264
    %458 = vst.msk [vmem:[%s118 + $0x160] sm:$0xff] %vm101, %v266
    %459 = vst.msk [vmem:[%s118 + $0x170] sm:$0x1] %vm119, %v265
    %460 = vst.msk [vmem:[%s118 + $0x190] sm:$0xfe] %vm441, %v267
    %461 = vst.msk [vmem:[%s118 + $0x1a0] sm:$0xff] %vm101, %v269
    %462 = vst.msk [vmem:[%s118 + $0x1b0] sm:$0x1] %vm119, %v268
    %463 = vst.msk [vmem:[%s118 + $0x1d0] sm:$0xfe] %vm441, %v270
    %464 = vst.msk [vmem:[%s118 + $0x1e0] sm:$0xff] %vm101, %v272
    %465 = vst.msk [vmem:[%s118 + $0x1f0] sm:$0x1] %vm119, %v271
    %466 = vst.msk [vmem:[%s118 + $0x210] sm:$0xfe] %vm441, %v273
    %467 = vst.msk [vmem:[%s118 + $0x220] sm:$0xff] %vm101, %v275
    %468 = vst.msk [vmem:[%s118 + $0x230] sm:$0x1] %vm119, %v274
    %469 = vst.msk [vmem:[%s118 + $0x250] sm:$0xfe] %vm441, %v276
    %470 = vst.msk [vmem:[%s118 + $0x260] sm:$0xff] %vm101, %v278
    %471 = vst.msk [vmem:[%s118 + $0x270] sm:$0x1] %vm119, %v277
    %472 = vst.msk [vmem:[%s118 + $0x290] sm:$0xfe] %vm441, %v279
    %473 = vst.msk [vmem:[%s118 + $0x2a0] sm:$0xff] %vm101, %v281
    %474 = vst.msk [vmem:[%s118 + $0x2b0] sm:$0x1] %vm119, %v280
    %475 = vst.msk [vmem:[%s118 + $0x2d0] sm:$0xfe] %vm441, %v282
    %476 = vst.msk [vmem:[%s118 + $0x2e0] sm:$0xff] %vm101, %v284
    %477 = vst.msk [vmem:[%s118 + $0x2f0] sm:$0x1] %vm119, %v283
    %478 = vst.msk [vmem:[%s118 + $0x310] sm:$0xfe] %vm441, %v285
    %479 = vst.msk [vmem:[%s118 + $0x320] sm:$0xff] %vm101, %v287
    %480 = vst.msk [vmem:[%s118 + $0x330] sm:$0x1] %vm119, %v286
    %481 = vst.msk [vmem:[%s118 + $0x350] sm:$0xfe] %vm441, %v288
    %482 = vst.msk [vmem:[%s118 + $0x360] sm:$0xff] %vm101, %v290
    %483 = vst.msk [vmem:[%s118 + $0x370] sm:$0x1] %vm119, %v289
    %484 = vst.msk [vmem:[%s118 + $0x390] sm:$0xfe] %vm441, %v291
    %485 = vst.msk [vmem:[%s118 + $0x3a0] sm:$0xff] %vm101, %v293
    %486 = vst.msk [vmem:[%s118 + $0x3b0] sm:$0x1] %vm119, %v292
    %487 = vst.msk [vmem:[%s118 + $0x3d0] sm:$0xfe] %vm441, %v294
    %488 = vst.msk [vmem:[%s118 + $0x3e0] sm:$0xff] %vm101, %v296
    %489 = vst.msk [vmem:[%s118 + $0x3f0] sm:$0x1] %vm119, %v295
    %490 = vst.msk [vmem:[%s118 + $0x490] sm:$0xfe] %vm441, %v297
    %491 = vst.msk [vmem:[%s118 + $0x4a0] sm:$0xff] %vm101, %v299
    %492 = vst.msk [vmem:[%s118 + $0x4b0] sm:$0x1] %vm119, %v298
    %493 = vst.msk [vmem:[%s118 + $0x4d0] sm:$0xfe] %vm441, %v300
    %494 = vst.msk [vmem:[%s118 + $0x4e0] sm:$0xff] %vm101, %v302
    %495 = vst.msk [vmem:[%s118 + $0x4f0] sm:$0x1] %vm119, %v301
    %496 = vst.msk [vmem:[%s118 + $0x510] sm:$0xfe] %vm441, %v303
    %497 = vst.msk [vmem:[%s118 + $0x520] sm:$0xff] %vm101, %v305
    %498 = vst.msk [vmem:[%s118 + $0x530] sm:$0x1] %vm119, %v304
    %499 = vst.msk [vmem:[%s118 + $0x550] sm:$0xfe] %vm441, %v306
    %500 = vst.msk [vmem:[%s118 + $0x560] sm:$0xff] %vm101, %v308
    %501 = vst.msk [vmem:[%s118 + $0x570] sm:$0x1] %vm119, %v307
    %502 = vst.msk [vmem:[%s118 + $0x590] sm:$0xfe] %vm441, %v309
    %503 = vst.msk [vmem:[%s118 + $0x5a0] sm:$0xff] %vm101, %v311
    %504 = vst.msk [vmem:[%s118 + $0x5b0] sm:$0x1] %vm119, %v310
    %505 = vst.msk [vmem:[%s118 + $0x5d0] sm:$0xfe] %vm441, %v312
    %506 = vst.msk [vmem:[%s118 + $0x5e0] sm:$0xff] %vm101, %v314
    %507 = vst.msk [vmem:[%s118 + $0x5f0] sm:$0x1] %vm119, %v313
    %508 = vst.msk [vmem:[%s118 + $0x610] sm:$0xfe] %vm441, %v315
    %509 = vst.msk [vmem:[%s118 + $0x620] sm:$0xff] %vm101, %v317
    %510 = vst.msk [vmem:[%s118 + $0x630] sm:$0x1] %vm119, %v316
    %511 = vst.msk [vmem:[%s118 + $0x650] sm:$0xfe] %vm441, %v318
    %512 = vst.msk [vmem:[%s118 + $0x660] sm:$0xff] %vm101, %v320
    %513 = vst.msk [vmem:[%s118 + $0x670] sm:$0x1] %vm119, %v319
    %514 = vst.msk [vmem:[%s118 + $0x690] sm:$0xfe] %vm441, %v321
    %515 = vst.msk [vmem:[%s118 + $0x6a0] sm:$0xff] %vm101, %v323
    %516 = vst.msk [vmem:[%s118 + $0x6b0] sm:$0x1] %vm119, %v322
    %517 = vst.msk [vmem:[%s118 + $0x6d0] sm:$0xfe] %vm441, %v324
    %518 = vst.msk [vmem:[%s118 + $0x6e0] sm:$0xff] %vm101, %v326
    %519 = vst.msk [vmem:[%s118 + $0x6f0] sm:$0x1] %vm119, %v325
    %520 = vst.msk [vmem:[%s118 + $0x710] sm:$0xfe] %vm441, %v327
    %521 = vst.msk [vmem:[%s118 + $0x720] sm:$0xff] %vm101, %v329
    %522 = vst.msk [vmem:[%s118 + $0x730] sm:$0x1] %vm119, %v328
    %523 = vst.msk [vmem:[%s118 + $0x750] sm:$0xfe] %vm441, %v330
    %524 = vst.msk [vmem:[%s118 + $0x760] sm:$0xff] %vm101, %v332
    %525 = vst.msk [vmem:[%s118 + $0x770] sm:$0x1] %vm119, %v331
    %526 = vst.msk [vmem:[%s118 + $0x790] sm:$0xfe] %vm441, %v333
    %527 = vst.msk [vmem:[%s118 + $0x7a0] sm:$0xff] %vm101, %v335
    %528 = vst.msk [vmem:[%s118 + $0x7b0] sm:$0x1] %vm119, %v334
    %529 = vst.msk [vmem:[%s118 + $0x7d0] sm:$0xfe] %vm441, %v336
    %530 = vst.msk [vmem:[%s118 + $0x7e0] sm:$0xff] %vm101, %v338
    %531 = vst.msk [vmem:[%s118 + $0x7f0] sm:$0x1] %vm119, %v337
    %532 = vst.msk [vmem:[%s118 + $0x810] sm:$0xfe] %vm441, %v339
    %533 = vst.msk [vmem:[%s118 + $0x820] sm:$0xff] %vm101, %v341
    %534 = vst.msk [vmem:[%s118 + $0x830] sm:$0x1] %vm119, %v340
    %535 = vst.msk [vmem:[%s118 + $0x850] sm:$0xfe] %vm441, %v342
    %536 = vst.msk [vmem:[%s118 + $0x860] sm:$0xff] %vm101, %v344
    %537 = vst.msk [vmem:[%s118 + $0x870] sm:$0x1] %vm119, %v343
    %538 = vrot.lane.b32.xlu0 %v36, 64
    %v539 = vpop.permute.xlu0 %538
    %540 = vrot.lane.b32.xlu0 %v37, 64
    %v541 = vpop.permute.xlu0 %540
    %542 = vrot.lane.b32.xlu0 %v38, 64
    %v543 = vpop.permute.xlu0 %542
    %544 = vrot.lane.b32.xlu0 %v39, 64
    %v545 = vpop.permute.xlu0 %544
    %546 = vrot.lane.b32.xlu0 %v40, 64
    %v547 = vpop.permute.xlu0 %546
    %548 = vrot.lane.b32.xlu0 %v41, 64
    %v549 = vpop.permute.xlu0 %548
    %550 = vrot.lane.b32.xlu0 %v42, 64
    %v551 = vpop.permute.xlu0 %550
    %552 = vrot.lane.b32.xlu0 %v43, 64
    %v553 = vpop.permute.xlu0 %552
    %554 = vrot.lane.b32.xlu0 %v44, 64
    %v555 = vpop.permute.xlu0 %554
    %556 = vrot.lane.b32.xlu0 %v45, 64
    %v557 = vpop.permute.xlu0 %556
    %558 = vrot.lane.b32.xlu0 %v46, 64
    %v559 = vpop.permute.xlu0 %558
    %560 = vrot.lane.b32.xlu0 %v47, 64
    %v561 = vpop.permute.xlu0 %560
    %562 = vrot.lane.b32.xlu0 %v48, 64
    %v563 = vpop.permute.xlu0 %562
    %564 = vrot.lane.b32.xlu0 %v49, 64
    %v565 = vpop.permute.xlu0 %564
    %566 = vrot.lane.b32.xlu0 %v50, 64
    %v567 = vpop.permute.xlu0 %566
    %568 = vrot.lane.b32.xlu0 %v51, 64
    %v569 = vpop.permute.xlu0 %568
    %570 = vrot.lane.b32.xlu0 %v52, 64
    %v571 = vpop.permute.xlu0 %570
    %572 = vrot.lane.b32.xlu0 %v53, 64
    %v573 = vpop.permute.xlu0 %572
    %574 = vrot.lane.b32.xlu0 %v54, 64
    %v575 = vpop.permute.xlu0 %574
    %576 = vrot.lane.b32.xlu0 %v55, 64
    %v577 = vpop.permute.xlu0 %576
    %578 = vrot.lane.b32.xlu0 %v56, 64
    %v579 = vpop.permute.xlu0 %578
    %580 = vrot.lane.b32.xlu0 %v57, 64
    %v581 = vpop.permute.xlu0 %580
    %582 = vrot.lane.b32.xlu0 %v58, 64
    %v583 = vpop.permute.xlu0 %582
    %584 = vrot.lane.b32.xlu0 %v59, 64
    %v585 = vpop.permute.xlu0 %584
    %586 = vrot.lane.b32.xlu0 %v60, 64
    %v587 = vpop.permute.xlu0 %586
    %588 = vrot.lane.b32.xlu0 %v61, 64
    %v589 = vpop.permute.xlu0 %588
    %590 = vrot.lane.b32.xlu0 %v62, 64
    %v591 = vpop.permute.xlu0 %590
    %592 = vrot.lane.b32.xlu0 %v63, 64
    %v593 = vpop.permute.xlu0 %592
    %594 = vrot.lane.b32.xlu0 %v64, 64
    %v595 = vpop.permute.xlu0 %594
    %596 = vrot.lane.b32.xlu0 %v65, 64
    %v597 = vpop.permute.xlu0 %596
    %598 = vrot.lane.b32.xlu0 %v66, 64
    %v599 = vpop.permute.xlu0 %598
    %600 = vrot.lane.b32.xlu0 %v67, 64
    %v601 = vpop.permute.xlu0 %600
    %602 = vrot.lane.b32.xlu0 %v68, 64
    %v603 = vpop.permute.xlu0 %602
    %604 = vrot.lane.b32.xlu0 %v69, 64
    %v605 = vpop.permute.xlu0 %604
    %606 = vrot.lane.b32.xlu0 %v70, 64
    %v607 = vpop.permute.xlu0 %606
    %608 = vrot.lane.b32.xlu0 %v71, 64
    %v609 = vpop.permute.xlu0 %608
    %610 = vrot.lane.b32.xlu0 %v72, 64
    %v611 = vpop.permute.xlu0 %610
    %612 = vrot.lane.b32.xlu0 %v73, 64
    %v613 = vpop.permute.xlu0 %612
    %614 = vrot.lane.b32.xlu0 %v74, 64
    %v615 = vpop.permute.xlu0 %614
    %616 = vrot.lane.b32.xlu0 %v75, 64
    %v617 = vpop.permute.xlu0 %616
    %618 = vrot.lane.b32.xlu0 %v76, 64
    %v619 = vpop.permute.xlu0 %618
    %620 = vrot.lane.b32.xlu0 %v77, 64
    %v621 = vpop.permute.xlu0 %620
    %622 = vrot.lane.b32.xlu0 %v78, 64
    %v623 = vpop.permute.xlu0 %622
    %624 = vrot.lane.b32.xlu0 %v79, 64
    %v625 = vpop.permute.xlu0 %624
    %626 = vrot.lane.b32.xlu0 %v80, 64
    %v627 = vpop.permute.xlu0 %626
    %628 = vrot.lane.b32.xlu0 %v81, 64
    %v629 = vpop.permute.xlu0 %628
    %630 = vrot.lane.b32.xlu0 %v82, 64
    %v631 = vpop.permute.xlu0 %630
    %632 = vrot.lane.b32.xlu0 %v83, 64
    %v633 = vpop.permute.xlu0 %632
    %634 = vrot.lane.b32.xlu0 %v84, 64
    %v635 = vpop.permute.xlu0 %634
    %636 = vrot.lane.b32.xlu0 %v85, 64
    %v637 = vpop.permute.xlu0 %636
    %638 = vrot.lane.b32.xlu0 %v86, 64
    %v639 = vpop.permute.xlu0 %638
    %640 = vrot.lane.b32.xlu0 %v87, 64
    %v641 = vpop.permute.xlu0 %640
    %642 = vrot.lane.b32.xlu0 %v88, 64
    %v643 = vpop.permute.xlu0 %642
    %644 = vrot.lane.b32.xlu0 %v89, 64
    %v645 = vpop.permute.xlu0 %644
    %646 = vrot.lane.b32.xlu0 %v90, 64
    %v647 = vpop.permute.xlu0 %646
    %648 = vrot.lane.b32.xlu0 %v91, 64
    %v649 = vpop.permute.xlu0 %648
    %650 = vrot.lane.b32.xlu0 %v92, 64
    %v651 = vpop.permute.xlu0 %650
    %652 = vrot.lane.b32.xlu0 %v93, 64
    %v653 = vpop.permute.xlu0 %652
    %654 = vrot.lane.b32.xlu0 %v94, 64
    %v655 = vpop.permute.xlu0 %654
    %656 = vrot.lane.b32.xlu0 %v95, 64
    %v657 = vpop.permute.xlu0 %656
    %658 = vrot.lane.b32.xlu0 %v96, 64
    %v659 = vpop.permute.xlu0 %658
    %660 = vrot.lane.b32.xlu0 %v97, 64
    %v661 = vpop.permute.xlu0 %660
    %662 = vrot.lane.b32.xlu0 %v98, 64
    %v663 = vpop.permute.xlu0 %662
    %664 = vrot.lane.b32.xlu0 %v99, 64
    %v665 = vpop.permute.xlu0 %664
    %vm730 = vcmask 1048064
    %731 = vst.msk [vmem:[%s118 + $0x10] sm:$0xff] %vm730, %v539
    %732 = vst.msk [vmem:[%s118 + $0x20] sm:$0xff] %vm730, %v541
    %733 = vst.msk [vmem:[%s118 + $0x50] sm:$0xff] %vm730, %v543
    %734 = vst.msk [vmem:[%s118 + $0x60] sm:$0xff] %vm730, %v545
    %735 = vst.msk [vmem:[%s118 + $0x90] sm:$0xff] %vm730, %v547
    %736 = vst.msk [vmem:[%s118 + $0xa0] sm:$0xff] %vm730, %v549
    %737 = vst.msk [vmem:[%s118 + $0xd0] sm:$0xff] %vm730, %v551
    %738 = vst.msk [vmem:[%s118 + $0xe0] sm:$0xff] %vm730, %v553
    %739 = vst.msk [vmem:[%s118 + $0x110] sm:$0xff] %vm730, %v555
    %740 = vst.msk [vmem:[%s118 + $0x120] sm:$0xff] %vm730, %v557
    %741 = vst.msk [vmem:[%s118 + $0x150] sm:$0xff] %vm730, %v559
    %742 = vst.msk [vmem:[%s118 + $0x160] sm:$0xff] %vm730, %v561
    %743 = vst.msk [vmem:[%s118 + $0x190] sm:$0xff] %vm730, %v563
    %744 = vst.msk [vmem:[%s118 + $0x1a0] sm:$0xff] %vm730, %v565
    %745 = vst.msk [vmem:[%s118 + $0x1d0] sm:$0xff] %vm730, %v567
    %746 = vst.msk [vmem:[%s118 + $0x1e0] sm:$0xff] %vm730, %v569
    %747 = vst.msk [vmem:[%s118 + $0x210] sm:$0xff] %vm730, %v571
    %748 = vst.msk [vmem:[%s118 + $0x220] sm:$0xff] %vm730, %v573
    %749 = vst.msk [vmem:[%s118 + $0x250] sm:$0xff] %vm730, %v575
    %750 = vst.msk [vmem:[%s118 + $0x260] sm:$0xff] %vm730, %v577
    %751 = vst.msk [vmem:[%s118 + $0x290] sm:$0xff] %vm730, %v579
    %752 = vst.msk [vmem:[%s118 + $0x2a0] sm:$0xff] %vm730, %v581
    %753 = vst.msk [vmem:[%s118 + $0x2d0] sm:$0xff] %vm730, %v583
    %754 = vst.msk [vmem:[%s118 + $0x2e0] sm:$0xff] %vm730, %v585
    %755 = vst.msk [vmem:[%s118 + $0x310] sm:$0xff] %vm730, %v587
    %756 = vst.msk [vmem:[%s118 + $0x320] sm:$0xff] %vm730, %v589
    %757 = vst.msk [vmem:[%s118 + $0x350] sm:$0xff] %vm730, %v591
    %758 = vst.msk [vmem:[%s118 + $0x360] sm:$0xff] %vm730, %v593
    %759 = vst.msk [vmem:[%s118 + $0x390] sm:$0xff] %vm730, %v595
    %760 = vst.msk [vmem:[%s118 + $0x3a0] sm:$0xff] %vm730, %v597
    %761 = vst.msk [vmem:[%s118 + $0x3d0] sm:$0xff] %vm730, %v599
    %762 = vst.msk [vmem:[%s118 + $0x3e0] sm:$0xff] %vm730, %v601
    %763 = vst.msk [vmem:[%s118 + $0x490] sm:$0xff] %vm730, %v603
    %764 = vst.msk [vmem:[%s118 + $0x4a0] sm:$0xff] %vm730, %v605
    %765 = vst.msk [vmem:[%s118 + $0x4d0] sm:$0xff] %vm730, %v607
    %766 = vst.msk [vmem:[%s118 + $0x4e0] sm:$0xff] %vm730, %v609
    %767 = vst.msk [vmem:[%s118 + $0x510] sm:$0xff] %vm730, %v611
    %768 = vst.msk [vmem:[%s118 + $0x520] sm:$0xff] %vm730, %v613
    %769 = vst.msk [vmem:[%s118 + $0x550] sm:$0xff] %vm730, %v615
    %770 = vst.msk [vmem:[%s118 + $0x560] sm:$0xff] %vm730, %v617
    %771 = vst.msk [vmem:[%s118 + $0x590] sm:$0xff] %vm730, %v619
    %772 = vst.msk [vmem:[%s118 + $0x5a0] sm:$0xff] %vm730, %v621
    %773 = vst.msk [vmem:[%s118 + $0x5d0] sm:$0xff] %vm730, %v623
    %774 = vst.msk [vmem:[%s118 + $0x5e0] sm:$0xff] %vm730, %v625
    %775 = vst.msk [vmem:[%s118 + $0x610] sm:$0xff] %vm730, %v627
    %776 = vst.msk [vmem:[%s118 + $0x620] sm:$0xff] %vm730, %v629
    %777 = vst.msk [vmem:[%s118 + $0x650] sm:$0xff] %vm730, %v631
    %778 = vst.msk [vmem:[%s118 + $0x660] sm:$0xff] %vm730, %v633
    %779 = vst.msk [vmem:[%s118 + $0x690] sm:$0xff] %vm730, %v635
    %780 = vst.msk [vmem:[%s118 + $0x6a0] sm:$0xff] %vm730, %v637
    %781 = vst.msk [vmem:[%s118 + $0x6d0] sm:$0xff] %vm730, %v639
    %782 = vst.msk [vmem:[%s118 + $0x6e0] sm:$0xff] %vm730, %v641
    %783 = vst.msk [vmem:[%s118 + $0x710] sm:$0xff] %vm730, %v643
    %784 = vst.msk [vmem:[%s118 + $0x720] sm:$0xff] %vm730, %v645
    %785 = vst.msk [vmem:[%s118 + $0x750] sm:$0xff] %vm730, %v647
    %786 = vst.msk [vmem:[%s118 + $0x760] sm:$0xff] %vm730, %v649
    %787 = vst.msk [vmem:[%s118 + $0x790] sm:$0xff] %vm730, %v651
    %788 = vst.msk [vmem:[%s118 + $0x7a0] sm:$0xff] %vm730, %v653
    %789 = vst.msk [vmem:[%s118 + $0x7d0] sm:$0xff] %vm730, %v655
    %790 = vst.msk [vmem:[%s118 + $0x7e0] sm:$0xff] %vm730, %v657
    %791 = vst.msk [vmem:[%s118 + $0x810] sm:$0xff] %vm730, %v659
    %792 = vst.msk [vmem:[%s118 + $0x820] sm:$0xff] %vm730, %v661
    %793 = vst.msk [vmem:[%s118 + $0x850] sm:$0xff] %vm730, %v663
    %794 = vst.msk [vmem:[%s118 + $0x860] sm:$0xff] %vm730, %v665
    %vm795 = vcmask 1046528
    %v796 = vrot.slane %v36, 1
    %v797 = vrot.slane %v37, 1
    %v798 = vsel %vm795, %v796, %v797
    %v799 = vrot.slane %v38, 1
    %v800 = vrot.slane %v39, 1
    %v801 = vsel %vm795, %v799, %v800
    %v802 = vrot.slane %v40, 1
    %v803 = vrot.slane %v41, 1
    %v804 = vsel %vm795, %v802, %v803
    %v805 = vrot.slane %v42, 1
    %v806 = vrot.slane %v43, 1
    %v807 = vsel %vm795, %v805, %v806
    %v808 = vrot.slane %v44, 1
    %v809 = vrot.slane %v45, 1
    %v810 = vsel %vm795, %v808, %v809
    %v811 = vrot.slane %v46, 1
    %v812 = vrot.slane %v47, 1
    %v813 = vsel %vm795, %v811, %v812
    %v814 = vrot.slane %v48, 1
    %v815 = vrot.slane %v49, 1
    %v816 = vsel %vm795, %v814, %v815
    %v817 = vrot.slane %v50, 1
    %v818 = vrot.slane %v51, 1
    %v819 = vsel %vm795, %v817, %v818
    %v820 = vrot.slane %v52, 1
    %v821 = vrot.slane %v53, 1
    %v822 = vsel %vm795, %v820, %v821
    %v823 = vrot.slane %v54, 1
    %v824 = vrot.slane %v55, 1
    %v825 = vsel %vm795, %v823, %v824
    %v826 = vrot.slane %v56, 1
    %v827 = vrot.slane %v57, 1
    %v828 = vsel %vm795, %v826, %v827
    %v829 = vrot.slane %v58, 1
    %v830 = vrot.slane %v59, 1
    %v831 = vsel %vm795, %v829, %v830
    %v832 = vrot.slane %v60, 1
    %v833 = vrot.slane %v61, 1
    %v834 = vsel %vm795, %v832, %v833
    %v835 = vrot.slane %v62, 1
    %v836 = vrot.slane %v63, 1
    %v837 = vsel %vm795, %v835, %v836
    %v838 = vrot.slane %v64, 1
    %v839 = vrot.slane %v65, 1
    %v840 = vsel %vm795, %v838, %v839
    %v841 = vrot.slane %v66, 1
    %v842 = vrot.slane %v67, 1
    %v843 = vsel %vm795, %v841, %v842
    %v844 = vrot.slane %v68, 1
    %v845 = vrot.slane %v69, 1
    %v846 = vsel %vm795, %v844, %v845
    %v847 = vrot.slane %v70, 1
    %v848 = vrot.slane %v71, 1
    %v849 = vsel %vm795, %v847, %v848
    %v850 = vrot.slane %v72, 1
    %v851 = vrot.slane %v73, 1
    %v852 = vsel %vm795, %v850, %v851
    %v853 = vrot.slane %v74, 1
    %v854 = vrot.slane %v75, 1
    %v855 = vsel %vm795, %v853, %v854
    %v856 = vrot.slane %v76, 1
    %v857 = vrot.slane %v77, 1
    %v858 = vsel %vm795, %v856, %v857
    %v859 = vrot.slane %v78, 1
    %v860 = vrot.slane %v79, 1
    %v861 = vsel %vm795, %v859, %v860
    %v862 = vrot.slane %v80, 1
    %v863 = vrot.slane %v81, 1
    %v864 = vsel %vm795, %v862, %v863
    %v865 = vrot.slane %v82, 1
    %v866 = vrot.slane %v83, 1
    %v867 = vsel %vm795, %v865, %v866
    %v868 = vrot.slane %v84, 1
    %v869 = vrot.slane %v85, 1
    %v870 = vsel %vm795, %v868, %v869
    %v871 = vrot.slane %v86, 1
    %v872 = vrot.slane %v87, 1
    %v873 = vsel %vm795, %v871, %v872
    %v874 = vrot.slane %v88, 1
    %v875 = vrot.slane %v89, 1
    %v876 = vsel %vm795, %v874, %v875
    %v877 = vrot.slane %v90, 1
    %v878 = vrot.slane %v91, 1
    %v879 = vsel %vm795, %v877, %v878
    %v880 = vrot.slane %v92, 1
    %v881 = vrot.slane %v93, 1
    %v882 = vsel %vm795, %v880, %v881
    %v883 = vrot.slane %v94, 1
    %v884 = vrot.slane %v95, 1
    %v885 = vsel %vm795, %v883, %v884
    %v886 = vrot.slane %v96, 1
    %v887 = vrot.slane %v97, 1
    %v888 = vsel %vm795, %v886, %v887
    %v889 = vrot.slane %v98, 1
    %v890 = vrot.slane %v99, 1
    %v891 = vsel %vm795, %v889, %v890
    %vm988 = vcmask 523271
    %989 = vst.msk [vmem:[%s118 + $0x8] sm:$0x80] %vm988, %v796
    %990 = vst.msk [vmem:[%s118 + $0x18] sm:$0xff] %vm101, %v798
    %vm991 = vcmask 522240
    %992 = vst.msk [vmem:[%s118 + $0x28] sm:$0x7f] %vm991, %v797
    %993 = vst.msk [vmem:[%s118 + $0x48] sm:$0x80] %vm988, %v799
    %994 = vst.msk [vmem:[%s118 + $0x58] sm:$0xff] %vm101, %v801
    %995 = vst.msk [vmem:[%s118 + $0x68] sm:$0x7f] %vm991, %v800
    %996 = vst.msk [vmem:[%s118 + $0x88] sm:$0x80] %vm988, %v802
    %997 = vst.msk [vmem:[%s118 + $0x98] sm:$0xff] %vm101, %v804
    %998 = vst.msk [vmem:[%s118 + $0xa8] sm:$0x7f] %vm991, %v803
    %999 = vst.msk [vmem:[%s118 + $0xc8] sm:$0x80] %vm988, %v805
    %1000 = vst.msk [vmem:[%s118 + $0xd8] sm:$0xff] %vm101, %v807
    %1001 = vst.msk [vmem:[%s118 + $0xe8] sm:$0x7f] %vm991, %v806
    %1002 = vst.msk [vmem:[%s118 + $0x108] sm:$0x80] %vm988, %v808
    %1003 = vst.msk [vmem:[%s118 + $0x118] sm:$0xff] %vm101, %v810
    %1004 = vst.msk [vmem:[%s118 + $0x128] sm:$0x7f] %vm991, %v809
    %1005 = vst.msk [vmem:[%s118 + $0x148] sm:$0x80] %vm988, %v811
    %1006 = vst.msk [vmem:[%s118 + $0x158] sm:$0xff] %vm101, %v813
    %1007 = vst.msk [vmem:[%s118 + $0x168] sm:$0x7f] %vm991, %v812
    %1008 = vst.msk [vmem:[%s118 + $0x188] sm:$0x80] %vm988, %v814
    %1009 = vst.msk [vmem:[%s118 + $0x198] sm:$0xff] %vm101, %v816
    %1010 = vst.msk [vmem:[%s118 + $0x1a8] sm:$0x7f] %vm991, %v815
    %1011 = vst.msk [vmem:[%s118 + $0x1c8] sm:$0x80] %vm988, %v817
    %1012 = vst.msk [vmem:[%s118 + $0x1d8] sm:$0xff] %vm101, %v819
    %1013 = vst.msk [vmem:[%s118 + $0x1e8] sm:$0x7f] %vm991, %v818
    %1014 = vst.msk [vmem:[%s118 + $0x208] sm:$0x80] %vm988, %v820
    %1015 = vst.msk [vmem:[%s118 + $0x218] sm:$0xff] %vm101, %v822
    %1016 = vst.msk [vmem:[%s118 + $0x228] sm:$0x7f] %vm991, %v821
    %1017 = vst.msk [vmem:[%s118 + $0x248] sm:$0x80] %vm988, %v823
    %1018 = vst.msk [vmem:[%s118 + $0x258] sm:$0xff] %vm101, %v825
    %1019 = vst.msk [vmem:[%s118 + $0x268] sm:$0x7f] %vm991, %v824
    %1020 = vst.msk [vmem:[%s118 + $0x288] sm:$0x80] %vm988, %v826
    %1021 = vst.msk [vmem:[%s118 + $0x298] sm:$0xff] %vm101, %v828
    %1022 = vst.msk [vmem:[%s118 + $0x2a8] sm:$0x7f] %vm991, %v827
    %1023 = vst.msk [vmem:[%s118 + $0x2c8] sm:$0x80] %vm988, %v829
    %1024 = vst.msk [vmem:[%s118 + $0x2d8] sm:$0xff] %vm101, %v831
    %1025 = vst.msk [vmem:[%s118 + $0x2e8] sm:$0x7f] %vm991, %v830
    %1026 = vst.msk [vmem:[%s118 + $0x308] sm:$0x80] %vm988, %v832
    %1027 = vst.msk [vmem:[%s118 + $0x318] sm:$0xff] %vm101, %v834
    %1028 = vst.msk [vmem:[%s118 + $0x328] sm:$0x7f] %vm991, %v833
    %1029 = vst.msk [vmem:[%s118 + $0x348] sm:$0x80] %vm988, %v835
    %1030 = vst.msk [vmem:[%s118 + $0x358] sm:$0xff] %vm101, %v837
    %1031 = vst.msk [vmem:[%s118 + $0x368] sm:$0x7f] %vm991, %v836
    %1032 = vst.msk [vmem:[%s118 + $0x388] sm:$0x80] %vm988, %v838
    %1033 = vst.msk [vmem:[%s118 + $0x398] sm:$0xff] %vm101, %v840
    %1034 = vst.msk [vmem:[%s118 + $0x3a8] sm:$0x7f] %vm991, %v839
    %1035 = vst.msk [vmem:[%s118 + $0x3c8] sm:$0x80] %vm988, %v841
    %1036 = vst.msk [vmem:[%s118 + $0x3d8] sm:$0xff] %vm101, %v843
    %1037 = vst.msk [vmem:[%s118 + $0x3e8] sm:$0x7f] %vm991, %v842
    %1038 = vst.msk [vmem:[%s118 + $0x488] sm:$0x80] %vm988, %v844
    %1039 = vst.msk [vmem:[%s118 + $0x498] sm:$0xff] %vm101, %v846
    %1040 = vst.msk [vmem:[%s118 + $0x4a8] sm:$0x7f] %vm991, %v845
    %1041 = vst.msk [vmem:[%s118 + $0x4c8] sm:$0x80] %vm988, %v847
    %1042 = vst.msk [vmem:[%s118 + $0x4d8] sm:$0xff] %vm101, %v849
    %1043 = vst.msk [vmem:[%s118 + $0x4e8] sm:$0x7f] %vm991, %v848
    %1044 = vst.msk [vmem:[%s118 + $0x508] sm:$0x80] %vm988, %v850
    %1045 = vst.msk [vmem:[%s118 + $0x518] sm:$0xff] %vm101, %v852
    %1046 = vst.msk [vmem:[%s118 + $0x528] sm:$0x7f] %vm991, %v851
    %1047 = vst.msk [vmem:[%s118 + $0x548] sm:$0x80] %vm988, %v853
    %1048 = vst.msk [vmem:[%s118 + $0x558] sm:$0xff] %vm101, %v855
    %1049 = vst.msk [vmem:[%s118 + $0x568] sm:$0x7f] %vm991, %v854
    %1050 = vst.msk [vmem:[%s118 + $0x588] sm:$0x80] %vm988, %v856
    %1051 = vst.msk [vmem:[%s118 + $0x598] sm:$0xff] %vm101, %v858
    %1052 = vst.msk [vmem:[%s118 + $0x5a8] sm:$0x7f] %vm991, %v857
    %1053 = vst.msk [vmem:[%s118 + $0x5c8] sm:$0x80] %vm988, %v859
    %1054 = vst.msk [vmem:[%s118 + $0x5d8] sm:$0xff] %vm101, %v861
    %1055 = vst.msk [vmem:[%s118 + $0x5e8] sm:$0x7f] %vm991, %v860
    %1056 = vst.msk [vmem:[%s118 + $0x608] sm:$0x80] %vm988, %v862
    %1057 = vst.msk [vmem:[%s118 + $0x618] sm:$0xff] %vm101, %v864
    %1058 = vst.msk [vmem:[%s118 + $0x628] sm:$0x7f] %vm991, %v863
    %1059 = vst.msk [vmem:[%s118 + $0x648] sm:$0x80] %vm988, %v865
    %1060 = vst.msk [vmem:[%s118 + $0x658] sm:$0xff] %vm101, %v867
    %1061 = vst.msk [vmem:[%s118 + $0x668] sm:$0x7f] %vm991, %v866
    %1062 = vst.msk [vmem:[%s118 + $0x688] sm:$0x80] %vm988, %v868
    %1063 = vst.msk [vmem:[%s118 + $0x698] sm:$0xff] %vm101, %v870
    %1064 = vst.msk [vmem:[%s118 + $0x6a8] sm:$0x7f] %vm991, %v869
    %1065 = vst.msk [vmem:[%s118 + $0x6c8] sm:$0x80] %vm988, %v871
    %1066 = vst.msk [vmem:[%s118 + $0x6d8] sm:$0xff] %vm101, %v873
    %1067 = vst.msk [vmem:[%s118 + $0x6e8] sm:$0x7f] %vm991, %v872
    %1068 = vst.msk [vmem:[%s118 + $0x708] sm:$0x80] %vm988, %v874
    %1069 = vst.msk [vmem:[%s118 + $0x718] sm:$0xff] %vm101, %v876
    %1070 = vst.msk [vmem:[%s118 + $0x728] sm:$0x7f] %vm991, %v875
    %1071 = vst.msk [vmem:[%s118 + $0x748] sm:$0x80] %vm988, %v877
    %1072 = vst.msk [vmem:[%s118 + $0x758] sm:$0xff] %vm101, %v879
    %1073 = vst.msk [vmem:[%s118 + $0x768] sm:$0x7f] %vm991, %v878
    %1074 = vst.msk [vmem:[%s118 + $0x788] sm:$0x80] %vm988, %v880
    %1075 = vst.msk [vmem:[%s118 + $0x798] sm:$0xff] %vm101, %v882
    %1076 = vst.msk [vmem:[%s118 + $0x7a8] sm:$0x7f] %vm991, %v881
    %1077 = vst.msk [vmem:[%s118 + $0x7c8] sm:$0x80] %vm988, %v883
    %1078 = vst.msk [vmem:[%s118 + $0x7d8] sm:$0xff] %vm101, %v885
    %1079 = vst.msk [vmem:[%s118 + $0x7e8] sm:$0x7f] %vm991, %v884
    %1080 = vst.msk [vmem:[%s118 + $0x808] sm:$0x80] %vm988, %v886
    %1081 = vst.msk [vmem:[%s118 + $0x818] sm:$0xff] %vm101, %v888
    %1082 = vst.msk [vmem:[%s118 + $0x828] sm:$0x7f] %vm991, %v887
    %1083 = vst.msk [vmem:[%s118 + $0x848] sm:$0x80] %vm988, %v889
    %1084 = vst.msk [vmem:[%s118 + $0x858] sm:$0xff] %vm101, %v891
    %1085 = vst.msk [vmem:[%s118 + $0x868] sm:$0x7f] %vm991, %v890
    %v1086 = vld [vmem:[#allocation2 + $0x10] sm:$0xff]
    %v1087 = vld [vmem:[#allocation2 + $0x18] sm:$0xff]
    %v1088 = vld [vmem:[#allocation2 + $0x20] sm:$0xff]
    %v1089 = vld [vmem:[#allocation2 + $0x28] sm:$0xff]
    %v1090 = vld [vmem:[#allocation2 + $0x50] sm:$0xff]
    %v1091 = vld [vmem:[#allocation2 + $0x58] sm:$0xff]
    %v1092 = vld [vmem:[#allocation2 + $0x60] sm:$0xff]
    %v1093 = vld [vmem:[#allocation2 + $0x68] sm:$0xff]
    %v1094 = vld [vmem:[#allocation2 + $0x90] sm:$0xff]
    %v1095 = vld [vmem:[#allocation2 + $0x98] sm:$0xff]
    %v1096 = vld [vmem:[#allocation2 + $0xa0] sm:$0xff]
    %v1097 = vld [vmem:[#allocation2 + $0xa8] sm:$0xff]
    %v1098 = vld [vmem:[#allocation2 + $0xd0] sm:$0xff]
    %v1099 = vld [vmem:[#allocation2 + $0xd8] sm:$0xff]
    %v1100 = vld [vmem:[#allocation2 + $0xe0] sm:$0xff]
    %v1101 = vld [vmem:[#allocation2 + $0xe8] sm:$0xff]
    %v1102 = vld [vmem:[#allocation2 + $0x110] sm:$0xff]
    %v1103 = vld [vmem:[#allocation2 + $0x118] sm:$0xff]
    %v1104 = vld [vmem:[#allocation2 + $0x120] sm:$0xff]
    %v1105 = vld [vmem:[#allocation2 + $0x128] sm:$0xff]
    %v1106 = vld [vmem:[#allocation2 + $0x150] sm:$0xff]
    %v1107 = vld [vmem:[#allocation2 + $0x158] sm:$0xff]
    %v1108 = vld [vmem:[#allocation2 + $0x160] sm:$0xff]
    %v1109 = vld [vmem:[#allocation2 + $0x168] sm:$0xff]
    %v1110 = vld [vmem:[#allocation2 + $0x190] sm:$0xff]
    %v1111 = vld [vmem:[#allocation2 + $0x198] sm:$0xff]
    %v1112 = vld [vmem:[#allocation2 + $0x1a0] sm:$0xff]
    %v1113 = vld [vmem:[#allocation2 + $0x1a8] sm:$0xff]
    %v1114 = vld [vmem:[#allocation2 + $0x1d0] sm:$0xff]
    %v1115 = vld [vmem:[#allocation2 + $0x1d8] sm:$0xff]
    %v1116 = vld [vmem:[#allocation2 + $0x1e0] sm:$0xff]
    %v1117 = vld [vmem:[#allocation2 + $0x1e8] sm:$0xff]
    %v1118 = vld [vmem:[#allocation2 + $0x210] sm:$0xff]
    %v1119 = vld [vmem:[#allocation2 + $0x218] sm:$0xff]
    %v1120 = vld [vmem:[#allocation2 + $0x220] sm:$0xff]
    %v1121 = vld [vmem:[#allocation2 + $0x228] sm:$0xff]
    %v1122 = vld [vmem:[#allocation2 + $0x250] sm:$0xff]
    %v1123 = vld [vmem:[#allocation2 + $0x258] sm:$0xff]
    %v1124 = vld [vmem:[#allocation2 + $0x260] sm:$0xff]
    %v1125 = vld [vmem:[#allocation2 + $0x268] sm:$0xff]
    %v1126 = vld [vmem:[#allocation2 + $0x290] sm:$0xff]
    %v1127 = vld [vmem:[#allocation2 + $0x298] sm:$0xff]
    %v1128 = vld [vmem:[#allocation2 + $0x2a0] sm:$0xff]
    %v1129 = vld [vmem:[#allocation2 + $0x2a8] sm:$0xff]
    %v1130 = vld [vmem:[#allocation2 + $0x2d0] sm:$0xff]
    %v1131 = vld [vmem:[#allocation2 + $0x2d8] sm:$0xff]
    %v1132 = vld [vmem:[#allocation2 + $0x2e0] sm:$0xff]
    %v1133 = vld [vmem:[#allocation2 + $0x2e8] sm:$0xff]
    %v1134 = vld [vmem:[#allocation2 + $0x310] sm:$0xff]
    %v1135 = vld [vmem:[#allocation2 + $0x318] sm:$0xff]
    %v1136 = vld [vmem:[#allocation2 + $0x320] sm:$0xff]
    %v1137 = vld [vmem:[#allocation2 + $0x328] sm:$0xff]
    %v1138 = vld [vmem:[#allocation2 + $0x350] sm:$0xff]
    %v1139 = vld [vmem:[#allocation2 + $0x358] sm:$0xff]
    %v1140 = vld [vmem:[#allocation2 + $0x360] sm:$0xff]
    %v1141 = vld [vmem:[#allocation2 + $0x368] sm:$0xff]
    %v1142 = vld [vmem:[#allocation2 + $0x390] sm:$0xff]
    %v1143 = vld [vmem:[#allocation2 + $0x398] sm:$0xff]
    %v1144 = vld [vmem:[#allocation2 + $0x3a0] sm:$0xff]
    %v1145 = vld [vmem:[#allocation2 + $0x3a8] sm:$0xff]
    %v1146 = vld [vmem:[#allocation2 + $0x3d0] sm:$0xff]
    %v1147 = vld [vmem:[#allocation2 + $0x3d8] sm:$0xff]
    %v1148 = vld [vmem:[#allocation2 + $0x3e0] sm:$0xff]
    %v1149 = vld [vmem:[#allocation2 + $0x3e8] sm:$0xff]
    %v1150 = vld [vmem:[#allocation2 + $0x490] sm:$0xff]
    %v1151 = vld [vmem:[#allocation2 + $0x498] sm:$0xff]
    %v1152 = vld [vmem:[#allocation2 + $0x4a0] sm:$0xff]
    %v1153 = vld [vmem:[#allocation2 + $0x4a8] sm:$0xff]
    %v1154 = vld [vmem:[#allocation2 + $0x4d0] sm:$0xff]
    %v1155 = vld [vmem:[#allocation2 + $0x4d8] sm:$0xff]
    %v1156 = vld [vmem:[#allocation2 + $0x4e0] sm:$0xff]
    %v1157 = vld [vmem:[#allocation2 + $0x4e8] sm:$0xff]
    %v1158 = vld [vmem:[#allocation2 + $0x510] sm:$0xff]
    %v1159 = vld [vmem:[#allocation2 + $0x518] sm:$0xff]
    %v1160 = vld [vmem:[#allocation2 + $0x520] sm:$0xff]
    %v1161 = vld [vmem:[#allocation2 + $0x528] sm:$0xff]
    %v1162 = vld [vmem:[#allocation2 + $0x550] sm:$0xff]
    %v1163 = vld [vmem:[#allocation2 + $0x558] sm:$0xff]
    %v1164 = vld [vmem:[#allocation2 + $0x560] sm:$0xff]
    %v1165 = vld [vmem:[#allocation2 + $0x568] sm:$0xff]
    %v1166 = vld [vmem:[#allocation2 + $0x590] sm:$0xff]
    %v1167 = vld [vmem:[#allocation2 + $0x598] sm:$0xff]
    %v1168 = vld [vmem:[#allocation2 + $0x5a0] sm:$0xff]
    %v1169 = vld [vmem:[#allocation2 + $0x5a8] sm:$0xff]
    %v1170 = vld [vmem:[#allocation2 + $0x5d0] sm:$0xff]
    %v1171 = vld [vmem:[#allocation2 + $0x5d8] sm:$0xff]
    %v1172 = vld [vmem:[#allocation2 + $0x5e0] sm:$0xff]
    %v1173 = vld [vmem:[#allocation2 + $0x5e8] sm:$0xff]
    %v1174 = vld [vmem:[#allocation2 + $0x610] sm:$0xff]
    %v1175 = vld [vmem:[#allocation2 + $0x618] sm:$0xff]
    %v1176 = vld [vmem:[#allocation2 + $0x620] sm:$0xff]
    %v1177 = vld [vmem:[#allocation2 + $0x628] sm:$0xff]
    %v1178 = vld [vmem:[#allocation2 + $0x650] sm:$0xff]
    %v1179 = vld [vmem:[#allocation2 + $0x658] sm:$0xff]
    %v1180 = vld [vmem:[#allocation2 + $0x660] sm:$0xff]
    %v1181 = vld [vmem:[#allocation2 + $0x668] sm:$0xff]
    %v1182 = vld [vmem:[#allocation2 + $0x690] sm:$0xff]
    %v1183 = vld [vmem:[#allocation2 + $0x698] sm:$0xff]
    %v1184 = vld [vmem:[#allocation2 + $0x6a0] sm:$0xff]
    %v1185 = vld [vmem:[#allocation2 + $0x6a8] sm:$0xff]
    %v1186 = vld [vmem:[#allocation2 + $0x6d0] sm:$0xff]
    %v1187 = vld [vmem:[#allocation2 + $0x6d8] sm:$0xff]
    %v1188 = vld [vmem:[#allocation2 + $0x6e0] sm:$0xff]
    %v1189 = vld [vmem:[#allocation2 + $0x6e8] sm:$0xff]
    %v1190 = vld [vmem:[#allocation2 + $0x710] sm:$0xff]
    %v1191 = vld [vmem:[#allocation2 + $0x718] sm:$0xff]
    %v1192 = vld [vmem:[#allocation2 + $0x720] sm:$0xff]
    %v1193 = vld [vmem:[#allocation2 + $0x728] sm:$0xff]
    %v1194 = vld [vmem:[#allocation2 + $0x750] sm:$0xff]
    %v1195 = vld [vmem:[#allocation2 + $0x758] sm:$0xff]
    %v1196 = vld [vmem:[#allocation2 + $0x760] sm:$0xff]
    %v1197 = vld [vmem:[#allocation2 + $0x768] sm:$0xff]
    %v1198 = vld [vmem:[#allocation2 + $0x790] sm:$0xff]
    %v1199 = vld [vmem:[#allocation2 + $0x798] sm:$0xff]
    %v1200 = vld [vmem:[#allocation2 + $0x7a0] sm:$0xff]
    %v1201 = vld [vmem:[#allocation2 + $0x7a8] sm:$0xff]
    %v1202 = vld [vmem:[#allocation2 + $0x7d0] sm:$0xff]
    %v1203 = vld [vmem:[#allocation2 + $0x7d8] sm:$0xff]
    %v1204 = vld [vmem:[#allocation2 + $0x7e0] sm:$0xff]
    %v1205 = vld [vmem:[#allocation2 + $0x7e8] sm:$0xff]
    %v1206 = vld [vmem:[#allocation2 + $0x810] sm:$0xff]
    %v1207 = vld [vmem:[#allocation2 + $0x818] sm:$0xff]
    %v1208 = vld [vmem:[#allocation2 + $0x820] sm:$0xff]
    %v1209 = vld [vmem:[#allocation2 + $0x828] sm:$0xff]
    %v1210 = vld [vmem:[#allocation2 + $0x850] sm:$0xff]
    %v1211 = vld [vmem:[#allocation2 + $0x858] sm:$0xff]
    %v1212 = vld [vmem:[#allocation2 + $0x860] sm:$0xff]
    %v1213 = vld [vmem:[#allocation2 + $0x868] sm:$0xff]
    %v1214 = vld [vmem:[%s1] sm:$0xff]
    %v1215 = vld [vmem:[%s1 + $0x8] sm:$0xff]
    %v1216 = vld [vmem:[%s1 + $0x10] sm:$0xff]
    %v1217 = vld [vmem:[%s1 + $0x18] sm:$0xff]
    %v1218 = vld [vmem:[%s1 + $0x20] sm:$0xff]
    %v1219 = vld [vmem:[%s1 + $0x28] sm:$0xff]
    %v1220 = vld [vmem:[%s1 + $0x30] sm:$0xff]
    %v1221 = vld [vmem:[%s1 + $0x38] sm:$0xff]
    %v1222 = vld [vmem:[%s1 + $0x40] sm:$0xff]
    %v1223 = vld [vmem:[%s1 + $0x48] sm:$0xff]
    %v1224 = vld [vmem:[%s1 + $0x50] sm:$0xff]
    %v1225 = vld [vmem:[%s1 + $0x58] sm:$0xff]
    %v1226 = vld [vmem:[%s1 + $0x60] sm:$0xff]
    %v1227 = vld [vmem:[%s1 + $0x68] sm:$0xff]
    %v1228 = vld [vmem:[%s1 + $0x70] sm:$0xff]
    %v1229 = vld [vmem:[%s1 + $0x78] sm:$0xff]
    %v1230 = vld [vmem:[%s1 + $0x80] sm:$0xff]
    %v1231 = vld [vmem:[%s1 + $0x88] sm:$0xff]
    %v1232 = vld [vmem:[%s1 + $0x90] sm:$0xff]
    %v1233 = vld [vmem:[%s1 + $0x98] sm:$0xff]
    %v1234 = vld [vmem:[%s1 + $0xa0] sm:$0xff]
    %v1235 = vld [vmem:[%s1 + $0xa8] sm:$0xff]
    %v1236 = vld [vmem:[%s1 + $0xb0] sm:$0xff]
    %v1237 = vld [vmem:[%s1 + $0xb8] sm:$0xff]
    %v1238 = vld [vmem:[%s118 + $0x10] sm:$0xff]
    %v1239 = vld [vmem:[%s118 + $0x18] sm:$0xff]
    %v1240 = vld [vmem:[%s118 + $0x20] sm:$0xff]
    %v1241 = vld [vmem:[%s118 + $0x28] sm:$0xff]
    %v1242 = vld [vmem:[%s118 + $0x50] sm:$0xff]
    %v1243 = vld [vmem:[%s118 + $0x58] sm:$0xff]
    %v1244 = vld [vmem:[%s118 + $0x60] sm:$0xff]
    %v1245 = vld [vmem:[%s118 + $0x68] sm:$0xff]
    %v1246 = vld [vmem:[%s118 + $0x90] sm:$0xff]
    %v1247 = vld [vmem:[%s118 + $0x98] sm:$0xff]
    %v1248 = vld [vmem:[%s118 + $0xa0] sm:$0xff]
    %v1249 = vld [vmem:[%s118 + $0xa8] sm:$0xff]
    %v1250 = vld [vmem:[%s118 + $0xd0] sm:$0xff]
    %v1251 = vld [vmem:[%s118 + $0xd8] sm:$0xff]
    %v1252 = vld [vmem:[%s118 + $0xe0] sm:$0xff]
    %v1253 = vld [vmem:[%s118 + $0xe8] sm:$0xff]
    %v1254 = vld [vmem:[%s118 + $0x110] sm:$0xff]
    %v1255 = vld [vmem:[%s118 + $0x118] sm:$0xff]
    %v1256 = vld [vmem:[%s118 + $0x120] sm:$0xff]
    %v1257 = vld [vmem:[%s118 + $0x128] sm:$0xff]
    %v1258 = vld [vmem:[%s118 + $0x150] sm:$0xff]
    %v1259 = vld [vmem:[%s118 + $0x158] sm:$0xff]
    %v1260 = vld [vmem:[%s118 + $0x160] sm:$0xff]
    %v1261 = vld [vmem:[%s118 + $0x168] sm:$0xff]
    %v1262 = vld [vmem:[%s118 + $0x190] sm:$0xff]
    %v1263 = vld [vmem:[%s118 + $0x198] sm:$0xff]
    %v1264 = vld [vmem:[%s118 + $0x1a0] sm:$0xff]
    %v1265 = vld [vmem:[%s118 + $0x1a8] sm:$0xff]
    %v1266 = vld [vmem:[%s118 + $0x1d0] sm:$0xff]
    %v1267 = vld [vmem:[%s118 + $0x1d8] sm:$0xff]
    %v1268 = vld [vmem:[%s118 + $0x1e0] sm:$0xff]
    %v1269 = vld [vmem:[%s118 + $0x1e8] sm:$0xff]
    %v1270 = vld [vmem:[%s118 + $0x210] sm:$0xff]
    %v1271 = vld [vmem:[%s118 + $0x218] sm:$0xff]
    %v1272 = vld [vmem:[%s118 + $0x220] sm:$0xff]
    %v1273 = vld [vmem:[%s118 + $0x228] sm:$0xff]
    %v1274 = vld [vmem:[%s118 + $0x250] sm:$0xff]
    %v1275 = vld [vmem:[%s118 + $0x258] sm:$0xff]
    %v1276 = vld [vmem:[%s118 + $0x260] sm:$0xff]
    %v1277 = vld [vmem:[%s118 + $0x268] sm:$0xff]
    %v1278 = vld [vmem:[%s118 + $0x290] sm:$0xff]
    %v1279 = vld [vmem:[%s118 + $0x298] sm:$0xff]
    %v1280 = vld [vmem:[%s118 + $0x2a0] sm:$0xff]
    %v1281 = vld [vmem:[%s118 + $0x2a8] sm:$0xff]
    %v1282 = vld [vmem:[%s118 + $0x2d0] sm:$0xff]
    %v1283 = vld [vmem:[%s118 + $0x2d8] sm:$0xff]
    %v1284 = vld [vmem:[%s118 + $0x2e0] sm:$0xff]
    %v1285 = vld [vmem:[%s118 + $0x2e8] sm:$0xff]
    %v1286 = vld [vmem:[%s118 + $0x310] sm:$0xff]
    %v1287 = vld [vmem:[%s118 + $0x318] sm:$0xff]
    %v1288 = vld [vmem:[%s118 + $0x320] sm:$0xff]
    %v1289 = vld [vmem:[%s118 + $0x328] sm:$0xff]
    %v1290 = vld [vmem:[%s118 + $0x350] sm:$0xff]
    %v1291 = vld [vmem:[%s118 + $0x358] sm:$0xff]
    %v1292 = vld [vmem:[%s118 + $0x360] sm:$0xff]
    %v1293 = vld [vmem:[%s118 + $0x368] sm:$0xff]
    %v1294 = vld [vmem:[%s118 + $0x390] sm:$0xff]
    %v1295 = vld [vmem:[%s118 + $0x398] sm:$0xff]
    %v1296 = vld [vmem:[%s118 + $0x3a0] sm:$0xff]
    %v1297 = vld [vmem:[%s118 + $0x3a8] sm:$0xff]
    %v1298 = vld [vmem:[%s118 + $0x3d0] sm:$0xff]
    %v1299 = vld [vmem:[%s118 + $0x3d8] sm:$0xff]
    %v1300 = vld [vmem:[%s118 + $0x3e0] sm:$0xff]
    %v1301 = vld [vmem:[%s118 + $0x3e8] sm:$0xff]
    %v1302 = vld [vmem:[%s118 + $0x490] sm:$0xff]
    %v1303 = vld [vmem:[%s118 + $0x498] sm:$0xff]
    %v1304 = vld [vmem:[%s118 + $0x4a0] sm:$0xff]
    %v1305 = vld [vmem:[%s118 + $0x4a8] sm:$0xff]
    %v1306 = vld [vmem:[%s118 + $0x4d0] sm:$0xff]
    %v1307 = vld [vmem:[%s118 + $0x4d8] sm:$0xff]
    %v1308 = vld [vmem:[%s118 + $0x4e0] sm:$0xff]
    %v1309 = vld [vmem:[%s118 + $0x4e8] sm:$0xff]
    %v1310 = vld [vmem:[%s118 + $0x510] sm:$0xff]
    %v1311 = vld [vmem:[%s118 + $0x518] sm:$0xff]
    %v1312 = vld [vmem:[%s118 + $0x520] sm:$0xff]
    %v1313 = vld [vmem:[%s118 + $0x528] sm:$0xff]
    %v1314 = vld [vmem:[%s118 + $0x550] sm:$0xff]
    %v1315 = vld [vmem:[%s118 + $0x558] sm:$0xff]
    %v1316 = vld [vmem:[%s118 + $0x560] sm:$0xff]
    %v1317 = vld [vmem:[%s118 + $0x568] sm:$0xff]
    %v1318 = vld [vmem:[%s118 + $0x590] sm:$0xff]
    %v1319 = vld [vmem:[%s118 + $0x598] sm:$0xff]
    %v1320 = vld [vmem:[%s118 + $0x5a0] sm:$0xff]
    %v1321 = vld [vmem:[%s118 + $0x5a8] sm:$0xff]
    %v1322 = vld [vmem:[%s118 + $0x5d0] sm:$0xff]
    %v1323 = vld [vmem:[%s118 + $0x5d8] sm:$0xff]
    %v1324 = vld [vmem:[%s118 + $0x5e0] sm:$0xff]
    %v1325 = vld [vmem:[%s118 + $0x5e8] sm:$0xff]
    %v1326 = vld [vmem:[%s118 + $0x610] sm:$0xff]
    %v1327 = vld [vmem:[%s118 + $0x618] sm:$0xff]
    %v1328 = vld [vmem:[%s118 + $0x620] sm:$0xff]
    %v1329 = vld [vmem:[%s118 + $0x628] sm:$0xff]
    %v1330 = vld [vmem:[%s118 + $0x650] sm:$0xff]
    %v1331 = vld [vmem:[%s118 + $0x658] sm:$0xff]
    %v1332 = vld [vmem:[%s118 + $0x660] sm:$0xff]
    %v1333 = vld [vmem:[%s118 + $0x668] sm:$0xff]
    %v1334 = vld [vmem:[%s118 + $0x690] sm:$0xff]
    %v1335 = vld [vmem:[%s118 + $0x698] sm:$0xff]
    %v1336 = vld [vmem:[%s118 + $0x6a0] sm:$0xff]
    %v1337 = vld [vmem:[%s118 + $0x6a8] sm:$0xff]
    %v1338 = vld [vmem:[%s118 + $0x6d0] sm:$0xff]
    %v1339 = vld [vmem:[%s118 + $0x6d8] sm:$0xff]
    %v1340 = vld [vmem:[%s118 + $0x6e0] sm:$0xff]
    %v1341 = vld [vmem:[%s118 + $0x6e8] sm:$0xff]
    %v1342 = vld [vmem:[%s118 + $0x710] sm:$0xff]
    %v1343 = vld [vmem:[%s118 + $0x718] sm:$0xff]
    %v1344 = vld [vmem:[%s118 + $0x720] sm:$0xff]
    %v1345 = vld [vmem:[%s118 + $0x728] sm:$0xff]
    %v1346 = vld [vmem:[%s118 + $0x750] sm:$0xff]
    %v1347 = vld [vmem:[%s118 + $0x758] sm:$0xff]
    %v1348 = vld [vmem:[%s118 + $0x760] sm:$0xff]
    %v1349 = vld [vmem:[%s118 + $0x768] sm:$0xff]
    %v1350 = vld [vmem:[%s118 + $0x790] sm:$0xff]
    %v1351 = vld [vmem:[%s118 + $0x798] sm:$0xff]
    %v1352 = vld [vmem:[%s118 + $0x7a0] sm:$0xff]
    %v1353 = vld [vmem:[%s118 + $0x7a8] sm:$0xff]
    %v1354 = vld [vmem:[%s118 + $0x7d0] sm:$0xff]
    %v1355 = vld [vmem:[%s118 + $0x7d8] sm:$0xff]
    %v1356 = vld [vmem:[%s118 + $0x7e0] sm:$0xff]
    %v1357 = vld [vmem:[%s118 + $0x7e8] sm:$0xff]
    %v1358 = vld [vmem:[%s118 + $0x810] sm:$0xff]
    %v1359 = vld [vmem:[%s118 + $0x818] sm:$0xff]
    %v1360 = vld [vmem:[%s118 + $0x820] sm:$0xff]
    %v1361 = vld [vmem:[%s118 + $0x828] sm:$0xff]
    %v1362 = vld [vmem:[%s118 + $0x850] sm:$0xff]
    %v1363 = vld [vmem:[%s118 + $0x858] sm:$0xff]
    %v1364 = vld [vmem:[%s118 + $0x860] sm:$0xff]
    %v1365 = vld [vmem:[%s118 + $0x868] sm:$0xff]
    %s1366 = scalar_lea.vmem %s1, 192
    %v1367 = vld [vmem:[%s1366] sm:$0xff]
    %v1368 = vld [vmem:[%s1366 + $0x8] sm:$0xff]
    %v1369 = vld [vmem:[%s1366 + $0x10] sm:$0xff]
    %v1370 = vld [vmem:[%s1366 + $0x18] sm:$0xff]
    %v1371 = vld [vmem:[%s1366 + $0x20] sm:$0xff]
    %v1372 = vld [vmem:[%s1366 + $0x28] sm:$0xff]
    %v1373 = vld [vmem:[%s1366 + $0x30] sm:$0xff]
    %v1374 = vld [vmem:[%s1366 + $0x38] sm:$0xff]
    %v1375 = vld [vmem:[%s1366 + $0x40] sm:$0xff]
    %v1376 = vld [vmem:[%s1366 + $0x48] sm:$0xff]
    %v1377 = vld [vmem:[%s1366 + $0x50] sm:$0xff]
    %v1378 = vld [vmem:[%s1366 + $0x58] sm:$0xff]
    %v1379 = vld [vmem:[%s1366 + $0x60] sm:$0xff]
    %v1380 = vld [vmem:[%s1366 + $0x68] sm:$0xff]
    %v1381 = vld [vmem:[%s1366 + $0x70] sm:$0xff]
    %v1382 = vld [vmem:[%s1366 + $0x78] sm:$0xff]
    %v1383 = vld [vmem:[%s1366 + $0x80] sm:$0xff]
    %v1384 = vld [vmem:[%s1366 + $0x88] sm:$0xff]
    %v1385 = vld [vmem:[%s1366 + $0x90] sm:$0xff]
    %v1386 = vld [vmem:[%s1366 + $0x98] sm:$0xff]
    %v1387 = vld [vmem:[%s1366 + $0xa0] sm:$0xff]
    %v1388 = vld [vmem:[%s1366 + $0xa8] sm:$0xff]
    %v1389 = vld [vmem:[%s1366 + $0xb0] sm:$0xff]
    %v1390 = vld [vmem:[%s1366 + $0xb8] sm:$0xff]
    %v1392 = vsel %vm101, %v1239, 0
    %v1395 = vsel %vm101, %v1241, 0
    %v1398 = vsel %vm101, %v1243, 0
    %v1401 = vsel %vm101, %v1245, 0
    %v1404 = vsel %vm101, %v1247, 0
    %v1407 = vsel %vm101, %v1249, 0
    %v1410 = vsel %vm101, %v1251, 0
    %v1413 = vsel %vm101, %v1253, 0
    %v1416 = vsel %vm101, %v1255, 0
    %v1419 = vsel %vm101, %v1257, 0
    %v1422 = vsel %vm101, %v1259, 0
    %v1425 = vsel %vm101, %v1261, 0
    %v1428 = vsel %vm101, %v1263, 0
    %v1431 = vsel %vm101, %v1265, 0
    %v1434 = vsel %vm101, %v1267, 0
    %v1437 = vsel %vm101, %v1269, 0
    %v1440 = vsel %vm101, %v1271, 0
    %v1443 = vsel %vm101, %v1273, 0
    %v1446 = vsel %vm101, %v1275, 0
    %v1449 = vsel %vm101, %v1277, 0
    %v1452 = vsel %vm101, %v1279, 0
    %v1455 = vsel %vm101, %v1281, 0
    %v1458 = vsel %vm101, %v1283, 0
    %v1461 = vsel %vm101, %v1285, 0
    %v1464 = vsel %vm101, %v1287, 0
    %v1467 = vsel %vm101, %v1289, 0
    %v1470 = vsel %vm101, %v1291, 0
    %v1473 = vsel %vm101, %v1293, 0
    %v1476 = vsel %vm101, %v1295, 0
    %v1479 = vsel %vm101, %v1297, 0
    %v1482 = vsel %vm101, %v1299, 0
    %v1485 = vsel %vm101, %v1301, 0
    %v1488 = vsel %vm101, %v1303, 0
    %v1491 = vsel %vm101, %v1305, 0
    %v1494 = vsel %vm101, %v1307, 0
    %v1497 = vsel %vm101, %v1309, 0
    %v1500 = vsel %vm101, %v1311, 0
    %v1503 = vsel %vm101, %v1313, 0
    %v1506 = vsel %vm101, %v1315, 0
    %v1509 = vsel %vm101, %v1317, 0
    %v1512 = vsel %vm101, %v1319, 0
    %v1515 = vsel %vm101, %v1321, 0
    %v1518 = vsel %vm101, %v1323, 0
    %v1521 = vsel %vm101, %v1325, 0
    %v1524 = vsel %vm101, %v1327, 0
    %v1527 = vsel %vm101, %v1329, 0
    %v1530 = vsel %vm101, %v1331, 0
    %v1533 = vsel %vm101, %v1333, 0
    %v1536 = vsel %vm101, %v1335, 0
    %v1539 = vsel %vm101, %v1337, 0
    %v1542 = vsel %vm101, %v1339, 0
    %v1545 = vsel %vm101, %v1341, 0
    %v1548 = vsel %vm101, %v1343, 0
    %v1551 = vsel %vm101, %v1345, 0
    %v1554 = vsel %vm101, %v1347, 0
    %v1557 = vsel %vm101, %v1349, 0
    %v1560 = vsel %vm101, %v1351, 0
    %v1563 = vsel %vm101, %v1353, 0
    %v1566 = vsel %vm101, %v1355, 0
    %v1569 = vsel %vm101, %v1357, 0
    %v1572 = vsel %vm101, %v1359, 0
    %v1575 = vsel %vm101, %v1361, 0
    %v1578 = vsel %vm101, %v1363, 0
    %v1581 = vsel %vm101, %v1365, 0
    %1583 = vmatprep.subr.mxu0 0.0
    %1584 = vmatpush1.msra.mxu0 %v1367
    %1585 = vmatprep.subr.mxu0 0.0
    %1586 = vmatpush1.msra.mxu0 %v1368
    %1587 = vmatprep.subr.mxu0 0.0
    %1588 = vmatpush1.msra.mxu0 %v1369
    %1589 = vmatprep.subr.mxu0 0.0
    %1590 = vmatpush1.msra.mxu0 %v1370
    %1591 = vmatprep.subr.mxu0 0.0
    %1592 = vmatpush1.msra.mxu0 %v1371
    %1593 = vmatprep.subr.mxu0 0.0
    %1594 = vmatpush1.msra.mxu0 %v1372
    %1595 = vmatprep.subr.mxu0 0.0
    %1596 = vmatpush1.msra.mxu0 %v1373
    %1597 = vmatprep.subr.mxu0 0.0
    %1598 = vmatpush1.msra.mxu0 %v1374
    %1599 = vmatprep.subr.mxu0 0.0
    %1600 = vmatpush1.msra.mxu0 %v1375
    %1601 = vmatprep.subr.mxu0 0.0
    %1602 = vmatpush1.msra.mxu0 %v1376
    %1603 = vmatprep.subr.mxu0 0.0
    %1604 = vmatpush1.msra.mxu0 %v1377
    %1605 = vmatprep.subr.mxu0 0.0
    %1606 = vmatpush1.msra.mxu0 %v1378
    %1607 = vmatprep.subr.mxu0 0.0
    %1608 = vmatpush1.msra.mxu0 %v1379
    %1609 = vmatprep.subr.mxu0 0.0
    %1610 = vmatpush1.msra.mxu0 %v1380
    %1611 = vmatprep.subr.mxu0 0.0
    %1612 = vmatpush1.msra.mxu0 %v1381
    %1613 = vmatprep.subr.mxu0 0.0
    %1614 = vmatpush1.msra.mxu0 %v1382
    %1615 = vmatprep.subr.mxu0 0.0
    %1616 = vmatpush1.msra.mxu0 %v1383
    %1617 = vmatprep.subr.mxu0 0.0
    %1618 = vmatpush1.msra.mxu0 %v1384
    %1619 = vmatprep.subr.mxu0 0.0
    %1620 = vmatpush1.msra.mxu0 %v1385
    %1621 = vmatprep.subr.mxu0 0.0
    %1622 = vmatpush1.msra.mxu0 %v1386
    %1623 = vmatprep.subr.mxu0 0.0
    %1624 = vmatpush1.msra.mxu0 %v1387
    %1625 = vmatprep.subr.mxu0 0.0
    %1626 = vmatpush1.msra.mxu0 %v1388
    %1627 = vmatprep.subr.mxu0 0.0
    %1628 = vmatpush1.msra.mxu0 %v1389
    %1629 = vmatprep.subr.mxu0 0.0
    %1630 = vmatpush1.msra.mxu0 %v1390
    %1631 = vmatprep.subr.mxu0 0.0
    %1632 = vmatpush1.msra.mxu0 0.0
    %1633 = vmatprep.subr.mxu0 0.0
    %1634 = vmatpush1.msra.mxu0 0.0
    %1635 = vmatprep.subr.mxu0 0.0
    %1636 = vmatpush1.msra.mxu0 0.0
    %1637 = vmatprep.subr.mxu0 0.0
    %1638 = vmatpush1.msra.mxu0 0.0
    %1639 = vmatprep.subr.mxu0 0.0
    %1640 = vmatpush1.msra.mxu0 0.0
    %1641 = vmatprep.subr.mxu0 0.0
    %1642 = vmatpush1.msra.mxu0 0.0
    %1643 = vmatprep.subr.mxu0 0.0
    %1644 = vmatpush1.msra.mxu0 0.0
    %1645 = vmatprep.subr.mxu0 0.0
    %1646 = vmatpush1.msra.mxu0 0.0
    %1647 = vmatprep.mubr.f32.mxu0 %v1392
    %1648 = vmatmul.mubr.f32.gmra.mrb[0].mxu0 %v1238
    %v1649 = vpop.f32.mrb[0].mxu0
    %v1650 = vadd.f32 0.0, %v1649
    %v1651 = vpop.f32.mrb[0].mxu0
    %1652 = vmatprep.mubr.f32.mxu0 %v1395
    %1653 = vmatmul.mubr.f32.gmra.mrb[0].mxu0 %v1240
    %v1654 = vpop.f32.mrb[0].mxu0
    %v1655 = vadd.f32 0.0, %v1654
    %v1656 = vpop.f32.mrb[0].mxu0
    %1657 = vmatprep.mubr.f32.mxu0 %v1398
    %1658 = vmatmul.mubr.f32.gmra.mrb[0].mxu0 %v1242
    %v1659 = vpop.f32.mrb[0].mxu0
    %v1660 = vadd.f32 0.0, %v1659
    %v1661 = vpop.f32.mrb[0].mxu0
    %1662 = vmatprep.mubr.f32.mxu0 %v1401
    %1663 = vmatmul.mubr.f32.gmra.mrb[0].mxu0 %v1244
    %v1664 = vpop.f32.mrb[0].mxu0
    %v1665 = vadd.f32 0.0, %v1664
    %v1666 = vpop.f32.mrb[0].mxu0
    %1667 = vmatprep.mubr.f32.mxu0 %v1404
    %1668 = vmatmul.mubr.f32.gmra.mrb[0].mxu0 %v1246
    %v1669 = vpop.f32.mrb[0].mxu0
    %v1670 = vadd.f32 0.0, %v1669
    %v1671 = vpop.f32.mrb[0].mxu0
    %1672 = vmatprep.mubr.f32.mxu0 %v1407
    %1673 = vmatmul.mubr.f32.gmra.mrb[0].mxu0 %v1248
    %v1674 = vpop.f32.mrb[0].mxu0
    %v1675 = vadd.f32 0.0, %v1674
    %v1676 = vpop.f32.mrb[0].mxu0
    %1677 = vmatprep.mubr.f32.mxu0 %v1410
    %1678 = vmatmul.mubr.f32.gmra.mrb[0].mxu0 %v1250
    %v1679 = vpop.f32.mrb[0].mxu0
    %v1680 = vadd.f32 0.0, %v1679
    %v1681 = vpop.f32.mrb[0].mxu0
    %1682 = vmatprep.mubr.f32.mxu0 %v1413
    %1683 = vmatmul.mubr.f32.gmra.mrb[0].mxu0 %v1252
    %v1684 = vpop.f32.mrb[0].mxu0
    %v1685 = vadd.f32 0.0, %v1684
    %v1686 = vpop.f32.mrb[0].mxu0
    %1687 = vmatprep.mubr.f32.mxu0 %v1416
    %1688 = vmatmul.mubr.f32.gmra.mrb[0].mxu0 %v1254
    %v1689 = vpop.f32.mrb[0].mxu0
    %v1690 = vadd.f32 0.0, %v1689
    %v1691 = vpop.f32.mrb[0].mxu0
    %1692 = vmatprep.mubr.f32.mxu0 %v1419
    %1693 = vmatmul.mubr.f32.gmra.mrb[0].mxu0 %v1256
    %v1694 = vpop.f32.mrb[0].mxu0
    %v1695 = vadd.f32 0.0, %v1694
    %v1696 = vpop.f32.mrb[0].mxu0
    %1697 = vmatprep.mubr.f32.mxu0 %v1422
    %1698 = vmatmul.mubr.f32.gmra.mrb[0].mxu0 %v1258
    %v1699 = vpop.f32.mrb[0].mxu0
    %v1700 = vadd.f32 0.0, %v1699
    %v1701 = vpop.f32.mrb[0].mxu0
    %1702 = vmatprep.mubr.f32.mxu0 %v1425
    %1703 = vmatmul.mubr.f32.gmra.mrb[0].mxu0 %v1260
    %v1704 = vpop.f32.mrb[0].mxu0
    %v1705 = vadd.f32 0.0, %v1704
    %v1706 = vpop.f32.mrb[0].mxu0
    %1707 = vmatprep.mubr.f32.mxu0 %v1428
    %1708 = vmatmul.mubr.f32.gmra.mrb[0].mxu0 %v1262
    %v1709 = vpop.f32.mrb[0].mxu0
    %v1710 = vadd.f32 0.0, %v1709
    %v1711 = vpop.f32.mrb[0].mxu0
    %1712 = vmatprep.mubr.f32.mxu0 %v1431
    %1713 = vmatmul.mubr.f32.gmra.mrb[0].mxu0 %v1264
    %v1714 = vpop.f32.mrb[0].mxu0
    %v1715 = vadd.f32 0.0, %v1714
    %v1716 = vpop.f32.mrb[0].mxu0
    %1717 = vmatprep.mubr.f32.mxu0 %v1434
    %1718 = vmatmul.mubr.f32.gmra.mrb[0].mxu0 %v1266
    %v1719 = vpop.f32.mrb[0].mxu0
    %v1720 = vadd.f32 0.0, %v1719
    %v1721 = vpop.f32.mrb[0].mxu0
    %1722 = vmatprep.mubr.f32.mxu0 %v1437
    %1723 = vmatmul.mubr.f32.gmra.mrb[0].mxu0 %v1268
    %v1724 = vpop.f32.mrb[0].mxu0
    %v1725 = vadd.f32 0.0, %v1724
    %v1726 = vpop.f32.mrb[0].mxu0
    %1727 = vmatprep.mubr.f32.mxu0 %v1440
    %1728 = vmatmul.mubr.f32.gmra.mrb[0].mxu0 %v1270
    %v1729 = vpop.f32.mrb[0].mxu0
    %v1730 = vadd.f32 0.0, %v1729
    %v1731 = vpop.f32.mrb[0].mxu0
    %1732 = vmatprep.mubr.f32.mxu0 %v1443
    %1733 = vmatmul.mubr.f32.gmra.mrb[0].mxu0 %v1272
    %v1734 = vpop.f32.mrb[0].mxu0
    %v1735 = vadd.f32 0.0, %v1734
    %v1736 = vpop.f32.mrb[0].mxu0
    %1737 = vmatprep.mubr.f32.mxu0 %v1446
    %1738 = vmatmul.mubr.f32.gmra.mrb[0].mxu0 %v1274
    %v1739 = vpop.f32.mrb[0].mxu0
    %v1740 = vadd.f32 0.0, %v1739
    %v1741 = vpop.f32.mrb[0].mxu0
    %1742 = vmatprep.mubr.f32.mxu0 %v1449
    %1743 = vmatmul.mubr.f32.gmra.mrb[0].mxu0 %v1276
    %v1744 = vpop.f32.mrb[0].mxu0
    %v1745 = vadd.f32 0.0, %v1744
    %v1746 = vpop.f32.mrb[0].mxu0
    %1747 = vmatprep.mubr.f32.mxu0 %v1452
    %1748 = vmatmul.mubr.f32.gmra.mrb[0].mxu0 %v1278
    %v1749 = vpop.f32.mrb[0].mxu0
    %v1750 = vadd.f32 0.0, %v1749
    %v1751 = vpop.f32.mrb[0].mxu0
    %1752 = vmatprep.mubr.f32.mxu0 %v1455
    %1753 = vmatmul.mubr.f32.gmra.mrb[0].mxu0 %v1280
    %v1754 = vpop.f32.mrb[0].mxu0
    %v1755 = vadd.f32 0.0, %v1754
    %v1756 = vpop.f32.mrb[0].mxu0
    %1757 = vmatprep.mubr.f32.mxu0 %v1458
    %1758 = vmatmul.mubr.f32.gmra.mrb[0].mxu0 %v1282
    %v1759 = vpop.f32.mrb[0].mxu0
    %v1760 = vadd.f32 0.0, %v1759
    %v1761 = vpop.f32.mrb[0].mxu0
    %1762 = vmatprep.mubr.f32.mxu0 %v1461
    %1763 = vmatmul.mubr.f32.gmra.mrb[0].mxu0 %v1284
    %v1764 = vpop.f32.mrb[0].mxu0
    %v1765 = vadd.f32 0.0, %v1764
    %v1766 = vpop.f32.mrb[0].mxu0
    %1767 = vmatprep.mubr.f32.mxu0 %v1464
    %1768 = vmatmul.mubr.f32.gmra.mrb[0].mxu0 %v1286
    %v1769 = vpop.f32.mrb[0].mxu0
    %v1770 = vadd.f32 0.0, %v1769
    %v1771 = vpop.f32.mrb[0].mxu0
    %1772 = vmatprep.mubr.f32.mxu0 %v1467
    %1773 = vmatmul.mubr.f32.gmra.mrb[0].mxu0 %v1288
    %v1774 = vpop.f32.mrb[0].mxu0
    %v1775 = vadd.f32 0.0, %v1774
    %v1776 = vpop.f32.mrb[0].mxu0
    %1777 = vmatprep.mubr.f32.mxu0 %v1470
    %1778 = vmatmul.mubr.f32.gmra.mrb[0].mxu0 %v1290
    %v1779 = vpop.f32.mrb[0].mxu0
    %v1780 = vadd.f32 0.0, %v1779
    %v1781 = vpop.f32.mrb[0].mxu0
    %1782 = vmatprep.mubr.f32.mxu0 %v1473
    %1783 = vmatmul.mubr.f32.gmra.mrb[0].mxu0 %v1292
    %v1784 = vpop.f32.mrb[0].mxu0
    %v1785 = vadd.f32 0.0, %v1784
    %v1786 = vpop.f32.mrb[0].mxu0
    %1787 = vmatprep.mubr.f32.mxu0 %v1476
    %1788 = vmatmul.mubr.f32.gmra.mrb[0].mxu0 %v1294
    %v1789 = vpop.f32.mrb[0].mxu0
    %v1790 = vadd.f32 0.0, %v1789
    %v1791 = vpop.f32.mrb[0].mxu0
    %1792 = vmatprep.mubr.f32.mxu0 %v1479
    %1793 = vmatmul.mubr.f32.gmra.mrb[0].mxu0 %v1296
    %v1794 = vpop.f32.mrb[0].mxu0
    %v1795 = vadd.f32 0.0, %v1794
    %v1796 = vpop.f32.mrb[0].mxu0
    %1797 = vmatprep.mubr.f32.mxu0 %v1482
    %1798 = vmatmul.mubr.f32.gmra.mrb[0].mxu0 %v1298
    %v1799 = vpop.f32.mrb[0].mxu0
    %v1800 = vadd.f32 0.0, %v1799
    %v1801 = vpop.f32.mrb[0].mxu0
    %1802 = vmatprep.mubr.f32.mxu0 %v1485
    %1803 = vmatmul.mubr.f32.gmra.mrb[0].mxu0 %v1300
    %v1804 = vpop.f32.mrb[0].mxu0
    %v1805 = vadd.f32 0.0, %v1804
    %v1806 = vpop.f32.mrb[0].mxu0
    %1807 = vmatprep.mubr.f32.mxu0 %v1488
    %1808 = vmatmul.mubr.f32.gmra.mrb[0].mxu0 %v1302
    %v1809 = vpop.f32.mrb[0].mxu0
    %v1810 = vadd.f32 0.0, %v1809
    %v1811 = vpop.f32.mrb[0].mxu0
    %1812 = vmatprep.mubr.f32.mxu0 %v1491
    %1813 = vmatmul.mubr.f32.gmra.mrb[0].mxu0 %v1304
    %v1814 = vpop.f32.mrb[0].mxu0
    %v1815 = vadd.f32 0.0, %v1814
    %v1816 = vpop.f32.mrb[0].mxu0
    %1817 = vmatprep.mubr.f32.mxu0 %v1494
    %1818 = vmatmul.mubr.f32.gmra.mrb[0].mxu0 %v1306
    %v1819 = vpop.f32.mrb[0].mxu0
    %v1820 = vadd.f32 0.0, %v1819
    %v1821 = vpop.f32.mrb[0].mxu0
    %1822 = vmatprep.mubr.f32.mxu0 %v1497
    %1823 = vmatmul.mubr.f32.gmra.mrb[0].mxu0 %v1308
    %v1824 = vpop.f32.mrb[0].mxu0
    %v1825 = vadd.f32 0.0, %v1824
    %v1826 = vpop.f32.mrb[0].mxu0
    %1827 = vmatprep.mubr.f32.mxu0 %v1500
    %1828 = vmatmul.mubr.f32.gmra.mrb[0].mxu0 %v1310
    %v1829 = vpop.f32.mrb[0].mxu0
    %v1830 = vadd.f32 0.0, %v1829
    %v1831 = vpop.f32.mrb[0].mxu0
    %1832 = vmatprep.mubr.f32.mxu0 %v1503
    %1833 = vmatmul.mubr.f32.gmra.mrb[0].mxu0 %v1312
    %v1834 = vpop.f32.mrb[0].mxu0
    %v1835 = vadd.f32 0.0, %v1834
    %v1836 = vpop.f32.mrb[0].mxu0
    %1837 = vmatprep.mubr.f32.mxu0 %v1506
    %1838 = vmatmul.mubr.f32.gmra.mrb[0].mxu0 %v1314
    %v1839 = vpop.f32.mrb[0].mxu0
    %v1840 = vadd.f32 0.0, %v1839
    %v1841 = vpop.f32.mrb[0].mxu0
    %1842 = vmatprep.mubr.f32.mxu0 %v1509
    %1843 = vmatmul.mubr.f32.gmra.mrb[0].mxu0 %v1316
    %v1844 = vpop.f32.mrb[0].mxu0
    %v1845 = vadd.f32 0.0, %v1844
    %v1846 = vpop.f32.mrb[0].mxu0
    %1847 = vmatprep.mubr.f32.mxu0 %v1512
    %1848 = vmatmul.mubr.f32.gmra.mrb[0].mxu0 %v1318
    %v1849 = vpop.f32.mrb[0].mxu0
    %v1850 = vadd.f32 0.0, %v1849
    %v1851 = vpop.f32.mrb[0].mxu0
    %1852 = vmatprep.mubr.f32.mxu0 %v1515
    %1853 = vmatmul.mubr.f32.gmra.mrb[0].mxu0 %v1320
    %v1854 = vpop.f32.mrb[0].mxu0
    %v1855 = vadd.f32 0.0, %v1854
    %v1856 = vpop.f32.mrb[0].mxu0
    %1857 = vmatprep.mubr.f32.mxu0 %v1518
    %1858 = vmatmul.mubr.f32.gmra.mrb[0].mxu0 %v1322
    %v1859 = vpop.f32.mrb[0].mxu0
    %v1860 = vadd.f32 0.0, %v1859
    %v1861 = vpop.f32.mrb[0].mxu0
    %1862 = vmatprep.mubr.f32.mxu0 %v1521
    %1863 = vmatmul.mubr.f32.gmra.mrb[0].mxu0 %v1324
    %v1864 = vpop.f32.mrb[0].mxu0
    %v1865 = vadd.f32 0.0, %v1864
    %v1866 = vpop.f32.mrb[0].mxu0
    %1867 = vmatprep.mubr.f32.mxu0 %v1524
    %1868 = vmatmul.mubr.f32.gmra.mrb[0].mxu0 %v1326
    %v1869 = vpop.f32.mrb[0].mxu0
    %v1870 = vadd.f32 0.0, %v1869
    %v1871 = vpop.f32.mrb[0].mxu0
    %1872 = vmatprep.mubr.f32.mxu0 %v1527
    %1873 = vmatmul.mubr.f32.gmra.mrb[0].mxu0 %v1328
    %v1874 = vpop.f32.mrb[0].mxu0
    %v1875 = vadd.f32 0.0, %v1874
    %v1876 = vpop.f32.mrb[0].mxu0
    %1877 = vmatprep.mubr.f32.mxu0 %v1530
    %1878 = vmatmul.mubr.f32.gmra.mrb[0].mxu0 %v1330
    %v1879 = vpop.f32.mrb[0].mxu0
    %v1880 = vadd.f32 0.0, %v1879
    %v1881 = vpop.f32.mrb[0].mxu0
    %1882 = vmatprep.mubr.f32.mxu0 %v1533
    %1883 = vmatmul.mubr.f32.gmra.mrb[0].mxu0 %v1332
    %v1884 = vpop.f32.mrb[0].mxu0
    %v1885 = vadd.f32 0.0, %v1884
    %v1886 = vpop.f32.mrb[0].mxu0
    %1887 = vmatprep.mubr.f32.mxu0 %v1536
    %1888 = vmatmul.mubr.f32.gmra.mrb[0].mxu0 %v1334
    %v1889 = vpop.f32.mrb[0].mxu0
    %v1890 = vadd.f32 0.0, %v1889
    %v1891 = vpop.f32.mrb[0].mxu0
    %1892 = vmatprep.mubr.f32.mxu0 %v1539
    %1893 = vmatmul.mubr.f32.gmra.mrb[0].mxu0 %v1336
    %v1894 = vpop.f32.mrb[0].mxu0
    %v1895 = vadd.f32 0.0, %v1894
    %v1896 = vpop.f32.mrb[0].mxu0
    %1897 = vmatprep.mubr.f32.mxu0 %v1542
    %1898 = vmatmul.mubr.f32.gmra.mrb[0].mxu0 %v1338
    %v1899 = vpop.f32.mrb[0].mxu0
    %v1900 = vadd.f32 0.0, %v1899
    %v1901 = vpop.f32.mrb[0].mxu0
    %1902 = vmatprep.mubr.f32.mxu0 %v1545
    %1903 = vmatmul.mubr.f32.gmra.mrb[0].mxu0 %v1340
    %v1904 = vpop.f32.mrb[0].mxu0
    %v1905 = vadd.f32 0.0, %v1904
    %v1906 = vpop.f32.mrb[0].mxu0
    %1907 = vmatprep.mubr.f32.mxu0 %v1548
    %1908 = vmatmul.mubr.f32.gmra.mrb[0].mxu0 %v1342
    %v1909 = vpop.f32.mrb[0].mxu0
    %v1910 = vadd.f32 0.0, %v1909
    %v1911 = vpop.f32.mrb[0].mxu0
    %1912 = vmatprep.mubr.f32.mxu0 %v1551
    %1913 = vmatmul.mubr.f32.gmra.mrb[0].mxu0 %v1344
    %v1914 = vpop.f32.mrb[0].mxu0
    %v1915 = vadd.f32 0.0, %v1914
    %v1916 = vpop.f32.mrb[0].mxu0
    %1917 = vmatprep.mubr.f32.mxu0 %v1554
    %1918 = vmatmul.mubr.f32.gmra.mrb[0].mxu0 %v1346
    %v1919 = vpop.f32.mrb[0].mxu0
    %v1920 = vadd.f32 0.0, %v1919
    %v1921 = vpop.f32.mrb[0].mxu0
    %1922 = vmatprep.mubr.f32.mxu0 %v1557
    %1923 = vmatmul.mubr.f32.gmra.mrb[0].mxu0 %v1348
    %v1924 = vpop.f32.mrb[0].mxu0
    %v1925 = vadd.f32 0.0, %v1924
    %v1926 = vpop.f32.mrb[0].mxu0
    %1927 = vmatprep.mubr.f32.mxu0 %v1560
    %1928 = vmatmul.mubr.f32.gmra.mrb[0].mxu0 %v1350
    %v1929 = vpop.f32.mrb[0].mxu0
    %v1930 = vadd.f32 0.0, %v1929
    %v1931 = vpop.f32.mrb[0].mxu0
    %1932 = vmatprep.mubr.f32.mxu0 %v1563
    %1933 = vmatmul.mubr.f32.gmra.mrb[0].mxu0 %v1352
    %v1934 = vpop.f32.mrb[0].mxu0
    %v1935 = vadd.f32 0.0, %v1934
    %v1936 = vpop.f32.mrb[0].mxu0
    %1937 = vmatprep.mubr.f32.mxu0 %v1566
    %1938 = vmatmul.mubr.f32.gmra.mrb[0].mxu0 %v1354
    %v1939 = vpop.f32.mrb[0].mxu0
    %v1940 = vadd.f32 0.0, %v1939
    %v1941 = vpop.f32.mrb[0].mxu0
    %1942 = vmatprep.mubr.f32.mxu0 %v1569
    %1943 = vmatmul.mubr.f32.gmra.mrb[0].mxu0 %v1356
    %v1944 = vpop.f32.mrb[0].mxu0
    %v1945 = vadd.f32 0.0, %v1944
    %v1946 = vpop.f32.mrb[0].mxu0
    %1947 = vmatprep.mubr.f32.mxu0 %v1572
    %1948 = vmatmul.mubr.f32.gmra.mrb[0].mxu0 %v1358
    %v1949 = vpop.f32.mrb[0].mxu0
    %v1950 = vadd.f32 0.0, %v1949
    %v1951 = vpop.f32.mrb[0].mxu0
    %1952 = vmatprep.mubr.f32.mxu0 %v1575
    %1953 = vmatmul.mubr.f32.gmra.mrb[0].mxu0 %v1360
    %v1954 = vpop.f32.mrb[0].mxu0
    %v1955 = vadd.f32 0.0, %v1954
    %v1956 = vpop.f32.mrb[0].mxu0
    %1957 = vmatprep.mubr.f32.mxu0 %v1578
    %1958 = vmatmul.mubr.f32.gmra.mrb[0].mxu0 %v1362
    %v1959 = vpop.f32.mrb[0].mxu0
    %v1960 = vadd.f32 0.0, %v1959
    %v1961 = vpop.f32.mrb[0].mxu0
    %1962 = vmatprep.mubr.f32.mxu0 %v1581
    %1963 = vmatmul.mubr.f32.gmra.mrb[0].mxu0 %v1364
    %v1964 = vpop.f32.mrb[0].mxu0
    %v1965 = vadd.f32 0.0, %v1964
    %v1966 = vpop.f32.mrb[0].mxu0
    %1967 = vdwg.mxu0
    %v1969 = vsel %vm101, %v1087, 0
    %v1972 = vsel %vm101, %v1089, 0
    %v1975 = vsel %vm101, %v1091, 0
    %v1978 = vsel %vm101, %v1093, 0
    %v1981 = vsel %vm101, %v1095, 0
    %v1984 = vsel %vm101, %v1097, 0
    %v1987 = vsel %vm101, %v1099, 0
    %v1990 = vsel %vm101, %v1101, 0
    %v1993 = vsel %vm101, %v1103, 0
    %v1996 = vsel %vm101, %v1105, 0
    %v1999 = vsel %vm101, %v1107, 0
    %v2002 = vsel %vm101, %v1109, 0
    %v2005 = vsel %vm101, %v1111, 0
    %v2008 = vsel %vm101, %v1113, 0
    %v2011 = vsel %vm101, %v1115, 0
    %v2014 = vsel %vm101, %v1117, 0
    %v2017 = vsel %vm101, %v1119, 0
    %v2020 = vsel %vm101, %v1121, 0
    %v2023 = vsel %vm101, %v1123, 0
    %v2026 = vsel %vm101, %v1125, 0
    %v2029 = vsel %vm101, %v1127, 0
    %v2032 = vsel %vm101, %v1129, 0
    %v2035 = vsel %vm101, %v1131, 0
    %v2038 = vsel %vm101, %v1133, 0
    %v2041 = vsel %vm101, %v1135, 0
    %v2044 = vsel %vm101, %v1137, 0
    %v2047 = vsel %vm101, %v1139, 0
    %v2050 = vsel %vm101, %v1141, 0
    %v2053 = vsel %vm101, %v1143, 0
    %v2056 = vsel %vm101, %v1145, 0
    %v2059 = vsel %vm101, %v1147, 0
    %v2062 = vsel %vm101, %v1149, 0
    %v2065 = vsel %vm101, %v1151, 0
    %v2068 = vsel %vm101, %v1153, 0
    %v2071 = vsel %vm101, %v1155, 0
    %v2074 = vsel %vm101, %v1157, 0
    %v2077 = vsel %vm101, %v1159, 0
    %v2080 = vsel %vm101, %v1161, 0
    %v2083 = vsel %vm101, %v1163, 0
    %v2086 = vsel %vm101, %v1165, 0
    %v2089 = vsel %vm101, %v1167, 0
    %v2092 = vsel %vm101, %v1169, 0
    %v2095 = vsel %vm101, %v1171, 0
    %v2098 = vsel %vm101, %v1173, 0
    %v2101 = vsel %vm101, %v1175, 0
    %v2104 = vsel %vm101, %v1177, 0
    %v2107 = vsel %vm101, %v1179, 0
    %v2110 = vsel %vm101, %v1181, 0
    %v2113 = vsel %vm101, %v1183, 0
    %v2116 = vsel %vm101, %v1185, 0
    %v2119 = vsel %vm101, %v1187, 0
    %v2122 = vsel %vm101, %v1189, 0
    %v2125 = vsel %vm101, %v1191, 0
    %v2128 = vsel %vm101, %v1193, 0
    %v2131 = vsel %vm101, %v1195, 0
    %v2134 = vsel %vm101, %v1197, 0
    %v2137 = vsel %vm101, %v1199, 0
    %v2140 = vsel %vm101, %v1201, 0
    %v2143 = vsel %vm101, %v1203, 0
    %v2146 = vsel %vm101, %v1205, 0
    %v2149 = vsel %vm101, %v1207, 0
    %v2152 = vsel %vm101, %v1209, 0
    %v2155 = vsel %vm101, %v1211, 0
    %v2158 = vsel %vm101, %v1213, 0
    %2160 = vmatprep.subr.mxu0 0.0
    %2161 = vmatpush1.msra.mxu0 %v1214
    %2162 = vmatprep.subr.mxu0 0.0
    %2163 = vmatpush1.msra.mxu0 %v1215
    %2164 = vmatprep.subr.mxu0 0.0
    %2165 = vmatpush1.msra.mxu0 %v1216
    %2166 = vmatprep.subr.mxu0 0.0
    %2167 = vmatpush1.msra.mxu0 %v1217
    %2168 = vmatprep.subr.mxu0 0.0
    %2169 = vmatpush1.msra.mxu0 %v1218
    %2170 = vmatprep.subr.mxu0 0.0
    %2171 = vmatpush1.msra.mxu0 %v1219
    %2172 = vmatprep.subr.mxu0 0.0
    %2173 = vmatpush1.msra.mxu0 %v1220
    %2174 = vmatprep.subr.mxu0 0.0
    %2175 = vmatpush1.msra.mxu0 %v1221
    %2176 = vmatprep.subr.mxu0 0.0
    %2177 = vmatpush1.msra.mxu0 %v1222
    %2178 = vmatprep.subr.mxu0 0.0
    %2179 = vmatpush1.msra.mxu0 %v1223
    %2180 = vmatprep.subr.mxu0 0.0
    %2181 = vmatpush1.msra.mxu0 %v1224
    %2182 = vmatprep.subr.mxu0 0.0
    %2183 = vmatpush1.msra.mxu0 %v1225
    %2184 = vmatprep.subr.mxu0 0.0
    %2185 = vmatpush1.msra.mxu0 %v1226
    %2186 = vmatprep.subr.mxu0 0.0
    %2187 = vmatpush1.msra.mxu0 %v1227
    %2188 = vmatprep.subr.mxu0 0.0
    %2189 = vmatpush1.msra.mxu0 %v1228
    %2190 = vmatprep.subr.mxu0 0.0
    %2191 = vmatpush1.msra.mxu0 %v1229
    %2192 = vmatprep.subr.mxu0 0.0
    %2193 = vmatpush1.msra.mxu0 %v1230
    %2194 = vmatprep.subr.mxu0 0.0
    %2195 = vmatpush1.msra.mxu0 %v1231
    %2196 = vmatprep.subr.mxu0 0.0
    %2197 = vmatpush1.msra.mxu0 %v1232
    %2198 = vmatprep.subr.mxu0 0.0
    %2199 = vmatpush1.msra.mxu0 %v1233
    %2200 = vmatprep.subr.mxu0 0.0
    %2201 = vmatpush1.msra.mxu0 %v1234
    %2202 = vmatprep.subr.mxu0 0.0
    %2203 = vmatpush1.msra.mxu0 %v1235
    %2204 = vmatprep.subr.mxu0 0.0
    %2205 = vmatpush1.msra.mxu0 %v1236
    %2206 = vmatprep.subr.mxu0 0.0
    %2207 = vmatpush1.msra.mxu0 %v1237
    %2208 = vmatprep.subr.mxu0 0.0
    %2209 = vmatpush1.msra.mxu0 0.0
    %2210 = vmatprep.subr.mxu0 0.0
    %2211 = vmatpush1.msra.mxu0 0.0
    %2212 = vmatprep.subr.mxu0 0.0
    %2213 = vmatpush1.msra.mxu0 0.0
    %2214 = vmatprep.subr.mxu0 0.0
    %2215 = vmatpush1.msra.mxu0 0.0
    %2216 = vmatprep.subr.mxu0 0.0
    %2217 = vmatpush1.msra.mxu0 0.0
    %2218 = vmatprep.subr.mxu0 0.0
    %2219 = vmatpush1.msra.mxu0 0.0
    %2220 = vmatprep.subr.mxu0 0.0
    %2221 = vmatpush1.msra.mxu0 0.0
    %2222 = vmatprep.subr.mxu0 0.0
    %2223 = vmatpush1.msra.mxu0 0.0
    %2224 = vmatprep.mubr.f32.mxu0 %v1969
    %2225 = vmatmul.mubr.f32.gmra.mrb[0].mxu0 %v1086
    %v2226 = vpop.f32.mrb[0].mxu0
    %v2227 = vadd.f32 %v1650, %v2226
    %v2228 = vpop.f32.mrb[0].mxu0
    %2229 = vmatprep.mubr.f32.mxu0 %v1972
    %2230 = vmatmul.mubr.f32.gmra.mrb[0].mxu0 %v1088
    %v2231 = vpop.f32.mrb[0].mxu0
    %v2232 = vadd.f32 %v1655, %v2231
    %v2233 = vpop.f32.mrb[0].mxu0
    %2234 = vmatprep.mubr.f32.mxu0 %v1975
    %2235 = vmatmul.mubr.f32.gmra.mrb[0].mxu0 %v1090
    %v2236 = vpop.f32.mrb[0].mxu0
    %v2237 = vadd.f32 %v1660, %v2236
    %v2238 = vpop.f32.mrb[0].mxu0
    %2239 = vmatprep.mubr.f32.mxu0 %v1978
    %2240 = vmatmul.mubr.f32.gmra.mrb[0].mxu0 %v1092
    %v2241 = vpop.f32.mrb[0].mxu0
    %v2242 = vadd.f32 %v1665, %v2241
    %v2243 = vpop.f32.mrb[0].mxu0
    %2244 = vmatprep.mubr.f32.mxu0 %v1981
    %2245 = vmatmul.mubr.f32.gmra.mrb[0].mxu0 %v1094
    %v2246 = vpop.f32.mrb[0].mxu0
    %v2247 = vadd.f32 %v1670, %v2246
    %v2248 = vpop.f32.mrb[0].mxu0
    %2249 = vmatprep.mubr.f32.mxu0 %v1984
    %2250 = vmatmul.mubr.f32.gmra.mrb[0].mxu0 %v1096
    %v2251 = vpop.f32.mrb[0].mxu0
    %v2252 = vadd.f32 %v1675, %v2251
    %v2253 = vpop.f32.mrb[0].mxu0
    %2254 = vmatprep.mubr.f32.mxu0 %v1987
    %2255 = vmatmul.mubr.f32.gmra.mrb[0].mxu0 %v1098
    %v2256 = vpop.f32.mrb[0].mxu0
    %v2257 = vadd.f32 %v1680, %v2256
    %v2258 = vpop.f32.mrb[0].mxu0
    %2259 = vmatprep.mubr.f32.mxu0 %v1990
    %2260 = vmatmul.mubr.f32.gmra.mrb[0].mxu0 %v1100
    %v2261 = vpop.f32.mrb[0].mxu0
    %v2262 = vadd.f32 %v1685, %v2261
    %v2263 = vpop.f32.mrb[0].mxu0
    %2264 = vmatprep.mubr.f32.mxu0 %v1993
    %2265 = vmatmul.mubr.f32.gmra.mrb[0].mxu0 %v1102
    %v2266 = vpop.f32.mrb[0].mxu0
    %v2267 = vadd.f32 %v1690, %v2266
    %v2268 = vpop.f32.mrb[0].mxu0
    %2269 = vmatprep.mubr.f32.mxu0 %v1996
    %2270 = vmatmul.mubr.f32.gmra.mrb[0].mxu0 %v1104
    %v2271 = vpop.f32.mrb[0].mxu0
    %v2272 = vadd.f32 %v1695, %v2271
    %v2273 = vpop.f32.mrb[0].mxu0
    %2274 = vmatprep.mubr.f32.mxu0 %v1999
    %2275 = vmatmul.mubr.f32.gmra.mrb[0].mxu0 %v1106
    %v2276 = vpop.f32.mrb[0].mxu0
    %v2277 = vadd.f32 %v1700, %v2276
    %v2278 = vpop.f32.mrb[0].mxu0
    %2279 = vmatprep.mubr.f32.mxu0 %v2002
    %2280 = vmatmul.mubr.f32.gmra.mrb[0].mxu0 %v1108
    %v2281 = vpop.f32.mrb[0].mxu0
    %v2282 = vadd.f32 %v1705, %v2281
    %v2283 = vpop.f32.mrb[0].mxu0
    %2284 = vmatprep.mubr.f32.mxu0 %v2005
    %2285 = vmatmul.mubr.f32.gmra.mrb[0].mxu0 %v1110
    %v2286 = vpop.f32.mrb[0].mxu0
    %v2287 = vadd.f32 %v1710, %v2286
    %v2288 = vpop.f32.mrb[0].mxu0
    %2289 = vmatprep.mubr.f32.mxu0 %v2008
    %2290 = vmatmul.mubr.f32.gmra.mrb[0].mxu0 %v1112
    %v2291 = vpop.f32.mrb[0].mxu0
    %v2292 = vadd.f32 %v1715, %v2291
    %v2293 = vpop.f32.mrb[0].mxu0
    %2294 = vmatprep.mubr.f32.mxu0 %v2011
    %2295 = vmatmul.mubr.f32.gmra.mrb[0].mxu0 %v1114
    %v2296 = vpop.f32.mrb[0].mxu0
    %v2297 = vadd.f32 %v1720, %v2296
    %v2298 = vpop.f32.mrb[0].mxu0
    %2299 = vmatprep.mubr.f32.mxu0 %v2014
    %2300 = vmatmul.mubr.f32.gmra.mrb[0].mxu0 %v1116
    %v2301 = vpop.f32.mrb[0].mxu0
    %v2302 = vadd.f32 %v1725, %v2301
    %v2303 = vpop.f32.mrb[0].mxu0
    %2304 = vmatprep.mubr.f32.mxu0 %v2017
    %2305 = vmatmul.mubr.f32.gmra.mrb[0].mxu0 %v1118
    %v2306 = vpop.f32.mrb[0].mxu0
    %v2307 = vadd.f32 %v1730, %v2306
    %v2308 = vpop.f32.mrb[0].mxu0
    %2309 = vmatprep.mubr.f32.mxu0 %v2020
    %2310 = vmatmul.mubr.f32.gmra.mrb[0].mxu0 %v1120
    %v2311 = vpop.f32.mrb[0].mxu0
    %v2312 = vadd.f32 %v1735, %v2311
    %v2313 = vpop.f32.mrb[0].mxu0
    %2314 = vmatprep.mubr.f32.mxu0 %v2023
    %2315 = vmatmul.mubr.f32.gmra.mrb[0].mxu0 %v1122
    %v2316 = vpop.f32.mrb[0].mxu0
    %v2317 = vadd.f32 %v1740, %v2316
    %v2318 = vpop.f32.mrb[0].mxu0
    %2319 = vmatprep.mubr.f32.mxu0 %v2026
    %2320 = vmatmul.mubr.f32.gmra.mrb[0].mxu0 %v1124
    %v2321 = vpop.f32.mrb[0].mxu0
    %v2322 = vadd.f32 %v1745, %v2321
    %v2323 = vpop.f32.mrb[0].mxu0
    %2324 = vmatprep.mubr.f32.mxu0 %v2029
    %2325 = vmatmul.mubr.f32.gmra.mrb[0].mxu0 %v1126
    %v2326 = vpop.f32.mrb[0].mxu0
    %v2327 = vadd.f32 %v1750, %v2326
    %v2328 = vpop.f32.mrb[0].mxu0
    %2329 = vmatprep.mubr.f32.mxu0 %v2032
    %2330 = vmatmul.mubr.f32.gmra.mrb[0].mxu0 %v1128
    %v2331 = vpop.f32.mrb[0].mxu0
    %v2332 = vadd.f32 %v1755, %v2331
    %v2333 = vpop.f32.mrb[0].mxu0
    %2334 = vmatprep.mubr.f32.mxu0 %v2035
    %2335 = vmatmul.mubr.f32.gmra.mrb[0].mxu0 %v1130
    %v2336 = vpop.f32.mrb[0].mxu0
    %v2337 = vadd.f32 %v1760, %v2336
    %v2338 = vpop.f32.mrb[0].mxu0
    %2339 = vmatprep.mubr.f32.mxu0 %v2038
    %2340 = vmatmul.mubr.f32.gmra.mrb[0].mxu0 %v1132
    %v2341 = vpop.f32.mrb[0].mxu0
    %v2342 = vadd.f32 %v1765, %v2341
    %v2343 = vpop.f32.mrb[0].mxu0
    %2344 = vmatprep.mubr.f32.mxu0 %v2041
    %2345 = vmatmul.mubr.f32.gmra.mrb[0].mxu0 %v1134
    %v2346 = vpop.f32.mrb[0].mxu0
    %v2347 = vadd.f32 %v1770, %v2346
    %v2348 = vpop.f32.mrb[0].mxu0
    %2349 = vmatprep.mubr.f32.mxu0 %v2044
    %2350 = vmatmul.mubr.f32.gmra.mrb[0].mxu0 %v1136
    %v2351 = vpop.f32.mrb[0].mxu0
    %v2352 = vadd.f32 %v1775, %v2351
    %v2353 = vpop.f32.mrb[0].mxu0
    %2354 = vmatprep.mubr.f32.mxu0 %v2047
    %2355 = vmatmul.mubr.f32.gmra.mrb[0].mxu0 %v1138
    %v2356 = vpop.f32.mrb[0].mxu0
    %v2357 = vadd.f32 %v1780, %v2356
    %v2358 = vpop.f32.mrb[0].mxu0
    %2359 = vmatprep.mubr.f32.mxu0 %v2050
    %2360 = vmatmul.mubr.f32.gmra.mrb[0].mxu0 %v1140
    %v2361 = vpop.f32.mrb[0].mxu0
    %v2362 = vadd.f32 %v1785, %v2361
    %v2363 = vpop.f32.mrb[0].mxu0
    %2364 = vmatprep.mubr.f32.mxu0 %v2053
    %2365 = vmatmul.mubr.f32.gmra.mrb[0].mxu0 %v1142
    %v2366 = vpop.f32.mrb[0].mxu0
    %v2367 = vadd.f32 %v1790, %v2366
    %v2368 = vpop.f32.mrb[0].mxu0
    %2369 = vmatprep.mubr.f32.mxu0 %v2056
    %2370 = vmatmul.mubr.f32.gmra.mrb[0].mxu0 %v1144
    %v2371 = vpop.f32.mrb[0].mxu0
    %v2372 = vadd.f32 %v1795, %v2371
    %v2373 = vpop.f32.mrb[0].mxu0
    %2374 = vmatprep.mubr.f32.mxu0 %v2059
    %2375 = vmatmul.mubr.f32.gmra.mrb[0].mxu0 %v1146
    %v2376 = vpop.f32.mrb[0].mxu0
    %v2377 = vadd.f32 %v1800, %v2376
    %v2378 = vpop.f32.mrb[0].mxu0
    %2379 = vmatprep.mubr.f32.mxu0 %v2062
    %2380 = vmatmul.mubr.f32.gmra.mrb[0].mxu0 %v1148
    %v2381 = vpop.f32.mrb[0].mxu0
    %v2382 = vadd.f32 %v1805, %v2381
    %v2383 = vpop.f32.mrb[0].mxu0
    %2384 = vmatprep.mubr.f32.mxu0 %v2065
    %2385 = vmatmul.mubr.f32.gmra.mrb[0].mxu0 %v1150
    %v2386 = vpop.f32.mrb[0].mxu0
    %v2387 = vadd.f32 %v1810, %v2386
    %v2388 = vpop.f32.mrb[0].mxu0
    %2389 = vmatprep.mubr.f32.mxu0 %v2068
    %2390 = vmatmul.mubr.f32.gmra.mrb[0].mxu0 %v1152
    %v2391 = vpop.f32.mrb[0].mxu0
    %v2392 = vadd.f32 %v1815, %v2391
    %v2393 = vpop.f32.mrb[0].mxu0
    %2394 = vmatprep.mubr.f32.mxu0 %v2071
    %2395 = vmatmul.mubr.f32.gmra.mrb[0].mxu0 %v1154
    %v2396 = vpop.f32.mrb[0].mxu0
    %v2397 = vadd.f32 %v1820, %v2396
    %v2398 = vpop.f32.mrb[0].mxu0
    %2399 = vmatprep.mubr.f32.mxu0 %v2074
    %2400 = vmatmul.mubr.f32.gmra.mrb[0].mxu0 %v1156
    %v2401 = vpop.f32.mrb[0].mxu0
    %v2402 = vadd.f32 %v1825, %v2401
    %v2403 = vpop.f32.mrb[0].mxu0
    %2404 = vmatprep.mubr.f32.mxu0 %v2077
    %2405 = vmatmul.mubr.f32.gmra.mrb[0].mxu0 %v1158
    %v2406 = vpop.f32.mrb[0].mxu0
    %v2407 = vadd.f32 %v1830, %v2406
    %v2408 = vpop.f32.mrb[0].mxu0
    %2409 = vmatprep.mubr.f32.mxu0 %v2080
    %2410 = vmatmul.mubr.f32.gmra.mrb[0].mxu0 %v1160
    %v2411 = vpop.f32.mrb[0].mxu0
    %v2412 = vadd.f32 %v1835, %v2411
    %v2413 = vpop.f32.mrb[0].mxu0
    %2414 = vmatprep.mubr.f32.mxu0 %v2083
    %2415 = vmatmul.mubr.f32.gmra.mrb[0].mxu0 %v1162
    %v2416 = vpop.f32.mrb[0].mxu0
    %v2417 = vadd.f32 %v1840, %v2416
    %v2418 = vpop.f32.mrb[0].mxu0
    %2419 = vmatprep.mubr.f32.mxu0 %v2086
    %2420 = vmatmul.mubr.f32.gmra.mrb[0].mxu0 %v1164
    %v2421 = vpop.f32.mrb[0].mxu0
    %v2422 = vadd.f32 %v1845, %v2421
    %v2423 = vpop.f32.mrb[0].mxu0
    %2424 = vmatprep.mubr.f32.mxu0 %v2089
    %2425 = vmatmul.mubr.f32.gmra.mrb[0].mxu0 %v1166
    %v2426 = vpop.f32.mrb[0].mxu0
    %v2427 = vadd.f32 %v1850, %v2426
    %v2428 = vpop.f32.mrb[0].mxu0
    %2429 = vmatprep.mubr.f32.mxu0 %v2092
    %2430 = vmatmul.mubr.f32.gmra.mrb[0].mxu0 %v1168
    %v2431 = vpop.f32.mrb[0].mxu0
    %v2432 = vadd.f32 %v1855, %v2431
    %v2433 = vpop.f32.mrb[0].mxu0
    %2434 = vmatprep.mubr.f32.mxu0 %v2095
    %2435 = vmatmul.mubr.f32.gmra.mrb[0].mxu0 %v1170
    %v2436 = vpop.f32.mrb[0].mxu0
    %v2437 = vadd.f32 %v1860, %v2436
    %v2438 = vpop.f32.mrb[0].mxu0
    %2439 = vmatprep.mubr.f32.mxu0 %v2098
    %2440 = vmatmul.mubr.f32.gmra.mrb[0].mxu0 %v1172
    %v2441 = vpop.f32.mrb[0].mxu0
    %v2442 = vadd.f32 %v1865, %v2441
    %v2443 = vpop.f32.mrb[0].mxu0
    %2444 = vmatprep.mubr.f32.mxu0 %v2101
    %2445 = vmatmul.mubr.f32.gmra.mrb[0].mxu0 %v1174
    %v2446 = vpop.f32.mrb[0].mxu0
    %v2447 = vadd.f32 %v1870, %v2446
    %v2448 = vpop.f32.mrb[0].mxu0
    %2449 = vmatprep.mubr.f32.mxu0 %v2104
    %2450 = vmatmul.mubr.f32.gmra.mrb[0].mxu0 %v1176
    %v2451 = vpop.f32.mrb[0].mxu0
    %v2452 = vadd.f32 %v1875, %v2451
    %v2453 = vpop.f32.mrb[0].mxu0
    %2454 = vmatprep.mubr.f32.mxu0 %v2107
    %2455 = vmatmul.mubr.f32.gmra.mrb[0].mxu0 %v1178
    %v2456 = vpop.f32.mrb[0].mxu0
    %v2457 = vadd.f32 %v1880, %v2456
    %v2458 = vpop.f32.mrb[0].mxu0
    %2459 = vmatprep.mubr.f32.mxu0 %v2110
    %2460 = vmatmul.mubr.f32.gmra.mrb[0].mxu0 %v1180
    %v2461 = vpop.f32.mrb[0].mxu0
    %v2462 = vadd.f32 %v1885, %v2461
    %v2463 = vpop.f32.mrb[0].mxu0
    %2464 = vmatprep.mubr.f32.mxu0 %v2113
    %2465 = vmatmul.mubr.f32.gmra.mrb[0].mxu0 %v1182
    %v2466 = vpop.f32.mrb[0].mxu0
    %v2467 = vadd.f32 %v1890, %v2466
    %v2468 = vpop.f32.mrb[0].mxu0
    %2469 = vmatprep.mubr.f32.mxu0 %v2116
    %2470 = vmatmul.mubr.f32.gmra.mrb[0].mxu0 %v1184
    %v2471 = vpop.f32.mrb[0].mxu0
    %v2472 = vadd.f32 %v1895, %v2471
    %v2473 = vpop.f32.mrb[0].mxu0
    %2474 = vmatprep.mubr.f32.mxu0 %v2119
    %2475 = vmatmul.mubr.f32.gmra.mrb[0].mxu0 %v1186
    %v2476 = vpop.f32.mrb[0].mxu0
    %v2477 = vadd.f32 %v1900, %v2476
    %v2478 = vpop.f32.mrb[0].mxu0
    %2479 = vmatprep.mubr.f32.mxu0 %v2122
    %2480 = vmatmul.mubr.f32.gmra.mrb[0].mxu0 %v1188
    %v2481 = vpop.f32.mrb[0].mxu0
    %v2482 = vadd.f32 %v1905, %v2481
    %v2483 = vpop.f32.mrb[0].mxu0
    %2484 = vmatprep.mubr.f32.mxu0 %v2125
    %2485 = vmatmul.mubr.f32.gmra.mrb[0].mxu0 %v1190
    %v2486 = vpop.f32.mrb[0].mxu0
    %v2487 = vadd.f32 %v1910, %v2486
    %v2488 = vpop.f32.mrb[0].mxu0
    %2489 = vmatprep.mubr.f32.mxu0 %v2128
    %2490 = vmatmul.mubr.f32.gmra.mrb[0].mxu0 %v1192
    %v2491 = vpop.f32.mrb[0].mxu0
    %v2492 = vadd.f32 %v1915, %v2491
    %v2493 = vpop.f32.mrb[0].mxu0
    %2494 = vmatprep.mubr.f32.mxu0 %v2131
    %2495 = vmatmul.mubr.f32.gmra.mrb[0].mxu0 %v1194
    %v2496 = vpop.f32.mrb[0].mxu0
    %v2497 = vadd.f32 %v1920, %v2496
    %v2498 = vpop.f32.mrb[0].mxu0
    %2499 = vmatprep.mubr.f32.mxu0 %v2134
    %2500 = vmatmul.mubr.f32.gmra.mrb[0].mxu0 %v1196
    %v2501 = vpop.f32.mrb[0].mxu0
    %v2502 = vadd.f32 %v1925, %v2501
    %v2503 = vpop.f32.mrb[0].mxu0
    %2504 = vmatprep.mubr.f32.mxu0 %v2137
    %2505 = vmatmul.mubr.f32.gmra.mrb[0].mxu0 %v1198
    %v2506 = vpop.f32.mrb[0].mxu0
    %v2507 = vadd.f32 %v1930, %v2506
    %v2508 = vpop.f32.mrb[0].mxu0
    %2509 = vmatprep.mubr.f32.mxu0 %v2140
    %2510 = vmatmul.mubr.f32.gmra.mrb[0].mxu0 %v1200
    %v2511 = vpop.f32.mrb[0].mxu0
    %v2512 = vadd.f32 %v1935, %v2511
    %v2513 = vpop.f32.mrb[0].mxu0
    %2514 = vmatprep.mubr.f32.mxu0 %v2143
    %2515 = vmatmul.mubr.f32.gmra.mrb[0].mxu0 %v1202
    %v2516 = vpop.f32.mrb[0].mxu0
    %v2517 = vadd.f32 %v1940, %v2516
    %v2518 = vpop.f32.mrb[0].mxu0
    %2519 = vmatprep.mubr.f32.mxu0 %v2146
    %2520 = vmatmul.mubr.f32.gmra.mrb[0].mxu0 %v1204
    %v2521 = vpop.f32.mrb[0].mxu0
    %v2522 = vadd.f32 %v1945, %v2521
    %v2523 = vpop.f32.mrb[0].mxu0
    %2524 = vmatprep.mubr.f32.mxu0 %v2149
    %2525 = vmatmul.mubr.f32.gmra.mrb[0].mxu0 %v1206
    %v2526 = vpop.f32.mrb[0].mxu0
    %v2527 = vadd.f32 %v1950, %v2526
    %v2528 = vpop.f32.mrb[0].mxu0
    %2529 = vmatprep.mubr.f32.mxu0 %v2152
    %2530 = vmatmul.mubr.f32.gmra.mrb[0].mxu0 %v1208
    %v2531 = vpop.f32.mrb[0].mxu0
    %v2532 = vadd.f32 %v1955, %v2531
    %v2533 = vpop.f32.mrb[0].mxu0
    %2534 = vmatprep.mubr.f32.mxu0 %v2155
    %2535 = vmatmul.mubr.f32.gmra.mrb[0].mxu0 %v1210
    %v2536 = vpop.f32.mrb[0].mxu0
    %v2537 = vadd.f32 %v1960, %v2536
    %v2538 = vpop.f32.mrb[0].mxu0
    %2539 = vmatprep.mubr.f32.mxu0 %v2158
    %2540 = vmatmul.mubr.f32.gmra.mrb[0].mxu0 %v1212
    %v2541 = vpop.f32.mrb[0].mxu0
    %v2542 = vadd.f32 %v1965, %v2541
    %v2543 = vpop.f32.mrb[0].mxu0
    %2544 = vdwg.mxu0
    %s2545 = scalar_lea.vmem [#allocation2], 128
    %v2546 = vld [vmem:[%s2545 + $0x10] sm:$0xff]
    %v2547 = vld [vmem:[%s2545 + $0x18] sm:$0xff]
    %v2548 = vld [vmem:[%s2545 + $0x20] sm:$0xff]
    %v2549 = vld [vmem:[%s2545 + $0x28] sm:$0xff]
    %v2550 = vld [vmem:[%s2545 + $0x50] sm:$0xff]
    %v2551 = vld [vmem:[%s2545 + $0x58] sm:$0xff]
    %v2552 = vld [vmem:[%s2545 + $0x60] sm:$0xff]
    %v2553 = vld [vmem:[%s2545 + $0x68] sm:$0xff]
    %v2554 = vld [vmem:[%s2545 + $0x90] sm:$0xff]
    %v2555 = vld [vmem:[%s2545 + $0x98] sm:$0xff]
    %v2556 = vld [vmem:[%s2545 + $0xa0] sm:$0xff]
    %v2557 = vld [vmem:[%s2545 + $0xa8] sm:$0xff]
    %v2558 = vld [vmem:[%s2545 + $0xd0] sm:$0xff]
    %v2559 = vld [vmem:[%s2545 + $0xd8] sm:$0xff]
    %v2560 = vld [vmem:[%s2545 + $0xe0] sm:$0xff]
    %v2561 = vld [vmem:[%s2545 + $0xe8] sm:$0xff]
    %v2562 = vld [vmem:[%s2545 + $0x110] sm:$0xff]
    %v2563 = vld [vmem:[%s2545 + $0x118] sm:$0xff]
    %v2564 = vld [vmem:[%s2545 + $0x120] sm:$0xff]
    %v2565 = vld [vmem:[%s2545 + $0x128] sm:$0xff]
    %v2566 = vld [vmem:[%s2545 + $0x150] sm:$0xff]
    %v2567 = vld [vmem:[%s2545 + $0x158] sm:$0xff]
    %v2568 = vld [vmem:[%s2545 + $0x160] sm:$0xff]
    %v2569 = vld [vmem:[%s2545 + $0x168] sm:$0xff]
    %v2570 = vld [vmem:[%s2545 + $0x190] sm:$0xff]
    %v2571 = vld [vmem:[%s2545 + $0x198] sm:$0xff]
    %v2572 = vld [vmem:[%s2545 + $0x1a0] sm:$0xff]
    %v2573 = vld [vmem:[%s2545 + $0x1a8] sm:$0xff]
    %v2574 = vld [vmem:[%s2545 + $0x1d0] sm:$0xff]
    %v2575 = vld [vmem:[%s2545 + $0x1d8] sm:$0xff]
    %v2576 = vld [vmem:[%s2545 + $0x1e0] sm:$0xff]
    %v2577 = vld [vmem:[%s2545 + $0x1e8] sm:$0xff]
    %v2578 = vld [vmem:[%s2545 + $0x210] sm:$0xff]
    %v2579 = vld [vmem:[%s2545 + $0x218] sm:$0xff]
    %v2580 = vld [vmem:[%s2545 + $0x220] sm:$0xff]
    %v2581 = vld [vmem:[%s2545 + $0x228] sm:$0xff]
    %v2582 = vld [vmem:[%s2545 + $0x250] sm:$0xff]
    %v2583 = vld [vmem:[%s2545 + $0x258] sm:$0xff]
    %v2584 = vld [vmem:[%s2545 + $0x260] sm:$0xff]
    %v2585 = vld [vmem:[%s2545 + $0x268] sm:$0xff]
    %v2586 = vld [vmem:[%s2545 + $0x290] sm:$0xff]
    %v2587 = vld [vmem:[%s2545 + $0x298] sm:$0xff]
    %v2588 = vld [vmem:[%s2545 + $0x2a0] sm:$0xff]
    %v2589 = vld [vmem:[%s2545 + $0x2a8] sm:$0xff]
    %v2590 = vld [vmem:[%s2545 + $0x2d0] sm:$0xff]
    %v2591 = vld [vmem:[%s2545 + $0x2d8] sm:$0xff]
    %v2592 = vld [vmem:[%s2545 + $0x2e0] sm:$0xff]
    %v2593 = vld [vmem:[%s2545 + $0x2e8] sm:$0xff]
    %v2594 = vld [vmem:[%s2545 + $0x310] sm:$0xff]
    %v2595 = vld [vmem:[%s2545 + $0x318] sm:$0xff]
    %v2596 = vld [vmem:[%s2545 + $0x320] sm:$0xff]
    %v2597 = vld [vmem:[%s2545 + $0x328] sm:$0xff]
    %v2598 = vld [vmem:[%s2545 + $0x350] sm:$0xff]
    %v2599 = vld [vmem:[%s2545 + $0x358] sm:$0xff]
    %v2600 = vld [vmem:[%s2545 + $0x360] sm:$0xff]
    %v2601 = vld [vmem:[%s2545 + $0x368] sm:$0xff]
    %v2602 = vld [vmem:[%s2545 + $0x390] sm:$0xff]
    %v2603 = vld [vmem:[%s2545 + $0x398] sm:$0xff]
    %v2604 = vld [vmem:[%s2545 + $0x3a0] sm:$0xff]
    %v2605 = vld [vmem:[%s2545 + $0x3a8] sm:$0xff]
    %v2606 = vld [vmem:[%s2545 + $0x3d0] sm:$0xff]
    %v2607 = vld [vmem:[%s2545 + $0x3d8] sm:$0xff]
    %v2608 = vld [vmem:[%s2545 + $0x3e0] sm:$0xff]
    %v2609 = vld [vmem:[%s2545 + $0x3e8] sm:$0xff]
    %v2610 = vld [vmem:[%s2545 + $0x490] sm:$0xff]
    %v2611 = vld [vmem:[%s2545 + $0x498] sm:$0xff]
    %v2612 = vld [vmem:[%s2545 + $0x4a0] sm:$0xff]
    %v2613 = vld [vmem:[%s2545 + $0x4a8] sm:$0xff]
    %v2614 = vld [vmem:[%s2545 + $0x4d0] sm:$0xff]
    %v2615 = vld [vmem:[%s2545 + $0x4d8] sm:$0xff]
    %v2616 = vld [vmem:[%s2545 + $0x4e0] sm:$0xff]
    %v2617 = vld [vmem:[%s2545 + $0x4e8] sm:$0xff]
    %v2618 = vld [vmem:[%s2545 + $0x510] sm:$0xff]
    %v2619 = vld [vmem:[%s2545 + $0x518] sm:$0xff]
    %v2620 = vld [vmem:[%s2545 + $0x520] sm:$0xff]
    %v2621 = vld [vmem:[%s2545 + $0x528] sm:$0xff]
    %v2622 = vld [vmem:[%s2545 + $0x550] sm:$0xff]
    %v2623 = vld [vmem:[%s2545 + $0x558] sm:$0xff]
    %v2624 = vld [vmem:[%s2545 + $0x560] sm:$0xff]
    %v2625 = vld [vmem:[%s2545 + $0x568] sm:$0xff]
    %v2626 = vld [vmem:[%s2545 + $0x590] sm:$0xff]
    %v2627 = vld [vmem:[%s2545 + $0x598] sm:$0xff]
    %v2628 = vld [vmem:[%s2545 + $0x5a0] sm:$0xff]
    %v2629 = vld [vmem:[%s2545 + $0x5a8] sm:$0xff]
    %v2630 = vld [vmem:[%s2545 + $0x5d0] sm:$0xff]
    %v2631 = vld [vmem:[%s2545 + $0x5d8] sm:$0xff]
    %v2632 = vld [vmem:[%s2545 + $0x5e0] sm:$0xff]
    %v2633 = vld [vmem:[%s2545 + $0x5e8] sm:$0xff]
    %v2634 = vld [vmem:[%s2545 + $0x610] sm:$0xff]
    %v2635 = vld [vmem:[%s2545 + $0x618] sm:$0xff]
    %v2636 = vld [vmem:[%s2545 + $0x620] sm:$0xff]
    %v2637 = vld [vmem:[%s2545 + $0x628] sm:$0xff]
    %v2638 = vld [vmem:[%s2545 + $0x650] sm:$0xff]
    %v2639 = vld [vmem:[%s2545 + $0x658] sm:$0xff]
    %v2640 = vld [vmem:[%s2545 + $0x660] sm:$0xff]
    %v2641 = vld [vmem:[%s2545 + $0x668] sm:$0xff]
    %v2642 = vld [vmem:[%s2545 + $0x690] sm:$0xff]
    %v2643 = vld [vmem:[%s2545 + $0x698] sm:$0xff]
    %v2644 = vld [vmem:[%s2545 + $0x6a0] sm:$0xff]
    %v2645 = vld [vmem:[%s2545 + $0x6a8] sm:$0xff]
    %v2646 = vld [vmem:[%s2545 + $0x6d0] sm:$0xff]
    %v2647 = vld [vmem:[%s2545 + $0x6d8] sm:$0xff]
    %v2648 = vld [vmem:[%s2545 + $0x6e0] sm:$0xff]
    %v2649 = vld [vmem:[%s2545 + $0x6e8] sm:$0xff]
    %v2650 = vld [vmem:[%s2545 + $0x710] sm:$0xff]
    %v2651 = vld [vmem:[%s2545 + $0x718] sm:$0xff]
    %v2652 = vld [vmem:[%s2545 + $0x720] sm:$0xff]
    %v2653 = vld [vmem:[%s2545 + $0x728] sm:$0xff]
    %v2654 = vld [vmem:[%s2545 + $0x750] sm:$0xff]
    %v2655 = vld [vmem:[%s2545 + $0x758] sm:$0xff]
    %v2656 = vld [vmem:[%s2545 + $0x760] sm:$0xff]
    %v2657 = vld [vmem:[%s2545 + $0x768] sm:$0xff]
    %v2658 = vld [vmem:[%s2545 + $0x790] sm:$0xff]
    %v2659 = vld [vmem:[%s2545 + $0x798] sm:$0xff]
    %v2660 = vld [vmem:[%s2545 + $0x7a0] sm:$0xff]
    %v2661 = vld [vmem:[%s2545 + $0x7a8] sm:$0xff]
    %v2662 = vld [vmem:[%s2545 + $0x7d0] sm:$0xff]
    %v2663 = vld [vmem:[%s2545 + $0x7d8] sm:$0xff]
    %v2664 = vld [vmem:[%s2545 + $0x7e0] sm:$0xff]
    %v2665 = vld [vmem:[%s2545 + $0x7e8] sm:$0xff]
    %v2666 = vld [vmem:[%s2545 + $0x810] sm:$0xff]
    %v2667 = vld [vmem:[%s2545 + $0x818] sm:$0xff]
    %v2668 = vld [vmem:[%s2545 + $0x820] sm:$0xff]
    %v2669 = vld [vmem:[%s2545 + $0x828] sm:$0xff]
    %v2670 = vld [vmem:[%s2545 + $0x850] sm:$0xff]
    %v2671 = vld [vmem:[%s2545 + $0x858] sm:$0xff]
    %v2672 = vld [vmem:[%s2545 + $0x860] sm:$0xff]
    %v2673 = vld [vmem:[%s2545 + $0x868] sm:$0xff]
    %s2674 = scalar_lea.vmem %s1, 384
    %v2675 = vld [vmem:[%s2674] sm:$0xff]
    %v2676 = vld [vmem:[%s2674 + $0x8] sm:$0xff]
    %v2677 = vld [vmem:[%s2674 + $0x10] sm:$0xff]
    %v2678 = vld [vmem:[%s2674 + $0x18] sm:$0xff]
    %v2679 = vld [vmem:[%s2674 + $0x20] sm:$0xff]
    %v2680 = vld [vmem:[%s2674 + $0x28] sm:$0xff]
    %v2681 = vld [vmem:[%s2674 + $0x30] sm:$0xff]
    %v2682 = vld [vmem:[%s2674 + $0x38] sm:$0xff]
    %v2683 = vld [vmem:[%s2674 + $0x40] sm:$0xff]
    %v2684 = vld [vmem:[%s2674 + $0x48] sm:$0xff]
    %v2685 = vld [vmem:[%s2674 + $0x50] sm:$0xff]
    %v2686 = vld [vmem:[%s2674 + $0x58] sm:$0xff]
    %v2687 = vld [vmem:[%s2674 + $0x60] sm:$0xff]
    %v2688 = vld [vmem:[%s2674 + $0x68] sm:$0xff]
    %v2689 = vld [vmem:[%s2674 + $0x70] sm:$0xff]
    %v2690 = vld [vmem:[%s2674 + $0x78] sm:$0xff]
    %v2691 = vld [vmem:[%s2674 + $0x80] sm:$0xff]
    %v2692 = vld [vmem:[%s2674 + $0x88] sm:$0xff]
    %v2693 = vld [vmem:[%s2674 + $0x90] sm:$0xff]
    %v2694 = vld [vmem:[%s2674 + $0x98] sm:$0xff]
    %v2695 = vld [vmem:[%s2674 + $0xa0] sm:$0xff]
    %v2696 = vld [vmem:[%s2674 + $0xa8] sm:$0xff]
    %v2697 = vld [vmem:[%s2674 + $0xb0] sm:$0xff]
    %v2698 = vld [vmem:[%s2674 + $0xb8] sm:$0xff]
    %v2700 = vsel %vm101, %v2547, 0
    %v2703 = vsel %vm101, %v2549, 0
    %v2706 = vsel %vm101, %v2551, 0
    %v2709 = vsel %vm101, %v2553, 0
    %v2712 = vsel %vm101, %v2555, 0
    %v2715 = vsel %vm101, %v2557, 0
    %v2718 = vsel %vm101, %v2559, 0
    %v2721 = vsel %vm101, %v2561, 0
    %v2724 = vsel %vm101, %v2563, 0
    %v2727 = vsel %vm101, %v2565, 0
    %v2730 = vsel %vm101, %v2567, 0
    %v2733 = vsel %vm101, %v2569, 0
    %v2736 = vsel %vm101, %v2571, 0
    %v2739 = vsel %vm101, %v2573, 0
    %v2742 = vsel %vm101, %v2575, 0
    %v2745 = vsel %vm101, %v2577, 0
    %v2748 = vsel %vm101, %v2579, 0
    %v2751 = vsel %vm101, %v2581, 0
    %v2754 = vsel %vm101, %v2583, 0
    %v2757 = vsel %vm101, %v2585, 0
    %v2760 = vsel %vm101, %v2587, 0
    %v2763 = vsel %vm101, %v2589, 0
    %v2766 = vsel %vm101, %v2591, 0
    %v2769 = vsel %vm101, %v2593, 0
    %v2772 = vsel %vm101, %v2595, 0
    %v2775 = vsel %vm101, %v2597, 0
    %v2778 = vsel %vm101, %v2599, 0
    %v2781 = vsel %vm101, %v2601, 0
    %v2784 = vsel %vm101, %v2603, 0
    %v2787 = vsel %vm101, %v2605, 0
    %v2790 = vsel %vm101, %v2607, 0
    %v2793 = vsel %vm101, %v2609, 0
    %v2796 = vsel %vm101, %v2611, 0
    %v2799 = vsel %vm101, %v2613, 0
    %v2802 = vsel %vm101, %v2615, 0
    %v2805 = vsel %vm101, %v2617, 0
    %v2808 = vsel %vm101, %v2619, 0
    %v2811 = vsel %vm101, %v2621, 0
    %v2814 = vsel %vm101, %v2623, 0
    %v2817 = vsel %vm101, %v2625, 0
    %v2820 = vsel %vm101, %v2627, 0
    %v2823 = vsel %vm101, %v2629, 0
    %v2826 = vsel %vm101, %v2631, 0
    %v2829 = vsel %vm101, %v2633, 0
    %v2832 = vsel %vm101, %v2635, 0
    %v2835 = vsel %vm101, %v2637, 0
    %v2838 = vsel %vm101, %v2639, 0
    %v2841 = vsel %vm101, %v2641, 0
    %v2844 = vsel %vm101, %v2643, 0
    %v2847 = vsel %vm101, %v2645, 0
    %v2850 = vsel %vm101, %v2647, 0
    %v2853 = vsel %vm101, %v2649, 0
    %v2856 = vsel %vm101, %v2651, 0
    %v2859 = vsel %vm101, %v2653, 0
    %v2862 = vsel %vm101, %v2655, 0
    %v2865 = vsel %vm101, %v2657, 0
    %v2868 = vsel %vm101, %v2659, 0
    %v2871 = vsel %vm101, %v2661, 0
    %v2874 = vsel %vm101, %v2663, 0
    %v2877 = vsel %vm101, %v2665, 0
    %v2880 = vsel %vm101, %v2667, 0
    %v2883 = vsel %vm101, %v2669, 0
    %v2886 = vsel %vm101, %v2671, 0
    %v2889 = vsel %vm101, %v2673, 0
    %2891 = vmatprep.subr.mxu0 0.0
    %2892 = vmatpush1.msra.mxu0 %v2675
    %2893 = vmatprep.subr.mxu0 0.0
    %2894 = vmatpush1.msra.mxu0 %v2676
    %2895 = vmatprep.subr.mxu0 0.0
    %2896 = vmatpush1.msra.mxu0 %v2677
    %2897 = vmatprep.subr.mxu0 0.0
    %2898 = vmatpush1.msra.mxu0 %v2678
    %2899 = vmatprep.subr.mxu0 0.0
    %2900 = vmatpush1.msra.mxu0 %v2679
    %2901 = vmatprep.subr.mxu0 0.0
    %2902 = vmatpush1.msra.mxu0 %v2680
    %2903 = vmatprep.subr.mxu0 0.0
    %2904 = vmatpush1.msra.mxu0 %v2681
    %2905 = vmatprep.subr.mxu0 0.0
    %2906 = vmatpush1.msra.mxu0 %v2682
    %2907 = vmatprep.subr.mxu0 0.0
    %2908 = vmatpush1.msra.mxu0 %v2683
    %2909 = vmatprep.subr.mxu0 0.0
    %2910 = vmatpush1.msra.mxu0 %v2684
    %2911 = vmatprep.subr.mxu0 0.0
    %2912 = vmatpush1.msra.mxu0 %v2685
    %2913 = vmatprep.subr.mxu0 0.0
    %2914 = vmatpush1.msra.mxu0 %v2686
    %2915 = vmatprep.subr.mxu0 0.0
    %2916 = vmatpush1.msra.mxu0 %v2687
    %2917 = vmatprep.subr.mxu0 0.0
    %2918 = vmatpush1.msra.mxu0 %v2688
    %2919 = vmatprep.subr.mxu0 0.0
    %2920 = vmatpush1.msra.mxu0 %v2689
    %2921 = vmatprep.subr.mxu0 0.0
    %2922 = vmatpush1.msra.mxu0 %v2690
    %2923 = vmatprep.subr.mxu0 0.0
    %2924 = vmatpush1.msra.mxu0 %v2691
    %2925 = vmatprep.subr.mxu0 0.0
    %2926 = vmatpush1.msra.mxu0 %v2692
    %2927 = vmatprep.subr.mxu0 0.0
    %2928 = vmatpush1.msra.mxu0 %v2693
    %2929 = vmatprep.subr.mxu0 0.0
    %2930 = vmatpush1.msra.mxu0 %v2694
    %2931 = vmatprep.subr.mxu0 0.0
    %2932 = vmatpush1.msra.mxu0 %v2695
    %2933 = vmatprep.subr.mxu0 0.0
    %2934 = vmatpush1.msra.mxu0 %v2696
    %2935 = vmatprep.subr.mxu0 0.0
    %2936 = vmatpush1.msra.mxu0 %v2697
    %2937 = vmatprep.subr.mxu0 0.0
    %2938 = vmatpush1.msra.mxu0 %v2698
    %2939 = vmatprep.subr.mxu0 0.0
    %2940 = vmatpush1.msra.mxu0 0.0
    %2941 = vmatprep.subr.mxu0 0.0
    %2942 = vmatpush1.msra.mxu0 0.0
    %2943 = vmatprep.subr.mxu0 0.0
    %2944 = vmatpush1.msra.mxu0 0.0
    %2945 = vmatprep.subr.mxu0 0.0
    %2946 = vmatpush1.msra.mxu0 0.0
    %2947 = vmatprep.subr.mxu0 0.0
    %2948 = vmatpush1.msra.mxu0 0.0
    %2949 = vmatprep.subr.mxu0 0.0
    %2950 = vmatpush1.msra.mxu0 0.0
    %2951 = vmatprep.subr.mxu0 0.0
    %2952 = vmatpush1.msra.mxu0 0.0
    %2953 = vmatprep.subr.mxu0 0.0
    %2954 = vmatpush1.msra.mxu0 0.0
    %2955 = vmatprep.mubr.f32.mxu0 %v2700
    %2956 = vmatmul.mubr.f32.gmra.mrb[0].mxu0 %v2546
    %v2957 = vpop.f32.mrb[0].mxu0
    %v2958 = vadd.f32 0.0, %v2957
    %v2959 = vpop.f32.mrb[0].mxu0
    %2960 = vmatprep.mubr.f32.mxu0 %v2703
    %2961 = vmatmul.mubr.f32.gmra.mrb[0].mxu0 %v2548
    %v2962 = vpop.f32.mrb[0].mxu0
    %v2963 = vadd.f32 0.0, %v2962
    %v2964 = vpop.f32.mrb[0].mxu0
    %2965 = vmatprep.mubr.f32.mxu0 %v2706
    %2966 = vmatmul.mubr.f32.gmra.mrb[0].mxu0 %v2550
    %v2967 = vpop.f32.mrb[0].mxu0
    %v2968 = vadd.f32 0.0, %v2967
    %v2969 = vpop.f32.mrb[0].mxu0
    %2970 = vmatprep.mubr.f32.mxu0 %v2709
    %2971 = vmatmul.mubr.f32.gmra.mrb[0].mxu0 %v2552
    %v2972 = vpop.f32.mrb[0].mxu0
    %v2973 = vadd.f32 0.0, %v2972
    %v2974 = vpop.f32.mrb[0].mxu0
    %2975 = vmatprep.mubr.f32.mxu0 %v2712
    %2976 = vmatmul.mubr.f32.gmra.mrb[0].mxu0 %v2554
    %v2977 = vpop.f32.mrb[0].mxu0
    %v2978 = vadd.f32 0.0, %v2977
    %v2979 = vpop.f32.mrb[0].mxu0
    %2980 = vmatprep.mubr.f32.mxu0 %v2715
    %2981 = vmatmul.mubr.f32.gmra.mrb[0].mxu0 %v2556
    %v2982 = vpop.f32.mrb[0].mxu0
    %v2983 = vadd.f32 0.0, %v2982
    %v2984 = vpop.f32.mrb[0].mxu0
    %2985 = vmatprep.mubr.f32.mxu0 %v2718
    %2986 = vmatmul.mubr.f32.gmra.mrb[0].mxu0 %v2558
    %v2987 = vpop.f32.mrb[0].mxu0
    %v2988 = vadd.f32 0.0, %v2987
    %v2989 = vpop.f32.mrb[0].mxu0
    %2990 = vmatprep.mubr.f32.mxu0 %v2721
    %2991 = vmatmul.mubr.f32.gmra.mrb[0].mxu0 %v2560
    %v2992 = vpop.f32.mrb[0].mxu0
    %v2993 = vadd.f32 0.0, %v2992
    %v2994 = vpop.f32.mrb[0].mxu0
    %2995 = vmatprep.mubr.f32.mxu0 %v2724
    %2996 = vmatmul.mubr.f32.gmra.mrb[0].mxu0 %v2562
    %v2997 = vpop.f32.mrb[0].mxu0
    %v2998 = vadd.f32 0.0, %v2997
    %v2999 = vpop.f32.mrb[0].mxu0
    %3000 = vmatprep.mubr.f32.mxu0 %v2727
    %3001 = vmatmul.mubr.f32.gmra.mrb[0].mxu0 %v2564
    %v3002 = vpop.f32.mrb[0].mxu0
    %v3003 = vadd.f32 0.0, %v3002
    %v3004 = vpop.f32.mrb[0].mxu0
    %3005 = vmatprep.mubr.f32.mxu0 %v2730
    %3006 = vmatmul.mubr.f32.gmra.mrb[0].mxu0 %v2566
    %v3007 = vpop.f32.mrb[0].mxu0
    %v3008 = vadd.f32 0.0, %v3007
    %v3009 = vpop.f32.mrb[0].mxu0
    %3010 = vmatprep.mubr.f32.mxu0 %v2733
    %3011 = vmatmul.mubr.f32.gmra.mrb[0].mxu0 %v2568
    %v3012 = vpop.f32.mrb[0].mxu0
    %v3013 = vadd.f32 0.0, %v3012
    %v3014 = vpop.f32.mrb[0].mxu0
    %3015 = vmatprep.mubr.f32.mxu0 %v2736
    %3016 = vmatmul.mubr.f32.gmra.mrb[0].mxu0 %v2570
    %v3017 = vpop.f32.mrb[0].mxu0
    %v3018 = vadd.f32 0.0, %v3017
    %v3019 = vpop.f32.mrb[0].mxu0
    %3020 = vmatprep.mubr.f32.mxu0 %v2739
    %3021 = vmatmul.mubr.f32.gmra.mrb[0].mxu0 %v2572
    %v3022 = vpop.f32.mrb[0].mxu0
    %v3023 = vadd.f32 0.0, %v3022
    %v3024 = vpop.f32.mrb[0].mxu0
    %3025 = vmatprep.mubr.f32.mxu0 %v2742
    %3026 = vmatmul.mubr.f32.gmra.mrb[0].mxu0 %v2574
    %v3027 = vpop.f32.mrb[0].mxu0
    %v3028 = vadd.f32 0.0, %v3027
    %v3029 = vpop.f32.mrb[0].mxu0
    %3030 = vmatprep.mubr.f32.mxu0 %v2745
    %3031 = vmatmul.mubr.f32.gmra.mrb[0].mxu0 %v2576
    %v3032 = vpop.f32.mrb[0].mxu0
    %v3033 = vadd.f32 0.0, %v3032
    %v3034 = vpop.f32.mrb[0].mxu0
    %3035 = vmatprep.mubr.f32.mxu0 %v2748
    %3036 = vmatmul.mubr.f32.gmra.mrb[0].mxu0 %v2578
    %v3037 = vpop.f32.mrb[0].mxu0
    %v3038 = vadd.f32 0.0, %v3037
    %v3039 = vpop.f32.mrb[0].mxu0
    %3040 = vmatprep.mubr.f32.mxu0 %v2751
    %3041 = vmatmul.mubr.f32.gmra.mrb[0].mxu0 %v2580
    %v3042 = vpop.f32.mrb[0].mxu0
    %v3043 = vadd.f32 0.0, %v3042
    %v3044 = vpop.f32.mrb[0].mxu0
    %3045 = vmatprep.mubr.f32.mxu0 %v2754
    %3046 = vmatmul.mubr.f32.gmra.mrb[0].mxu0 %v2582
    %v3047 = vpop.f32.mrb[0].mxu0
    %v3048 = vadd.f32 0.0, %v3047
    %v3049 = vpop.f32.mrb[0].mxu0
    %3050 = vmatprep.mubr.f32.mxu0 %v2757
    %3051 = vmatmul.mubr.f32.gmra.mrb[0].mxu0 %v2584
    %v3052 = vpop.f32.mrb[0].mxu0
    %v3053 = vadd.f32 0.0, %v3052
    %v3054 = vpop.f32.mrb[0].mxu0
    %3055 = vmatprep.mubr.f32.mxu0 %v2760
    %3056 = vmatmul.mubr.f32.gmra.mrb[0].mxu0 %v2586
    %v3057 = vpop.f32.mrb[0].mxu0
    %v3058 = vadd.f32 0.0, %v3057
    %v3059 = vpop.f32.mrb[0].mxu0
    %3060 = vmatprep.mubr.f32.mxu0 %v2763
    %3061 = vmatmul.mubr.f32.gmra.mrb[0].mxu0 %v2588
    %v3062 = vpop.f32.mrb[0].mxu0
    %v3063 = vadd.f32 0.0, %v3062
    %v3064 = vpop.f32.mrb[0].mxu0
    %3065 = vmatprep.mubr.f32.mxu0 %v2766
    %3066 = vmatmul.mubr.f32.gmra.mrb[0].mxu0 %v2590
    %v3067 = vpop.f32.mrb[0].mxu0
    %v3068 = vadd.f32 0.0, %v3067
    %v3069 = vpop.f32.mrb[0].mxu0
    %3070 = vmatprep.mubr.f32.mxu0 %v2769
    %3071 = vmatmul.mubr.f32.gmra.mrb[0].mxu0 %v2592
    %v3072 = vpop.f32.mrb[0].mxu0
    %v3073 = vadd.f32 0.0, %v3072
    %v3074 = vpop.f32.mrb[0].mxu0
    %3075 = vmatprep.mubr.f32.mxu0 %v2772
    %3076 = vmatmul.mubr.f32.gmra.mrb[0].mxu0 %v2594
    %v3077 = vpop.f32.mrb[0].mxu0
    %v3078 = vadd.f32 0.0, %v3077
    %v3079 = vpop.f32.mrb[0].mxu0
    %3080 = vmatprep.mubr.f32.mxu0 %v2775
    %3081 = vmatmul.mubr.f32.gmra.mrb[0].mxu0 %v2596
    %v3082 = vpop.f32.mrb[0].mxu0
    %v3083 = vadd.f32 0.0, %v3082
    %v3084 = vpop.f32.mrb[0].mxu0
    %3085 = vmatprep.mubr.f32.mxu0 %v2778
    %3086 = vmatmul.mubr.f32.gmra.mrb[0].mxu0 %v2598
    %v3087 = vpop.f32.mrb[0].mxu0
    %v3088 = vadd.f32 0.0, %v3087
    %v3089 = vpop.f32.mrb[0].mxu0
    %3090 = vmatprep.mubr.f32.mxu0 %v2781
    %3091 = vmatmul.mubr.f32.gmra.mrb[0].mxu0 %v2600
    %v3092 = vpop.f32.mrb[0].mxu0
    %v3093 = vadd.f32 0.0, %v3092
    %v3094 = vpop.f32.mrb[0].mxu0
    %3095 = vmatprep.mubr.f32.mxu0 %v2784
    %3096 = vmatmul.mubr.f32.gmra.mrb[0].mxu0 %v2602
    %v3097 = vpop.f32.mrb[0].mxu0
    %v3098 = vadd.f32 0.0, %v3097
    %v3099 = vpop.f32.mrb[0].mxu0
    %3100 = vmatprep.mubr.f32.mxu0 %v2787
    %3101 = vmatmul.mubr.f32.gmra.mrb[0].mxu0 %v2604
    %v3102 = vpop.f32.mrb[0].mxu0
    %v3103 = vadd.f32 0.0, %v3102
    %v3104 = vpop.f32.mrb[0].mxu0
    %3105 = vmatprep.mubr.f32.mxu0 %v2790
    %3106 = vmatmul.mubr.f32.gmra.mrb[0].mxu0 %v2606
    %v3107 = vpop.f32.mrb[0].mxu0
    %v3108 = vadd.f32 0.0, %v3107
    %v3109 = vpop.f32.mrb[0].mxu0
    %3110 = vmatprep.mubr.f32.mxu0 %v2793
    %3111 = vmatmul.mubr.f32.gmra.mrb[0].mxu0 %v2608
    %v3112 = vpop.f32.mrb[0].mxu0
    %v3113 = vadd.f32 0.0, %v3112
    %v3114 = vpop.f32.mrb[0].mxu0
    %3115 = vmatprep.mubr.f32.mxu0 %v2796
    %3116 = vmatmul.mubr.f32.gmra.mrb[0].mxu0 %v2610
    %v3117 = vpop.f32.mrb[0].mxu0
    %v3118 = vadd.f32 0.0, %v3117
    %v3119 = vpop.f32.mrb[0].mxu0
    %3120 = vmatprep.mubr.f32.mxu0 %v2799
    %3121 = vmatmul.mubr.f32.gmra.mrb[0].mxu0 %v2612
    %v3122 = vpop.f32.mrb[0].mxu0
    %v3123 = vadd.f32 0.0, %v3122
    %v3124 = vpop.f32.mrb[0].mxu0
    %3125 = vmatprep.mubr.f32.mxu0 %v2802
    %3126 = vmatmul.mubr.f32.gmra.mrb[0].mxu0 %v2614
    %v3127 = vpop.f32.mrb[0].mxu0
    %v3128 = vadd.f32 0.0, %v3127
    %v3129 = vpop.f32.mrb[0].mxu0
    %3130 = vmatprep.mubr.f32.mxu0 %v2805
    %3131 = vmatmul.mubr.f32.gmra.mrb[0].mxu0 %v2616
    %v3132 = vpop.f32.mrb[0].mxu0
    %v3133 = vadd.f32 0.0, %v3132
    %v3134 = vpop.f32.mrb[0].mxu0
    %3135 = vmatprep.mubr.f32.mxu0 %v2808
    %3136 = vmatmul.mubr.f32.gmra.mrb[0].mxu0 %v2618
    %v3137 = vpop.f32.mrb[0].mxu0
    %v3138 = vadd.f32 0.0, %v3137
    %v3139 = vpop.f32.mrb[0].mxu0
    %3140 = vmatprep.mubr.f32.mxu0 %v2811
    %3141 = vmatmul.mubr.f32.gmra.mrb[0].mxu0 %v2620
    %v3142 = vpop.f32.mrb[0].mxu0
    %v3143 = vadd.f32 0.0, %v3142
    %v3144 = vpop.f32.mrb[0].mxu0
    %3145 = vmatprep.mubr.f32.mxu0 %v2814
    %3146 = vmatmul.mubr.f32.gmra.mrb[0].mxu0 %v2622
    %v3147 = vpop.f32.mrb[0].mxu0
    %v3148 = vadd.f32 0.0, %v3147
    %v3149 = vpop.f32.mrb[0].mxu0
    %3150 = vmatprep.mubr.f32.mxu0 %v2817
    %3151 = vmatmul.mubr.f32.gmra.mrb[0].mxu0 %v2624
    %v3152 = vpop.f32.mrb[0].mxu0
    %v3153 = vadd.f32 0.0, %v3152
    %v3154 = vpop.f32.mrb[0].mxu0
    %3155 = vmatprep.mubr.f32.mxu0 %v2820
    %3156 = vmatmul.mubr.f32.gmra.mrb[0].mxu0 %v2626
    %v3157 = vpop.f32.mrb[0].mxu0
    %v3158 = vadd.f32 0.0, %v3157
    %v3159 = vpop.f32.mrb[0].mxu0
    %3160 = vmatprep.mubr.f32.mxu0 %v2823
    %3161 = vmatmul.mubr.f32.gmra.mrb[0].mxu0 %v2628
    %v3162 = vpop.f32.mrb[0].mxu0
    %v3163 = vadd.f32 0.0, %v3162
    %v3164 = vpop.f32.mrb[0].mxu0
    %3165 = vmatprep.mubr.f32.mxu0 %v2826
    %3166 = vmatmul.mubr.f32.gmra.mrb[0].mxu0 %v2630
    %v3167 = vpop.f32.mrb[0].mxu0
    %v3168 = vadd.f32 0.0, %v3167
    %v3169 = vpop.f32.mrb[0].mxu0
    %3170 = vmatprep.mubr.f32.mxu0 %v2829
    %3171 = vmatmul.mubr.f32.gmra.mrb[0].mxu0 %v2632
    %v3172 = vpop.f32.mrb[0].mxu0
    %v3173 = vadd.f32 0.0, %v3172
    %v3174 = vpop.f32.mrb[0].mxu0
    %3175 = vmatprep.mubr.f32.mxu0 %v2832
    %3176 = vmatmul.mubr.f32.gmra.mrb[0].mxu0 %v2634
    %v3177 = vpop.f32.mrb[0].mxu0
    %v3178 = vadd.f32 0.0, %v3177
    %v3179 = vpop.f32.mrb[0].mxu0
    %3180 = vmatprep.mubr.f32.mxu0 %v2835
    %3181 = vmatmul.mubr.f32.gmra.mrb[0].mxu0 %v2636
    %v3182 = vpop.f32.mrb[0].mxu0
    %v3183 = vadd.f32 0.0, %v3182
    %v3184 = vpop.f32.mrb[0].mxu0
    %3185 = vmatprep.mubr.f32.mxu0 %v2838
    %3186 = vmatmul.mubr.f32.gmra.mrb[0].mxu0 %v2638
    %v3187 = vpop.f32.mrb[0].mxu0
    %v3188 = vadd.f32 0.0, %v3187
    %v3189 = vpop.f32.mrb[0].mxu0
    %3190 = vmatprep.mubr.f32.mxu0 %v2841
    %3191 = vmatmul.mubr.f32.gmra.mrb[0].mxu0 %v2640
    %v3192 = vpop.f32.mrb[0].mxu0
    %v3193 = vadd.f32 0.0, %v3192
    %v3194 = vpop.f32.mrb[0].mxu0
    %3195 = vmatprep.mubr.f32.mxu0 %v2844
    %3196 = vmatmul.mubr.f32.gmra.mrb[0].mxu0 %v2642
    %v3197 = vpop.f32.mrb[0].mxu0
    %v3198 = vadd.f32 0.0, %v3197
    %v3199 = vpop.f32.mrb[0].mxu0
    %3200 = vmatprep.mubr.f32.mxu0 %v2847
    %3201 = vmatmul.mubr.f32.gmra.mrb[0].mxu0 %v2644
    %v3202 = vpop.f32.mrb[0].mxu0
    %v3203 = vadd.f32 0.0, %v3202
    %v3204 = vpop.f32.mrb[0].mxu0
    %3205 = vmatprep.mubr.f32.mxu0 %v2850
    %3206 = vmatmul.mubr.f32.gmra.mrb[0].mxu0 %v2646
    %v3207 = vpop.f32.mrb[0].mxu0
    %v3208 = vadd.f32 0.0, %v3207
    %v3209 = vpop.f32.mrb[0].mxu0
    %3210 = vmatprep.mubr.f32.mxu0 %v2853
    %3211 = vmatmul.mubr.f32.gmra.mrb[0].mxu0 %v2648
    %v3212 = vpop.f32.mrb[0].mxu0
    %v3213 = vadd.f32 0.0, %v3212
    %v3214 = vpop.f32.mrb[0].mxu0
    %3215 = vmatprep.mubr.f32.mxu0 %v2856
    %3216 = vmatmul.mubr.f32.gmra.mrb[0].mxu0 %v2650
    %v3217 = vpop.f32.mrb[0].mxu0
    %v3218 = vadd.f32 0.0, %v3217
    %v3219 = vpop.f32.mrb[0].mxu0
    %3220 = vmatprep.mubr.f32.mxu0 %v2859
    %3221 = vmatmul.mubr.f32.gmra.mrb[0].mxu0 %v2652
    %v3222 = vpop.f32.mrb[0].mxu0
    %v3223 = vadd.f32 0.0, %v3222
    %v3224 = vpop.f32.mrb[0].mxu0
    %3225 = vmatprep.mubr.f32.mxu0 %v2862
    %3226 = vmatmul.mubr.f32.gmra.mrb[0].mxu0 %v2654
    %v3227 = vpop.f32.mrb[0].mxu0
    %v3228 = vadd.f32 0.0, %v3227
    %v3229 = vpop.f32.mrb[0].mxu0
    %3230 = vmatprep.mubr.f32.mxu0 %v2865
    %3231 = vmatmul.mubr.f32.gmra.mrb[0].mxu0 %v2656
    %v3232 = vpop.f32.mrb[0].mxu0
    %v3233 = vadd.f32 0.0, %v3232
    %v3234 = vpop.f32.mrb[0].mxu0
    %3235 = vmatprep.mubr.f32.mxu0 %v2868
    %3236 = vmatmul.mubr.f32.gmra.mrb[0].mxu0 %v2658
    %v3237 = vpop.f32.mrb[0].mxu0
    %v3238 = vadd.f32 0.0, %v3237
    %v3239 = vpop.f32.mrb[0].mxu0
    %3240 = vmatprep.mubr.f32.mxu0 %v2871
    %3241 = vmatmul.mubr.f32.gmra.mrb[0].mxu0 %v2660
    %v3242 = vpop.f32.mrb[0].mxu0
    %v3243 = vadd.f32 0.0, %v3242
    %v3244 = vpop.f32.mrb[0].mxu0
    %3245 = vmatprep.mubr.f32.mxu0 %v2874
    %3246 = vmatmul.mubr.f32.gmra.mrb[0].mxu0 %v2662
    %v3247 = vpop.f32.mrb[0].mxu0
    %v3248 = vadd.f32 0.0, %v3247
    %v3249 = vpop.f32.mrb[0].mxu0
    %3250 = vmatprep.mubr.f32.mxu0 %v2877
    %3251 = vmatmul.mubr.f32.gmra.mrb[0].mxu0 %v2664
    %v3252 = vpop.f32.mrb[0].mxu0
    %v3253 = vadd.f32 0.0, %v3252
    %v3254 = vpop.f32.mrb[0].mxu0
    %3255 = vmatprep.mubr.f32.mxu0 %v2880
    %3256 = vmatmul.mubr.f32.gmra.mrb[0].mxu0 %v2666
    %v3257 = vpop.f32.mrb[0].mxu0
    %v3258 = vadd.f32 0.0, %v3257
    %v3259 = vpop.f32.mrb[0].mxu0
    %3260 = vmatprep.mubr.f32.mxu0 %v2883
    %3261 = vmatmul.mubr.f32.gmra.mrb[0].mxu0 %v2668
    %v3262 = vpop.f32.mrb[0].mxu0
    %v3263 = vadd.f32 0.0, %v3262
    %v3264 = vpop.f32.mrb[0].mxu0
    %3265 = vmatprep.mubr.f32.mxu0 %v2886
    %3266 = vmatmul.mubr.f32.gmra.mrb[0].mxu0 %v2670
    %v3267 = vpop.f32.mrb[0].mxu0
    %v3268 = vadd.f32 0.0, %v3267
    %v3269 = vpop.f32.mrb[0].mxu0
    %3270 = vmatprep.mubr.f32.mxu0 %v2889
    %3271 = vmatmul.mubr.f32.gmra.mrb[0].mxu0 %v2672
    %v3272 = vpop.f32.mrb[0].mxu0
    %v3273 = vadd.f32 0.0, %v3272
    %v3274 = vpop.f32.mrb[0].mxu0
    %3275 = vdwg.mxu0
    %v3276 = vadd.f32 %v2227, %v2958
    %v3277 = vadd.f32 %v2232, %v2963
    %v3278 = vadd.f32 %v2237, %v2968
    %v3279 = vadd.f32 %v2242, %v2973
    %v3280 = vadd.f32 %v2247, %v2978
    %v3281 = vadd.f32 %v2252, %v2983
    %v3282 = vadd.f32 %v2257, %v2988
    %v3283 = vadd.f32 %v2262, %v2993
    %v3284 = vadd.f32 %v2267, %v2998
    %v3285 = vadd.f32 %v2272, %v3003
    %v3286 = vadd.f32 %v2277, %v3008
    %v3287 = vadd.f32 %v2282, %v3013
    %v3288 = vadd.f32 %v2287, %v3018
    %v3289 = vadd.f32 %v2292, %v3023
    %v3290 = vadd.f32 %v2297, %v3028
    %v3291 = vadd.f32 %v2302, %v3033
    %v3292 = vadd.f32 %v2307, %v3038
    %v3293 = vadd.f32 %v2312, %v3043
    %v3294 = vadd.f32 %v2317, %v3048
    %v3295 = vadd.f32 %v2322, %v3053
    %v3296 = vadd.f32 %v2327, %v3058
    %v3297 = vadd.f32 %v2332, %v3063
    %v3298 = vadd.f32 %v2337, %v3068
    %v3299 = vadd.f32 %v2342, %v3073
    %v3300 = vadd.f32 %v2347, %v3078
    %v3301 = vadd.f32 %v2352, %v3083
    %v3302 = vadd.f32 %v2357, %v3088
    %v3303 = vadd.f32 %v2362, %v3093
    %v3304 = vadd.f32 %v2367, %v3098
    %v3305 = vadd.f32 %v2372, %v3103
    %v3306 = vadd.f32 %v2377, %v3108
    %v3307 = vadd.f32 %v2382, %v3113
    %v3308 = vadd.f32 %v2387, %v3118
    %v3309 = vadd.f32 %v2392, %v3123
    %v3310 = vadd.f32 %v2397, %v3128
    %v3311 = vadd.f32 %v2402, %v3133
    %v3312 = vadd.f32 %v2407, %v3138
    %v3313 = vadd.f32 %v2412, %v3143
    %v3314 = vadd.f32 %v2417, %v3148
    %v3315 = vadd.f32 %v2422, %v3153
    %v3316 = vadd.f32 %v2427, %v3158
    %v3317 = vadd.f32 %v2432, %v3163
    %v3318 = vadd.f32 %v2437, %v3168
    %v3319 = vadd.f32 %v2442, %v3173
    %v3320 = vadd.f32 %v2447, %v3178
    %v3321 = vadd.f32 %v2452, %v3183
    %v3322 = vadd.f32 %v2457, %v3188
    %v3323 = vadd.f32 %v2462, %v3193
    %v3324 = vadd.f32 %v2467, %v3198
    %v3325 = vadd.f32 %v2472, %v3203
    %v3326 = vadd.f32 %v2477, %v3208
    %v3327 = vadd.f32 %v2482, %v3213
    %v3328 = vadd.f32 %v2487, %v3218
    %v3329 = vadd.f32 %v2492, %v3223
    %v3330 = vadd.f32 %v2497, %v3228
    %v3331 = vadd.f32 %v2502, %v3233
    %v3332 = vadd.f32 %v2507, %v3238
    %v3333 = vadd.f32 %v2512, %v3243
    %v3334 = vadd.f32 %v2517, %v3248
    %v3335 = vadd.f32 %v2522, %v3253
    %v3336 = vadd.f32 %v2527, %v3258
    %v3337 = vadd.f32 %v2532, %v3263
    %v3338 = vadd.f32 %v2537, %v3268
    %v3339 = vadd.f32 %v2542, %v3273
    %v3340 = vld [vmem:[%s2] sm:$0x1]
    %v3342 = vlaneseq
    %v3343 = vshrl.u32 %v3342, 7
    %v3344 = vsub.s32 0, %v3343
    %v3345 = vrot.slane %v3340, %v3344
    %v3347 = vmul.f32 %v3276, %v3345
    %v3348 = vmul.f32 %v3277, %v3345
    %v3349 = vmul.f32 %v3278, %v3345
    %v3350 = vmul.f32 %v3279, %v3345
    %v3351 = vmul.f32 %v3280, %v3345
    %v3352 = vmul.f32 %v3281, %v3345
    %v3353 = vmul.f32 %v3282, %v3345
    %v3354 = vmul.f32 %v3283, %v3345
    %v3355 = vmul.f32 %v3284, %v3345
    %v3356 = vmul.f32 %v3285, %v3345
    %v3357 = vmul.f32 %v3286, %v3345
    %v3358 = vmul.f32 %v3287, %v3345
    %v3359 = vmul.f32 %v3288, %v3345
    %v3360 = vmul.f32 %v3289, %v3345
    %v3361 = vmul.f32 %v3290, %v3345
    %v3362 = vmul.f32 %v3291, %v3345
    %v3363 = vmul.f32 %v3292, %v3345
    %v3364 = vmul.f32 %v3293, %v3345
    %v3365 = vmul.f32 %v3294, %v3345
    %v3366 = vmul.f32 %v3295, %v3345
    %v3367 = vmul.f32 %v3296, %v3345
    %v3368 = vmul.f32 %v3297, %v3345
    %v3369 = vmul.f32 %v3298, %v3345
    %v3370 = vmul.f32 %v3299, %v3345
    %v3371 = vmul.f32 %v3300, %v3345
    %v3372 = vmul.f32 %v3301, %v3345
    %v3373 = vmul.f32 %v3302, %v3345
    %v3374 = vmul.f32 %v3303, %v3345
    %v3375 = vmul.f32 %v3304, %v3345
    %v3376 = vmul.f32 %v3305, %v3345
    %v3377 = vmul.f32 %v3306, %v3345
    %v3378 = vmul.f32 %v3307, %v3345
    %v3379 = vmul.f32 %v3308, %v3345
    %v3380 = vmul.f32 %v3309, %v3345
    %v3381 = vmul.f32 %v3310, %v3345
    %v3382 = vmul.f32 %v3311, %v3345
    %v3383 = vmul.f32 %v3312, %v3345
    %v3384 = vmul.f32 %v3313, %v3345
    %v3385 = vmul.f32 %v3314, %v3345
    %v3386 = vmul.f32 %v3315, %v3345
    %v3387 = vmul.f32 %v3316, %v3345
    %v3388 = vmul.f32 %v3317, %v3345
    %v3389 = vmul.f32 %v3318, %v3345
    %v3390 = vmul.f32 %v3319, %v3345
    %v3391 = vmul.f32 %v3320, %v3345
    %v3392 = vmul.f32 %v3321, %v3345
    %v3393 = vmul.f32 %v3322, %v3345
    %v3394 = vmul.f32 %v3323, %v3345
    %v3395 = vmul.f32 %v3324, %v3345
    %v3396 = vmul.f32 %v3325, %v3345
    %v3397 = vmul.f32 %v3326, %v3345
    %v3398 = vmul.f32 %v3327, %v3345
    %v3399 = vmul.f32 %v3328, %v3345
    %v3400 = vmul.f32 %v3329, %v3345
    %v3401 = vmul.f32 %v3330, %v3345
    %v3402 = vmul.f32 %v3331, %v3345
    %v3403 = vmul.f32 %v3332, %v3345
    %v3404 = vmul.f32 %v3333, %v3345
    %v3405 = vmul.f32 %v3334, %v3345
    %v3406 = vmul.f32 %v3335, %v3345
    %v3407 = vmul.f32 %v3336, %v3345
    %v3408 = vmul.f32 %v3337, %v3345
    %v3409 = vmul.f32 %v3338, %v3345
    %v3410 = vmul.f32 %v3339, %v3345
    %v3411 = vld [vmem:[%s3] sm:$0x1]
    %v3413 = vlaneseq
    %v3414 = vshrl.u32 %v3413, 7
    %v3415 = vsub.s32 0, %v3414
    %v3416 = vrot.slane %v3411, %v3415
    %v3418 = vadd.f32 %v3347, %v3416
    %v3419 = vadd.f32 %v3348, %v3416
    %v3420 = vadd.f32 %v3349, %v3416
    %v3421 = vadd.f32 %v3350, %v3416
    %v3422 = vadd.f32 %v3351, %v3416
    %v3423 = vadd.f32 %v3352, %v3416
    %v3424 = vadd.f32 %v3353, %v3416
    %v3425 = vadd.f32 %v3354, %v3416
    %v3426 = vadd.f32 %v3355, %v3416
    %v3427 = vadd.f32 %v3356, %v3416
    %v3428 = vadd.f32 %v3357, %v3416
    %v3429 = vadd.f32 %v3358, %v3416
    %v3430 = vadd.f32 %v3359, %v3416
    %v3431 = vadd.f32 %v3360, %v3416
    %v3432 = vadd.f32 %v3361, %v3416
    %v3433 = vadd.f32 %v3362, %v3416
    %v3434 = vadd.f32 %v3363, %v3416
    %v3435 = vadd.f32 %v3364, %v3416
    %v3436 = vadd.f32 %v3365, %v3416
    %v3437 = vadd.f32 %v3366, %v3416
    %v3438 = vadd.f32 %v3367, %v3416
    %v3439 = vadd.f32 %v3368, %v3416
    %v3440 = vadd.f32 %v3369, %v3416
    %v3441 = vadd.f32 %v3370, %v3416
    %v3442 = vadd.f32 %v3371, %v3416
    %v3443 = vadd.f32 %v3372, %v3416
    %v3444 = vadd.f32 %v3373, %v3416
    %v3445 = vadd.f32 %v3374, %v3416
    %v3446 = vadd.f32 %v3375, %v3416
    %v3447 = vadd.f32 %v3376, %v3416
    %v3448 = vadd.f32 %v3377, %v3416
    %v3449 = vadd.f32 %v3378, %v3416
    %v3450 = vadd.f32 %v3379, %v3416
    %v3451 = vadd.f32 %v3380, %v3416
    %v3452 = vadd.f32 %v3381, %v3416
    %v3453 = vadd.f32 %v3382, %v3416
    %v3454 = vadd.f32 %v3383, %v3416
    %v3455 = vadd.f32 %v3384, %v3416
    %v3456 = vadd.f32 %v3385, %v3416
    %v3457 = vadd.f32 %v3386, %v3416
    %v3458 = vadd.f32 %v3387, %v3416
    %v3459 = vadd.f32 %v3388, %v3416
    %v3460 = vadd.f32 %v3389, %v3416
    %v3461 = vadd.f32 %v3390, %v3416
    %v3462 = vadd.f32 %v3391, %v3416
    %v3463 = vadd.f32 %v3392, %v3416
    %v3464 = vadd.f32 %v3393, %v3416
    %v3465 = vadd.f32 %v3394, %v3416
    %v3466 = vadd.f32 %v3395, %v3416
    %v3467 = vadd.f32 %v3396, %v3416
    %v3468 = vadd.f32 %v3397, %v3416
    %v3469 = vadd.f32 %v3398, %v3416
    %v3470 = vadd.f32 %v3399, %v3416
    %v3471 = vadd.f32 %v3400, %v3416
    %v3472 = vadd.f32 %v3401, %v3416
    %v3473 = vadd.f32 %v3402, %v3416
    %v3474 = vadd.f32 %v3403, %v3416
    %v3475 = vadd.f32 %v3404, %v3416
    %v3476 = vadd.f32 %v3405, %v3416
    %v3477 = vadd.f32 %v3406, %v3416
    %v3478 = vadd.f32 %v3407, %v3416
    %v3479 = vadd.f32 %v3408, %v3416
    %v3480 = vadd.f32 %v3409, %v3416
    %v3481 = vadd.f32 %v3410, %v3416
    %v3482 = vmax.f32 %v3418, 0.0
    %v3483 = vmax.f32 %v3419, 0.0
    %v3484 = vmax.f32 %v3420, 0.0
    %v3485 = vmax.f32 %v3421, 0.0
    %v3486 = vmax.f32 %v3422, 0.0
    %v3487 = vmax.f32 %v3423, 0.0
    %v3488 = vmax.f32 %v3424, 0.0
    %v3489 = vmax.f32 %v3425, 0.0
    %v3490 = vmax.f32 %v3426, 0.0
    %v3491 = vmax.f32 %v3427, 0.0
    %v3492 = vmax.f32 %v3428, 0.0
    %v3493 = vmax.f32 %v3429, 0.0
    %v3494 = vmax.f32 %v3430, 0.0
    %v3495 = vmax.f32 %v3431, 0.0
    %v3496 = vmax.f32 %v3432, 0.0
    %v3497 = vmax.f32 %v3433, 0.0
    %v3498 = vmax.f32 %v3434, 0.0
    %v3499 = vmax.f32 %v3435, 0.0
    %v3500 = vmax.f32 %v3436, 0.0
    %v3501 = vmax.f32 %v3437, 0.0
    %v3502 = vmax.f32 %v3438, 0.0
    %v3503 = vmax.f32 %v3439, 0.0
    %v3504 = vmax.f32 %v3440, 0.0
    %v3505 = vmax.f32 %v3441, 0.0
    %v3506 = vmax.f32 %v3442, 0.0
    %v3507 = vmax.f32 %v3443, 0.0
    %v3508 = vmax.f32 %v3444, 0.0
    %v3509 = vmax.f32 %v3445, 0.0
    %v3510 = vmax.f32 %v3446, 0.0
    %v3511 = vmax.f32 %v3447, 0.0
    %v3512 = vmax.f32 %v3448, 0.0
    %v3513 = vmax.f32 %v3449, 0.0
    %v3514 = vmax.f32 %v3450, 0.0
    %v3515 = vmax.f32 %v3451, 0.0
    %v3516 = vmax.f32 %v3452, 0.0
    %v3517 = vmax.f32 %v3453, 0.0
    %v3518 = vmax.f32 %v3454, 0.0
    %v3519 = vmax.f32 %v3455, 0.0
    %v3520 = vmax.f32 %v3456, 0.0
    %v3521 = vmax.f32 %v3457, 0.0
    %v3522 = vmax.f32 %v3458, 0.0
    %v3523 = vmax.f32 %v3459, 0.0
    %v3524 = vmax.f32 %v3460, 0.0
    %v3525 = vmax.f32 %v3461, 0.0
    %v3526 = vmax.f32 %v3462, 0.0
    %v3527 = vmax.f32 %v3463, 0.0
    %v3528 = vmax.f32 %v3464, 0.0
    %v3529 = vmax.f32 %v3465, 0.0
    %v3530 = vmax.f32 %v3466, 0.0
    %v3531 = vmax.f32 %v3467, 0.0
    %v3532 = vmax.f32 %v3468, 0.0
    %v3533 = vmax.f32 %v3469, 0.0
    %v3534 = vmax.f32 %v3470, 0.0
    %v3535 = vmax.f32 %v3471, 0.0
    %v3536 = vmax.f32 %v3472, 0.0
    %v3537 = vmax.f32 %v3473, 0.0
    %v3538 = vmax.f32 %v3474, 0.0
    %v3539 = vmax.f32 %v3475, 0.0
    %v3540 = vmax.f32 %v3476, 0.0
    %v3541 = vmax.f32 %v3477, 0.0
    %v3542 = vmax.f32 %v3478, 0.0
    %v3543 = vmax.f32 %v3479, 0.0
    %v3544 = vmax.f32 %v3480, 0.0
    %v3545 = vmax.f32 %v3481, 0.0
    %3546 = vst [vmem:[#allocation3 + $0x10] sm:$0xff] 0.0
    %3547 = vst.msk [vmem:[#allocation3 + $0x18] sm:$0xff] %vm101, 0.0
    %3548 = vst [vmem:[#allocation3 + $0x20] sm:$0xff] 0.0
    %3549 = vst.msk [vmem:[#allocation3 + $0x28] sm:$0xff] %vm101, 0.0
    %3550 = vst [vmem:[#allocation3 + $0x490] sm:$0xff] 0.0
    %3551 = vst.msk [vmem:[#allocation3 + $0x498] sm:$0xff] %vm101, 0.0
    %3552 = vst [vmem:[#allocation3 + $0x4a0] sm:$0xff] 0.0
    %3553 = vst.msk [vmem:[#allocation3 + $0x4a8] sm:$0xff] %vm101, 0.0
    %s3554 = scalar_lea.vmem [#allocation3], 1088
    %3555 = vst [vmem:[%s3554 + $0x10] sm:$0xff] 0.0
    %3556 = vst.msk [vmem:[%s3554 + $0x18] sm:$0xff] %vm101, 0.0
    %3557 = vst [vmem:[%s3554 + $0x20] sm:$0xff] 0.0
    %3558 = vst.msk [vmem:[%s3554 + $0x28] sm:$0xff] %vm101, 0.0
    %3559 = vst [vmem:[%s3554 + $0x490] sm:$0xff] 0.0
    %3560 = vst.msk [vmem:[%s3554 + $0x498] sm:$0xff] %vm101, 0.0
    %3561 = vst [vmem:[%s3554 + $0x4a0] sm:$0xff] 0.0
    %3562 = vst.msk [vmem:[%s3554 + $0x4a8] sm:$0xff] %vm101, 0.0
    %s3563 = scalar_lea.vmem [#allocation3], 64
    %3564 = vst.msk [vmem:[%s3563 + $0x10] sm:$0x1] %vm119, 0.0
    %3565 = vst.msk [vmem:[%s3563 + $0x50] sm:$0x1] %vm119, 0.0
    %3566 = vst.msk [vmem:[%s3563 + $0x90] sm:$0x1] %vm119, 0.0
    %3567 = vst.msk [vmem:[%s3563 + $0xd0] sm:$0x1] %vm119, 0.0
    %3568 = vst.msk [vmem:[%s3563 + $0x110] sm:$0x1] %vm119, 0.0
    %3569 = vst.msk [vmem:[%s3563 + $0x150] sm:$0x1] %vm119, 0.0
    %3570 = vst.msk [vmem:[%s3563 + $0x190] sm:$0x1] %vm119, 0.0
    %3571 = vst.msk [vmem:[%s3563 + $0x1d0] sm:$0x1] %vm119, 0.0
    %3572 = vst.msk [vmem:[%s3563 + $0x210] sm:$0x1] %vm119, 0.0
    %3573 = vst.msk [vmem:[%s3563 + $0x250] sm:$0x1] %vm119, 0.0
    %3574 = vst.msk [vmem:[%s3563 + $0x290] sm:$0x1] %vm119, 0.0
    %3575 = vst.msk [vmem:[%s3563 + $0x2d0] sm:$0x1] %vm119, 0.0
    %3576 = vst.msk [vmem:[%s3563 + $0x310] sm:$0x1] %vm119, 0.0
    %3577 = vst.msk [vmem:[%s3563 + $0x350] sm:$0x1] %vm119, 0.0
    %3578 = vst.msk [vmem:[%s3563 + $0x390] sm:$0x1] %vm119, 0.0
    %3579 = vst.msk [vmem:[%s3563 + $0x3d0] sm:$0x1] %vm119, 0.0
    %3580 = vst.msk [vmem:[%s3563 + $0x490] sm:$0x1] %vm119, 0.0
    %3581 = vst.msk [vmem:[%s3563 + $0x4d0] sm:$0x1] %vm119, 0.0
    %3582 = vst.msk [vmem:[%s3563 + $0x510] sm:$0x1] %vm119, 0.0
    %3583 = vst.msk [vmem:[%s3563 + $0x550] sm:$0x1] %vm119, 0.0
    %3584 = vst.msk [vmem:[%s3563 + $0x590] sm:$0x1] %vm119, 0.0
    %3585 = vst.msk [vmem:[%s3563 + $0x5d0] sm:$0x1] %vm119, 0.0
    %3586 = vst.msk [vmem:[%s3563 + $0x610] sm:$0x1] %vm119, 0.0
    %3587 = vst.msk [vmem:[%s3563 + $0x650] sm:$0x1] %vm119, 0.0
    %3588 = vst.msk [vmem:[%s3563 + $0x690] sm:$0x1] %vm119, 0.0
    %3589 = vst.msk [vmem:[%s3563 + $0x6d0] sm:$0x1] %vm119, 0.0
    %3590 = vst.msk [vmem:[%s3563 + $0x710] sm:$0x1] %vm119, 0.0
    %3591 = vst.msk [vmem:[%s3563 + $0x750] sm:$0x1] %vm119, 0.0
    %3592 = vst.msk [vmem:[%s3563 + $0x790] sm:$0x1] %vm119, 0.0
    %3593 = vst.msk [vmem:[%s3563 + $0x7d0] sm:$0x1] %vm119, 0.0
    %3594 = vst.msk [vmem:[%s3563 + $0x810] sm:$0x1] %vm119, 0.0
    %3595 = vst.msk [vmem:[%s3563 + $0x850] sm:$0x1] %vm119, 0.0
    %3596 = vst.msk [vmem:[%s3563 + $0x2f] sm:$0x1] %vm119, 0.0
    %3597 = vst.msk [vmem:[%s3563 + $0x6f] sm:$0x1] %vm119, 0.0
    %3598 = vst.msk [vmem:[%s3563 + $0xaf] sm:$0x1] %vm119, 0.0
    %3599 = vst.msk [vmem:[%s3563 + $0xef] sm:$0x1] %vm119, 0.0
    %3600 = vst.msk [vmem:[%s3563 + $0x12f] sm:$0x1] %vm119, 0.0
    %3601 = vst.msk [vmem:[%s3563 + $0x16f] sm:$0x1] %vm119, 0.0
    %3602 = vst.msk [vmem:[%s3563 + $0x1af] sm:$0x1] %vm119, 0.0
    %3603 = vst.msk [vmem:[%s3563 + $0x1ef] sm:$0x1] %vm119, 0.0
    %3604 = vst.msk [vmem:[%s3563 + $0x22f] sm:$0x1] %vm119, 0.0
    %3605 = vst.msk [vmem:[%s3563 + $0x26f] sm:$0x1] %vm119, 0.0
    %3606 = vst.msk [vmem:[%s3563 + $0x2af] sm:$0x1] %vm119, 0.0
    %3607 = vst.msk [vmem:[%s3563 + $0x2ef] sm:$0x1] %vm119, 0.0
    %3608 = vst.msk [vmem:[%s3563 + $0x32f] sm:$0x1] %vm119, 0.0
    %3609 = vst.msk [vmem:[%s3563 + $0x36f] sm:$0x1] %vm119, 0.0
    %3610 = vst.msk [vmem:[%s3563 + $0x3af] sm:$0x1] %vm119, 0.0
    %3611 = vst.msk [vmem:[%s3563 + $0x3ef] sm:$0x1] %vm119, 0.0
    %3612 = vst.msk [vmem:[%s3563 + $0x4af] sm:$0x1] %vm119, 0.0
    %3613 = vst.msk [vmem:[%s3563 + $0x4ef] sm:$0x1] %vm119, 0.0
    %3614 = vst.msk [vmem:[%s3563 + $0x52f] sm:$0x1] %vm119, 0.0
    %3615 = vst.msk [vmem:[%s3563 + $0x56f] sm:$0x1] %vm119, 0.0
    %3616 = vst.msk [vmem:[%s3563 + $0x5af] sm:$0x1] %vm119, 0.0
    %3617 = vst.msk [vmem:[%s3563 + $0x5ef] sm:$0x1] %vm119, 0.0
    %3618 = vst.msk [vmem:[%s3563 + $0x62f] sm:$0x1] %vm119, 0.0
    %3619 = vst.msk [vmem:[%s3563 + $0x66f] sm:$0x1] %vm119, 0.0
    %3620 = vst.msk [vmem:[%s3563 + $0x6af] sm:$0x1] %vm119, 0.0
    %3621 = vst.msk [vmem:[%s3563 + $0x6ef] sm:$0x1] %vm119, 0.0
    %3622 = vst.msk [vmem:[%s3563 + $0x72f] sm:$0x1] %vm119, 0.0
    %3623 = vst.msk [vmem:[%s3563 + $0x76f] sm:$0x1] %vm119, 0.0
    %3624 = vst.msk [vmem:[%s3563 + $0x7af] sm:$0x1] %vm119, 0.0
    %3625 = vst.msk [vmem:[%s3563 + $0x7ef] sm:$0x1] %vm119, 0.0
    %3626 = vst.msk [vmem:[%s3563 + $0x82f] sm:$0x1] %vm119, 0.0
    %3627 = vst.msk [vmem:[%s3563 + $0x86f] sm:$0x1] %vm119, 0.0
    %v3692 = vrot.slane %v3482, 7
    %v3693 = vrot.slane %v3483, 7
    %v3694 = vsel %vm248, %v3692, %v3693
    %v3695 = vrot.slane %v3484, 7
    %v3696 = vrot.slane %v3485, 7
    %v3697 = vsel %vm248, %v3695, %v3696
    %v3698 = vrot.slane %v3486, 7
    %v3699 = vrot.slane %v3487, 7
    %v3700 = vsel %vm248, %v3698, %v3699
    %v3701 = vrot.slane %v3488, 7
    %v3702 = vrot.slane %v3489, 7
    %v3703 = vsel %vm248, %v3701, %v3702
    %v3704 = vrot.slane %v3490, 7
    %v3705 = vrot.slane %v3491, 7
    %v3706 = vsel %vm248, %v3704, %v3705
    %v3707 = vrot.slane %v3492, 7
    %v3708 = vrot.slane %v3493, 7
    %v3709 = vsel %vm248, %v3707, %v3708
    %v3710 = vrot.slane %v3494, 7
    %v3711 = vrot.slane %v3495, 7
    %v3712 = vsel %vm248, %v3710, %v3711
    %v3713 = vrot.slane %v3496, 7
    %v3714 = vrot.slane %v3497, 7
    %v3715 = vsel %vm248, %v3713, %v3714
    %v3716 = vrot.slane %v3498, 7
    %v3717 = vrot.slane %v3499, 7
    %v3718 = vsel %vm248, %v3716, %v3717
    %v3719 = vrot.slane %v3500, 7
    %v3720 = vrot.slane %v3501, 7
    %v3721 = vsel %vm248, %v3719, %v3720
    %v3722 = vrot.slane %v3502, 7
    %v3723 = vrot.slane %v3503, 7
    %v3724 = vsel %vm248, %v3722, %v3723
    %v3725 = vrot.slane %v3504, 7
    %v3726 = vrot.slane %v3505, 7
    %v3727 = vsel %vm248, %v3725, %v3726
    %v3728 = vrot.slane %v3506, 7
    %v3729 = vrot.slane %v3507, 7
    %v3730 = vsel %vm248, %v3728, %v3729
    %v3731 = vrot.slane %v3508, 7
    %v3732 = vrot.slane %v3509, 7
    %v3733 = vsel %vm248, %v3731, %v3732
    %v3734 = vrot.slane %v3510, 7
    %v3735 = vrot.slane %v3511, 7
    %v3736 = vsel %vm248, %v3734, %v3735
    %v3737 = vrot.slane %v3512, 7
    %v3738 = vrot.slane %v3513, 7
    %v3739 = vsel %vm248, %v3737, %v3738
    %v3740 = vrot.slane %v3514, 7
    %v3741 = vrot.slane %v3515, 7
    %v3742 = vsel %vm248, %v3740, %v3741
    %v3743 = vrot.slane %v3516, 7
    %v3744 = vrot.slane %v3517, 7
    %v3745 = vsel %vm248, %v3743, %v3744
    %v3746 = vrot.slane %v3518, 7
    %v3747 = vrot.slane %v3519, 7
    %v3748 = vsel %vm248, %v3746, %v3747
    %v3749 = vrot.slane %v3520, 7
    %v3750 = vrot.slane %v3521, 7
    %v3751 = vsel %vm248, %v3749, %v3750
    %v3752 = vrot.slane %v3522, 7
    %v3753 = vrot.slane %v3523, 7
    %v3754 = vsel %vm248, %v3752, %v3753
    %v3755 = vrot.slane %v3524, 7
    %v3756 = vrot.slane %v3525, 7
    %v3757 = vsel %vm248, %v3755, %v3756
    %v3758 = vrot.slane %v3526, 7
    %v3759 = vrot.slane %v3527, 7
    %v3760 = vsel %vm248, %v3758, %v3759
    %v3761 = vrot.slane %v3528, 7
    %v3762 = vrot.slane %v3529, 7
    %v3763 = vsel %vm248, %v3761, %v3762
    %v3764 = vrot.slane %v3530, 7
    %v3765 = vrot.slane %v3531, 7
    %v3766 = vsel %vm248, %v3764, %v3765
    %v3767 = vrot.slane %v3532, 7
    %v3768 = vrot.slane %v3533, 7
    %v3769 = vsel %vm248, %v3767, %v3768
    %v3770 = vrot.slane %v3534, 7
    %v3771 = vrot.slane %v3535, 7
    %v3772 = vsel %vm248, %v3770, %v3771
    %v3773 = vrot.slane %v3536, 7
    %v3774 = vrot.slane %v3537, 7
    %v3775 = vsel %vm248, %v3773, %v3774
    %v3776 = vrot.slane %v3538, 7
    %v3777 = vrot.slane %v3539, 7
    %v3778 = vsel %vm248, %v3776, %v3777
    %v3779 = vrot.slane %v3540, 7
    %v3780 = vrot.slane %v3541, 7
    %v3781 = vsel %vm248, %v3779, %v3780
    %v3782 = vrot.slane %v3542, 7
    %v3783 = vrot.slane %v3543, 7
    %v3784 = vsel %vm248, %v3782, %v3783
    %v3785 = vrot.slane %v3544, 7
    %v3786 = vrot.slane %v3545, 7
    %v3787 = vsel %vm248, %v3785, %v3786
    %3884 = vst.msk [vmem:[%s3563 + $0x10] sm:$0xfe] %vm441, %v3692
    %3885 = vst.msk [vmem:[%s3563 + $0x20] sm:$0xff] %vm101, %v3694
    %3886 = vst.msk [vmem:[%s3563 + $0x30] sm:$0x1] %vm119, %v3693
    %3887 = vst.msk [vmem:[%s3563 + $0x50] sm:$0xfe] %vm441, %v3695
    %3888 = vst.msk [vmem:[%s3563 + $0x60] sm:$0xff] %vm101, %v3697
    %3889 = vst.msk [vmem:[%s3563 + $0x70] sm:$0x1] %vm119, %v3696
    %3890 = vst.msk [vmem:[%s3563 + $0x90] sm:$0xfe] %vm441, %v3698
    %3891 = vst.msk [vmem:[%s3563 + $0xa0] sm:$0xff] %vm101, %v3700
    %3892 = vst.msk [vmem:[%s3563 + $0xb0] sm:$0x1] %vm119, %v3699
    %3893 = vst.msk [vmem:[%s3563 + $0xd0] sm:$0xfe] %vm441, %v3701
    %3894 = vst.msk [vmem:[%s3563 + $0xe0] sm:$0xff] %vm101, %v3703
    %3895 = vst.msk [vmem:[%s3563 + $0xf0] sm:$0x1] %vm119, %v3702
    %3896 = vst.msk [vmem:[%s3563 + $0x110] sm:$0xfe] %vm441, %v3704
    %3897 = vst.msk [vmem:[%s3563 + $0x120] sm:$0xff] %vm101, %v3706
    %3898 = vst.msk [vmem:[%s3563 + $0x130] sm:$0x1] %vm119, %v3705
    %3899 = vst.msk [vmem:[%s3563 + $0x150] sm:$0xfe] %vm441, %v3707
    %3900 = vst.msk [vmem:[%s3563 + $0x160] sm:$0xff] %vm101, %v3709
    %3901 = vst.msk [vmem:[%s3563 + $0x170] sm:$0x1] %vm119, %v3708
    %3902 = vst.msk [vmem:[%s3563 + $0x190] sm:$0xfe] %vm441, %v3710
    %3903 = vst.msk [vmem:[%s3563 + $0x1a0] sm:$0xff] %vm101, %v3712
    %3904 = vst.msk [vmem:[%s3563 + $0x1b0] sm:$0x1] %vm119, %v3711
    %3905 = vst.msk [vmem:[%s3563 + $0x1d0] sm:$0xfe] %vm441, %v3713
    %3906 = vst.msk [vmem:[%s3563 + $0x1e0] sm:$0xff] %vm101, %v3715
    %3907 = vst.msk [vmem:[%s3563 + $0x1f0] sm:$0x1] %vm119, %v3714
    %3908 = vst.msk [vmem:[%s3563 + $0x210] sm:$0xfe] %vm441, %v3716
    %3909 = vst.msk [vmem:[%s3563 + $0x220] sm:$0xff] %vm101, %v3718
    %3910 = vst.msk [vmem:[%s3563 + $0x230] sm:$0x1] %vm119, %v3717
    %3911 = vst.msk [vmem:[%s3563 + $0x250] sm:$0xfe] %vm441, %v3719
    %3912 = vst.msk [vmem:[%s3563 + $0x260] sm:$0xff] %vm101, %v3721
    %3913 = vst.msk [vmem:[%s3563 + $0x270] sm:$0x1] %vm119, %v3720
    %3914 = vst.msk [vmem:[%s3563 + $0x290] sm:$0xfe] %vm441, %v3722
    %3915 = vst.msk [vmem:[%s3563 + $0x2a0] sm:$0xff] %vm101, %v3724
    %3916 = vst.msk [vmem:[%s3563 + $0x2b0] sm:$0x1] %vm119, %v3723
    %3917 = vst.msk [vmem:[%s3563 + $0x2d0] sm:$0xfe] %vm441, %v3725
    %3918 = vst.msk [vmem:[%s3563 + $0x2e0] sm:$0xff] %vm101, %v3727
    %3919 = vst.msk [vmem:[%s3563 + $0x2f0] sm:$0x1] %vm119, %v3726
    %3920 = vst.msk [vmem:[%s3563 + $0x310] sm:$0xfe] %vm441, %v3728
    %3921 = vst.msk [vmem:[%s3563 + $0x320] sm:$0xff] %vm101, %v3730
    %3922 = vst.msk [vmem:[%s3563 + $0x330] sm:$0x1] %vm119, %v3729
    %3923 = vst.msk [vmem:[%s3563 + $0x350] sm:$0xfe] %vm441, %v3731
    %3924 = vst.msk [vmem:[%s3563 + $0x360] sm:$0xff] %vm101, %v3733
    %3925 = vst.msk [vmem:[%s3563 + $0x370] sm:$0x1] %vm119, %v3732
    %3926 = vst.msk [vmem:[%s3563 + $0x390] sm:$0xfe] %vm441, %v3734
    %3927 = vst.msk [vmem:[%s3563 + $0x3a0] sm:$0xff] %vm101, %v3736
    %3928 = vst.msk [vmem:[%s3563 + $0x3b0] sm:$0x1] %vm119, %v3735
    %3929 = vst.msk [vmem:[%s3563 + $0x3d0] sm:$0xfe] %vm441, %v3737
    %3930 = vst.msk [vmem:[%s3563 + $0x3e0] sm:$0xff] %vm101, %v3739
    %3931 = vst.msk [vmem:[%s3563 + $0x3f0] sm:$0x1] %vm119, %v3738
    %3932 = vst.msk [vmem:[%s3563 + $0x490] sm:$0xfe] %vm441, %v3740
    %3933 = vst.msk [vmem:[%s3563 + $0x4a0] sm:$0xff] %vm101, %v3742
    %3934 = vst.msk [vmem:[%s3563 + $0x4b0] sm:$0x1] %vm119, %v3741
    %3935 = vst.msk [vmem:[%s3563 + $0x4d0] sm:$0xfe] %vm441, %v3743
    %3936 = vst.msk [vmem:[%s3563 + $0x4e0] sm:$0xff] %vm101, %v3745
    %3937 = vst.msk [vmem:[%s3563 + $0x4f0] sm:$0x1] %vm119, %v3744
    %3938 = vst.msk [vmem:[%s3563 + $0x510] sm:$0xfe] %vm441, %v3746
    %3939 = vst.msk [vmem:[%s3563 + $0x520] sm:$0xff] %vm101, %v3748
    %3940 = vst.msk [vmem:[%s3563 + $0x530] sm:$0x1] %vm119, %v3747
    %3941 = vst.msk [vmem:[%s3563 + $0x550] sm:$0xfe] %vm441, %v3749
    %3942 = vst.msk [vmem:[%s3563 + $0x560] sm:$0xff] %vm101, %v3751
    %3943 = vst.msk [vmem:[%s3563 + $0x570] sm:$0x1] %vm119, %v3750
    %3944 = vst.msk [vmem:[%s3563 + $0x590] sm:$0xfe] %vm441, %v3752
    %3945 = vst.msk [vmem:[%s3563 + $0x5a0] sm:$0xff] %vm101, %v3754
    %3946 = vst.msk [vmem:[%s3563 + $0x5b0] sm:$0x1] %vm119, %v3753
    %3947 = vst.msk [vmem:[%s3563 + $0x5d0] sm:$0xfe] %vm441, %v3755
    %3948 = vst.msk [vmem:[%s3563 + $0x5e0] sm:$0xff] %vm101, %v3757
    %3949 = vst.msk [vmem:[%s3563 + $0x5f0] sm:$0x1] %vm119, %v3756
    %3950 = vst.msk [vmem:[%s3563 + $0x610] sm:$0xfe] %vm441, %v3758
    %3951 = vst.msk [vmem:[%s3563 + $0x620] sm:$0xff] %vm101, %v3760
    %3952 = vst.msk [vmem:[%s3563 + $0x630] sm:$0x1] %vm119, %v3759
    %3953 = vst.msk [vmem:[%s3563 + $0x650] sm:$0xfe] %vm441, %v3761
    %3954 = vst.msk [vmem:[%s3563 + $0x660] sm:$0xff] %vm101, %v3763
    %3955 = vst.msk [vmem:[%s3563 + $0x670] sm:$0x1] %vm119, %v3762
    %3956 = vst.msk [vmem:[%s3563 + $0x690] sm:$0xfe] %vm441, %v3764
    %3957 = vst.msk [vmem:[%s3563 + $0x6a0] sm:$0xff] %vm101, %v3766
    %3958 = vst.msk [vmem:[%s3563 + $0x6b0] sm:$0x1] %vm119, %v3765
    %3959 = vst.msk [vmem:[%s3563 + $0x6d0] sm:$0xfe] %vm441, %v3767
    %3960 = vst.msk [vmem:[%s3563 + $0x6e0] sm:$0xff] %vm101, %v3769
    %3961 = vst.msk [vmem:[%s3563 + $0x6f0] sm:$0x1] %vm119, %v3768
    %3962 = vst.msk [vmem:[%s3563 + $0x710] sm:$0xfe] %vm441, %v3770
    %3963 = vst.msk [vmem:[%s3563 + $0x720] sm:$0xff] %vm101, %v3772
    %3964 = vst.msk [vmem:[%s3563 + $0x730] sm:$0x1] %vm119, %v3771
    %3965 = vst.msk [vmem:[%s3563 + $0x750] sm:$0xfe] %vm441, %v3773
    %3966 = vst.msk [vmem:[%s3563 + $0x760] sm:$0xff] %vm101, %v3775
    %3967 = vst.msk [vmem:[%s3563 + $0x770] sm:$0x1] %vm119, %v3774
    %3968 = vst.msk [vmem:[%s3563 + $0x790] sm:$0xfe] %vm441, %v3776
    %3969 = vst.msk [vmem:[%s3563 + $0x7a0] sm:$0xff] %vm101, %v3778
    %3970 = vst.msk [vmem:[%s3563 + $0x7b0] sm:$0x1] %vm119, %v3777
    %3971 = vst.msk [vmem:[%s3563 + $0x7d0] sm:$0xfe] %vm441, %v3779
    %3972 = vst.msk [vmem:[%s3563 + $0x7e0] sm:$0xff] %vm101, %v3781
    %3973 = vst.msk [vmem:[%s3563 + $0x7f0] sm:$0x1] %vm119, %v3780
    %3974 = vst.msk [vmem:[%s3563 + $0x810] sm:$0xfe] %vm441, %v3782
    %3975 = vst.msk [vmem:[%s3563 + $0x820] sm:$0xff] %vm101, %v3784
    %3976 = vst.msk [vmem:[%s3563 + $0x830] sm:$0x1] %vm119, %v3783
    %3977 = vst.msk [vmem:[%s3563 + $0x850] sm:$0xfe] %vm441, %v3785
    %3978 = vst.msk [vmem:[%s3563 + $0x860] sm:$0xff] %vm101, %v3787
    %3979 = vst.msk [vmem:[%s3563 + $0x870] sm:$0x1] %vm119, %v3786
    %3980 = vrot.lane.b32.xlu0 %v3482, 64
    %v3981 = vpop.permute.xlu0 %3980
    %3982 = vrot.lane.b32.xlu0 %v3483, 64
    %v3983 = vpop.permute.xlu0 %3982
    %3984 = vrot.lane.b32.xlu0 %v3484, 64
    %v3985 = vpop.permute.xlu0 %3984
    %3986 = vrot.lane.b32.xlu0 %v3485, 64
    %v3987 = vpop.permute.xlu0 %3986
    %3988 = vrot.lane.b32.xlu0 %v3486, 64
    %v3989 = vpop.permute.xlu0 %3988
    %3990 = vrot.lane.b32.xlu0 %v3487, 64
    %v3991 = vpop.permute.xlu0 %3990
    %3992 = vrot.lane.b32.xlu0 %v3488, 64
    %v3993 = vpop.permute.xlu0 %3992
    %3994 = vrot.lane.b32.xlu0 %v3489, 64
    %v3995 = vpop.permute.xlu0 %3994
    %3996 = vrot.lane.b32.xlu0 %v3490, 64
    %v3997 = vpop.permute.xlu0 %3996
    %3998 = vrot.lane.b32.xlu0 %v3491, 64
    %v3999 = vpop.permute.xlu0 %3998
    %4000 = vrot.lane.b32.xlu0 %v3492, 64
    %v4001 = vpop.permute.xlu0 %4000
    %4002 = vrot.lane.b32.xlu0 %v3493, 64
    %v4003 = vpop.permute.xlu0 %4002
    %4004 = vrot.lane.b32.xlu0 %v3494, 64
    %v4005 = vpop.permute.xlu0 %4004
    %4006 = vrot.lane.b32.xlu0 %v3495, 64
    %v4007 = vpop.permute.xlu0 %4006
    %4008 = vrot.lane.b32.xlu0 %v3496, 64
    %v4009 = vpop.permute.xlu0 %4008
    %4010 = vrot.lane.b32.xlu0 %v3497, 64
    %v4011 = vpop.permute.xlu0 %4010
    %4012 = vrot.lane.b32.xlu0 %v3498, 64
    %v4013 = vpop.permute.xlu0 %4012
    %4014 = vrot.lane.b32.xlu0 %v3499, 64
    %v4015 = vpop.permute.xlu0 %4014
    %4016 = vrot.lane.b32.xlu0 %v3500, 64
    %v4017 = vpop.permute.xlu0 %4016
    %4018 = vrot.lane.b32.xlu0 %v3501, 64
    %v4019 = vpop.permute.xlu0 %4018
    %4020 = vrot.lane.b32.xlu0 %v3502, 64
    %v4021 = vpop.permute.xlu0 %4020
    %4022 = vrot.lane.b32.xlu0 %v3503, 64
    %v4023 = vpop.permute.xlu0 %4022
    %4024 = vrot.lane.b32.xlu0 %v3504, 64
    %v4025 = vpop.permute.xlu0 %4024
    %4026 = vrot.lane.b32.xlu0 %v3505, 64
    %v4027 = vpop.permute.xlu0 %4026
    %4028 = vrot.lane.b32.xlu0 %v3506, 64
    %v4029 = vpop.permute.xlu0 %4028
    %4030 = vrot.lane.b32.xlu0 %v3507, 64
    %v4031 = vpop.permute.xlu0 %4030
    %4032 = vrot.lane.b32.xlu0 %v3508, 64
    %v4033 = vpop.permute.xlu0 %4032
    %4034 = vrot.lane.b32.xlu0 %v3509, 64
    %v4035 = vpop.permute.xlu0 %4034
    %4036 = vrot.lane.b32.xlu0 %v3510, 64
    %v4037 = vpop.permute.xlu0 %4036
    %4038 = vrot.lane.b32.xlu0 %v3511, 64
    %v4039 = vpop.permute.xlu0 %4038
    %4040 = vrot.lane.b32.xlu0 %v3512, 64
    %v4041 = vpop.permute.xlu0 %4040
    %4042 = vrot.lane.b32.xlu0 %v3513, 64
    %v4043 = vpop.permute.xlu0 %4042
    %4044 = vrot.lane.b32.xlu0 %v3514, 64
    %v4045 = vpop.permute.xlu0 %4044
    %4046 = vrot.lane.b32.xlu0 %v3515, 64
    %v4047 = vpop.permute.xlu0 %4046
    %4048 = vrot.lane.b32.xlu0 %v3516, 64
    %v4049 = vpop.permute.xlu0 %4048
    %4050 = vrot.lane.b32.xlu0 %v3517, 64
    %v4051 = vpop.permute.xlu0 %4050
    %4052 = vrot.lane.b32.xlu0 %v3518, 64
    %v4053 = vpop.permute.xlu0 %4052
    %4054 = vrot.lane.b32.xlu0 %v3519, 64
    %v4055 = vpop.permute.xlu0 %4054
    %4056 = vrot.lane.b32.xlu0 %v3520, 64
    %v4057 = vpop.permute.xlu0 %4056
    %4058 = vrot.lane.b32.xlu0 %v3521, 64
    %v4059 = vpop.permute.xlu0 %4058
    %4060 = vrot.lane.b32.xlu0 %v3522, 64
    %v4061 = vpop.permute.xlu0 %4060
    %4062 = vrot.lane.b32.xlu0 %v3523, 64
    %v4063 = vpop.permute.xlu0 %4062
    %4064 = vrot.lane.b32.xlu0 %v3524, 64
    %v4065 = vpop.permute.xlu0 %4064
    %4066 = vrot.lane.b32.xlu0 %v3525, 64
    %v4067 = vpop.permute.xlu0 %4066
    %4068 = vrot.lane.b32.xlu0 %v3526, 64
    %v4069 = vpop.permute.xlu0 %4068
    %4070 = vrot.lane.b32.xlu0 %v3527, 64
    %v4071 = vpop.permute.xlu0 %4070
    %4072 = vrot.lane.b32.xlu0 %v3528, 64
    %v4073 = vpop.permute.xlu0 %4072
    %4074 = vrot.lane.b32.xlu0 %v3529, 64
    %v4075 = vpop.permute.xlu0 %4074
    %4076 = vrot.lane.b32.xlu0 %v3530, 64
    %v4077 = vpop.permute.xlu0 %4076
    %4078 = vrot.lane.b32.xlu0 %v3531, 64
    %v4079 = vpop.permute.xlu0 %4078
    %4080 = vrot.lane.b32.xlu0 %v3532, 64
    %v4081 = vpop.permute.xlu0 %4080
    %4082 = vrot.lane.b32.xlu0 %v3533, 64
    %v4083 = vpop.permute.xlu0 %4082
    %4084 = vrot.lane.b32.xlu0 %v3534, 64
    %v4085 = vpop.permute.xlu0 %4084
    %4086 = vrot.lane.b32.xlu0 %v3535, 64
    %v4087 = vpop.permute.xlu0 %4086
    %4088 = vrot.lane.b32.xlu0 %v3536, 64
    %v4089 = vpop.permute.xlu0 %4088
    %4090 = vrot.lane.b32.xlu0 %v3537, 64
    %v4091 = vpop.permute.xlu0 %4090
    %4092 = vrot.lane.b32.xlu0 %v3538, 64
    %v4093 = vpop.permute.xlu0 %4092
    %4094 = vrot.lane.b32.xlu0 %v3539, 64
    %v4095 = vpop.permute.xlu0 %4094
    %4096 = vrot.lane.b32.xlu0 %v3540, 64
    %v4097 = vpop.permute.xlu0 %4096
    %4098 = vrot.lane.b32.xlu0 %v3541, 64
    %v4099 = vpop.permute.xlu0 %4098
    %4100 = vrot.lane.b32.xlu0 %v3542, 64
    %v4101 = vpop.permute.xlu0 %4100
    %4102 = vrot.lane.b32.xlu0 %v3543, 64
    %v4103 = vpop.permute.xlu0 %4102
    %4104 = vrot.lane.b32.xlu0 %v3544, 64
    %v4105 = vpop.permute.xlu0 %4104
    %4106 = vrot.lane.b32.xlu0 %v3545, 64
    %v4107 = vpop.permute.xlu0 %4106
    %4172 = vst.msk [vmem:[%s3563 + $0x10] sm:$0xff] %vm730, %v3981
    %4173 = vst.msk [vmem:[%s3563 + $0x20] sm:$0xff] %vm730, %v3983
    %4174 = vst.msk [vmem:[%s3563 + $0x50] sm:$0xff] %vm730, %v3985
    %4175 = vst.msk [vmem:[%s3563 + $0x60] sm:$0xff] %vm730, %v3987
    %4176 = vst.msk [vmem:[%s3563 + $0x90] sm:$0xff] %vm730, %v3989
    %4177 = vst.msk [vmem:[%s3563 + $0xa0] sm:$0xff] %vm730, %v3991
    %4178 = vst.msk [vmem:[%s3563 + $0xd0] sm:$0xff] %vm730, %v3993
    %4179 = vst.msk [vmem:[%s3563 + $0xe0] sm:$0xff] %vm730, %v3995
    %4180 = vst.msk [vmem:[%s3563 + $0x110] sm:$0xff] %vm730, %v3997
    %4181 = vst.msk [vmem:[%s3563 + $0x120] sm:$0xff] %vm730, %v3999
    %4182 = vst.msk [vmem:[%s3563 + $0x150] sm:$0xff] %vm730, %v4001
    %4183 = vst.msk [vmem:[%s3563 + $0x160] sm:$0xff] %vm730, %v4003
    %4184 = vst.msk [vmem:[%s3563 + $0x190] sm:$0xff] %vm730, %v4005
    %4185 = vst.msk [vmem:[%s3563 + $0x1a0] sm:$0xff] %vm730, %v4007
    %4186 = vst.msk [vmem:[%s3563 + $0x1d0] sm:$0xff] %vm730, %v4009
    %4187 = vst.msk [vmem:[%s3563 + $0x1e0] sm:$0xff] %vm730, %v4011
    %4188 = vst.msk [vmem:[%s3563 + $0x210] sm:$0xff] %vm730, %v4013
    %4189 = vst.msk [vmem:[%s3563 + $0x220] sm:$0xff] %vm730, %v4015
    %4190 = vst.msk [vmem:[%s3563 + $0x250] sm:$0xff] %vm730, %v4017
    %4191 = vst.msk [vmem:[%s3563 + $0x260] sm:$0xff] %vm730, %v4019
    %4192 = vst.msk [vmem:[%s3563 + $0x290] sm:$0xff] %vm730, %v4021
    %4193 = vst.msk [vmem:[%s3563 + $0x2a0] sm:$0xff] %vm730, %v4023
    %4194 = vst.msk [vmem:[%s3563 + $0x2d0] sm:$0xff] %vm730, %v4025
    %4195 = vst.msk [vmem:[%s3563 + $0x2e0] sm:$0xff] %vm730, %v4027
    %4196 = vst.msk [vmem:[%s3563 + $0x310] sm:$0xff] %vm730, %v4029
    %4197 = vst.msk [vmem:[%s3563 + $0x320] sm:$0xff] %vm730, %v4031
    %4198 = vst.msk [vmem:[%s3563 + $0x350] sm:$0xff] %vm730, %v4033
    %4199 = vst.msk [vmem:[%s3563 + $0x360] sm:$0xff] %vm730, %v4035
    %4200 = vst.msk [vmem:[%s3563 + $0x390] sm:$0xff] %vm730, %v4037
    %4201 = vst.msk [vmem:[%s3563 + $0x3a0] sm:$0xff] %vm730, %v4039
    %4202 = vst.msk [vmem:[%s3563 + $0x3d0] sm:$0xff] %vm730, %v4041
    %4203 = vst.msk [vmem:[%s3563 + $0x3e0] sm:$0xff] %vm730, %v4043
    %4204 = vst.msk [vmem:[%s3563 + $0x490] sm:$0xff] %vm730, %v4045
    %4205 = vst.msk [vmem:[%s3563 + $0x4a0] sm:$0xff] %vm730, %v4047
    %4206 = vst.msk [vmem:[%s3563 + $0x4d0] sm:$0xff] %vm730, %v4049
    %4207 = vst.msk [vmem:[%s3563 + $0x4e0] sm:$0xff] %vm730, %v4051
    %4208 = vst.msk [vmem:[%s3563 + $0x510] sm:$0xff] %vm730, %v4053
    %4209 = vst.msk [vmem:[%s3563 + $0x520] sm:$0xff] %vm730, %v4055
    %4210 = vst.msk [vmem:[%s3563 + $0x550] sm:$0xff] %vm730, %v4057
    %4211 = vst.msk [vmem:[%s3563 + $0x560] sm:$0xff] %vm730, %v4059
    %4212 = vst.msk [vmem:[%s3563 + $0x590] sm:$0xff] %vm730, %v4061
    %4213 = vst.msk [vmem:[%s3563 + $0x5a0] sm:$0xff] %vm730, %v4063
    %4214 = vst.msk [vmem:[%s3563 + $0x5d0] sm:$0xff] %vm730, %v4065
    %4215 = vst.msk [vmem:[%s3563 + $0x5e0] sm:$0xff] %vm730, %v4067
    %4216 = vst.msk [vmem:[%s3563 + $0x610] sm:$0xff] %vm730, %v4069
    %4217 = vst.msk [vmem:[%s3563 + $0x620] sm:$0xff] %vm730, %v4071
    %4218 = vst.msk [vmem:[%s3563 + $0x650] sm:$0xff] %vm730, %v4073
    %4219 = vst.msk [vmem:[%s3563 + $0x660] sm:$0xff] %vm730, %v4075
    %4220 = vst.msk [vmem:[%s3563 + $0x690] sm:$0xff] %vm730, %v4077
    %4221 = vst.msk [vmem:[%s3563 + $0x6a0] sm:$0xff] %vm730, %v4079
    %4222 = vst.msk [vmem:[%s3563 + $0x6d0] sm:$0xff] %vm730, %v4081
    %4223 = vst.msk [vmem:[%s3563 + $0x6e0] sm:$0xff] %vm730, %v4083
    %4224 = vst.msk [vmem:[%s3563 + $0x710] sm:$0xff] %vm730, %v4085
    %4225 = vst.msk [vmem:[%s3563 + $0x720] sm:$0xff] %vm730, %v4087
    %4226 = vst.msk [vmem:[%s3563 + $0x750] sm:$0xff] %vm730, %v4089
    %4227 = vst.msk [vmem:[%s3563 + $0x760] sm:$0xff] %vm730, %v4091
    %4228 = vst.msk [vmem:[%s3563 + $0x790] sm:$0xff] %vm730, %v4093
    %4229 = vst.msk [vmem:[%s3563 + $0x7a0] sm:$0xff] %vm730, %v4095
    %4230 = vst.msk [vmem:[%s3563 + $0x7d0] sm:$0xff] %vm730, %v4097
    %4231 = vst.msk [vmem:[%s3563 + $0x7e0] sm:$0xff] %vm730, %v4099
    %4232 = vst.msk [vmem:[%s3563 + $0x810] sm:$0xff] %vm730, %v4101
    %4233 = vst.msk [vmem:[%s3563 + $0x820] sm:$0xff] %vm730, %v4103
    %4234 = vst.msk [vmem:[%s3563 + $0x850] sm:$0xff] %vm730, %v4105
    %4235 = vst.msk [vmem:[%s3563 + $0x860] sm:$0xff] %vm730, %v4107
    %v4236 = vrot.slane %v3482, 1
    %v4237 = vrot.slane %v3483, 1
    %v4238 = vsel %vm795, %v4236, %v4237
    %v4239 = vrot.slane %v3484, 1
    %v4240 = vrot.slane %v3485, 1
    %v4241 = vsel %vm795, %v4239, %v4240
    %v4242 = vrot.slane %v3486, 1
    %v4243 = vrot.slane %v3487, 1
    %v4244 = vsel %vm795, %v4242, %v4243
    %v4245 = vrot.slane %v3488, 1
    %v4246 = vrot.slane %v3489, 1
    %v4247 = vsel %vm795, %v4245, %v4246
    %v4248 = vrot.slane %v3490, 1
    %v4249 = vrot.slane %v3491, 1
    %v4250 = vsel %vm795, %v4248, %v4249
    %v4251 = vrot.slane %v3492, 1
    %v4252 = vrot.slane %v3493, 1
    %v4253 = vsel %vm795, %v4251, %v4252
    %v4254 = vrot.slane %v3494, 1
    %v4255 = vrot.slane %v3495, 1
    %v4256 = vsel %vm795, %v4254, %v4255
    %v4257 = vrot.slane %v3496, 1
    %v4258 = vrot.slane %v3497, 1
    %v4259 = vsel %vm795, %v4257, %v4258
    %v4260 = vrot.slane %v3498, 1
    %v4261 = vrot.slane %v3499, 1
    %v4262 = vsel %vm795, %v4260, %v4261
    %v4263 = vrot.slane %v3500, 1
    %v4264 = vrot.slane %v3501, 1
    %v4265 = vsel %vm795, %v4263, %v4264
    %v4266 = vrot.slane %v3502, 1
    %v4267 = vrot.slane %v3503, 1
    %v4268 = vsel %vm795, %v4266, %v4267
    %v4269 = vrot.slane %v3504, 1
    %v4270 = vrot.slane %v3505, 1
    %v4271 = vsel %vm795, %v4269, %v4270
    %v4272 = vrot.slane %v3506, 1
    %v4273 = vrot.slane %v3507, 1
    %v4274 = vsel %vm795, %v4272, %v4273
    %v4275 = vrot.slane %v3508, 1
    %v4276 = vrot.slane %v3509, 1
    %v4277 = vsel %vm795, %v4275, %v4276
    %v4278 = vrot.slane %v3510, 1
    %v4279 = vrot.slane %v3511, 1
    %v4280 = vsel %vm795, %v4278, %v4279
    %v4281 = vrot.slane %v3512, 1
    %v4282 = vrot.slane %v3513, 1
    %v4283 = vsel %vm795, %v4281, %v4282
    %v4284 = vrot.slane %v3514, 1
    %v4285 = vrot.slane %v3515, 1
    %v4286 = vsel %vm795, %v4284, %v4285
    %v4287 = vrot.slane %v3516, 1
    %v4288 = vrot.slane %v3517, 1
    %v4289 = vsel %vm795, %v4287, %v4288
    %v4290 = vrot.slane %v3518, 1
    %v4291 = vrot.slane %v3519, 1
    %v4292 = vsel %vm795, %v4290, %v4291
    %v4293 = vrot.slane %v3520, 1
    %v4294 = vrot.slane %v3521, 1
    %v4295 = vsel %vm795, %v4293, %v4294
    %v4296 = vrot.slane %v3522, 1
    %v4297 = vrot.slane %v3523, 1
    %v4298 = vsel %vm795, %v4296, %v4297
    %v4299 = vrot.slane %v3524, 1
    %v4300 = vrot.slane %v3525, 1
    %v4301 = vsel %vm795, %v4299, %v4300
    %v4302 = vrot.slane %v3526, 1
    %v4303 = vrot.slane %v3527, 1
    %v4304 = vsel %vm795, %v4302, %v4303
    %v4305 = vrot.slane %v3528, 1
    %v4306 = vrot.slane %v3529, 1
    %v4307 = vsel %vm795, %v4305, %v4306
    %v4308 = vrot.slane %v3530, 1
    %v4309 = vrot.slane %v3531, 1
    %v4310 = vsel %vm795, %v4308, %v4309
    %v4311 = vrot.slane %v3532, 1
    %v4312 = vrot.slane %v3533, 1
    %v4313 = vsel %vm795, %v4311, %v4312
    %v4314 = vrot.slane %v3534, 1
    %v4315 = vrot.slane %v3535, 1
    %v4316 = vsel %vm795, %v4314, %v4315
    %v4317 = vrot.slane %v3536, 1
    %v4318 = vrot.slane %v3537, 1
    %v4319 = vsel %vm795, %v4317, %v4318
    %v4320 = vrot.slane %v3538, 1
    %v4321 = vrot.slane %v3539, 1
    %v4322 = vsel %vm795, %v4320, %v4321
    %v4323 = vrot.slane %v3540, 1
    %v4324 = vrot.slane %v3541, 1
    %v4325 = vsel %vm795, %v4323, %v4324
    %v4326 = vrot.slane %v3542, 1
    %v4327 = vrot.slane %v3543, 1
    %v4328 = vsel %vm795, %v4326, %v4327
    %v4329 = vrot.slane %v3544, 1
    %v4330 = vrot.slane %v3545, 1
    %v4331 = vsel %vm795, %v4329, %v4330
    %4428 = vst.msk [vmem:[%s3563 + $0x8] sm:$0x80] %vm988, %v4236
    %4429 = vst.msk [vmem:[%s3563 + $0x18] sm:$0xff] %vm101, %v4238
    %4430 = vst.msk [vmem:[%s3563 + $0x28] sm:$0x7f] %vm991, %v4237
    %4431 = vst.msk [vmem:[%s3563 + $0x48] sm:$0x80] %vm988, %v4239
    %4432 = vst.msk [vmem:[%s3563 + $0x58] sm:$0xff] %vm101, %v4241
    %4433 = vst.msk [vmem:[%s3563 + $0x68] sm:$0x7f] %vm991, %v4240
    %4434 = vst.msk [vmem:[%s3563 + $0x88] sm:$0x80] %vm988, %v4242
    %4435 = vst.msk [vmem:[%s3563 + $0x98] sm:$0xff] %vm101, %v4244
    %4436 = vst.msk [vmem:[%s3563 + $0xa8] sm:$0x7f] %vm991, %v4243
    %4437 = vst.msk [vmem:[%s3563 + $0xc8] sm:$0x80] %vm988, %v4245
    %4438 = vst.msk [vmem:[%s3563 + $0xd8] sm:$0xff] %vm101, %v4247
    %4439 = vst.msk [vmem:[%s3563 + $0xe8] sm:$0x7f] %vm991, %v4246
    %4440 = vst.msk [vmem:[%s3563 + $0x108] sm:$0x80] %vm988, %v4248
    %4441 = vst.msk [vmem:[%s3563 + $0x118] sm:$0xff] %vm101, %v4250
    %4442 = vst.msk [vmem:[%s3563 + $0x128] sm:$0x7f] %vm991, %v4249
    %4443 = vst.msk [vmem:[%s3563 + $0x148] sm:$0x80] %vm988, %v4251
    %4444 = vst.msk [vmem:[%s3563 + $0x158] sm:$0xff] %vm101, %v4253
    %4445 = vst.msk [vmem:[%s3563 + $0x168] sm:$0x7f] %vm991, %v4252
    %4446 = vst.msk [vmem:[%s3563 + $0x188] sm:$0x80] %vm988, %v4254
    %4447 = vst.msk [vmem:[%s3563 + $0x198] sm:$0xff] %vm101, %v4256
    %4448 = vst.msk [vmem:[%s3563 + $0x1a8] sm:$0x7f] %vm991, %v4255
    %4449 = vst.msk [vmem:[%s3563 + $0x1c8] sm:$0x80] %vm988, %v4257
    %4450 = vst.msk [vmem:[%s3563 + $0x1d8] sm:$0xff] %vm101, %v4259
    %4451 = vst.msk [vmem:[%s3563 + $0x1e8] sm:$0x7f] %vm991, %v4258
    %4452 = vst.msk [vmem:[%s3563 + $0x208] sm:$0x80] %vm988, %v4260
    %4453 = vst.msk [vmem:[%s3563 + $0x218] sm:$0xff] %vm101, %v4262
    %4454 = vst.msk [vmem:[%s3563 + $0x228] sm:$0x7f] %vm991, %v4261
    %4455 = vst.msk [vmem:[%s3563 + $0x248] sm:$0x80] %vm988, %v4263
    %4456 = vst.msk [vmem:[%s3563 + $0x258] sm:$0xff] %vm101, %v4265
    %4457 = vst.msk [vmem:[%s3563 + $0x268] sm:$0x7f] %vm991, %v4264
    %4458 = vst.msk [vmem:[%s3563 + $0x288] sm:$0x80] %vm988, %v4266
    %4459 = vst.msk [vmem:[%s3563 + $0x298] sm:$0xff] %vm101, %v4268
    %4460 = vst.msk [vmem:[%s3563 + $0x2a8] sm:$0x7f] %vm991, %v4267
    %4461 = vst.msk [vmem:[%s3563 + $0x2c8] sm:$0x80] %vm988, %v4269
    %4462 = vst.msk [vmem:[%s3563 + $0x2d8] sm:$0xff] %vm101, %v4271
    %4463 = vst.msk [vmem:[%s3563 + $0x2e8] sm:$0x7f] %vm991, %v4270
    %4464 = vst.msk [vmem:[%s3563 + $0x308] sm:$0x80] %vm988, %v4272
    %4465 = vst.msk [vmem:[%s3563 + $0x318] sm:$0xff] %vm101, %v4274
    %4466 = vst.msk [vmem:[%s3563 + $0x328] sm:$0x7f] %vm991, %v4273
    %4467 = vst.msk [vmem:[%s3563 + $0x348] sm:$0x80] %vm988, %v4275
    %4468 = vst.msk [vmem:[%s3563 + $0x358] sm:$0xff] %vm101, %v4277
    %4469 = vst.msk [vmem:[%s3563 + $0x368] sm:$0x7f] %vm991, %v4276
    %4470 = vst.msk [vmem:[%s3563 + $0x388] sm:$0x80] %vm988, %v4278
    %4471 = vst.msk [vmem:[%s3563 + $0x398] sm:$0xff] %vm101, %v4280
    %4472 = vst.msk [vmem:[%s3563 + $0x3a8] sm:$0x7f] %vm991, %v4279
    %4473 = vst.msk [vmem:[%s3563 + $0x3c8] sm:$0x80] %vm988, %v4281
    %4474 = vst.msk [vmem:[%s3563 + $0x3d8] sm:$0xff] %vm101, %v4283
    %4475 = vst.msk [vmem:[%s3563 + $0x3e8] sm:$0x7f] %vm991, %v4282
    %4476 = vst.msk [vmem:[%s3563 + $0x488] sm:$0x80] %vm988, %v4284
    %4477 = vst.msk [vmem:[%s3563 + $0x498] sm:$0xff] %vm101, %v4286
    %4478 = vst.msk [vmem:[%s3563 + $0x4a8] sm:$0x7f] %vm991, %v4285
    %4479 = vst.msk [vmem:[%s3563 + $0x4c8] sm:$0x80] %vm988, %v4287
    %4480 = vst.msk [vmem:[%s3563 + $0x4d8] sm:$0xff] %vm101, %v4289
    %4481 = vst.msk [vmem:[%s3563 + $0x4e8] sm:$0x7f] %vm991, %v4288
    %4482 = vst.msk [vmem:[%s3563 + $0x508] sm:$0x80] %vm988, %v4290
    %4483 = vst.msk [vmem:[%s3563 + $0x518] sm:$0xff] %vm101, %v4292
    %4484 = vst.msk [vmem:[%s3563 + $0x528] sm:$0x7f] %vm991, %v4291
    %4485 = vst.msk [vmem:[%s3563 + $0x548] sm:$0x80] %vm988, %v4293
    %4486 = vst.msk [vmem:[%s3563 + $0x558] sm:$0xff] %vm101, %v4295
    %4487 = vst.msk [vmem:[%s3563 + $0x568] sm:$0x7f] %vm991, %v4294
    %4488 = vst.msk [vmem:[%s3563 + $0x588] sm:$0x80] %vm988, %v4296
    %4489 = vst.msk [vmem:[%s3563 + $0x598] sm:$0xff] %vm101, %v4298
    %4490 = vst.msk [vmem:[%s3563 + $0x5a8] sm:$0x7f] %vm991, %v4297
    %4491 = vst.msk [vmem:[%s3563 + $0x5c8] sm:$0x80] %vm988, %v4299
    %4492 = vst.msk [vmem:[%s3563 + $0x5d8] sm:$0xff] %vm101, %v4301
    %4493 = vst.msk [vmem:[%s3563 + $0x5e8] sm:$0x7f] %vm991, %v4300
    %4494 = vst.msk [vmem:[%s3563 + $0x608] sm:$0x80] %vm988, %v4302
    %4495 = vst.msk [vmem:[%s3563 + $0x618] sm:$0xff] %vm101, %v4304
    %4496 = vst.msk [vmem:[%s3563 + $0x628] sm:$0x7f] %vm991, %v4303
    %4497 = vst.msk [vmem:[%s3563 + $0x648] sm:$0x80] %vm988, %v4305
    %4498 = vst.msk [vmem:[%s3563 + $0x658] sm:$0xff] %vm101, %v4307
    %4499 = vst.msk [vmem:[%s3563 + $0x668] sm:$0x7f] %vm991, %v4306
    %4500 = vst.msk [vmem:[%s3563 + $0x688] sm:$0x80] %vm988, %v4308
    %4501 = vst.msk [vmem:[%s3563 + $0x698] sm:$0xff] %vm101, %v4310
    %4502 = vst.msk [vmem:[%s3563 + $0x6a8] sm:$0x7f] %vm991, %v4309
    %4503 = vst.msk [vmem:[%s3563 + $0x6c8] sm:$0x80] %vm988, %v4311
    %4504 = vst.msk [vmem:[%s3563 + $0x6d8] sm:$0xff] %vm101, %v4313
    %4505 = vst.msk [vmem:[%s3563 + $0x6e8] sm:$0x7f] %vm991, %v4312
    %4506 = vst.msk [vmem:[%s3563 + $0x708] sm:$0x80] %vm988, %v4314
    %4507 = vst.msk [vmem:[%s3563 + $0x718] sm:$0xff] %vm101, %v4316
    %4508 = vst.msk [vmem:[%s3563 + $0x728] sm:$0x7f] %vm991, %v4315
    %4509 = vst.msk [vmem:[%s3563 + $0x748] sm:$0x80] %vm988, %v4317
    %4510 = vst.msk [vmem:[%s3563 + $0x758] sm:$0xff] %vm101, %v4319
    %4511 = vst.msk [vmem:[%s3563 + $0x768] sm:$0x7f] %vm991, %v4318
    %4512 = vst.msk [vmem:[%s3563 + $0x788] sm:$0x80] %vm988, %v4320
    %4513 = vst.msk [vmem:[%s3563 + $0x798] sm:$0xff] %vm101, %v4322
    %4514 = vst.msk [vmem:[%s3563 + $0x7a8] sm:$0x7f] %vm991, %v4321
    %4515 = vst.msk [vmem:[%s3563 + $0x7c8] sm:$0x80] %vm988, %v4323
    %4516 = vst.msk [vmem:[%s3563 + $0x7d8] sm:$0xff] %vm101, %v4325
    %4517 = vst.msk [vmem:[%s3563 + $0x7e8] sm:$0x7f] %vm991, %v4324
    %4518 = vst.msk [vmem:[%s3563 + $0x808] sm:$0x80] %vm988, %v4326
    %4519 = vst.msk [vmem:[%s3563 + $0x818] sm:$0xff] %vm101, %v4328
    %4520 = vst.msk [vmem:[%s3563 + $0x828] sm:$0x7f] %vm991, %v4327
    %4521 = vst.msk [vmem:[%s3563 + $0x848] sm:$0x80] %vm988, %v4329
    %4522 = vst.msk [vmem:[%s3563 + $0x858] sm:$0xff] %vm101, %v4331
    %4523 = vst.msk [vmem:[%s3563 + $0x868] sm:$0x7f] %vm991, %v4330
    %v4524 = vld [vmem:[#allocation3 + $0x10] sm:$0xff]
    %v4525 = vld [vmem:[#allocation3 + $0x18] sm:$0xff]
    %v4526 = vld [vmem:[#allocation3 + $0x20] sm:$0xff]
    %v4527 = vld [vmem:[#allocation3 + $0x28] sm:$0xff]
    %v4528 = vld [vmem:[#allocation3 + $0x50] sm:$0xff]
    %v4529 = vld [vmem:[#allocation3 + $0x58] sm:$0xff]
    %v4530 = vld [vmem:[#allocation3 + $0x60] sm:$0xff]
    %v4531 = vld [vmem:[#allocation3 + $0x68] sm:$0xff]
    %v4532 = vld [vmem:[#allocation3 + $0x90] sm:$0xff]
    %v4533 = vld [vmem:[#allocation3 + $0x98] sm:$0xff]
    %v4534 = vld [vmem:[#allocation3 + $0xa0] sm:$0xff]
    %v4535 = vld [vmem:[#allocation3 + $0xa8] sm:$0xff]
    %v4536 = vld [vmem:[#allocation3 + $0xd0] sm:$0xff]
    %v4537 = vld [vmem:[#allocation3 + $0xd8] sm:$0xff]
    %v4538 = vld [vmem:[#allocation3 + $0xe0] sm:$0xff]
    %v4539 = vld [vmem:[#allocation3 + $0xe8] sm:$0xff]
    %v4540 = vld [vmem:[#allocation3 + $0x110] sm:$0xff]
    %v4541 = vld [vmem:[#allocation3 + $0x118] sm:$0xff]
    %v4542 = vld [vmem:[#allocation3 + $0x120] sm:$0xff]
    %v4543 = vld [vmem:[#allocation3 + $0x128] sm:$0xff]
    %v4544 = vld [vmem:[#allocation3 + $0x150] sm:$0xff]
    %v4545 = vld [vmem:[#allocation3 + $0x158] sm:$0xff]
    %v4546 = vld [vmem:[#allocation3 + $0x160] sm:$0xff]
    %v4547 = vld [vmem:[#allocation3 + $0x168] sm:$0xff]
    %v4548 = vld [vmem:[#allocation3 + $0x190] sm:$0xff]
    %v4549 = vld [vmem:[#allocation3 + $0x198] sm:$0xff]
    %v4550 = vld [vmem:[#allocation3 + $0x1a0] sm:$0xff]
    %v4551 = vld [vmem:[#allocation3 + $0x1a8] sm:$0xff]
    %v4552 = vld [vmem:[#allocation3 + $0x1d0] sm:$0xff]
    %v4553 = vld [vmem:[#allocation3 + $0x1d8] sm:$0xff]
    %v4554 = vld [vmem:[#allocation3 + $0x1e0] sm:$0xff]
    %v4555 = vld [vmem:[#allocation3 + $0x1e8] sm:$0xff]
    %v4556 = vld [vmem:[#allocation3 + $0x210] sm:$0xff]
    %v4557 = vld [vmem:[#allocation3 + $0x218] sm:$0xff]
    %v4558 = vld [vmem:[#allocation3 + $0x220] sm:$0xff]
    %v4559 = vld [vmem:[#allocation3 + $0x228] sm:$0xff]
    %v4560 = vld [vmem:[#allocation3 + $0x250] sm:$0xff]
    %v4561 = vld [vmem:[#allocation3 + $0x258] sm:$0xff]
    %v4562 = vld [vmem:[#allocation3 + $0x260] sm:$0xff]
    %v4563 = vld [vmem:[#allocation3 + $0x268] sm:$0xff]
    %v4564 = vld [vmem:[#allocation3 + $0x290] sm:$0xff]
    %v4565 = vld [vmem:[#allocation3 + $0x298] sm:$0xff]
    %v4566 = vld [vmem:[#allocation3 + $0x2a0] sm:$0xff]
    %v4567 = vld [vmem:[#allocation3 + $0x2a8] sm:$0xff]
    %v4568 = vld [vmem:[#allocation3 + $0x2d0] sm:$0xff]
    %v4569 = vld [vmem:[#allocation3 + $0x2d8] sm:$0xff]
    %v4570 = vld [vmem:[#allocation3 + $0x2e0] sm:$0xff]
    %v4571 = vld [vmem:[#allocation3 + $0x2e8] sm:$0xff]
    %v4572 = vld [vmem:[#allocation3 + $0x310] sm:$0xff]
    %v4573 = vld [vmem:[#allocation3 + $0x318] sm:$0xff]
    %v4574 = vld [vmem:[#allocation3 + $0x320] sm:$0xff]
    %v4575 = vld [vmem:[#allocation3 + $0x328] sm:$0xff]
    %v4576 = vld [vmem:[#allocation3 + $0x350] sm:$0xff]
    %v4577 = vld [vmem:[#allocation3 + $0x358] sm:$0xff]
    %v4578 = vld [vmem:[#allocation3 + $0x360] sm:$0xff]
    %v4579 = vld [vmem:[#allocation3 + $0x368] sm:$0xff]
    %v4580 = vld [vmem:[#allocation3 + $0x390] sm:$0xff]
    %v4581 = vld [vmem:[#allocation3 + $0x398] sm:$0xff]
    %v4582 = vld [vmem:[#allocation3 + $0x3a0] sm:$0xff]
    %v4583 = vld [vmem:[#allocation3 + $0x3a8] sm:$0xff]
    %v4584 = vld [vmem:[#allocation3 + $0x3d0] sm:$0xff]
    %v4585 = vld [vmem:[#allocation3 + $0x3d8] sm:$0xff]
    %v4586 = vld [vmem:[#allocation3 + $0x3e0] sm:$0xff]
    %v4587 = vld [vmem:[#allocation3 + $0x3e8] sm:$0xff]
    %v4588 = vld [vmem:[#allocation3 + $0x490] sm:$0xff]
    %v4589 = vld [vmem:[#allocation3 + $0x498] sm:$0xff]
    %v4590 = vld [vmem:[#allocation3 + $0x4a0] sm:$0xff]
    %v4591 = vld [vmem:[#allocation3 + $0x4a8] sm:$0xff]
    %v4592 = vld [vmem:[#allocation3 + $0x4d0] sm:$0xff]
    %v4593 = vld [vmem:[#allocation3 + $0x4d8] sm:$0xff]
    %v4594 = vld [vmem:[#allocation3 + $0x4e0] sm:$0xff]
    %v4595 = vld [vmem:[#allocation3 + $0x4e8] sm:$0xff]
    %v4596 = vld [vmem:[#allocation3 + $0x510] sm:$0xff]
    %v4597 = vld [vmem:[#allocation3 + $0x518] sm:$0xff]
    %v4598 = vld [vmem:[#allocation3 + $0x520] sm:$0xff]
    %v4599 = vld [vmem:[#allocation3 + $0x528] sm:$0xff]
    %v4600 = vld [vmem:[#allocation3 + $0x550] sm:$0xff]
    %v4601 = vld [vmem:[#allocation3 + $0x558] sm:$0xff]
    %v4602 = vld [vmem:[#allocation3 + $0x560] sm:$0xff]
    %v4603 = vld [vmem:[#allocation3 + $0x568] sm:$0xff]
    %v4604 = vld [vmem:[#allocation3 + $0x590] sm:$0xff]
    %v4605 = vld [vmem:[#allocation3 + $0x598] sm:$0xff]
    %v4606 = vld [vmem:[#allocation3 + $0x5a0] sm:$0xff]
    %v4607 = vld [vmem:[#allocation3 + $0x5a8] sm:$0xff]
    %v4608 = vld [vmem:[#allocation3 + $0x5d0] sm:$0xff]
    %v4609 = vld [vmem:[#allocation3 + $0x5d8] sm:$0xff]
    %v4610 = vld [vmem:[#allocation3 + $0x5e0] sm:$0xff]
    %v4611 = vld [vmem:[#allocation3 + $0x5e8] sm:$0xff]
    %v4612 = vld [vmem:[#allocation3 + $0x610] sm:$0xff]
    %v4613 = vld [vmem:[#allocation3 + $0x618] sm:$0xff]
    %v4614 = vld [vmem:[#allocation3 + $0x620] sm:$0xff]
    %v4615 = vld [vmem:[#allocation3 + $0x628] sm:$0xff]
    %v4616 = vld [vmem:[#allocation3 + $0x650] sm:$0xff]
    %v4617 = vld [vmem:[#allocation3 + $0x658] sm:$0xff]
    %v4618 = vld [vmem:[#allocation3 + $0x660] sm:$0xff]
    %v4619 = vld [vmem:[#allocation3 + $0x668] sm:$0xff]
    %v4620 = vld [vmem:[#allocation3 + $0x690] sm:$0xff]
    %v4621 = vld [vmem:[#allocation3 + $0x698] sm:$0xff]
    %v4622 = vld [vmem:[#allocation3 + $0x6a0] sm:$0xff]
    %v4623 = vld [vmem:[#allocation3 + $0x6a8] sm:$0xff]
    %v4624 = vld [vmem:[#allocation3 + $0x6d0] sm:$0xff]
    %v4625 = vld [vmem:[#allocation3 + $0x6d8] sm:$0xff]
    %v4626 = vld [vmem:[#allocation3 + $0x6e0] sm:$0xff]
    %v4627 = vld [vmem:[#allocation3 + $0x6e8] sm:$0xff]
    %v4628 = vld [vmem:[#allocation3 + $0x710] sm:$0xff]
    %v4629 = vld [vmem:[#allocation3 + $0x718] sm:$0xff]
    %v4630 = vld [vmem:[#allocation3 + $0x720] sm:$0xff]
    %v4631 = vld [vmem:[#allocation3 + $0x728] sm:$0xff]
    %v4632 = vld [vmem:[#allocation3 + $0x750] sm:$0xff]
    %v4633 = vld [vmem:[#allocation3 + $0x758] sm:$0xff]
    %v4634 = vld [vmem:[#allocation3 + $0x760] sm:$0xff]
    %v4635 = vld [vmem:[#allocation3 + $0x768] sm:$0xff]
    %v4636 = vld [vmem:[#allocation3 + $0x790] sm:$0xff]
    %v4637 = vld [vmem:[#allocation3 + $0x798] sm:$0xff]
    %v4638 = vld [vmem:[#allocation3 + $0x7a0] sm:$0xff]
    %v4639 = vld [vmem:[#allocation3 + $0x7a8] sm:$0xff]
    %v4640 = vld [vmem:[#allocation3 + $0x7d0] sm:$0xff]
    %v4641 = vld [vmem:[#allocation3 + $0x7d8] sm:$0xff]
    %v4642 = vld [vmem:[#allocation3 + $0x7e0] sm:$0xff]
    %v4643 = vld [vmem:[#allocation3 + $0x7e8] sm:$0xff]
    %v4644 = vld [vmem:[#allocation3 + $0x810] sm:$0xff]
    %v4645 = vld [vmem:[#allocation3 + $0x818] sm:$0xff]
    %v4646 = vld [vmem:[#allocation3 + $0x820] sm:$0xff]
    %v4647 = vld [vmem:[#allocation3 + $0x828] sm:$0xff]
    %v4648 = vld [vmem:[#allocation3 + $0x850] sm:$0xff]
    %v4649 = vld [vmem:[#allocation3 + $0x858] sm:$0xff]
    %v4650 = vld [vmem:[#allocation3 + $0x860] sm:$0xff]
    %v4651 = vld [vmem:[#allocation3 + $0x868] sm:$0xff]
    %v4652 = vld [vmem:[%s4] sm:$0xff]
    %v4653 = vld [vmem:[%s4 + $0x8] sm:$0xff]
    %v4654 = vld [vmem:[%s4 + $0x10] sm:$0xff]
    %v4655 = vld [vmem:[%s4 + $0x18] sm:$0xff]
    %v4656 = vld [vmem:[%s4 + $0x20] sm:$0xff]
    %v4657 = vld [vmem:[%s4 + $0x28] sm:$0xff]
    %v4658 = vld [vmem:[%s4 + $0x30] sm:$0xff]
    %v4659 = vld [vmem:[%s4 + $0x38] sm:$0xff]
    %v4660 = vld [vmem:[%s4 + $0x40] sm:$0xff]
    %v4661 = vld [vmem:[%s4 + $0x48] sm:$0xff]
    %v4662 = vld [vmem:[%s4 + $0x50] sm:$0xff]
    %v4663 = vld [vmem:[%s4 + $0x58] sm:$0xff]
    %v4664 = vld [vmem:[%s4 + $0x60] sm:$0xff]
    %v4665 = vld [vmem:[%s4 + $0x68] sm:$0xff]
    %v4666 = vld [vmem:[%s4 + $0x70] sm:$0xff]
    %v4667 = vld [vmem:[%s4 + $0x78] sm:$0xff]
    %v4668 = vld [vmem:[%s4 + $0x80] sm:$0xff]
    %v4669 = vld [vmem:[%s4 + $0x88] sm:$0xff]
    %v4670 = vld [vmem:[%s4 + $0x90] sm:$0xff]
    %v4671 = vld [vmem:[%s4 + $0x98] sm:$0xff]
    %v4672 = vld [vmem:[%s4 + $0xa0] sm:$0xff]
    %v4673 = vld [vmem:[%s4 + $0xa8] sm:$0xff]
    %v4674 = vld [vmem:[%s4 + $0xb0] sm:$0xff]
    %v4675 = vld [vmem:[%s4 + $0xb8] sm:$0xff]
    %v4676 = vld [vmem:[%s3563 + $0x10] sm:$0xff]
    %v4677 = vld [vmem:[%s3563 + $0x18] sm:$0xff]
    %v4678 = vld [vmem:[%s3563 + $0x20] sm:$0xff]
    %v4679 = vld [vmem:[%s3563 + $0x28] sm:$0xff]
    %v4680 = vld [vmem:[%s3563 + $0x50] sm:$0xff]
    %v4681 = vld [vmem:[%s3563 + $0x58] sm:$0xff]
    %v4682 = vld [vmem:[%s3563 + $0x60] sm:$0xff]
    %v4683 = vld [vmem:[%s3563 + $0x68] sm:$0xff]
    %v4684 = vld [vmem:[%s3563 + $0x90] sm:$0xff]
    %v4685 = vld [vmem:[%s3563 + $0x98] sm:$0xff]
    %v4686 = vld [vmem:[%s3563 + $0xa0] sm:$0xff]
    %v4687 = vld [vmem:[%s3563 + $0xa8] sm:$0xff]
    %v4688 = vld [vmem:[%s3563 + $0xd0] sm:$0xff]
    %v4689 = vld [vmem:[%s3563 + $0xd8] sm:$0xff]
    %v4690 = vld [vmem:[%s3563 + $0xe0] sm:$0xff]
    %v4691 = vld [vmem:[%s3563 + $0xe8] sm:$0xff]
    %v4692 = vld [vmem:[%s3563 + $0x110] sm:$0xff]
    %v4693 = vld [vmem:[%s3563 + $0x118] sm:$0xff]
    %v4694 = vld [vmem:[%s3563 + $0x120] sm:$0xff]
    %v4695 = vld [vmem:[%s3563 + $0x128] sm:$0xff]
    %v4696 = vld [vmem:[%s3563 + $0x150] sm:$0xff]
    %v4697 = vld [vmem:[%s3563 + $0x158] sm:$0xff]
    %v4698 = vld [vmem:[%s3563 + $0x160] sm:$0xff]
    %v4699 = vld [vmem:[%s3563 + $0x168] sm:$0xff]
    %v4700 = vld [vmem:[%s3563 + $0x190] sm:$0xff]
    %v4701 = vld [vmem:[%s3563 + $0x198] sm:$0xff]
    %v4702 = vld [vmem:[%s3563 + $0x1a0] sm:$0xff]
    %v4703 = vld [vmem:[%s3563 + $0x1a8] sm:$0xff]
    %v4704 = vld [vmem:[%s3563 + $0x1d0] sm:$0xff]
    %v4705 = vld [vmem:[%s3563 + $0x1d8] sm:$0xff]
    %v4706 = vld [vmem:[%s3563 + $0x1e0] sm:$0xff]
    %v4707 = vld [vmem:[%s3563 + $0x1e8] sm:$0xff]
    %v4708 = vld [vmem:[%s3563 + $0x210] sm:$0xff]
    %v4709 = vld [vmem:[%s3563 + $0x218] sm:$0xff]
    %v4710 = vld [vmem:[%s3563 + $0x220] sm:$0xff]
    %v4711 = vld [vmem:[%s3563 + $0x228] sm:$0xff]
    %v4712 = vld [vmem:[%s3563 + $0x250] sm:$0xff]
    %v4713 = vld [vmem:[%s3563 + $0x258] sm:$0xff]
    %v4714 = vld [vmem:[%s3563 + $0x260] sm:$0xff]
    %v4715 = vld [vmem:[%s3563 + $0x268] sm:$0xff]
    %v4716 = vld [vmem:[%s3563 + $0x290] sm:$0xff]
    %v4717 = vld [vmem:[%s3563 + $0x298] sm:$0xff]
    %v4718 = vld [vmem:[%s3563 + $0x2a0] sm:$0xff]
    %v4719 = vld [vmem:[%s3563 + $0x2a8] sm:$0xff]
    %v4720 = vld [vmem:[%s3563 + $0x2d0] sm:$0xff]
    %v4721 = vld [vmem:[%s3563 + $0x2d8] sm:$0xff]
    %v4722 = vld [vmem:[%s3563 + $0x2e0] sm:$0xff]
    %v4723 = vld [vmem:[%s3563 + $0x2e8] sm:$0xff]
    %v4724 = vld [vmem:[%s3563 + $0x310] sm:$0xff]
    %v4725 = vld [vmem:[%s3563 + $0x318] sm:$0xff]
    %v4726 = vld [vmem:[%s3563 + $0x320] sm:$0xff]
    %v4727 = vld [vmem:[%s3563 + $0x328] sm:$0xff]
    %v4728 = vld [vmem:[%s3563 + $0x350] sm:$0xff]
    %v4729 = vld [vmem:[%s3563 + $0x358] sm:$0xff]
    %v4730 = vld [vmem:[%s3563 + $0x360] sm:$0xff]
    %v4731 = vld [vmem:[%s3563 + $0x368] sm:$0xff]
    %v4732 = vld [vmem:[%s3563 + $0x390] sm:$0xff]
    %v4733 = vld [vmem:[%s3563 + $0x398] sm:$0xff]
    %v4734 = vld [vmem:[%s3563 + $0x3a0] sm:$0xff]
    %v4735 = vld [vmem:[%s3563 + $0x3a8] sm:$0xff]
    %v4736 = vld [vmem:[%s3563 + $0x3d0] sm:$0xff]
    %v4737 = vld [vmem:[%s3563 + $0x3d8] sm:$0xff]
    %v4738 = vld [vmem:[%s3563 + $0x3e0] sm:$0xff]
    %v4739 = vld [vmem:[%s3563 + $0x3e8] sm:$0xff]
    %v4740 = vld [vmem:[%s3563 + $0x490] sm:$0xff]
    %v4741 = vld [vmem:[%s3563 + $0x498] sm:$0xff]
    %v4742 = vld [vmem:[%s3563 + $0x4a0] sm:$0xff]
    %v4743 = vld [vmem:[%s3563 + $0x4a8] sm:$0xff]
    %v4744 = vld [vmem:[%s3563 + $0x4d0] sm:$0xff]
    %v4745 = vld [vmem:[%s3563 + $0x4d8] sm:$0xff]
    %v4746 = vld [vmem:[%s3563 + $0x4e0] sm:$0xff]
    %v4747 = vld [vmem:[%s3563 + $0x4e8] sm:$0xff]
    %v4748 = vld [vmem:[%s3563 + $0x510] sm:$0xff]
    %v4749 = vld [vmem:[%s3563 + $0x518] sm:$0xff]
    %v4750 = vld [vmem:[%s3563 + $0x520] sm:$0xff]
    %v4751 = vld [vmem:[%s3563 + $0x528] sm:$0xff]
    %v4752 = vld [vmem:[%s3563 + $0x550] sm:$0xff]
    %v4753 = vld [vmem:[%s3563 + $0x558] sm:$0xff]
    %v4754 = vld [vmem:[%s3563 + $0x560] sm:$0xff]
    %v4755 = vld [vmem:[%s3563 + $0x568] sm:$0xff]
    %v4756 = vld [vmem:[%s3563 + $0x590] sm:$0xff]
    %v4757 = vld [vmem:[%s3563 + $0x598] sm:$0xff]
    %v4758 = vld [vmem:[%s3563 + $0x5a0] sm:$0xff]
    %v4759 = vld [vmem:[%s3563 + $0x5a8] sm:$0xff]
    %v4760 = vld [vmem:[%s3563 + $0x5d0] sm:$0xff]
    %v4761 = vld [vmem:[%s3563 + $0x5d8] sm:$0xff]
    %v4762 = vld [vmem:[%s3563 + $0x5e0] sm:$0xff]
    %v4763 = vld [vmem:[%s3563 + $0x5e8] sm:$0xff]
    %v4764 = vld [vmem:[%s3563 + $0x610] sm:$0xff]
    %v4765 = vld [vmem:[%s3563 + $0x618] sm:$0xff]
    %v4766 = vld [vmem:[%s3563 + $0x620] sm:$0xff]
    %v4767 = vld [vmem:[%s3563 + $0x628] sm:$0xff]
    %v4768 = vld [vmem:[%s3563 + $0x650] sm:$0xff]
    %v4769 = vld [vmem:[%s3563 + $0x658] sm:$0xff]
    %v4770 = vld [vmem:[%s3563 + $0x660] sm:$0xff]
    %v4771 = vld [vmem:[%s3563 + $0x668] sm:$0xff]
    %v4772 = vld [vmem:[%s3563 + $0x690] sm:$0xff]
    %v4773 = vld [vmem:[%s3563 + $0x698] sm:$0xff]
    %v4774 = vld [vmem:[%s3563 + $0x6a0] sm:$0xff]
    %v4775 = vld [vmem:[%s3563 + $0x6a8] sm:$0xff]
    %v4776 = vld [vmem:[%s3563 + $0x6d0] sm:$0xff]
    %v4777 = vld [vmem:[%s3563 + $0x6d8] sm:$0xff]
    %v4778 = vld [vmem:[%s3563 + $0x6e0] sm:$0xff]
    %v4779 = vld [vmem:[%s3563 + $0x6e8] sm:$0xff]
    %v4780 = vld [vmem:[%s3563 + $0x710] sm:$0xff]
    %v4781 = vld [vmem:[%s3563 + $0x718] sm:$0xff]
    %v4782 = vld [vmem:[%s3563 + $0x720] sm:$0xff]
    %v4783 = vld [vmem:[%s3563 + $0x728] sm:$0xff]
    %v4784 = vld [vmem:[%s3563 + $0x750] sm:$0xff]
    %v4785 = vld [vmem:[%s3563 + $0x758] sm:$0xff]
    %v4786 = vld [vmem:[%s3563 + $0x760] sm:$0xff]
    %v4787 = vld [vmem:[%s3563 + $0x768] sm:$0xff]
    %v4788 = vld [vmem:[%s3563 + $0x790] sm:$0xff]
    %v4789 = vld [vmem:[%s3563 + $0x798] sm:$0xff]
    %v4790 = vld [vmem:[%s3563 + $0x7a0] sm:$0xff]
    %v4791 = vld [vmem:[%s3563 + $0x7a8] sm:$0xff]
    %v4792 = vld [vmem:[%s3563 + $0x7d0] sm:$0xff]
    %v4793 = vld [vmem:[%s3563 + $0x7d8] sm:$0xff]
    %v4794 = vld [vmem:[%s3563 + $0x7e0] sm:$0xff]
    %v4795 = vld [vmem:[%s3563 + $0x7e8] sm:$0xff]
    %v4796 = vld [vmem:[%s3563 + $0x810] sm:$0xff]
    %v4797 = vld [vmem:[%s3563 + $0x818] sm:$0xff]
    %v4798 = vld [vmem:[%s3563 + $0x820] sm:$0xff]
    %v4799 = vld [vmem:[%s3563 + $0x828] sm:$0xff]
    %v4800 = vld [vmem:[%s3563 + $0x850] sm:$0xff]
    %v4801 = vld [vmem:[%s3563 + $0x858] sm:$0xff]
    %v4802 = vld [vmem:[%s3563 + $0x860] sm:$0xff]
    %v4803 = vld [vmem:[%s3563 + $0x868] sm:$0xff]
    %s4804 = scalar_lea.vmem %s4, 192
    %v4805 = vld [vmem:[%s4804] sm:$0xff]
    %v4806 = vld [vmem:[%s4804 + $0x8] sm:$0xff]
    %v4807 = vld [vmem:[%s4804 + $0x10] sm:$0xff]
    %v4808 = vld [vmem:[%s4804 + $0x18] sm:$0xff]
    %v4809 = vld [vmem:[%s4804 + $0x20] sm:$0xff]
    %v4810 = vld [vmem:[%s4804 + $0x28] sm:$0xff]
    %v4811 = vld [vmem:[%s4804 + $0x30] sm:$0xff]
    %v4812 = vld [vmem:[%s4804 + $0x38] sm:$0xff]
    %v4813 = vld [vmem:[%s4804 + $0x40] sm:$0xff]
    %v4814 = vld [vmem:[%s4804 + $0x48] sm:$0xff]
    %v4815 = vld [vmem:[%s4804 + $0x50] sm:$0xff]
    %v4816 = vld [vmem:[%s4804 + $0x58] sm:$0xff]
    %v4817 = vld [vmem:[%s4804 + $0x60] sm:$0xff]
    %v4818 = vld [vmem:[%s4804 + $0x68] sm:$0xff]
    %v4819 = vld [vmem:[%s4804 + $0x70] sm:$0xff]
    %v4820 = vld [vmem:[%s4804 + $0x78] sm:$0xff]
    %v4821 = vld [vmem:[%s4804 + $0x80] sm:$0xff]
    %v4822 = vld [vmem:[%s4804 + $0x88] sm:$0xff]
    %v4823 = vld [vmem:[%s4804 + $0x90] sm:$0xff]
    %v4824 = vld [vmem:[%s4804 + $0x98] sm:$0xff]
    %v4825 = vld [vmem:[%s4804 + $0xa0] sm:$0xff]
    %v4826 = vld [vmem:[%s4804 + $0xa8] sm:$0xff]
    %v4827 = vld [vmem:[%s4804 + $0xb0] sm:$0xff]
    %v4828 = vld [vmem:[%s4804 + $0xb8] sm:$0xff]
    %v4830 = vsel %vm101, %v4677, 0
    %v4833 = vsel %vm101, %v4679, 0
    %v4836 = vsel %vm101, %v4681, 0
    %v4839 = vsel %vm101, %v4683, 0
    %v4842 = vsel %vm101, %v4685, 0
    %v4845 = vsel %vm101, %v4687, 0
    %v4848 = vsel %vm101, %v4689, 0
    %v4851 = vsel %vm101, %v4691, 0
    %v4854 = vsel %vm101, %v4693, 0
    %v4857 = vsel %vm101, %v4695, 0
    %v4860 = vsel %vm101, %v4697, 0
    %v4863 = vsel %vm101, %v4699, 0
    %v4866 = vsel %vm101, %v4701, 0
    %v4869 = vsel %vm101, %v4703, 0
    %v4872 = vsel %vm101, %v4705, 0
    %v4875 = vsel %vm101, %v4707, 0
    %v4878 = vsel %vm101, %v4709, 0
    %v4881 = vsel %vm101, %v4711, 0
    %v4884 = vsel %vm101, %v4713, 0
    %v4887 = vsel %vm101, %v4715, 0
    %v4890 = vsel %vm101, %v4717, 0
    %v4893 = vsel %vm101, %v4719, 0
    %v4896 = vsel %vm101, %v4721, 0
    %v4899 = vsel %vm101, %v4723, 0
    %v4902 = vsel %vm101, %v4725, 0
    %v4905 = vsel %vm101, %v4727, 0
    %v4908 = vsel %vm101, %v4729, 0
    %v4911 = vsel %vm101, %v4731, 0
    %v4914 = vsel %vm101, %v4733, 0
    %v4917 = vsel %vm101, %v4735, 0
    %v4920 = vsel %vm101, %v4737, 0
    %v4923 = vsel %vm101, %v4739, 0
    %v4926 = vsel %vm101, %v4741, 0
    %v4929 = vsel %vm101, %v4743, 0
    %v4932 = vsel %vm101, %v4745, 0
    %v4935 = vsel %vm101, %v4747, 0
    %v4938 = vsel %vm101, %v4749, 0
    %v4941 = vsel %vm101, %v4751, 0
    %v4944 = vsel %vm101, %v4753, 0
    %v4947 = vsel %vm101, %v4755, 0
    %v4950 = vsel %vm101, %v4757, 0
    %v4953 = vsel %vm101, %v4759, 0
    %v4956 = vsel %vm101, %v4761, 0
    %v4959 = vsel %vm101, %v4763, 0
    %v4962 = vsel %vm101, %v4765, 0
    %v4965 = vsel %vm101, %v4767, 0
    %v4968 = vsel %vm101, %v4769, 0
    %v4971 = vsel %vm101, %v4771, 0
    %v4974 = vsel %vm101, %v4773, 0
    %v4977 = vsel %vm101, %v4775, 0
    %v4980 = vsel %vm101, %v4777, 0
    %v4983 = vsel %vm101, %v4779, 0
    %v4986 = vsel %vm101, %v4781, 0
    %v4989 = vsel %vm101, %v4783, 0
    %v4992 = vsel %vm101, %v4785, 0
    %v4995 = vsel %vm101, %v4787, 0
    %v4998 = vsel %vm101, %v4789, 0
    %v5001 = vsel %vm101, %v4791, 0
    %v5004 = vsel %vm101, %v4793, 0
    %v5007 = vsel %vm101, %v4795, 0
    %v5010 = vsel %vm101, %v4797, 0
    %v5013 = vsel %vm101, %v4799, 0
    %v5016 = vsel %vm101, %v4801, 0
    %v5019 = vsel %vm101, %v4803, 0
    %5021 = vmatprep.subr.mxu0 0.0
    %5022 = vmatpush1.msra.mxu0 %v4805
    %5023 = vmatprep.subr.mxu0 0.0
    %5024 = vmatpush1.msra.mxu0 %v4806
    %5025 = vmatprep.subr.mxu0 0.0
    %5026 = vmatpush1.msra.mxu0 %v4807
    %5027 = vmatprep.subr.mxu0 0.0
    %5028 = vmatpush1.msra.mxu0 %v4808
    %5029 = vmatprep.subr.mxu0 0.0
    %5030 = vmatpush1.msra.mxu0 %v4809
    %5031 = vmatprep.subr.mxu0 0.0
    %5032 = vmatpush1.msra.mxu0 %v4810
    %5033 = vmatprep.subr.mxu0 0.0
    %5034 = vmatpush1.msra.mxu0 %v4811
    %5035 = vmatprep.subr.mxu0 0.0
    %5036 = vmatpush1.msra.mxu0 %v4812
    %5037 = vmatprep.subr.mxu0 0.0
    %5038 = vmatpush1.msra.mxu0 %v4813
    %5039 = vmatprep.subr.mxu0 0.0
    %5040 = vmatpush1.msra.mxu0 %v4814
    %5041 = vmatprep.subr.mxu0 0.0
    %5042 = vmatpush1.msra.mxu0 %v4815
    %5043 = vmatprep.subr.mxu0 0.0
    %5044 = vmatpush1.msra.mxu0 %v4816
    %5045 = vmatprep.subr.mxu0 0.0
    %5046 = vmatpush1.msra.mxu0 %v4817
    %5047 = vmatprep.subr.mxu0 0.0
    %5048 = vmatpush1.msra.mxu0 %v4818
    %5049 = vmatprep.subr.mxu0 0.0
    %5050 = vmatpush1.msra.mxu0 %v4819
    %5051 = vmatprep.subr.mxu0 0.0
    %5052 = vmatpush1.msra.mxu0 %v4820
    %5053 = vmatprep.subr.mxu0 0.0
    %5054 = vmatpush1.msra.mxu0 %v4821
    %5055 = vmatprep.subr.mxu0 0.0
    %5056 = vmatpush1.msra.mxu0 %v4822
    %5057 = vmatprep.subr.mxu0 0.0
    %5058 = vmatpush1.msra.mxu0 %v4823
    %5059 = vmatprep.subr.mxu0 0.0
    %5060 = vmatpush1.msra.mxu0 %v4824
    %5061 = vmatprep.subr.mxu0 0.0
    %5062 = vmatpush1.msra.mxu0 %v4825
    %5063 = vmatprep.subr.mxu0 0.0
    %5064 = vmatpush1.msra.mxu0 %v4826
    %5065 = vmatprep.subr.mxu0 0.0
    %5066 = vmatpush1.msra.mxu0 %v4827
    %5067 = vmatprep.subr.mxu0 0.0
    %5068 = vmatpush1.msra.mxu0 %v4828
    %5069 = vmatprep.subr.mxu0 0.0
    %5070 = vmatpush1.msra.mxu0 0.0
    %5071 = vmatprep.subr.mxu0 0.0
    %5072 = vmatpush1.msra.mxu0 0.0
    %5073 = vmatprep.subr.mxu0 0.0
    %5074 = vmatpush1.msra.mxu0 0.0
    %5075 = vmatprep.subr.mxu0 0.0
    %5076 = vmatpush1.msra.mxu0 0.0
    %5077 = vmatprep.subr.mxu0 0.0
    %5078 = vmatpush1.msra.mxu0 0.0
    %5079 = vmatprep.subr.mxu0 0.0
    %5080 = vmatpush1.msra.mxu0 0.0
    %5081 = vmatprep.subr.mxu0 0.0
    %5082 = vmatpush1.msra.mxu0 0.0
    %5083 = vmatprep.subr.mxu0 0.0
    %5084 = vmatpush1.msra.mxu0 0.0
    %5085 = vmatprep.mubr.f32.mxu0 %v4830
    %5086 = vmatmul.mubr.f32.gmra.mrb[0].mxu0 %v4676
    %v5087 = vpop.f32.mrb[0].mxu0
    %v5088 = vadd.f32 0.0, %v5087
    %v5089 = vpop.f32.mrb[0].mxu0
    %5090 = vmatprep.mubr.f32.mxu0 %v4833
    %5091 = vmatmul.mubr.f32.gmra.mrb[0].mxu0 %v4678
    %v5092 = vpop.f32.mrb[0].mxu0
    %v5093 = vadd.f32 0.0, %v5092
    %v5094 = vpop.f32.mrb[0].mxu0
    %5095 = vmatprep.mubr.f32.mxu0 %v4836
    %5096 = vmatmul.mubr.f32.gmra.mrb[0].mxu0 %v4680
    %v5097 = vpop.f32.mrb[0].mxu0
    %v5098 = vadd.f32 0.0, %v5097
    %v5099 = vpop.f32.mrb[0].mxu0
    %5100 = vmatprep.mubr.f32.mxu0 %v4839
    %5101 = vmatmul.mubr.f32.gmra.mrb[0].mxu0 %v4682
    %v5102 = vpop.f32.mrb[0].mxu0
    %v5103 = vadd.f32 0.0, %v5102
    %v5104 = vpop.f32.mrb[0].mxu0
    %5105 = vmatprep.mubr.f32.mxu0 %v4842
    %5106 = vmatmul.mubr.f32.gmra.mrb[0].mxu0 %v4684
    %v5107 = vpop.f32.mrb[0].mxu0
    %v5108 = vadd.f32 0.0, %v5107
    %v5109 = vpop.f32.mrb[0].mxu0
    %5110 = vmatprep.mubr.f32.mxu0 %v4845
    %5111 = vmatmul.mubr.f32.gmra.mrb[0].mxu0 %v4686
    %v5112 = vpop.f32.mrb[0].mxu0
    %v5113 = vadd.f32 0.0, %v5112
    %v5114 = vpop.f32.mrb[0].mxu0
    %5115 = vmatprep.mubr.f32.mxu0 %v4848
    %5116 = vmatmul.mubr.f32.gmra.mrb[0].mxu0 %v4688
    %v5117 = vpop.f32.mrb[0].mxu0
    %v5118 = vadd.f32 0.0, %v5117
    %v5119 = vpop.f32.mrb[0].mxu0
    %5120 = vmatprep.mubr.f32.mxu0 %v4851
    %5121 = vmatmul.mubr.f32.gmra.mrb[0].mxu0 %v4690
    %v5122 = vpop.f32.mrb[0].mxu0
    %v5123 = vadd.f32 0.0, %v5122
    %v5124 = vpop.f32.mrb[0].mxu0
    %5125 = vmatprep.mubr.f32.mxu0 %v4854
    %5126 = vmatmul.mubr.f32.gmra.mrb[0].mxu0 %v4692
    %v5127 = vpop.f32.mrb[0].mxu0
    %v5128 = vadd.f32 0.0, %v5127
    %v5129 = vpop.f32.mrb[0].mxu0
    %5130 = vmatprep.mubr.f32.mxu0 %v4857
    %5131 = vmatmul.mubr.f32.gmra.mrb[0].mxu0 %v4694
    %v5132 = vpop.f32.mrb[0].mxu0
    %v5133 = vadd.f32 0.0, %v5132
    %v5134 = vpop.f32.mrb[0].mxu0
    %5135 = vmatprep.mubr.f32.mxu0 %v4860
    %5136 = vmatmul.mubr.f32.gmra.mrb[0].mxu0 %v4696
    %v5137 = vpop.f32.mrb[0].mxu0
    %v5138 = vadd.f32 0.0, %v5137
    %v5139 = vpop.f32.mrb[0].mxu0
    %5140 = vmatprep.mubr.f32.mxu0 %v4863
    %5141 = vmatmul.mubr.f32.gmra.mrb[0].mxu0 %v4698
    %v5142 = vpop.f32.mrb[0].mxu0
    %v5143 = vadd.f32 0.0, %v5142
    %v5144 = vpop.f32.mrb[0].mxu0
    %5145 = vmatprep.mubr.f32.mxu0 %v4866
    %5146 = vmatmul.mubr.f32.gmra.mrb[0].mxu0 %v4700
    %v5147 = vpop.f32.mrb[0].mxu0
    %v5148 = vadd.f32 0.0, %v5147
    %v5149 = vpop.f32.mrb[0].mxu0
    %5150 = vmatprep.mubr.f32.mxu0 %v4869
    %5151 = vmatmul.mubr.f32.gmra.mrb[0].mxu0 %v4702
    %v5152 = vpop.f32.mrb[0].mxu0
    %v5153 = vadd.f32 0.0, %v5152
    %v5154 = vpop.f32.mrb[0].mxu0
    %5155 = vmatprep.mubr.f32.mxu0 %v4872
    %5156 = vmatmul.mubr.f32.gmra.mrb[0].mxu0 %v4704
    %v5157 = vpop.f32.mrb[0].mxu0
    %v5158 = vadd.f32 0.0, %v5157
    %v5159 = vpop.f32.mrb[0].mxu0
    %5160 = vmatprep.mubr.f32.mxu0 %v4875
    %5161 = vmatmul.mubr.f32.gmra.mrb[0].mxu0 %v4706
    %v5162 = vpop.f32.mrb[0].mxu0
    %v5163 = vadd.f32 0.0, %v5162
    %v5164 = vpop.f32.mrb[0].mxu0
    %5165 = vmatprep.mubr.f32.mxu0 %v4878
    %5166 = vmatmul.mubr.f32.gmra.mrb[0].mxu0 %v4708
    %v5167 = vpop.f32.mrb[0].mxu0
    %v5168 = vadd.f32 0.0, %v5167
    %v5169 = vpop.f32.mrb[0].mxu0
    %5170 = vmatprep.mubr.f32.mxu0 %v4881
    %5171 = vmatmul.mubr.f32.gmra.mrb[0].mxu0 %v4710
    %v5172 = vpop.f32.mrb[0].mxu0
    %v5173 = vadd.f32 0.0, %v5172
    %v5174 = vpop.f32.mrb[0].mxu0
    %5175 = vmatprep.mubr.f32.mxu0 %v4884
    %5176 = vmatmul.mubr.f32.gmra.mrb[0].mxu0 %v4712
    %v5177 = vpop.f32.mrb[0].mxu0
    %v5178 = vadd.f32 0.0, %v5177
    %v5179 = vpop.f32.mrb[0].mxu0
    %5180 = vmatprep.mubr.f32.mxu0 %v4887
    %5181 = vmatmul.mubr.f32.gmra.mrb[0].mxu0 %v4714
    %v5182 = vpop.f32.mrb[0].mxu0
    %v5183 = vadd.f32 0.0, %v5182
    %v5184 = vpop.f32.mrb[0].mxu0
    %5185 = vmatprep.mubr.f32.mxu0 %v4890
    %5186 = vmatmul.mubr.f32.gmra.mrb[0].mxu0 %v4716
    %v5187 = vpop.f32.mrb[0].mxu0
    %v5188 = vadd.f32 0.0, %v5187
    %v5189 = vpop.f32.mrb[0].mxu0
    %5190 = vmatprep.mubr.f32.mxu0 %v4893
    %5191 = vmatmul.mubr.f32.gmra.mrb[0].mxu0 %v4718
    %v5192 = vpop.f32.mrb[0].mxu0
    %v5193 = vadd.f32 0.0, %v5192
    %v5194 = vpop.f32.mrb[0].mxu0
    %5195 = vmatprep.mubr.f32.mxu0 %v4896
    %5196 = vmatmul.mubr.f32.gmra.mrb[0].mxu0 %v4720
    %v5197 = vpop.f32.mrb[0].mxu0
    %v5198 = vadd.f32 0.0, %v5197
    %v5199 = vpop.f32.mrb[0].mxu0
    %5200 = vmatprep.mubr.f32.mxu0 %v4899
    %5201 = vmatmul.mubr.f32.gmra.mrb[0].mxu0 %v4722
    %v5202 = vpop.f32.mrb[0].mxu0
    %v5203 = vadd.f32 0.0, %v5202
    %v5204 = vpop.f32.mrb[0].mxu0
    %5205 = vmatprep.mubr.f32.mxu0 %v4902
    %5206 = vmatmul.mubr.f32.gmra.mrb[0].mxu0 %v4724
    %v5207 = vpop.f32.mrb[0].mxu0
    %v5208 = vadd.f32 0.0, %v5207
    %v5209 = vpop.f32.mrb[0].mxu0
    %5210 = vmatprep.mubr.f32.mxu0 %v4905
    %5211 = vmatmul.mubr.f32.gmra.mrb[0].mxu0 %v4726
    %v5212 = vpop.f32.mrb[0].mxu0
    %v5213 = vadd.f32 0.0, %v5212
    %v5214 = vpop.f32.mrb[0].mxu0
    %5215 = vmatprep.mubr.f32.mxu0 %v4908
    %5216 = vmatmul.mubr.f32.gmra.mrb[0].mxu0 %v4728
    %v5217 = vpop.f32.mrb[0].mxu0
    %v5218 = vadd.f32 0.0, %v5217
    %v5219 = vpop.f32.mrb[0].mxu0
    %5220 = vmatprep.mubr.f32.mxu0 %v4911
    %5221 = vmatmul.mubr.f32.gmra.mrb[0].mxu0 %v4730
    %v5222 = vpop.f32.mrb[0].mxu0
    %v5223 = vadd.f32 0.0, %v5222
    %v5224 = vpop.f32.mrb[0].mxu0
    %5225 = vmatprep.mubr.f32.mxu0 %v4914
    %5226 = vmatmul.mubr.f32.gmra.mrb[0].mxu0 %v4732
    %v5227 = vpop.f32.mrb[0].mxu0
    %v5228 = vadd.f32 0.0, %v5227
    %v5229 = vpop.f32.mrb[0].mxu0
    %5230 = vmatprep.mubr.f32.mxu0 %v4917
    %5231 = vmatmul.mubr.f32.gmra.mrb[0].mxu0 %v4734
    %v5232 = vpop.f32.mrb[0].mxu0
    %v5233 = vadd.f32 0.0, %v5232
    %v5234 = vpop.f32.mrb[0].mxu0
    %5235 = vmatprep.mubr.f32.mxu0 %v4920
    %5236 = vmatmul.mubr.f32.gmra.mrb[0].mxu0 %v4736
    %v5237 = vpop.f32.mrb[0].mxu0
    %v5238 = vadd.f32 0.0, %v5237
    %v5239 = vpop.f32.mrb[0].mxu0
    %5240 = vmatprep.mubr.f32.mxu0 %v4923
    %5241 = vmatmul.mubr.f32.gmra.mrb[0].mxu0 %v4738
    %v5242 = vpop.f32.mrb[0].mxu0
    %v5243 = vadd.f32 0.0, %v5242
    %v5244 = vpop.f32.mrb[0].mxu0
    %5245 = vmatprep.mubr.f32.mxu0 %v4926
    %5246 = vmatmul.mubr.f32.gmra.mrb[0].mxu0 %v4740
    %v5247 = vpop.f32.mrb[0].mxu0
    %v5248 = vadd.f32 0.0, %v5247
    %v5249 = vpop.f32.mrb[0].mxu0
    %5250 = vmatprep.mubr.f32.mxu0 %v4929
    %5251 = vmatmul.mubr.f32.gmra.mrb[0].mxu0 %v4742
    %v5252 = vpop.f32.mrb[0].mxu0
    %v5253 = vadd.f32 0.0, %v5252
    %v5254 = vpop.f32.mrb[0].mxu0
    %5255 = vmatprep.mubr.f32.mxu0 %v4932
    %5256 = vmatmul.mubr.f32.gmra.mrb[0].mxu0 %v4744
    %v5257 = vpop.f32.mrb[0].mxu0
    %v5258 = vadd.f32 0.0, %v5257
    %v5259 = vpop.f32.mrb[0].mxu0
    %5260 = vmatprep.mubr.f32.mxu0 %v4935
    %5261 = vmatmul.mubr.f32.gmra.mrb[0].mxu0 %v4746
    %v5262 = vpop.f32.mrb[0].mxu0
    %v5263 = vadd.f32 0.0, %v5262
    %v5264 = vpop.f32.mrb[0].mxu0
    %5265 = vmatprep.mubr.f32.mxu0 %v4938
    %5266 = vmatmul.mubr.f32.gmra.mrb[0].mxu0 %v4748
    %v5267 = vpop.f32.mrb[0].mxu0
    %v5268 = vadd.f32 0.0, %v5267
    %v5269 = vpop.f32.mrb[0].mxu0
    %5270 = vmatprep.mubr.f32.mxu0 %v4941
    %5271 = vmatmul.mubr.f32.gmra.mrb[0].mxu0 %v4750
    %v5272 = vpop.f32.mrb[0].mxu0
    %v5273 = vadd.f32 0.0, %v5272
    %v5274 = vpop.f32.mrb[0].mxu0
    %5275 = vmatprep.mubr.f32.mxu0 %v4944
    %5276 = vmatmul.mubr.f32.gmra.mrb[0].mxu0 %v4752
    %v5277 = vpop.f32.mrb[0].mxu0
    %v5278 = vadd.f32 0.0, %v5277
    %v5279 = vpop.f32.mrb[0].mxu0
    %5280 = vmatprep.mubr.f32.mxu0 %v4947
    %5281 = vmatmul.mubr.f32.gmra.mrb[0].mxu0 %v4754
    %v5282 = vpop.f32.mrb[0].mxu0
    %v5283 = vadd.f32 0.0, %v5282
    %v5284 = vpop.f32.mrb[0].mxu0
    %5285 = vmatprep.mubr.f32.mxu0 %v4950
    %5286 = vmatmul.mubr.f32.gmra.mrb[0].mxu0 %v4756
    %v5287 = vpop.f32.mrb[0].mxu0
    %v5288 = vadd.f32 0.0, %v5287
    %v5289 = vpop.f32.mrb[0].mxu0
    %5290 = vmatprep.mubr.f32.mxu0 %v4953
    %5291 = vmatmul.mubr.f32.gmra.mrb[0].mxu0 %v4758
    %v5292 = vpop.f32.mrb[0].mxu0
    %v5293 = vadd.f32 0.0, %v5292
    %v5294 = vpop.f32.mrb[0].mxu0
    %5295 = vmatprep.mubr.f32.mxu0 %v4956
    %5296 = vmatmul.mubr.f32.gmra.mrb[0].mxu0 %v4760
    %v5297 = vpop.f32.mrb[0].mxu0
    %v5298 = vadd.f32 0.0, %v5297
    %v5299 = vpop.f32.mrb[0].mxu0
    %5300 = vmatprep.mubr.f32.mxu0 %v4959
    %5301 = vmatmul.mubr.f32.gmra.mrb[0].mxu0 %v4762
    %v5302 = vpop.f32.mrb[0].mxu0
    %v5303 = vadd.f32 0.0, %v5302
    %v5304 = vpop.f32.mrb[0].mxu0
    %5305 = vmatprep.mubr.f32.mxu0 %v4962
    %5306 = vmatmul.mubr.f32.gmra.mrb[0].mxu0 %v4764
    %v5307 = vpop.f32.mrb[0].mxu0
    %v5308 = vadd.f32 0.0, %v5307
    %v5309 = vpop.f32.mrb[0].mxu0
    %5310 = vmatprep.mubr.f32.mxu0 %v4965
    %5311 = vmatmul.mubr.f32.gmra.mrb[0].mxu0 %v4766
    %v5312 = vpop.f32.mrb[0].mxu0
    %v5313 = vadd.f32 0.0, %v5312
    %v5314 = vpop.f32.mrb[0].mxu0
    %5315 = vmatprep.mubr.f32.mxu0 %v4968
    %5316 = vmatmul.mubr.f32.gmra.mrb[0].mxu0 %v4768
    %v5317 = vpop.f32.mrb[0].mxu0
    %v5318 = vadd.f32 0.0, %v5317
    %v5319 = vpop.f32.mrb[0].mxu0
    %5320 = vmatprep.mubr.f32.mxu0 %v4971
    %5321 = vmatmul.mubr.f32.gmra.mrb[0].mxu0 %v4770
    %v5322 = vpop.f32.mrb[0].mxu0
    %v5323 = vadd.f32 0.0, %v5322
    %v5324 = vpop.f32.mrb[0].mxu0
    %5325 = vmatprep.mubr.f32.mxu0 %v4974
    %5326 = vmatmul.mubr.f32.gmra.mrb[0].mxu0 %v4772
    %v5327 = vpop.f32.mrb[0].mxu0
    %v5328 = vadd.f32 0.0, %v5327
    %v5329 = vpop.f32.mrb[0].mxu0
    %5330 = vmatprep.mubr.f32.mxu0 %v4977
    %5331 = vmatmul.mubr.f32.gmra.mrb[0].mxu0 %v4774
    %v5332 = vpop.f32.mrb[0].mxu0
    %v5333 = vadd.f32 0.0, %v5332
    %v5334 = vpop.f32.mrb[0].mxu0
    %5335 = vmatprep.mubr.f32.mxu0 %v4980
    %5336 = vmatmul.mubr.f32.gmra.mrb[0].mxu0 %v4776
    %v5337 = vpop.f32.mrb[0].mxu0
    %v5338 = vadd.f32 0.0, %v5337
    %v5339 = vpop.f32.mrb[0].mxu0
    %5340 = vmatprep.mubr.f32.mxu0 %v4983
    %5341 = vmatmul.mubr.f32.gmra.mrb[0].mxu0 %v4778
    %v5342 = vpop.f32.mrb[0].mxu0
    %v5343 = vadd.f32 0.0, %v5342
    %v5344 = vpop.f32.mrb[0].mxu0
    %5345 = vmatprep.mubr.f32.mxu0 %v4986
    %5346 = vmatmul.mubr.f32.gmra.mrb[0].mxu0 %v4780
    %v5347 = vpop.f32.mrb[0].mxu0
    %v5348 = vadd.f32 0.0, %v5347
    %v5349 = vpop.f32.mrb[0].mxu0
    %5350 = vmatprep.mubr.f32.mxu0 %v4989
    %5351 = vmatmul.mubr.f32.gmra.mrb[0].mxu0 %v4782
    %v5352 = vpop.f32.mrb[0].mxu0
    %v5353 = vadd.f32 0.0, %v5352
    %v5354 = vpop.f32.mrb[0].mxu0
    %5355 = vmatprep.mubr.f32.mxu0 %v4992
    %5356 = vmatmul.mubr.f32.gmra.mrb[0].mxu0 %v4784
    %v5357 = vpop.f32.mrb[0].mxu0
    %v5358 = vadd.f32 0.0, %v5357
    %v5359 = vpop.f32.mrb[0].mxu0
    %5360 = vmatprep.mubr.f32.mxu0 %v4995
    %5361 = vmatmul.mubr.f32.gmra.mrb[0].mxu0 %v4786
    %v5362 = vpop.f32.mrb[0].mxu0
    %v5363 = vadd.f32 0.0, %v5362
    %v5364 = vpop.f32.mrb[0].mxu0
    %5365 = vmatprep.mubr.f32.mxu0 %v4998
    %5366 = vmatmul.mubr.f32.gmra.mrb[0].mxu0 %v4788
    %v5367 = vpop.f32.mrb[0].mxu0
    %v5368 = vadd.f32 0.0, %v5367
    %v5369 = vpop.f32.mrb[0].mxu0
    %5370 = vmatprep.mubr.f32.mxu0 %v5001
    %5371 = vmatmul.mubr.f32.gmra.mrb[0].mxu0 %v4790
    %v5372 = vpop.f32.mrb[0].mxu0
    %v5373 = vadd.f32 0.0, %v5372
    %v5374 = vpop.f32.mrb[0].mxu0
    %5375 = vmatprep.mubr.f32.mxu0 %v5004
    %5376 = vmatmul.mubr.f32.gmra.mrb[0].mxu0 %v4792
    %v5377 = vpop.f32.mrb[0].mxu0
    %v5378 = vadd.f32 0.0, %v5377
    %v5379 = vpop.f32.mrb[0].mxu0
    %5380 = vmatprep.mubr.f32.mxu0 %v5007
    %5381 = vmatmul.mubr.f32.gmra.mrb[0].mxu0 %v4794
    %v5382 = vpop.f32.mrb[0].mxu0
    %v5383 = vadd.f32 0.0, %v5382
    %v5384 = vpop.f32.mrb[0].mxu0
    %5385 = vmatprep.mubr.f32.mxu0 %v5010
    %5386 = vmatmul.mubr.f32.gmra.mrb[0].mxu0 %v4796
    %v5387 = vpop.f32.mrb[0].mxu0
    %v5388 = vadd.f32 0.0, %v5387
    %v5389 = vpop.f32.mrb[0].mxu0
    %5390 = vmatprep.mubr.f32.mxu0 %v5013
    %5391 = vmatmul.mubr.f32.gmra.mrb[0].mxu0 %v4798
    %v5392 = vpop.f32.mrb[0].mxu0
    %v5393 = vadd.f32 0.0, %v5392
    %v5394 = vpop.f32.mrb[0].mxu0
    %5395 = vmatprep.mubr.f32.mxu0 %v5016
    %5396 = vmatmul.mubr.f32.gmra.mrb[0].mxu0 %v4800
    %v5397 = vpop.f32.mrb[0].mxu0
    %v5398 = vadd.f32 0.0, %v5397
    %v5399 = vpop.f32.mrb[0].mxu0
    %5400 = vmatprep.mubr.f32.mxu0 %v5019
    %5401 = vmatmul.mubr.f32.gmra.mrb[0].mxu0 %v4802
    %v5402 = vpop.f32.mrb[0].mxu0
    %v5403 = vadd.f32 0.0, %v5402
    %v5404 = vpop.f32.mrb[0].mxu0
    %5405 = vdwg.mxu0
    %v5407 = vsel %vm101, %v4525, 0
    %v5410 = vsel %vm101, %v4527, 0
    %v5413 = vsel %vm101, %v4529, 0
    %v5416 = vsel %vm101, %v4531, 0
    %v5419 = vsel %vm101, %v4533, 0
    %v5422 = vsel %vm101, %v4535, 0
    %v5425 = vsel %vm101, %v4537, 0
    %v5428 = vsel %vm101, %v4539, 0
    %v5431 = vsel %vm101, %v4541, 0
    %v5434 = vsel %vm101, %v4543, 0
    %v5437 = vsel %vm101, %v4545, 0
    %v5440 = vsel %vm101, %v4547, 0
    %v5443 = vsel %vm101, %v4549, 0
    %v5446 = vsel %vm101, %v4551, 0
    %v5449 = vsel %vm101, %v4553, 0
    %v5452 = vsel %vm101, %v4555, 0
    %v5455 = vsel %vm101, %v4557, 0
    %v5458 = vsel %vm101, %v4559, 0
    %v5461 = vsel %vm101, %v4561, 0
    %v5464 = vsel %vm101, %v4563, 0
    %v5467 = vsel %vm101, %v4565, 0
    %v5470 = vsel %vm101, %v4567, 0
    %v5473 = vsel %vm101, %v4569, 0
    %v5476 = vsel %vm101, %v4571, 0
    %v5479 = vsel %vm101, %v4573, 0
    %v5482 = vsel %vm101, %v4575, 0
    %v5485 = vsel %vm101, %v4577, 0
    %v5488 = vsel %vm101, %v4579, 0
    %v5491 = vsel %vm101, %v4581, 0
    %v5494 = vsel %vm101, %v4583, 0
    %v5497 = vsel %vm101, %v4585, 0
    %v5500 = vsel %vm101, %v4587, 0
    %v5503 = vsel %vm101, %v4589, 0
    %v5506 = vsel %vm101, %v4591, 0
    %v5509 = vsel %vm101, %v4593, 0
    %v5512 = vsel %vm101, %v4595, 0
    %v5515 = vsel %vm101, %v4597, 0
    %v5518 = vsel %vm101, %v4599, 0
    %v5521 = vsel %vm101, %v4601, 0
    %v5524 = vsel %vm101, %v4603, 0
    %v5527 = vsel %vm101, %v4605, 0
    %v5530 = vsel %vm101, %v4607, 0
    %v5533 = vsel %vm101, %v4609, 0
    %v5536 = vsel %vm101, %v4611, 0
    %v5539 = vsel %vm101, %v4613, 0
    %v5542 = vsel %vm101, %v4615, 0
    %v5545 = vsel %vm101, %v4617, 0
    %v5548 = vsel %vm101, %v4619, 0
    %v5551 = vsel %vm101, %v4621, 0
    %v5554 = vsel %vm101, %v4623, 0
    %v5557 = vsel %vm101, %v4625, 0
    %v5560 = vsel %vm101, %v4627, 0
    %v5563 = vsel %vm101, %v4629, 0
    %v5566 = vsel %vm101, %v4631, 0
    %v5569 = vsel %vm101, %v4633, 0
    %v5572 = vsel %vm101, %v4635, 0
    %v5575 = vsel %vm101, %v4637, 0
    %v5578 = vsel %vm101, %v4639, 0
    %v5581 = vsel %vm101, %v4641, 0
    %v5584 = vsel %vm101, %v4643, 0
    %v5587 = vsel %vm101, %v4645, 0
    %v5590 = vsel %vm101, %v4647, 0
    %v5593 = vsel %vm101, %v4649, 0
    %v5596 = vsel %vm101, %v4651, 0
    %5598 = vmatprep.subr.mxu0 0.0
    %5599 = vmatpush1.msra.mxu0 %v4652
    %5600 = vmatprep.subr.mxu0 0.0
    %5601 = vmatpush1.msra.mxu0 %v4653
    %5602 = vmatprep.subr.mxu0 0.0
    %5603 = vmatpush1.msra.mxu0 %v4654
    %5604 = vmatprep.subr.mxu0 0.0
    %5605 = vmatpush1.msra.mxu0 %v4655
    %5606 = vmatprep.subr.mxu0 0.0
    %5607 = vmatpush1.msra.mxu0 %v4656
    %5608 = vmatprep.subr.mxu0 0.0
    %5609 = vmatpush1.msra.mxu0 %v4657
    %5610 = vmatprep.subr.mxu0 0.0
    %5611 = vmatpush1.msra.mxu0 %v4658
    %5612 = vmatprep.subr.mxu0 0.0
    %5613 = vmatpush1.msra.mxu0 %v4659
    %5614 = vmatprep.subr.mxu0 0.0
    %5615 = vmatpush1.msra.mxu0 %v4660
    %5616 = vmatprep.subr.mxu0 0.0
    %5617 = vmatpush1.msra.mxu0 %v4661
    %5618 = vmatprep.subr.mxu0 0.0
    %5619 = vmatpush1.msra.mxu0 %v4662
    %5620 = vmatprep.subr.mxu0 0.0
    %5621 = vmatpush1.msra.mxu0 %v4663
    %5622 = vmatprep.subr.mxu0 0.0
    %5623 = vmatpush1.msra.mxu0 %v4664
    %5624 = vmatprep.subr.mxu0 0.0
    %5625 = vmatpush1.msra.mxu0 %v4665
    %5626 = vmatprep.subr.mxu0 0.0
    %5627 = vmatpush1.msra.mxu0 %v4666
    %5628 = vmatprep.subr.mxu0 0.0
    %5629 = vmatpush1.msra.mxu0 %v4667
    %5630 = vmatprep.subr.mxu0 0.0
    %5631 = vmatpush1.msra.mxu0 %v4668
    %5632 = vmatprep.subr.mxu0 0.0
    %5633 = vmatpush1.msra.mxu0 %v4669
    %5634 = vmatprep.subr.mxu0 0.0
    %5635 = vmatpush1.msra.mxu0 %v4670
    %5636 = vmatprep.subr.mxu0 0.0
    %5637 = vmatpush1.msra.mxu0 %v4671
    %5638 = vmatprep.subr.mxu0 0.0
    %5639 = vmatpush1.msra.mxu0 %v4672
    %5640 = vmatprep.subr.mxu0 0.0
    %5641 = vmatpush1.msra.mxu0 %v4673
    %5642 = vmatprep.subr.mxu0 0.0
    %5643 = vmatpush1.msra.mxu0 %v4674
    %5644 = vmatprep.subr.mxu0 0.0
    %5645 = vmatpush1.msra.mxu0 %v4675
    %5646 = vmatprep.subr.mxu0 0.0
    %5647 = vmatpush1.msra.mxu0 0.0
    %5648 = vmatprep.subr.mxu0 0.0
    %5649 = vmatpush1.msra.mxu0 0.0
    %5650 = vmatprep.subr.mxu0 0.0
    %5651 = vmatpush1.msra.mxu0 0.0
    %5652 = vmatprep.subr.mxu0 0.0
    %5653 = vmatpush1.msra.mxu0 0.0
    %5654 = vmatprep.subr.mxu0 0.0
    %5655 = vmatpush1.msra.mxu0 0.0
    %5656 = vmatprep.subr.mxu0 0.0
    %5657 = vmatpush1.msra.mxu0 0.0
    %5658 = vmatprep.subr.mxu0 0.0
    %5659 = vmatpush1.msra.mxu0 0.0
    %5660 = vmatprep.subr.mxu0 0.0
    %5661 = vmatpush1.msra.mxu0 0.0
    %5662 = vmatprep.mubr.f32.mxu0 %v5407
    %5663 = vmatmul.mubr.f32.gmra.mrb[0].mxu0 %v4524
    %v5664 = vpop.f32.mrb[0].mxu0
    %v5665 = vadd.f32 %v5088, %v5664
    %v5666 = vpop.f32.mrb[0].mxu0
    %5667 = vmatprep.mubr.f32.mxu0 %v5410
    %5668 = vmatmul.mubr.f32.gmra.mrb[0].mxu0 %v4526
    %v5669 = vpop.f32.mrb[0].mxu0
    %v5670 = vadd.f32 %v5093, %v5669
    %v5671 = vpop.f32.mrb[0].mxu0
    %5672 = vmatprep.mubr.f32.mxu0 %v5413
    %5673 = vmatmul.mubr.f32.gmra.mrb[0].mxu0 %v4528
    %v5674 = vpop.f32.mrb[0].mxu0
    %v5675 = vadd.f32 %v5098, %v5674
    %v5676 = vpop.f32.mrb[0].mxu0
    %5677 = vmatprep.mubr.f32.mxu0 %v5416
    %5678 = vmatmul.mubr.f32.gmra.mrb[0].mxu0 %v4530
    %v5679 = vpop.f32.mrb[0].mxu0
    %v5680 = vadd.f32 %v5103, %v5679
    %v5681 = vpop.f32.mrb[0].mxu0
    %5682 = vmatprep.mubr.f32.mxu0 %v5419
    %5683 = vmatmul.mubr.f32.gmra.mrb[0].mxu0 %v4532
    %v5684 = vpop.f32.mrb[0].mxu0
    %v5685 = vadd.f32 %v5108, %v5684
    %v5686 = vpop.f32.mrb[0].mxu0
    %5687 = vmatprep.mubr.f32.mxu0 %v5422
    %5688 = vmatmul.mubr.f32.gmra.mrb[0].mxu0 %v4534
    %v5689 = vpop.f32.mrb[0].mxu0
    %v5690 = vadd.f32 %v5113, %v5689
    %v5691 = vpop.f32.mrb[0].mxu0
    %5692 = vmatprep.mubr.f32.mxu0 %v5425
    %5693 = vmatmul.mubr.f32.gmra.mrb[0].mxu0 %v4536
    %v5694 = vpop.f32.mrb[0].mxu0
    %v5695 = vadd.f32 %v5118, %v5694
    %v5696 = vpop.f32.mrb[0].mxu0
    %5697 = vmatprep.mubr.f32.mxu0 %v5428
    %5698 = vmatmul.mubr.f32.gmra.mrb[0].mxu0 %v4538
    %v5699 = vpop.f32.mrb[0].mxu0
    %v5700 = vadd.f32 %v5123, %v5699
    %v5701 = vpop.f32.mrb[0].mxu0
    %5702 = vmatprep.mubr.f32.mxu0 %v5431
    %5703 = vmatmul.mubr.f32.gmra.mrb[0].mxu0 %v4540
    %v5704 = vpop.f32.mrb[0].mxu0
    %v5705 = vadd.f32 %v5128, %v5704
    %v5706 = vpop.f32.mrb[0].mxu0
    %5707 = vmatprep.mubr.f32.mxu0 %v5434
    %5708 = vmatmul.mubr.f32.gmra.mrb[0].mxu0 %v4542
    %v5709 = vpop.f32.mrb[0].mxu0
    %v5710 = vadd.f32 %v5133, %v5709
    %v5711 = vpop.f32.mrb[0].mxu0
    %5712 = vmatprep.mubr.f32.mxu0 %v5437
    %5713 = vmatmul.mubr.f32.gmra.mrb[0].mxu0 %v4544
    %v5714 = vpop.f32.mrb[0].mxu0
    %v5715 = vadd.f32 %v5138, %v5714
    %v5716 = vpop.f32.mrb[0].mxu0
    %5717 = vmatprep.mubr.f32.mxu0 %v5440
    %5718 = vmatmul.mubr.f32.gmra.mrb[0].mxu0 %v4546
    %v5719 = vpop.f32.mrb[0].mxu0
    %v5720 = vadd.f32 %v5143, %v5719
    %v5721 = vpop.f32.mrb[0].mxu0
    %5722 = vmatprep.mubr.f32.mxu0 %v5443
    %5723 = vmatmul.mubr.f32.gmra.mrb[0].mxu0 %v4548
    %v5724 = vpop.f32.mrb[0].mxu0
    %v5725 = vadd.f32 %v5148, %v5724
    %v5726 = vpop.f32.mrb[0].mxu0
    %5727 = vmatprep.mubr.f32.mxu0 %v5446
    %5728 = vmatmul.mubr.f32.gmra.mrb[0].mxu0 %v4550
    %v5729 = vpop.f32.mrb[0].mxu0
    %v5730 = vadd.f32 %v5153, %v5729
    %v5731 = vpop.f32.mrb[0].mxu0
    %5732 = vmatprep.mubr.f32.mxu0 %v5449
    %5733 = vmatmul.mubr.f32.gmra.mrb[0].mxu0 %v4552
    %v5734 = vpop.f32.mrb[0].mxu0
    %v5735 = vadd.f32 %v5158, %v5734
    %v5736 = vpop.f32.mrb[0].mxu0
    %5737 = vmatprep.mubr.f32.mxu0 %v5452
    %5738 = vmatmul.mubr.f32.gmra.mrb[0].mxu0 %v4554
    %v5739 = vpop.f32.mrb[0].mxu0
    %v5740 = vadd.f32 %v5163, %v5739
    %v5741 = vpop.f32.mrb[0].mxu0
    %5742 = vmatprep.mubr.f32.mxu0 %v5455
    %5743 = vmatmul.mubr.f32.gmra.mrb[0].mxu0 %v4556
    %v5744 = vpop.f32.mrb[0].mxu0
    %v5745 = vadd.f32 %v5168, %v5744
    %v5746 = vpop.f32.mrb[0].mxu0
    %5747 = vmatprep.mubr.f32.mxu0 %v5458
    %5748 = vmatmul.mubr.f32.gmra.mrb[0].mxu0 %v4558
    %v5749 = vpop.f32.mrb[0].mxu0
    %v5750 = vadd.f32 %v5173, %v5749
    %v5751 = vpop.f32.mrb[0].mxu0
    %5752 = vmatprep.mubr.f32.mxu0 %v5461
    %5753 = vmatmul.mubr.f32.gmra.mrb[0].mxu0 %v4560
    %v5754 = vpop.f32.mrb[0].mxu0
    %v5755 = vadd.f32 %v5178, %v5754
    %v5756 = vpop.f32.mrb[0].mxu0
    %5757 = vmatprep.mubr.f32.mxu0 %v5464
    %5758 = vmatmul.mubr.f32.gmra.mrb[0].mxu0 %v4562
    %v5759 = vpop.f32.mrb[0].mxu0
    %v5760 = vadd.f32 %v5183, %v5759
    %v5761 = vpop.f32.mrb[0].mxu0
    %5762 = vmatprep.mubr.f32.mxu0 %v5467
    %5763 = vmatmul.mubr.f32.gmra.mrb[0].mxu0 %v4564
    %v5764 = vpop.f32.mrb[0].mxu0
    %v5765 = vadd.f32 %v5188, %v5764
    %v5766 = vpop.f32.mrb[0].mxu0
    %5767 = vmatprep.mubr.f32.mxu0 %v5470
    %5768 = vmatmul.mubr.f32.gmra.mrb[0].mxu0 %v4566
    %v5769 = vpop.f32.mrb[0].mxu0
    %v5770 = vadd.f32 %v5193, %v5769
    %v5771 = vpop.f32.mrb[0].mxu0
    %5772 = vmatprep.mubr.f32.mxu0 %v5473
    %5773 = vmatmul.mubr.f32.gmra.mrb[0].mxu0 %v4568
    %v5774 = vpop.f32.mrb[0].mxu0
    %v5775 = vadd.f32 %v5198, %v5774
    %v5776 = vpop.f32.mrb[0].mxu0
    %5777 = vmatprep.mubr.f32.mxu0 %v5476
    %5778 = vmatmul.mubr.f32.gmra.mrb[0].mxu0 %v4570
    %v5779 = vpop.f32.mrb[0].mxu0
    %v5780 = vadd.f32 %v5203, %v5779
    %v5781 = vpop.f32.mrb[0].mxu0
    %5782 = vmatprep.mubr.f32.mxu0 %v5479
    %5783 = vmatmul.mubr.f32.gmra.mrb[0].mxu0 %v4572
    %v5784 = vpop.f32.mrb[0].mxu0
    %v5785 = vadd.f32 %v5208, %v5784
    %v5786 = vpop.f32.mrb[0].mxu0
    %5787 = vmatprep.mubr.f32.mxu0 %v5482
    %5788 = vmatmul.mubr.f32.gmra.mrb[0].mxu0 %v4574
    %v5789 = vpop.f32.mrb[0].mxu0
    %v5790 = vadd.f32 %v5213, %v5789
    %v5791 = vpop.f32.mrb[0].mxu0
    %5792 = vmatprep.mubr.f32.mxu0 %v5485
    %5793 = vmatmul.mubr.f32.gmra.mrb[0].mxu0 %v4576
    %v5794 = vpop.f32.mrb[0].mxu0
    %v5795 = vadd.f32 %v5218, %v5794
    %v5796 = vpop.f32.mrb[0].mxu0
    %5797 = vmatprep.mubr.f32.mxu0 %v5488
    %5798 = vmatmul.mubr.f32.gmra.mrb[0].mxu0 %v4578
    %v5799 = vpop.f32.mrb[0].mxu0
    %v5800 = vadd.f32 %v5223, %v5799
    %v5801 = vpop.f32.mrb[0].mxu0
    %5802 = vmatprep.mubr.f32.mxu0 %v5491
    %5803 = vmatmul.mubr.f32.gmra.mrb[0].mxu0 %v4580
    %v5804 = vpop.f32.mrb[0].mxu0
    %v5805 = vadd.f32 %v5228, %v5804
    %v5806 = vpop.f32.mrb[0].mxu0
    %5807 = vmatprep.mubr.f32.mxu0 %v5494
    %5808 = vmatmul.mubr.f32.gmra.mrb[0].mxu0 %v4582
    %v5809 = vpop.f32.mrb[0].mxu0
    %v5810 = vadd.f32 %v5233, %v5809
    %v5811 = vpop.f32.mrb[0].mxu0
    %5812 = vmatprep.mubr.f32.mxu0 %v5497
    %5813 = vmatmul.mubr.f32.gmra.mrb[0].mxu0 %v4584
    %v5814 = vpop.f32.mrb[0].mxu0
    %v5815 = vadd.f32 %v5238, %v5814
    %v5816 = vpop.f32.mrb[0].mxu0
    %5817 = vmatprep.mubr.f32.mxu0 %v5500
    %5818 = vmatmul.mubr.f32.gmra.mrb[0].mxu0 %v4586
    %v5819 = vpop.f32.mrb[0].mxu0
    %v5820 = vadd.f32 %v5243, %v5819
    %v5821 = vpop.f32.mrb[0].mxu0
    %5822 = vmatprep.mubr.f32.mxu0 %v5503
    %5823 = vmatmul.mubr.f32.gmra.mrb[0].mxu0 %v4588
    %v5824 = vpop.f32.mrb[0].mxu0
    %v5825 = vadd.f32 %v5248, %v5824
    %v5826 = vpop.f32.mrb[0].mxu0
    %5827 = vmatprep.mubr.f32.mxu0 %v5506
    %5828 = vmatmul.mubr.f32.gmra.mrb[0].mxu0 %v4590
    %v5829 = vpop.f32.mrb[0].mxu0
    %v5830 = vadd.f32 %v5253, %v5829
    %v5831 = vpop.f32.mrb[0].mxu0
    %5832 = vmatprep.mubr.f32.mxu0 %v5509
    %5833 = vmatmul.mubr.f32.gmra.mrb[0].mxu0 %v4592
    %v5834 = vpop.f32.mrb[0].mxu0
    %v5835 = vadd.f32 %v5258, %v5834
    %v5836 = vpop.f32.mrb[0].mxu0
    %5837 = vmatprep.mubr.f32.mxu0 %v5512
    %5838 = vmatmul.mubr.f32.gmra.mrb[0].mxu0 %v4594
    %v5839 = vpop.f32.mrb[0].mxu0
    %v5840 = vadd.f32 %v5263, %v5839
    %v5841 = vpop.f32.mrb[0].mxu0
    %5842 = vmatprep.mubr.f32.mxu0 %v5515
    %5843 = vmatmul.mubr.f32.gmra.mrb[0].mxu0 %v4596
    %v5844 = vpop.f32.mrb[0].mxu0
    %v5845 = vadd.f32 %v5268, %v5844
    %v5846 = vpop.f32.mrb[0].mxu0
    %5847 = vmatprep.mubr.f32.mxu0 %v5518
    %5848 = vmatmul.mubr.f32.gmra.mrb[0].mxu0 %v4598
    %v5849 = vpop.f32.mrb[0].mxu0
    %v5850 = vadd.f32 %v5273, %v5849
    %v5851 = vpop.f32.mrb[0].mxu0
    %5852 = vmatprep.mubr.f32.mxu0 %v5521
    %5853 = vmatmul.mubr.f32.gmra.mrb[0].mxu0 %v4600
    %v5854 = vpop.f32.mrb[0].mxu0
    %v5855 = vadd.f32 %v5278, %v5854
    %v5856 = vpop.f32.mrb[0].mxu0
    %5857 = vmatprep.mubr.f32.mxu0 %v5524
    %5858 = vmatmul.mubr.f32.gmra.mrb[0].mxu0 %v4602
    %v5859 = vpop.f32.mrb[0].mxu0
    %v5860 = vadd.f32 %v5283, %v5859
    %v5861 = vpop.f32.mrb[0].mxu0
    %5862 = vmatprep.mubr.f32.mxu0 %v5527
    %5863 = vmatmul.mubr.f32.gmra.mrb[0].mxu0 %v4604
    %v5864 = vpop.f32.mrb[0].mxu0
    %v5865 = vadd.f32 %v5288, %v5864
    %v5866 = vpop.f32.mrb[0].mxu0
    %5867 = vmatprep.mubr.f32.mxu0 %v5530
    %5868 = vmatmul.mubr.f32.gmra.mrb[0].mxu0 %v4606
    %v5869 = vpop.f32.mrb[0].mxu0
    %v5870 = vadd.f32 %v5293, %v5869
    %v5871 = vpop.f32.mrb[0].mxu0
    %5872 = vmatprep.mubr.f32.mxu0 %v5533
    %5873 = vmatmul.mubr.f32.gmra.mrb[0].mxu0 %v4608
    %v5874 = vpop.f32.mrb[0].mxu0
    %v5875 = vadd.f32 %v5298, %v5874
    %v5876 = vpop.f32.mrb[0].mxu0
    %5877 = vmatprep.mubr.f32.mxu0 %v5536
    %5878 = vmatmul.mubr.f32.gmra.mrb[0].mxu0 %v4610
    %v5879 = vpop.f32.mrb[0].mxu0
    %v5880 = vadd.f32 %v5303, %v5879
    %v5881 = vpop.f32.mrb[0].mxu0
    %5882 = vmatprep.mubr.f32.mxu0 %v5539
    %5883 = vmatmul.mubr.f32.gmra.mrb[0].mxu0 %v4612
    %v5884 = vpop.f32.mrb[0].mxu0
    %v5885 = vadd.f32 %v5308, %v5884
    %v5886 = vpop.f32.mrb[0].mxu0
    %5887 = vmatprep.mubr.f32.mxu0 %v5542
    %5888 = vmatmul.mubr.f32.gmra.mrb[0].mxu0 %v4614
    %v5889 = vpop.f32.mrb[0].mxu0
    %v5890 = vadd.f32 %v5313, %v5889
    %v5891 = vpop.f32.mrb[0].mxu0
    %5892 = vmatprep.mubr.f32.mxu0 %v5545
    %5893 = vmatmul.mubr.f32.gmra.mrb[0].mxu0 %v4616
    %v5894 = vpop.f32.mrb[0].mxu0
    %v5895 = vadd.f32 %v5318, %v5894
    %v5896 = vpop.f32.mrb[0].mxu0
    %5897 = vmatprep.mubr.f32.mxu0 %v5548
    %5898 = vmatmul.mubr.f32.gmra.mrb[0].mxu0 %v4618
    %v5899 = vpop.f32.mrb[0].mxu0
    %v5900 = vadd.f32 %v5323, %v5899
    %v5901 = vpop.f32.mrb[0].mxu0
    %5902 = vmatprep.mubr.f32.mxu0 %v5551
    %5903 = vmatmul.mubr.f32.gmra.mrb[0].mxu0 %v4620
    %v5904 = vpop.f32.mrb[0].mxu0
    %v5905 = vadd.f32 %v5328, %v5904
    %v5906 = vpop.f32.mrb[0].mxu0
    %5907 = vmatprep.mubr.f32.mxu0 %v5554
    %5908 = vmatmul.mubr.f32.gmra.mrb[0].mxu0 %v4622
    %v5909 = vpop.f32.mrb[0].mxu0
    %v5910 = vadd.f32 %v5333, %v5909
    %v5911 = vpop.f32.mrb[0].mxu0
    %5912 = vmatprep.mubr.f32.mxu0 %v5557
    %5913 = vmatmul.mubr.f32.gmra.mrb[0].mxu0 %v4624
    %v5914 = vpop.f32.mrb[0].mxu0
    %v5915 = vadd.f32 %v5338, %v5914
    %v5916 = vpop.f32.mrb[0].mxu0
    %5917 = vmatprep.mubr.f32.mxu0 %v5560
    %5918 = vmatmul.mubr.f32.gmra.mrb[0].mxu0 %v4626
    %v5919 = vpop.f32.mrb[0].mxu0
    %v5920 = vadd.f32 %v5343, %v5919
    %v5921 = vpop.f32.mrb[0].mxu0
    %5922 = vmatprep.mubr.f32.mxu0 %v5563
    %5923 = vmatmul.mubr.f32.gmra.mrb[0].mxu0 %v4628
    %v5924 = vpop.f32.mrb[0].mxu0
    %v5925 = vadd.f32 %v5348, %v5924
    %v5926 = vpop.f32.mrb[0].mxu0
    %5927 = vmatprep.mubr.f32.mxu0 %v5566
    %5928 = vmatmul.mubr.f32.gmra.mrb[0].mxu0 %v4630
    %v5929 = vpop.f32.mrb[0].mxu0
    %v5930 = vadd.f32 %v5353, %v5929
    %v5931 = vpop.f32.mrb[0].mxu0
    %5932 = vmatprep.mubr.f32.mxu0 %v5569
    %5933 = vmatmul.mubr.f32.gmra.mrb[0].mxu0 %v4632
    %v5934 = vpop.f32.mrb[0].mxu0
    %v5935 = vadd.f32 %v5358, %v5934
    %v5936 = vpop.f32.mrb[0].mxu0
    %5937 = vmatprep.mubr.f32.mxu0 %v5572
    %5938 = vmatmul.mubr.f32.gmra.mrb[0].mxu0 %v4634
    %v5939 = vpop.f32.mrb[0].mxu0
    %v5940 = vadd.f32 %v5363, %v5939
    %v5941 = vpop.f32.mrb[0].mxu0
    %5942 = vmatprep.mubr.f32.mxu0 %v5575
    %5943 = vmatmul.mubr.f32.gmra.mrb[0].mxu0 %v4636
    %v5944 = vpop.f32.mrb[0].mxu0
    %v5945 = vadd.f32 %v5368, %v5944
    %v5946 = vpop.f32.mrb[0].mxu0
    %5947 = vmatprep.mubr.f32.mxu0 %v5578
    %5948 = vmatmul.mubr.f32.gmra.mrb[0].mxu0 %v4638
    %v5949 = vpop.f32.mrb[0].mxu0
    %v5950 = vadd.f32 %v5373, %v5949
    %v5951 = vpop.f32.mrb[0].mxu0
    %5952 = vmatprep.mubr.f32.mxu0 %v5581
    %5953 = vmatmul.mubr.f32.gmra.mrb[0].mxu0 %v4640
    %v5954 = vpop.f32.mrb[0].mxu0
    %v5955 = vadd.f32 %v5378, %v5954
    %v5956 = vpop.f32.mrb[0].mxu0
    %5957 = vmatprep.mubr.f32.mxu0 %v5584
    %5958 = vmatmul.mubr.f32.gmra.mrb[0].mxu0 %v4642
    %v5959 = vpop.f32.mrb[0].mxu0
    %v5960 = vadd.f32 %v5383, %v5959
    %v5961 = vpop.f32.mrb[0].mxu0
    %5962 = vmatprep.mubr.f32.mxu0 %v5587
    %5963 = vmatmul.mubr.f32.gmra.mrb[0].mxu0 %v4644
    %v5964 = vpop.f32.mrb[0].mxu0
    %v5965 = vadd.f32 %v5388, %v5964
    %v5966 = vpop.f32.mrb[0].mxu0
    %5967 = vmatprep.mubr.f32.mxu0 %v5590
    %5968 = vmatmul.mubr.f32.gmra.mrb[0].mxu0 %v4646
    %v5969 = vpop.f32.mrb[0].mxu0
    %v5970 = vadd.f32 %v5393, %v5969
    %v5971 = vpop.f32.mrb[0].mxu0
    %5972 = vmatprep.mubr.f32.mxu0 %v5593
    %5973 = vmatmul.mubr.f32.gmra.mrb[0].mxu0 %v4648
    %v5974 = vpop.f32.mrb[0].mxu0
    %v5975 = vadd.f32 %v5398, %v5974
    %v5976 = vpop.f32.mrb[0].mxu0
    %5977 = vmatprep.mubr.f32.mxu0 %v5596
    %5978 = vmatmul.mubr.f32.gmra.mrb[0].mxu0 %v4650
    %v5979 = vpop.f32.mrb[0].mxu0
    %v5980 = vadd.f32 %v5403, %v5979
    %v5981 = vpop.f32.mrb[0].mxu0
    %5982 = vdwg.mxu0
    %s5983 = scalar_lea.vmem [#allocation3], 128
    %v5984 = vld [vmem:[%s5983 + $0x10] sm:$0xff]
    %v5985 = vld [vmem:[%s5983 + $0x18] sm:$0xff]
    %v5986 = vld [vmem:[%s5983 + $0x20] sm:$0xff]
    %v5987 = vld [vmem:[%s5983 + $0x28] sm:$0xff]
    %v5988 = vld [vmem:[%s5983 + $0x50] sm:$0xff]
    %v5989 = vld [vmem:[%s5983 + $0x58] sm:$0xff]
    %v5990 = vld [vmem:[%s5983 + $0x60] sm:$0xff]
    %v5991 = vld [vmem:[%s5983 + $0x68] sm:$0xff]
    %v5992 = vld [vmem:[%s5983 + $0x90] sm:$0xff]
    %v5993 = vld [vmem:[%s5983 + $0x98] sm:$0xff]
    %v5994 = vld [vmem:[%s5983 + $0xa0] sm:$0xff]
    %v5995 = vld [vmem:[%s5983 + $0xa8] sm:$0xff]
    %v5996 = vld [vmem:[%s5983 + $0xd0] sm:$0xff]
    %v5997 = vld [vmem:[%s5983 + $0xd8] sm:$0xff]
    %v5998 = vld [vmem:[%s5983 + $0xe0] sm:$0xff]
    %v5999 = vld [vmem:[%s5983 + $0xe8] sm:$0xff]
    %v6000 = vld [vmem:[%s5983 + $0x110] sm:$0xff]
    %v6001 = vld [vmem:[%s5983 + $0x118] sm:$0xff]
    %v6002 = vld [vmem:[%s5983 + $0x120] sm:$0xff]
    %v6003 = vld [vmem:[%s5983 + $0x128] sm:$0xff]
    %v6004 = vld [vmem:[%s5983 + $0x150] sm:$0xff]
    %v6005 = vld [vmem:[%s5983 + $0x158] sm:$0xff]
    %v6006 = vld [vmem:[%s5983 + $0x160] sm:$0xff]
    %v6007 = vld [vmem:[%s5983 + $0x168] sm:$0xff]
    %v6008 = vld [vmem:[%s5983 + $0x190] sm:$0xff]
    %v6009 = vld [vmem:[%s5983 + $0x198] sm:$0xff]
    %v6010 = vld [vmem:[%s5983 + $0x1a0] sm:$0xff]
    %v6011 = vld [vmem:[%s5983 + $0x1a8] sm:$0xff]
    %v6012 = vld [vmem:[%s5983 + $0x1d0] sm:$0xff]
    %v6013 = vld [vmem:[%s5983 + $0x1d8] sm:$0xff]
    %v6014 = vld [vmem:[%s5983 + $0x1e0] sm:$0xff]
    %v6015 = vld [vmem:[%s5983 + $0x1e8] sm:$0xff]
    %v6016 = vld [vmem:[%s5983 + $0x210] sm:$0xff]
    %v6017 = vld [vmem:[%s5983 + $0x218] sm:$0xff]
    %v6018 = vld [vmem:[%s5983 + $0x220] sm:$0xff]
    %v6019 = vld [vmem:[%s5983 + $0x228] sm:$0xff]
    %v6020 = vld [vmem:[%s5983 + $0x250] sm:$0xff]
    %v6021 = vld [vmem:[%s5983 + $0x258] sm:$0xff]
    %v6022 = vld [vmem:[%s5983 + $0x260] sm:$0xff]
    %v6023 = vld [vmem:[%s5983 + $0x268] sm:$0xff]
    %v6024 = vld [vmem:[%s5983 + $0x290] sm:$0xff]
    %v6025 = vld [vmem:[%s5983 + $0x298] sm:$0xff]
    %v6026 = vld [vmem:[%s5983 + $0x2a0] sm:$0xff]
    %v6027 = vld [vmem:[%s5983 + $0x2a8] sm:$0xff]
    %v6028 = vld [vmem:[%s5983 + $0x2d0] sm:$0xff]
    %v6029 = vld [vmem:[%s5983 + $0x2d8] sm:$0xff]
    %v6030 = vld [vmem:[%s5983 + $0x2e0] sm:$0xff]
    %v6031 = vld [vmem:[%s5983 + $0x2e8] sm:$0xff]
    %v6032 = vld [vmem:[%s5983 + $0x310] sm:$0xff]
    %v6033 = vld [vmem:[%s5983 + $0x318] sm:$0xff]
    %v6034 = vld [vmem:[%s5983 + $0x320] sm:$0xff]
    %v6035 = vld [vmem:[%s5983 + $0x328] sm:$0xff]
    %v6036 = vld [vmem:[%s5983 + $0x350] sm:$0xff]
    %v6037 = vld [vmem:[%s5983 + $0x358] sm:$0xff]
    %v6038 = vld [vmem:[%s5983 + $0x360] sm:$0xff]
    %v6039 = vld [vmem:[%s5983 + $0x368] sm:$0xff]
    %v6040 = vld [vmem:[%s5983 + $0x390] sm:$0xff]
    %v6041 = vld [vmem:[%s5983 + $0x398] sm:$0xff]
    %v6042 = vld [vmem:[%s5983 + $0x3a0] sm:$0xff]
    %v6043 = vld [vmem:[%s5983 + $0x3a8] sm:$0xff]
    %v6044 = vld [vmem:[%s5983 + $0x3d0] sm:$0xff]
    %v6045 = vld [vmem:[%s5983 + $0x3d8] sm:$0xff]
    %v6046 = vld [vmem:[%s5983 + $0x3e0] sm:$0xff]
    %v6047 = vld [vmem:[%s5983 + $0x3e8] sm:$0xff]
    %v6048 = vld [vmem:[%s5983 + $0x490] sm:$0xff]
    %v6049 = vld [vmem:[%s5983 + $0x498] sm:$0xff]
    %v6050 = vld [vmem:[%s5983 + $0x4a0] sm:$0xff]
    %v6051 = vld [vmem:[%s5983 + $0x4a8] sm:$0xff]
    %v6052 = vld [vmem:[%s5983 + $0x4d0] sm:$0xff]
    %v6053 = vld [vmem:[%s5983 + $0x4d8] sm:$0xff]
    %v6054 = vld [vmem:[%s5983 + $0x4e0] sm:$0xff]
    %v6055 = vld [vmem:[%s5983 + $0x4e8] sm:$0xff]
    %v6056 = vld [vmem:[%s5983 + $0x510] sm:$0xff]
    %v6057 = vld [vmem:[%s5983 + $0x518] sm:$0xff]
    %v6058 = vld [vmem:[%s5983 + $0x520] sm:$0xff]
    %v6059 = vld [vmem:[%s5983 + $0x528] sm:$0xff]
    %v6060 = vld [vmem:[%s5983 + $0x550] sm:$0xff]
    %v6061 = vld [vmem:[%s5983 + $0x558] sm:$0xff]
    %v6062 = vld [vmem:[%s5983 + $0x560] sm:$0xff]
    %v6063 = vld [vmem:[%s5983 + $0x568] sm:$0xff]
    %v6064 = vld [vmem:[%s5983 + $0x590] sm:$0xff]
    %v6065 = vld [vmem:[%s5983 + $0x598] sm:$0xff]
    %v6066 = vld [vmem:[%s5983 + $0x5a0] sm:$0xff]
    %v6067 = vld [vmem:[%s5983 + $0x5a8] sm:$0xff]
    %v6068 = vld [vmem:[%s5983 + $0x5d0] sm:$0xff]
    %v6069 = vld [vmem:[%s5983 + $0x5d8] sm:$0xff]
    %v6070 = vld [vmem:[%s5983 + $0x5e0] sm:$0xff]
    %v6071 = vld [vmem:[%s5983 + $0x5e8] sm:$0xff]
    %v6072 = vld [vmem:[%s5983 + $0x610] sm:$0xff]
    %v6073 = vld [vmem:[%s5983 + $0x618] sm:$0xff]
    %v6074 = vld [vmem:[%s5983 + $0x620] sm:$0xff]
    %v6075 = vld [vmem:[%s5983 + $0x628] sm:$0xff]
    %v6076 = vld [vmem:[%s5983 + $0x650] sm:$0xff]
    %v6077 = vld [vmem:[%s5983 + $0x658] sm:$0xff]
    %v6078 = vld [vmem:[%s5983 + $0x660] sm:$0xff]
    %v6079 = vld [vmem:[%s5983 + $0x668] sm:$0xff]
    %v6080 = vld [vmem:[%s5983 + $0x690] sm:$0xff]
    %v6081 = vld [vmem:[%s5983 + $0x698] sm:$0xff]
    %v6082 = vld [vmem:[%s5983 + $0x6a0] sm:$0xff]
    %v6083 = vld [vmem:[%s5983 + $0x6a8] sm:$0xff]
    %v6084 = vld [vmem:[%s5983 + $0x6d0] sm:$0xff]
    %v6085 = vld [vmem:[%s5983 + $0x6d8] sm:$0xff]
    %v6086 = vld [vmem:[%s5983 + $0x6e0] sm:$0xff]
    %v6087 = vld [vmem:[%s5983 + $0x6e8] sm:$0xff]
    %v6088 = vld [vmem:[%s5983 + $0x710] sm:$0xff]
    %v6089 = vld [vmem:[%s5983 + $0x718] sm:$0xff]
    %v6090 = vld [vmem:[%s5983 + $0x720] sm:$0xff]
    %v6091 = vld [vmem:[%s5983 + $0x728] sm:$0xff]
    %v6092 = vld [vmem:[%s5983 + $0x750] sm:$0xff]
    %v6093 = vld [vmem:[%s5983 + $0x758] sm:$0xff]
    %v6094 = vld [vmem:[%s5983 + $0x760] sm:$0xff]
    %v6095 = vld [vmem:[%s5983 + $0x768] sm:$0xff]
    %v6096 = vld [vmem:[%s5983 + $0x790] sm:$0xff]
    %v6097 = vld [vmem:[%s5983 + $0x798] sm:$0xff]
    %v6098 = vld [vmem:[%s5983 + $0x7a0] sm:$0xff]
    %v6099 = vld [vmem:[%s5983 + $0x7a8] sm:$0xff]
    %v6100 = vld [vmem:[%s5983 + $0x7d0] sm:$0xff]
    %v6101 = vld [vmem:[%s5983 + $0x7d8] sm:$0xff]
    %v6102 = vld [vmem:[%s5983 + $0x7e0] sm:$0xff]
    %v6103 = vld [vmem:[%s5983 + $0x7e8] sm:$0xff]
    %v6104 = vld [vmem:[%s5983 + $0x810] sm:$0xff]
    %v6105 = vld [vmem:[%s5983 + $0x818] sm:$0xff]
    %v6106 = vld [vmem:[%s5983 + $0x820] sm:$0xff]
    %v6107 = vld [vmem:[%s5983 + $0x828] sm:$0xff]
    %v6108 = vld [vmem:[%s5983 + $0x850] sm:$0xff]
    %v6109 = vld [vmem:[%s5983 + $0x858] sm:$0xff]
    %v6110 = vld [vmem:[%s5983 + $0x860] sm:$0xff]
    %v6111 = vld [vmem:[%s5983 + $0x868] sm:$0xff]
    %s6112 = scalar_lea.vmem %s4, 384
    %v6113 = vld [vmem:[%s6112] sm:$0xff]
    %v6114 = vld [vmem:[%s6112 + $0x8] sm:$0xff]
    %v6115 = vld [vmem:[%s6112 + $0x10] sm:$0xff]
    %v6116 = vld [vmem:[%s6112 + $0x18] sm:$0xff]
    %v6117 = vld [vmem:[%s6112 + $0x20] sm:$0xff]
    %v6118 = vld [vmem:[%s6112 + $0x28] sm:$0xff]
    %v6119 = vld [vmem:[%s6112 + $0x30] sm:$0xff]
    %v6120 = vld [vmem:[%s6112 + $0x38] sm:$0xff]
    %v6121 = vld [vmem:[%s6112 + $0x40] sm:$0xff]
    %v6122 = vld [vmem:[%s6112 + $0x48] sm:$0xff]
    %v6123 = vld [vmem:[%s6112 + $0x50] sm:$0xff]
    %v6124 = vld [vmem:[%s6112 + $0x58] sm:$0xff]
    %v6125 = vld [vmem:[%s6112 + $0x60] sm:$0xff]
    %v6126 = vld [vmem:[%s6112 + $0x68] sm:$0xff]
    %v6127 = vld [vmem:[%s6112 + $0x70] sm:$0xff]
    %v6128 = vld [vmem:[%s6112 + $0x78] sm:$0xff]
    %v6129 = vld [vmem:[%s6112 + $0x80] sm:$0xff]
    %v6130 = vld [vmem:[%s6112 + $0x88] sm:$0xff]
    %v6131 = vld [vmem:[%s6112 + $0x90] sm:$0xff]
    %v6132 = vld [vmem:[%s6112 + $0x98] sm:$0xff]
    %v6133 = vld [vmem:[%s6112 + $0xa0] sm:$0xff]
    %v6134 = vld [vmem:[%s6112 + $0xa8] sm:$0xff]
    %v6135 = vld [vmem:[%s6112 + $0xb0] sm:$0xff]
    %v6136 = vld [vmem:[%s6112 + $0xb8] sm:$0xff]
    %v6138 = vsel %vm101, %v5985, 0
    %v6141 = vsel %vm101, %v5987, 0
    %v6144 = vsel %vm101, %v5989, 0
    %v6147 = vsel %vm101, %v5991, 0
    %v6150 = vsel %vm101, %v5993, 0
    %v6153 = vsel %vm101, %v5995, 0
    %v6156 = vsel %vm101, %v5997, 0
    %v6159 = vsel %vm101, %v5999, 0
    %v6162 = vsel %vm101, %v6001, 0
    %v6165 = vsel %vm101, %v6003, 0
    %v6168 = vsel %vm101, %v6005, 0
    %v6171 = vsel %vm101, %v6007, 0
    %v6174 = vsel %vm101, %v6009, 0
    %v6177 = vsel %vm101, %v6011, 0
    %v6180 = vsel %vm101, %v6013, 0
    %v6183 = vsel %vm101, %v6015, 0
    %v6186 = vsel %vm101, %v6017, 0
    %v6189 = vsel %vm101, %v6019, 0
    %v6192 = vsel %vm101, %v6021, 0
    %v6195 = vsel %vm101, %v6023, 0
    %v6198 = vsel %vm101, %v6025, 0
    %v6201 = vsel %vm101, %v6027, 0
    %v6204 = vsel %vm101, %v6029, 0
    %v6207 = vsel %vm101, %v6031, 0
    %v6210 = vsel %vm101, %v6033, 0
    %v6213 = vsel %vm101, %v6035, 0
    %v6216 = vsel %vm101, %v6037, 0
    %v6219 = vsel %vm101, %v6039, 0
    %v6222 = vsel %vm101, %v6041, 0
    %v6225 = vsel %vm101, %v6043, 0
    %v6228 = vsel %vm101, %v6045, 0
    %v6231 = vsel %vm101, %v6047, 0
    %v6234 = vsel %vm101, %v6049, 0
    %v6237 = vsel %vm101, %v6051, 0
    %v6240 = vsel %vm101, %v6053, 0
    %v6243 = vsel %vm101, %v6055, 0
    %v6246 = vsel %vm101, %v6057, 0
    %v6249 = vsel %vm101, %v6059, 0
    %v6252 = vsel %vm101, %v6061, 0
    %v6255 = vsel %vm101, %v6063, 0
    %v6258 = vsel %vm101, %v6065, 0
    %v6261 = vsel %vm101, %v6067, 0
    %v6264 = vsel %vm101, %v6069, 0
    %v6267 = vsel %vm101, %v6071, 0
    %v6270 = vsel %vm101, %v6073, 0
    %v6273 = vsel %vm101, %v6075, 0
    %v6276 = vsel %vm101, %v6077, 0
    %v6279 = vsel %vm101, %v6079, 0
    %v6282 = vsel %vm101, %v6081, 0
    %v6285 = vsel %vm101, %v6083, 0
    %v6288 = vsel %vm101, %v6085, 0
    %v6291 = vsel %vm101, %v6087, 0
    %v6294 = vsel %vm101, %v6089, 0
    %v6297 = vsel %vm101, %v6091, 0
    %v6300 = vsel %vm101, %v6093, 0
    %v6303 = vsel %vm101, %v6095, 0
    %v6306 = vsel %vm101, %v6097, 0
    %v6309 = vsel %vm101, %v6099, 0
    %v6312 = vsel %vm101, %v6101, 0
    %v6315 = vsel %vm101, %v6103, 0
    %v6318 = vsel %vm101, %v6105, 0
    %v6321 = vsel %vm101, %v6107, 0
    %v6324 = vsel %vm101, %v6109, 0
    %v6327 = vsel %vm101, %v6111, 0
    %6329 = vmatprep.subr.mxu0 0.0
    %6330 = vmatpush1.msra.mxu0 %v6113
    %6331 = vmatprep.subr.mxu0 0.0
    %6332 = vmatpush1.msra.mxu0 %v6114
    %6333 = vmatprep.subr.mxu0 0.0
    %6334 = vmatpush1.msra.mxu0 %v6115
    %6335 = vmatprep.subr.mxu0 0.0
    %6336 = vmatpush1.msra.mxu0 %v6116
    %6337 = vmatprep.subr.mxu0 0.0
    %6338 = vmatpush1.msra.mxu0 %v6117
    %6339 = vmatprep.subr.mxu0 0.0
    %6340 = vmatpush1.msra.mxu0 %v6118
    %6341 = vmatprep.subr.mxu0 0.0
    %6342 = vmatpush1.msra.mxu0 %v6119
    %6343 = vmatprep.subr.mxu0 0.0
    %6344 = vmatpush1.msra.mxu0 %v6120
    %6345 = vmatprep.subr.mxu0 0.0
    %6346 = vmatpush1.msra.mxu0 %v6121
    %6347 = vmatprep.subr.mxu0 0.0
    %6348 = vmatpush1.msra.mxu0 %v6122
    %6349 = vmatprep.subr.mxu0 0.0
    %6350 = vmatpush1.msra.mxu0 %v6123
    %6351 = vmatprep.subr.mxu0 0.0
    %6352 = vmatpush1.msra.mxu0 %v6124
    %6353 = vmatprep.subr.mxu0 0.0
    %6354 = vmatpush1.msra.mxu0 %v6125
    %6355 = vmatprep.subr.mxu0 0.0
    %6356 = vmatpush1.msra.mxu0 %v6126
    %6357 = vmatprep.subr.mxu0 0.0
    %6358 = vmatpush1.msra.mxu0 %v6127
    %6359 = vmatprep.subr.mxu0 0.0
    %6360 = vmatpush1.msra.mxu0 %v6128
    %6361 = vmatprep.subr.mxu0 0.0
    %6362 = vmatpush1.msra.mxu0 %v6129
    %6363 = vmatprep.subr.mxu0 0.0
    %6364 = vmatpush1.msra.mxu0 %v6130
    %6365 = vmatprep.subr.mxu0 0.0
    %6366 = vmatpush1.msra.mxu0 %v6131
    %6367 = vmatprep.subr.mxu0 0.0
    %6368 = vmatpush1.msra.mxu0 %v6132
    %6369 = vmatprep.subr.mxu0 0.0
    %6370 = vmatpush1.msra.mxu0 %v6133
    %6371 = vmatprep.subr.mxu0 0.0
    %6372 = vmatpush1.msra.mxu0 %v6134
    %6373 = vmatprep.subr.mxu0 0.0
    %6374 = vmatpush1.msra.mxu0 %v6135
    %6375 = vmatprep.subr.mxu0 0.0
    %6376 = vmatpush1.msra.mxu0 %v6136
    %6377 = vmatprep.subr.mxu0 0.0
    %6378 = vmatpush1.msra.mxu0 0.0
    %6379 = vmatprep.subr.mxu0 0.0
    %6380 = vmatpush1.msra.mxu0 0.0
    %6381 = vmatprep.subr.mxu0 0.0
    %6382 = vmatpush1.msra.mxu0 0.0
    %6383 = vmatprep.subr.mxu0 0.0
    %6384 = vmatpush1.msra.mxu0 0.0
    %6385 = vmatprep.subr.mxu0 0.0
    %6386 = vmatpush1.msra.mxu0 0.0
    %6387 = vmatprep.subr.mxu0 0.0
    %6388 = vmatpush1.msra.mxu0 0.0
    %6389 = vmatprep.subr.mxu0 0.0
    %6390 = vmatpush1.msra.mxu0 0.0
    %6391 = vmatprep.subr.mxu0 0.0
    %6392 = vmatpush1.msra.mxu0 0.0
    %6393 = vmatprep.mubr.f32.mxu0 %v6138
    %6394 = vmatmul.mubr.f32.gmra.mrb[0].mxu0 %v5984
    %v6395 = vpop.f32.mrb[0].mxu0
    %v6396 = vadd.f32 0.0, %v6395
    %v6397 = vpop.f32.mrb[0].mxu0
    %6398 = vmatprep.mubr.f32.mxu0 %v6141
    %6399 = vmatmul.mubr.f32.gmra.mrb[0].mxu0 %v5986
    %v6400 = vpop.f32.mrb[0].mxu0
    %v6401 = vadd.f32 0.0, %v6400
    %v6402 = vpop.f32.mrb[0].mxu0
    %6403 = vmatprep.mubr.f32.mxu0 %v6144
    %6404 = vmatmul.mubr.f32.gmra.mrb[0].mxu0 %v5988
    %v6405 = vpop.f32.mrb[0].mxu0
    %v6406 = vadd.f32 0.0, %v6405
    %v6407 = vpop.f32.mrb[0].mxu0
    %6408 = vmatprep.mubr.f32.mxu0 %v6147
    %6409 = vmatmul.mubr.f32.gmra.mrb[0].mxu0 %v5990
    %v6410 = vpop.f32.mrb[0].mxu0
    %v6411 = vadd.f32 0.0, %v6410
    %v6412 = vpop.f32.mrb[0].mxu0
    %6413 = vmatprep.mubr.f32.mxu0 %v6150
    %6414 = vmatmul.mubr.f32.gmra.mrb[0].mxu0 %v5992
    %v6415 = vpop.f32.mrb[0].mxu0
    %v6416 = vadd.f32 0.0, %v6415
    %v6417 = vpop.f32.mrb[0].mxu0
    %6418 = vmatprep.mubr.f32.mxu0 %v6153
    %6419 = vmatmul.mubr.f32.gmra.mrb[0].mxu0 %v5994
    %v6420 = vpop.f32.mrb[0].mxu0
    %v6421 = vadd.f32 0.0, %v6420
    %v6422 = vpop.f32.mrb[0].mxu0
    %6423 = vmatprep.mubr.f32.mxu0 %v6156
    %6424 = vmatmul.mubr.f32.gmra.mrb[0].mxu0 %v5996
    %v6425 = vpop.f32.mrb[0].mxu0
    %v6426 = vadd.f32 0.0, %v6425
    %v6427 = vpop.f32.mrb[0].mxu0
    %6428 = vmatprep.mubr.f32.mxu0 %v6159
    %6429 = vmatmul.mubr.f32.gmra.mrb[0].mxu0 %v5998
    %v6430 = vpop.f32.mrb[0].mxu0
    %v6431 = vadd.f32 0.0, %v6430
    %v6432 = vpop.f32.mrb[0].mxu0
    %6433 = vmatprep.mubr.f32.mxu0 %v6162
    %6434 = vmatmul.mubr.f32.gmra.mrb[0].mxu0 %v6000
    %v6435 = vpop.f32.mrb[0].mxu0
    %v6436 = vadd.f32 0.0, %v6435
    %v6437 = vpop.f32.mrb[0].mxu0
    %6438 = vmatprep.mubr.f32.mxu0 %v6165
    %6439 = vmatmul.mubr.f32.gmra.mrb[0].mxu0 %v6002
    %v6440 = vpop.f32.mrb[0].mxu0
    %v6441 = vadd.f32 0.0, %v6440
    %v6442 = vpop.f32.mrb[0].mxu0
    %6443 = vmatprep.mubr.f32.mxu0 %v6168
    %6444 = vmatmul.mubr.f32.gmra.mrb[0].mxu0 %v6004
    %v6445 = vpop.f32.mrb[0].mxu0
    %v6446 = vadd.f32 0.0, %v6445
    %v6447 = vpop.f32.mrb[0].mxu0
    %6448 = vmatprep.mubr.f32.mxu0 %v6171
    %6449 = vmatmul.mubr.f32.gmra.mrb[0].mxu0 %v6006
    %v6450 = vpop.f32.mrb[0].mxu0
    %v6451 = vadd.f32 0.0, %v6450
    %v6452 = vpop.f32.mrb[0].mxu0
    %6453 = vmatprep.mubr.f32.mxu0 %v6174
    %6454 = vmatmul.mubr.f32.gmra.mrb[0].mxu0 %v6008
    %v6455 = vpop.f32.mrb[0].mxu0
    %v6456 = vadd.f32 0.0, %v6455
    %v6457 = vpop.f32.mrb[0].mxu0
    %6458 = vmatprep.mubr.f32.mxu0 %v6177
    %6459 = vmatmul.mubr.f32.gmra.mrb[0].mxu0 %v6010
    %v6460 = vpop.f32.mrb[0].mxu0
    %v6461 = vadd.f32 0.0, %v6460
    %v6462 = vpop.f32.mrb[0].mxu0
    %6463 = vmatprep.mubr.f32.mxu0 %v6180
    %6464 = vmatmul.mubr.f32.gmra.mrb[0].mxu0 %v6012
    %v6465 = vpop.f32.mrb[0].mxu0
    %v6466 = vadd.f32 0.0, %v6465
    %v6467 = vpop.f32.mrb[0].mxu0
    %6468 = vmatprep.mubr.f32.mxu0 %v6183
    %6469 = vmatmul.mubr.f32.gmra.mrb[0].mxu0 %v6014
    %v6470 = vpop.f32.mrb[0].mxu0
    %v6471 = vadd.f32 0.0, %v6470
    %v6472 = vpop.f32.mrb[0].mxu0
    %6473 = vmatprep.mubr.f32.mxu0 %v6186
    %6474 = vmatmul.mubr.f32.gmra.mrb[0].mxu0 %v6016
    %v6475 = vpop.f32.mrb[0].mxu0
    %v6476 = vadd.f32 0.0, %v6475
    %v6477 = vpop.f32.mrb[0].mxu0
    %6478 = vmatprep.mubr.f32.mxu0 %v6189
    %6479 = vmatmul.mubr.f32.gmra.mrb[0].mxu0 %v6018
    %v6480 = vpop.f32.mrb[0].mxu0
    %v6481 = vadd.f32 0.0, %v6480
    %v6482 = vpop.f32.mrb[0].mxu0
    %6483 = vmatprep.mubr.f32.mxu0 %v6192
    %6484 = vmatmul.mubr.f32.gmra.mrb[0].mxu0 %v6020
    %v6485 = vpop.f32.mrb[0].mxu0
    %v6486 = vadd.f32 0.0, %v6485
    %v6487 = vpop.f32.mrb[0].mxu0
    %6488 = vmatprep.mubr.f32.mxu0 %v6195
    %6489 = vmatmul.mubr.f32.gmra.mrb[0].mxu0 %v6022
    %v6490 = vpop.f32.mrb[0].mxu0
    %v6491 = vadd.f32 0.0, %v6490
    %v6492 = vpop.f32.mrb[0].mxu0
    %6493 = vmatprep.mubr.f32.mxu0 %v6198
    %6494 = vmatmul.mubr.f32.gmra.mrb[0].mxu0 %v6024
    %v6495 = vpop.f32.mrb[0].mxu0
    %v6496 = vadd.f32 0.0, %v6495
    %v6497 = vpop.f32.mrb[0].mxu0
    %6498 = vmatprep.mubr.f32.mxu0 %v6201
    %6499 = vmatmul.mubr.f32.gmra.mrb[0].mxu0 %v6026
    %v6500 = vpop.f32.mrb[0].mxu0
    %v6501 = vadd.f32 0.0, %v6500
    %v6502 = vpop.f32.mrb[0].mxu0
    %6503 = vmatprep.mubr.f32.mxu0 %v6204
    %6504 = vmatmul.mubr.f32.gmra.mrb[0].mxu0 %v6028
    %v6505 = vpop.f32.mrb[0].mxu0
    %v6506 = vadd.f32 0.0, %v6505
    %v6507 = vpop.f32.mrb[0].mxu0
    %6508 = vmatprep.mubr.f32.mxu0 %v6207
    %6509 = vmatmul.mubr.f32.gmra.mrb[0].mxu0 %v6030
    %v6510 = vpop.f32.mrb[0].mxu0
    %v6511 = vadd.f32 0.0, %v6510
    %v6512 = vpop.f32.mrb[0].mxu0
    %6513 = vmatprep.mubr.f32.mxu0 %v6210
    %6514 = vmatmul.mubr.f32.gmra.mrb[0].mxu0 %v6032
    %v6515 = vpop.f32.mrb[0].mxu0
    %v6516 = vadd.f32 0.0, %v6515
    %v6517 = vpop.f32.mrb[0].mxu0
    %6518 = vmatprep.mubr.f32.mxu0 %v6213
    %6519 = vmatmul.mubr.f32.gmra.mrb[0].mxu0 %v6034
    %v6520 = vpop.f32.mrb[0].mxu0
    %v6521 = vadd.f32 0.0, %v6520
    %v6522 = vpop.f32.mrb[0].mxu0
    %6523 = vmatprep.mubr.f32.mxu0 %v6216
    %6524 = vmatmul.mubr.f32.gmra.mrb[0].mxu0 %v6036
    %v6525 = vpop.f32.mrb[0].mxu0
    %v6526 = vadd.f32 0.0, %v6525
    %v6527 = vpop.f32.mrb[0].mxu0
    %6528 = vmatprep.mubr.f32.mxu0 %v6219
    %6529 = vmatmul.mubr.f32.gmra.mrb[0].mxu0 %v6038
    %v6530 = vpop.f32.mrb[0].mxu0
    %v6531 = vadd.f32 0.0, %v6530
    %v6532 = vpop.f32.mrb[0].mxu0
    %6533 = vmatprep.mubr.f32.mxu0 %v6222
    %6534 = vmatmul.mubr.f32.gmra.mrb[0].mxu0 %v6040
    %v6535 = vpop.f32.mrb[0].mxu0
    %v6536 = vadd.f32 0.0, %v6535
    %v6537 = vpop.f32.mrb[0].mxu0
    %6538 = vmatprep.mubr.f32.mxu0 %v6225
    %6539 = vmatmul.mubr.f32.gmra.mrb[0].mxu0 %v6042
    %v6540 = vpop.f32.mrb[0].mxu0
    %v6541 = vadd.f32 0.0, %v6540
    %v6542 = vpop.f32.mrb[0].mxu0
    %6543 = vmatprep.mubr.f32.mxu0 %v6228
    %6544 = vmatmul.mubr.f32.gmra.mrb[0].mxu0 %v6044
    %v6545 = vpop.f32.mrb[0].mxu0
    %v6546 = vadd.f32 0.0, %v6545
    %v6547 = vpop.f32.mrb[0].mxu0
    %6548 = vmatprep.mubr.f32.mxu0 %v6231
    %6549 = vmatmul.mubr.f32.gmra.mrb[0].mxu0 %v6046
    %v6550 = vpop.f32.mrb[0].mxu0
    %v6551 = vadd.f32 0.0, %v6550
    %v6552 = vpop.f32.mrb[0].mxu0
    %6553 = vmatprep.mubr.f32.mxu0 %v6234
    %6554 = vmatmul.mubr.f32.gmra.mrb[0].mxu0 %v6048
    %v6555 = vpop.f32.mrb[0].mxu0
    %v6556 = vadd.f32 0.0, %v6555
    %v6557 = vpop.f32.mrb[0].mxu0
    %6558 = vmatprep.mubr.f32.mxu0 %v6237
    %6559 = vmatmul.mubr.f32.gmra.mrb[0].mxu0 %v6050
    %v6560 = vpop.f32.mrb[0].mxu0
    %v6561 = vadd.f32 0.0, %v6560
    %v6562 = vpop.f32.mrb[0].mxu0
    %6563 = vmatprep.mubr.f32.mxu0 %v6240
    %6564 = vmatmul.mubr.f32.gmra.mrb[0].mxu0 %v6052
    %v6565 = vpop.f32.mrb[0].mxu0
    %v6566 = vadd.f32 0.0, %v6565
    %v6567 = vpop.f32.mrb[0].mxu0
    %6568 = vmatprep.mubr.f32.mxu0 %v6243
    %6569 = vmatmul.mubr.f32.gmra.mrb[0].mxu0 %v6054
    %v6570 = vpop.f32.mrb[0].mxu0
    %v6571 = vadd.f32 0.0, %v6570
    %v6572 = vpop.f32.mrb[0].mxu0
    %6573 = vmatprep.mubr.f32.mxu0 %v6246
    %6574 = vmatmul.mubr.f32.gmra.mrb[0].mxu0 %v6056
    %v6575 = vpop.f32.mrb[0].mxu0
    %v6576 = vadd.f32 0.0, %v6575
    %v6577 = vpop.f32.mrb[0].mxu0
    %6578 = vmatprep.mubr.f32.mxu0 %v6249
    %6579 = vmatmul.mubr.f32.gmra.mrb[0].mxu0 %v6058
    %v6580 = vpop.f32.mrb[0].mxu0
    %v6581 = vadd.f32 0.0, %v6580
    %v6582 = vpop.f32.mrb[0].mxu0
    %6583 = vmatprep.mubr.f32.mxu0 %v6252
    %6584 = vmatmul.mubr.f32.gmra.mrb[0].mxu0 %v6060
    %v6585 = vpop.f32.mrb[0].mxu0
    %v6586 = vadd.f32 0.0, %v6585
    %v6587 = vpop.f32.mrb[0].mxu0
    %6588 = vmatprep.mubr.f32.mxu0 %v6255
    %6589 = vmatmul.mubr.f32.gmra.mrb[0].mxu0 %v6062
    %v6590 = vpop.f32.mrb[0].mxu0
    %v6591 = vadd.f32 0.0, %v6590
    %v6592 = vpop.f32.mrb[0].mxu0
    %6593 = vmatprep.mubr.f32.mxu0 %v6258
    %6594 = vmatmul.mubr.f32.gmra.mrb[0].mxu0 %v6064
    %v6595 = vpop.f32.mrb[0].mxu0
    %v6596 = vadd.f32 0.0, %v6595
    %v6597 = vpop.f32.mrb[0].mxu0
    %6598 = vmatprep.mubr.f32.mxu0 %v6261
    %6599 = vmatmul.mubr.f32.gmra.mrb[0].mxu0 %v6066
    %v6600 = vpop.f32.mrb[0].mxu0
    %v6601 = vadd.f32 0.0, %v6600
    %v6602 = vpop.f32.mrb[0].mxu0
    %6603 = vmatprep.mubr.f32.mxu0 %v6264
    %6604 = vmatmul.mubr.f32.gmra.mrb[0].mxu0 %v6068
    %v6605 = vpop.f32.mrb[0].mxu0
    %v6606 = vadd.f32 0.0, %v6605
    %v6607 = vpop.f32.mrb[0].mxu0
    %6608 = vmatprep.mubr.f32.mxu0 %v6267
    %6609 = vmatmul.mubr.f32.gmra.mrb[0].mxu0 %v6070
    %v6610 = vpop.f32.mrb[0].mxu0
    %v6611 = vadd.f32 0.0, %v6610
    %v6612 = vpop.f32.mrb[0].mxu0
    %6613 = vmatprep.mubr.f32.mxu0 %v6270
    %6614 = vmatmul.mubr.f32.gmra.mrb[0].mxu0 %v6072
    %v6615 = vpop.f32.mrb[0].mxu0
    %v6616 = vadd.f32 0.0, %v6615
    %v6617 = vpop.f32.mrb[0].mxu0
    %6618 = vmatprep.mubr.f32.mxu0 %v6273
    %6619 = vmatmul.mubr.f32.gmra.mrb[0].mxu0 %v6074
    %v6620 = vpop.f32.mrb[0].mxu0
    %v6621 = vadd.f32 0.0, %v6620
    %v6622 = vpop.f32.mrb[0].mxu0
    %6623 = vmatprep.mubr.f32.mxu0 %v6276
    %6624 = vmatmul.mubr.f32.gmra.mrb[0].mxu0 %v6076
    %v6625 = vpop.f32.mrb[0].mxu0
    %v6626 = vadd.f32 0.0, %v6625
    %v6627 = vpop.f32.mrb[0].mxu0
    %6628 = vmatprep.mubr.f32.mxu0 %v6279
    %6629 = vmatmul.mubr.f32.gmra.mrb[0].mxu0 %v6078
    %v6630 = vpop.f32.mrb[0].mxu0
    %v6631 = vadd.f32 0.0, %v6630
    %v6632 = vpop.f32.mrb[0].mxu0
    %6633 = vmatprep.mubr.f32.mxu0 %v6282
    %6634 = vmatmul.mubr.f32.gmra.mrb[0].mxu0 %v6080
    %v6635 = vpop.f32.mrb[0].mxu0
    %v6636 = vadd.f32 0.0, %v6635
    %v6637 = vpop.f32.mrb[0].mxu0
    %6638 = vmatprep.mubr.f32.mxu0 %v6285
    %6639 = vmatmul.mubr.f32.gmra.mrb[0].mxu0 %v6082
    %v6640 = vpop.f32.mrb[0].mxu0
    %v6641 = vadd.f32 0.0, %v6640
    %v6642 = vpop.f32.mrb[0].mxu0
    %6643 = vmatprep.mubr.f32.mxu0 %v6288
    %6644 = vmatmul.mubr.f32.gmra.mrb[0].mxu0 %v6084
    %v6645 = vpop.f32.mrb[0].mxu0
    %v6646 = vadd.f32 0.0, %v6645
    %v6647 = vpop.f32.mrb[0].mxu0
    %6648 = vmatprep.mubr.f32.mxu0 %v6291
    %6649 = vmatmul.mubr.f32.gmra.mrb[0].mxu0 %v6086
    %v6650 = vpop.f32.mrb[0].mxu0
    %v6651 = vadd.f32 0.0, %v6650
    %v6652 = vpop.f32.mrb[0].mxu0
    %6653 = vmatprep.mubr.f32.mxu0 %v6294
    %6654 = vmatmul.mubr.f32.gmra.mrb[0].mxu0 %v6088
    %v6655 = vpop.f32.mrb[0].mxu0
    %v6656 = vadd.f32 0.0, %v6655
    %v6657 = vpop.f32.mrb[0].mxu0
    %6658 = vmatprep.mubr.f32.mxu0 %v6297
    %6659 = vmatmul.mubr.f32.gmra.mrb[0].mxu0 %v6090
    %v6660 = vpop.f32.mrb[0].mxu0
    %v6661 = vadd.f32 0.0, %v6660
    %v6662 = vpop.f32.mrb[0].mxu0
    %6663 = vmatprep.mubr.f32.mxu0 %v6300
    %6664 = vmatmul.mubr.f32.gmra.mrb[0].mxu0 %v6092
    %v6665 = vpop.f32.mrb[0].mxu0
    %v6666 = vadd.f32 0.0, %v6665
    %v6667 = vpop.f32.mrb[0].mxu0
    %6668 = vmatprep.mubr.f32.mxu0 %v6303
    %6669 = vmatmul.mubr.f32.gmra.mrb[0].mxu0 %v6094
    %v6670 = vpop.f32.mrb[0].mxu0
    %v6671 = vadd.f32 0.0, %v6670
    %v6672 = vpop.f32.mrb[0].mxu0
    %6673 = vmatprep.mubr.f32.mxu0 %v6306
    %6674 = vmatmul.mubr.f32.gmra.mrb[0].mxu0 %v6096
    %v6675 = vpop.f32.mrb[0].mxu0
    %v6676 = vadd.f32 0.0, %v6675
    %v6677 = vpop.f32.mrb[0].mxu0
    %6678 = vmatprep.mubr.f32.mxu0 %v6309
    %6679 = vmatmul.mubr.f32.gmra.mrb[0].mxu0 %v6098
    %v6680 = vpop.f32.mrb[0].mxu0
    %v6681 = vadd.f32 0.0, %v6680
    %v6682 = vpop.f32.mrb[0].mxu0
    %6683 = vmatprep.mubr.f32.mxu0 %v6312
    %6684 = vmatmul.mubr.f32.gmra.mrb[0].mxu0 %v6100
    %v6685 = vpop.f32.mrb[0].mxu0
    %v6686 = vadd.f32 0.0, %v6685
    %v6687 = vpop.f32.mrb[0].mxu0
    %6688 = vmatprep.mubr.f32.mxu0 %v6315
    %6689 = vmatmul.mubr.f32.gmra.mrb[0].mxu0 %v6102
    %v6690 = vpop.f32.mrb[0].mxu0
    %v6691 = vadd.f32 0.0, %v6690
    %v6692 = vpop.f32.mrb[0].mxu0
    %6693 = vmatprep.mubr.f32.mxu0 %v6318
    %6694 = vmatmul.mubr.f32.gmra.mrb[0].mxu0 %v6104
    %v6695 = vpop.f32.mrb[0].mxu0
    %v6696 = vadd.f32 0.0, %v6695
    %v6697 = vpop.f32.mrb[0].mxu0
    %6698 = vmatprep.mubr.f32.mxu0 %v6321
    %6699 = vmatmul.mubr.f32.gmra.mrb[0].mxu0 %v6106
    %v6700 = vpop.f32.mrb[0].mxu0
    %v6701 = vadd.f32 0.0, %v6700
    %v6702 = vpop.f32.mrb[0].mxu0
    %6703 = vmatprep.mubr.f32.mxu0 %v6324
    %6704 = vmatmul.mubr.f32.gmra.mrb[0].mxu0 %v6108
    %v6705 = vpop.f32.mrb[0].mxu0
    %v6706 = vadd.f32 0.0, %v6705
    %v6707 = vpop.f32.mrb[0].mxu0
    %6708 = vmatprep.mubr.f32.mxu0 %v6327
    %6709 = vmatmul.mubr.f32.gmra.mrb[0].mxu0 %v6110
    %v6710 = vpop.f32.mrb[0].mxu0
    %v6711 = vadd.f32 0.0, %v6710
    %v6712 = vpop.f32.mrb[0].mxu0
    %6713 = vdwg.mxu0
    %v6714 = vadd.f32 %v5665, %v6396
    %v6715 = vadd.f32 %v5670, %v6401
    %v6716 = vadd.f32 %v5675, %v6406
    %v6717 = vadd.f32 %v5680, %v6411
    %v6718 = vadd.f32 %v5685, %v6416
    %v6719 = vadd.f32 %v5690, %v6421
    %v6720 = vadd.f32 %v5695, %v6426
    %v6721 = vadd.f32 %v5700, %v6431
    %v6722 = vadd.f32 %v5705, %v6436
    %v6723 = vadd.f32 %v5710, %v6441
    %v6724 = vadd.f32 %v5715, %v6446
    %v6725 = vadd.f32 %v5720, %v6451
    %v6726 = vadd.f32 %v5725, %v6456
    %v6727 = vadd.f32 %v5730, %v6461
    %v6728 = vadd.f32 %v5735, %v6466
    %v6729 = vadd.f32 %v5740, %v6471
    %v6730 = vadd.f32 %v5745, %v6476
    %v6731 = vadd.f32 %v5750, %v6481
    %v6732 = vadd.f32 %v5755, %v6486
    %v6733 = vadd.f32 %v5760, %v6491
    %v6734 = vadd.f32 %v5765, %v6496
    %v6735 = vadd.f32 %v5770, %v6501
    %v6736 = vadd.f32 %v5775, %v6506
    %v6737 = vadd.f32 %v5780, %v6511
    %v6738 = vadd.f32 %v5785, %v6516
    %v6739 = vadd.f32 %v5790, %v6521
    %v6740 = vadd.f32 %v5795, %v6526
    %v6741 = vadd.f32 %v5800, %v6531
    %v6742 = vadd.f32 %v5805, %v6536
    %v6743 = vadd.f32 %v5810, %v6541
    %v6744 = vadd.f32 %v5815, %v6546
    %v6745 = vadd.f32 %v5820, %v6551
    %v6746 = vadd.f32 %v5825, %v6556
    %v6747 = vadd.f32 %v5830, %v6561
    %v6748 = vadd.f32 %v5835, %v6566
    %v6749 = vadd.f32 %v5840, %v6571
    %v6750 = vadd.f32 %v5845, %v6576
    %v6751 = vadd.f32 %v5850, %v6581
    %v6752 = vadd.f32 %v5855, %v6586
    %v6753 = vadd.f32 %v5860, %v6591
    %v6754 = vadd.f32 %v5865, %v6596
    %v6755 = vadd.f32 %v5870, %v6601
    %v6756 = vadd.f32 %v5875, %v6606
    %v6757 = vadd.f32 %v5880, %v6611
    %v6758 = vadd.f32 %v5885, %v6616
    %v6759 = vadd.f32 %v5890, %v6621
    %v6760 = vadd.f32 %v5895, %v6626
    %v6761 = vadd.f32 %v5900, %v6631
    %v6762 = vadd.f32 %v5905, %v6636
    %v6763 = vadd.f32 %v5910, %v6641
    %v6764 = vadd.f32 %v5915, %v6646
    %v6765 = vadd.f32 %v5920, %v6651
    %v6766 = vadd.f32 %v5925, %v6656
    %v6767 = vadd.f32 %v5930, %v6661
    %v6768 = vadd.f32 %v5935, %v6666
    %v6769 = vadd.f32 %v5940, %v6671
    %v6770 = vadd.f32 %v5945, %v6676
    %v6771 = vadd.f32 %v5950, %v6681
    %v6772 = vadd.f32 %v5955, %v6686
    %v6773 = vadd.f32 %v5960, %v6691
    %v6774 = vadd.f32 %v5965, %v6696
    %v6775 = vadd.f32 %v5970, %v6701
    %v6776 = vadd.f32 %v5975, %v6706
    %v6777 = vadd.f32 %v5980, %v6711
    %v6778 = vld [vmem:[%s5] sm:$0x1]
    %v6780 = vlaneseq
    %v6781 = vshrl.u32 %v6780, 7
    %v6782 = vsub.s32 0, %v6781
    %v6783 = vrot.slane %v6778, %v6782
    %v6785 = vmul.f32 %v6714, %v6783
    %v6786 = vmul.f32 %v6715, %v6783
    %v6787 = vmul.f32 %v6716, %v6783
    %v6788 = vmul.f32 %v6717, %v6783
    %v6789 = vmul.f32 %v6718, %v6783
    %v6790 = vmul.f32 %v6719, %v6783
    %v6791 = vmul.f32 %v6720, %v6783
    %v6792 = vmul.f32 %v6721, %v6783
    %v6793 = vmul.f32 %v6722, %v6783
    %v6794 = vmul.f32 %v6723, %v6783
    %v6795 = vmul.f32 %v6724, %v6783
    %v6796 = vmul.f32 %v6725, %v6783
    %v6797 = vmul.f32 %v6726, %v6783
    %v6798 = vmul.f32 %v6727, %v6783
    %v6799 = vmul.f32 %v6728, %v6783
    %v6800 = vmul.f32 %v6729, %v6783
    %v6801 = vmul.f32 %v6730, %v6783
    %v6802 = vmul.f32 %v6731, %v6783
    %v6803 = vmul.f32 %v6732, %v6783
    %v6804 = vmul.f32 %v6733, %v6783
    %v6805 = vmul.f32 %v6734, %v6783
    %v6806 = vmul.f32 %v6735, %v6783
    %v6807 = vmul.f32 %v6736, %v6783
    %v6808 = vmul.f32 %v6737, %v6783
    %v6809 = vmul.f32 %v6738, %v6783
    %v6810 = vmul.f32 %v6739, %v6783
    %v6811 = vmul.f32 %v6740, %v6783
    %v6812 = vmul.f32 %v6741, %v6783
    %v6813 = vmul.f32 %v6742, %v6783
    %v6814 = vmul.f32 %v6743, %v6783
    %v6815 = vmul.f32 %v6744, %v6783
    %v6816 = vmul.f32 %v6745, %v6783
    %v6817 = vmul.f32 %v6746, %v6783
    %v6818 = vmul.f32 %v6747, %v6783
    %v6819 = vmul.f32 %v6748, %v6783
    %v6820 = vmul.f32 %v6749, %v6783
    %v6821 = vmul.f32 %v6750, %v6783
    %v6822 = vmul.f32 %v6751, %v6783
    %v6823 = vmul.f32 %v6752, %v6783
    %v6824 = vmul.f32 %v6753, %v6783
    %v6825 = vmul.f32 %v6754, %v6783
    %v6826 = vmul.f32 %v6755, %v6783
    %v6827 = vmul.f32 %v6756, %v6783
    %v6828 = vmul.f32 %v6757, %v6783
    %v6829 = vmul.f32 %v6758, %v6783
    %v6830 = vmul.f32 %v6759, %v6783
    %v6831 = vmul.f32 %v6760, %v6783
    %v6832 = vmul.f32 %v6761, %v6783
    %v6833 = vmul.f32 %v6762, %v6783
    %v6834 = vmul.f32 %v6763, %v6783
    %v6835 = vmul.f32 %v6764, %v6783
    %v6836 = vmul.f32 %v6765, %v6783
    %v6837 = vmul.f32 %v6766, %v6783
    %v6838 = vmul.f32 %v6767, %v6783
    %v6839 = vmul.f32 %v6768, %v6783
    %v6840 = vmul.f32 %v6769, %v6783
    %v6841 = vmul.f32 %v6770, %v6783
    %v6842 = vmul.f32 %v6771, %v6783
    %v6843 = vmul.f32 %v6772, %v6783
    %v6844 = vmul.f32 %v6773, %v6783
    %v6845 = vmul.f32 %v6774, %v6783
    %v6846 = vmul.f32 %v6775, %v6783
    %v6847 = vmul.f32 %v6776, %v6783
    %v6848 = vmul.f32 %v6777, %v6783
    %v6849 = vld [vmem:[%s6] sm:$0x1]
    %v6851 = vlaneseq
    %v6852 = vshrl.u32 %v6851, 7
    %v6853 = vsub.s32 0, %v6852
    %v6854 = vrot.slane %v6849, %v6853
    %v6856 = vadd.f32 %v6785, %v6854
    %v6857 = vadd.f32 %v6786, %v6854
    %v6858 = vadd.f32 %v6787, %v6854
    %v6859 = vadd.f32 %v6788, %v6854
    %v6860 = vadd.f32 %v6789, %v6854
    %v6861 = vadd.f32 %v6790, %v6854
    %v6862 = vadd.f32 %v6791, %v6854
    %v6863 = vadd.f32 %v6792, %v6854
    %v6864 = vadd.f32 %v6793, %v6854
    %v6865 = vadd.f32 %v6794, %v6854
    %v6866 = vadd.f32 %v6795, %v6854
    %v6867 = vadd.f32 %v6796, %v6854
    %v6868 = vadd.f32 %v6797, %v6854
    %v6869 = vadd.f32 %v6798, %v6854
    %v6870 = vadd.f32 %v6799, %v6854
    %v6871 = vadd.f32 %v6800, %v6854
    %v6872 = vadd.f32 %v6801, %v6854
    %v6873 = vadd.f32 %v6802, %v6854
    %v6874 = vadd.f32 %v6803, %v6854
    %v6875 = vadd.f32 %v6804, %v6854
    %v6876 = vadd.f32 %v6805, %v6854
    %v6877 = vadd.f32 %v6806, %v6854
    %v6878 = vadd.f32 %v6807, %v6854
    %v6879 = vadd.f32 %v6808, %v6854
    %v6880 = vadd.f32 %v6809, %v6854
    %v6881 = vadd.f32 %v6810, %v6854
    %v6882 = vadd.f32 %v6811, %v6854
    %v6883 = vadd.f32 %v6812, %v6854
    %v6884 = vadd.f32 %v6813, %v6854
    %v6885 = vadd.f32 %v6814, %v6854
    %v6886 = vadd.f32 %v6815, %v6854
    %v6887 = vadd.f32 %v6816, %v6854
    %v6888 = vadd.f32 %v6817, %v6854
    %v6889 = vadd.f32 %v6818, %v6854
    %v6890 = vadd.f32 %v6819, %v6854
    %v6891 = vadd.f32 %v6820, %v6854
    %v6892 = vadd.f32 %v6821, %v6854
    %v6893 = vadd.f32 %v6822, %v6854
    %v6894 = vadd.f32 %v6823, %v6854
    %v6895 = vadd.f32 %v6824, %v6854
    %v6896 = vadd.f32 %v6825, %v6854
    %v6897 = vadd.f32 %v6826, %v6854
    %v6898 = vadd.f32 %v6827, %v6854
    %v6899 = vadd.f32 %v6828, %v6854
    %v6900 = vadd.f32 %v6829, %v6854
    %v6901 = vadd.f32 %v6830, %v6854
    %v6902 = vadd.f32 %v6831, %v6854
    %v6903 = vadd.f32 %v6832, %v6854
    %v6904 = vadd.f32 %v6833, %v6854
    %v6905 = vadd.f32 %v6834, %v6854
    %v6906 = vadd.f32 %v6835, %v6854
    %v6907 = vadd.f32 %v6836, %v6854
    %v6908 = vadd.f32 %v6837, %v6854
    %v6909 = vadd.f32 %v6838, %v6854
    %v6910 = vadd.f32 %v6839, %v6854
    %v6911 = vadd.f32 %v6840, %v6854
    %v6912 = vadd.f32 %v6841, %v6854
    %v6913 = vadd.f32 %v6842, %v6854
    %v6914 = vadd.f32 %v6843, %v6854
    %v6915 = vadd.f32 %v6844, %v6854
    %v6916 = vadd.f32 %v6845, %v6854
    %v6917 = vadd.f32 %v6846, %v6854
    %v6918 = vadd.f32 %v6847, %v6854
    %v6919 = vadd.f32 %v6848, %v6854
    %v6920 = vmax.f32 %v6856, 0.0
    %v6921 = vmax.f32 %v6857, 0.0
    %v6922 = vmax.f32 %v6858, 0.0
    %v6923 = vmax.f32 %v6859, 0.0
    %v6924 = vmax.f32 %v6860, 0.0
    %v6925 = vmax.f32 %v6861, 0.0
    %v6926 = vmax.f32 %v6862, 0.0
    %v6927 = vmax.f32 %v6863, 0.0
    %v6928 = vmax.f32 %v6864, 0.0
    %v6929 = vmax.f32 %v6865, 0.0
    %v6930 = vmax.f32 %v6866, 0.0
    %v6931 = vmax.f32 %v6867, 0.0
    %v6932 = vmax.f32 %v6868, 0.0
    %v6933 = vmax.f32 %v6869, 0.0
    %v6934 = vmax.f32 %v6870, 0.0
    %v6935 = vmax.f32 %v6871, 0.0
    %v6936 = vmax.f32 %v6872, 0.0
    %v6937 = vmax.f32 %v6873, 0.0
    %v6938 = vmax.f32 %v6874, 0.0
    %v6939 = vmax.f32 %v6875, 0.0
    %v6940 = vmax.f32 %v6876, 0.0
    %v6941 = vmax.f32 %v6877, 0.0
    %v6942 = vmax.f32 %v6878, 0.0
    %v6943 = vmax.f32 %v6879, 0.0
    %v6944 = vmax.f32 %v6880, 0.0
    %v6945 = vmax.f32 %v6881, 0.0
    %v6946 = vmax.f32 %v6882, 0.0
    %v6947 = vmax.f32 %v6883, 0.0
    %v6948 = vmax.f32 %v6884, 0.0
    %v6949 = vmax.f32 %v6885, 0.0
    %v6950 = vmax.f32 %v6886, 0.0
    %v6951 = vmax.f32 %v6887, 0.0
    %v6952 = vmax.f32 %v6888, 0.0
    %v6953 = vmax.f32 %v6889, 0.0
    %v6954 = vmax.f32 %v6890, 0.0
    %v6955 = vmax.f32 %v6891, 0.0
    %v6956 = vmax.f32 %v6892, 0.0
    %v6957 = vmax.f32 %v6893, 0.0
    %v6958 = vmax.f32 %v6894, 0.0
    %v6959 = vmax.f32 %v6895, 0.0
    %v6960 = vmax.f32 %v6896, 0.0
    %v6961 = vmax.f32 %v6897, 0.0
    %v6962 = vmax.f32 %v6898, 0.0
    %v6963 = vmax.f32 %v6899, 0.0
    %v6964 = vmax.f32 %v6900, 0.0
    %v6965 = vmax.f32 %v6901, 0.0
    %v6966 = vmax.f32 %v6902, 0.0
    %v6967 = vmax.f32 %v6903, 0.0
    %v6968 = vmax.f32 %v6904, 0.0
    %v6969 = vmax.f32 %v6905, 0.0
    %v6970 = vmax.f32 %v6906, 0.0
    %v6971 = vmax.f32 %v6907, 0.0
    %v6972 = vmax.f32 %v6908, 0.0
    %v6973 = vmax.f32 %v6909, 0.0
    %v6974 = vmax.f32 %v6910, 0.0
    %v6975 = vmax.f32 %v6911, 0.0
    %v6976 = vmax.f32 %v6912, 0.0
    %v6977 = vmax.f32 %v6913, 0.0
    %v6978 = vmax.f32 %v6914, 0.0
    %v6979 = vmax.f32 %v6915, 0.0
    %v6980 = vmax.f32 %v6916, 0.0
    %v6981 = vmax.f32 %v6917, 0.0
    %v6982 = vmax.f32 %v6918, 0.0
    %v6983 = vmax.f32 %v6919, 0.0
    %vm6984 = vcmask 785408
    %6985 = vst.msk [vmem:[#allocation4 + $0x8] sm:$0xff] %vm6984, 0.0
    %6986 = vst.msk [vmem:[#allocation4 + $0x10] sm:$0xff] %vm6984, 0.0
    %6987 = vst.msk [vmem:[#allocation4 + $0x248] sm:$0xff] %vm6984, 0.0
    %6988 = vst.msk [vmem:[#allocation4 + $0x250] sm:$0xff] %vm6984, 0.0
    %s6989 = scalar_lea.vmem [#allocation4], 544
    %6990 = vst.msk [vmem:[%s6989 + $0x8] sm:$0xff] %vm6984, 0.0
    %6991 = vst.msk [vmem:[%s6989 + $0x10] sm:$0xff] %vm6984, 0.0
    %6992 = vst.msk [vmem:[%s6989 + $0x248] sm:$0xff] %vm6984, 0.0
    %6993 = vst.msk [vmem:[%s6989 + $0x250] sm:$0xff] %vm6984, 0.0
    %s6994 = scalar_lea.vmem [#allocation4], 32
    %vm6995 = vcmask 253952
    %6996 = vst.msk [vmem:[%s6994 + $0x8] sm:$0x1] %vm6995, 0.0
    %6997 = vst.msk [vmem:[%s6994 + $0x28] sm:$0x1] %vm6995, 0.0
    %6998 = vst.msk [vmem:[%s6994 + $0x48] sm:$0x1] %vm6995, 0.0
    %6999 = vst.msk [vmem:[%s6994 + $0x68] sm:$0x1] %vm6995, 0.0
    %7000 = vst.msk [vmem:[%s6994 + $0x88] sm:$0x1] %vm6995, 0.0
    %7001 = vst.msk [vmem:[%s6994 + $0xa8] sm:$0x1] %vm6995, 0.0
    %7002 = vst.msk [vmem:[%s6994 + $0xc8] sm:$0x1] %vm6995, 0.0
    %7003 = vst.msk [vmem:[%s6994 + $0xe8] sm:$0x1] %vm6995, 0.0
    %7004 = vst.msk [vmem:[%s6994 + $0x108] sm:$0x1] %vm6995, 0.0
    %7005 = vst.msk [vmem:[%s6994 + $0x128] sm:$0x1] %vm6995, 0.0
    %7006 = vst.msk [vmem:[%s6994 + $0x148] sm:$0x1] %vm6995, 0.0
    %7007 = vst.msk [vmem:[%s6994 + $0x168] sm:$0x1] %vm6995, 0.0
    %7008 = vst.msk [vmem:[%s6994 + $0x188] sm:$0x1] %vm6995, 0.0
    %7009 = vst.msk [vmem:[%s6994 + $0x1a8] sm:$0x1] %vm6995, 0.0
    %7010 = vst.msk [vmem:[%s6994 + $0x1c8] sm:$0x1] %vm6995, 0.0
    %7011 = vst.msk [vmem:[%s6994 + $0x1e8] sm:$0x1] %vm6995, 0.0
    %7012 = vst.msk [vmem:[%s6994 + $0x248] sm:$0x1] %vm6995, 0.0
    %7013 = vst.msk [vmem:[%s6994 + $0x268] sm:$0x1] %vm6995, 0.0
    %7014 = vst.msk [vmem:[%s6994 + $0x288] sm:$0x1] %vm6995, 0.0
    %7015 = vst.msk [vmem:[%s6994 + $0x2a8] sm:$0x1] %vm6995, 0.0
    %7016 = vst.msk [vmem:[%s6994 + $0x2c8] sm:$0x1] %vm6995, 0.0
    %7017 = vst.msk [vmem:[%s6994 + $0x2e8] sm:$0x1] %vm6995, 0.0
    %7018 = vst.msk [vmem:[%s6994 + $0x308] sm:$0x1] %vm6995, 0.0
    %7019 = vst.msk [vmem:[%s6994 + $0x328] sm:$0x1] %vm6995, 0.0
    %7020 = vst.msk [vmem:[%s6994 + $0x348] sm:$0x1] %vm6995, 0.0
    %7021 = vst.msk [vmem:[%s6994 + $0x368] sm:$0x1] %vm6995, 0.0
    %7022 = vst.msk [vmem:[%s6994 + $0x388] sm:$0x1] %vm6995, 0.0
    %7023 = vst.msk [vmem:[%s6994 + $0x3a8] sm:$0x1] %vm6995, 0.0
    %7024 = vst.msk [vmem:[%s6994 + $0x3c8] sm:$0x1] %vm6995, 0.0
    %7025 = vst.msk [vmem:[%s6994 + $0x3e8] sm:$0x1] %vm6995, 0.0
    %7026 = vst.msk [vmem:[%s6994 + $0x408] sm:$0x1] %vm6995, 0.0
    %7027 = vst.msk [vmem:[%s6994 + $0x428] sm:$0x1] %vm6995, 0.0
    %vm7028 = vcmask 778752
    %7029 = vst.msk [vmem:[%s6994 + $0x17] sm:$0x1] %vm7028, 0.0
    %7030 = vst.msk [vmem:[%s6994 + $0x37] sm:$0x1] %vm7028, 0.0
    %7031 = vst.msk [vmem:[%s6994 + $0x57] sm:$0x1] %vm7028, 0.0
    %7032 = vst.msk [vmem:[%s6994 + $0x77] sm:$0x1] %vm7028, 0.0
    %7033 = vst.msk [vmem:[%s6994 + $0x97] sm:$0x1] %vm7028, 0.0
    %7034 = vst.msk [vmem:[%s6994 + $0xb7] sm:$0x1] %vm7028, 0.0
    %7035 = vst.msk [vmem:[%s6994 + $0xd7] sm:$0x1] %vm7028, 0.0
    %7036 = vst.msk [vmem:[%s6994 + $0xf7] sm:$0x1] %vm7028, 0.0
    %7037 = vst.msk [vmem:[%s6994 + $0x117] sm:$0x1] %vm7028, 0.0
    %7038 = vst.msk [vmem:[%s6994 + $0x137] sm:$0x1] %vm7028, 0.0
    %7039 = vst.msk [vmem:[%s6994 + $0x157] sm:$0x1] %vm7028, 0.0
    %7040 = vst.msk [vmem:[%s6994 + $0x177] sm:$0x1] %vm7028, 0.0
    %7041 = vst.msk [vmem:[%s6994 + $0x197] sm:$0x1] %vm7028, 0.0
    %7042 = vst.msk [vmem:[%s6994 + $0x1b7] sm:$0x1] %vm7028, 0.0
    %7043 = vst.msk [vmem:[%s6994 + $0x1d7] sm:$0x1] %vm7028, 0.0
    %7044 = vst.msk [vmem:[%s6994 + $0x1f7] sm:$0x1] %vm7028, 0.0
    %7045 = vst.msk [vmem:[%s6994 + $0x257] sm:$0x1] %vm7028, 0.0
    %7046 = vst.msk [vmem:[%s6994 + $0x277] sm:$0x1] %vm7028, 0.0
    %7047 = vst.msk [vmem:[%s6994 + $0x297] sm:$0x1] %vm7028, 0.0
    %7048 = vst.msk [vmem:[%s6994 + $0x2b7] sm:$0x1] %vm7028, 0.0
    %7049 = vst.msk [vmem:[%s6994 + $0x2d7] sm:$0x1] %vm7028, 0.0
    %7050 = vst.msk [vmem:[%s6994 + $0x2f7] sm:$0x1] %vm7028, 0.0
    %7051 = vst.msk [vmem:[%s6994 + $0x317] sm:$0x1] %vm7028, 0.0
    %7052 = vst.msk [vmem:[%s6994 + $0x337] sm:$0x1] %vm7028, 0.0
    %7053 = vst.msk [vmem:[%s6994 + $0x357] sm:$0x1] %vm7028, 0.0
    %7054 = vst.msk [vmem:[%s6994 + $0x377] sm:$0x1] %vm7028, 0.0
    %7055 = vst.msk [vmem:[%s6994 + $0x397] sm:$0x1] %vm7028, 0.0
    %7056 = vst.msk [vmem:[%s6994 + $0x3b7] sm:$0x1] %vm7028, 0.0
    %7057 = vst.msk [vmem:[%s6994 + $0x3d7] sm:$0x1] %vm7028, 0.0
    %7058 = vst.msk [vmem:[%s6994 + $0x3f7] sm:$0x1] %vm7028, 0.0
    %7059 = vst.msk [vmem:[%s6994 + $0x417] sm:$0x1] %vm7028, 0.0
    %7060 = vst.msk [vmem:[%s6994 + $0x437] sm:$0x1] %vm7028, 0.0
    %vm7061 = vcmask 261120
    %7062 = vst.msk [vmem:[%s6994 + $0x9] sm:$0xff] %vm7061, %v6920
    %7063 = vst.msk [vmem:[%s6994 + $0x11] sm:$0xff] %vm7061, %v6921
    %7064 = vst.msk [vmem:[%s6994 + $0x29] sm:$0xff] %vm7061, %v6922
    %7065 = vst.msk [vmem:[%s6994 + $0x31] sm:$0xff] %vm7061, %v6923
    %7066 = vst.msk [vmem:[%s6994 + $0x49] sm:$0xff] %vm7061, %v6924
    %7067 = vst.msk [vmem:[%s6994 + $0x51] sm:$0xff] %vm7061, %v6925
    %7068 = vst.msk [vmem:[%s6994 + $0x69] sm:$0xff] %vm7061, %v6926
    %7069 = vst.msk [vmem:[%s6994 + $0x71] sm:$0xff] %vm7061, %v6927
    %7070 = vst.msk [vmem:[%s6994 + $0x89] sm:$0xff] %vm7061, %v6928
    %7071 = vst.msk [vmem:[%s6994 + $0x91] sm:$0xff] %vm7061, %v6929
    %7072 = vst.msk [vmem:[%s6994 + $0xa9] sm:$0xff] %vm7061, %v6930
    %7073 = vst.msk [vmem:[%s6994 + $0xb1] sm:$0xff] %vm7061, %v6931
    %7074 = vst.msk [vmem:[%s6994 + $0xc9] sm:$0xff] %vm7061, %v6932
    %7075 = vst.msk [vmem:[%s6994 + $0xd1] sm:$0xff] %vm7061, %v6933
    %7076 = vst.msk [vmem:[%s6994 + $0xe9] sm:$0xff] %vm7061, %v6934
    %7077 = vst.msk [vmem:[%s6994 + $0xf1] sm:$0xff] %vm7061, %v6935
    %7078 = vst.msk [vmem:[%s6994 + $0x109] sm:$0xff] %vm7061, %v6936
    %7079 = vst.msk [vmem:[%s6994 + $0x111] sm:$0xff] %vm7061, %v6937
    %7080 = vst.msk [vmem:[%s6994 + $0x129] sm:$0xff] %vm7061, %v6938
    %7081 = vst.msk [vmem:[%s6994 + $0x131] sm:$0xff] %vm7061, %v6939
    %7082 = vst.msk [vmem:[%s6994 + $0x149] sm:$0xff] %vm7061, %v6940
    %7083 = vst.msk [vmem:[%s6994 + $0x151] sm:$0xff] %vm7061, %v6941
    %7084 = vst.msk [vmem:[%s6994 + $0x169] sm:$0xff] %vm7061, %v6942
    %7085 = vst.msk [vmem:[%s6994 + $0x171] sm:$0xff] %vm7061, %v6943
    %7086 = vst.msk [vmem:[%s6994 + $0x189] sm:$0xff] %vm7061, %v6944
    %7087 = vst.msk [vmem:[%s6994 + $0x191] sm:$0xff] %vm7061, %v6945
    %7088 = vst.msk [vmem:[%s6994 + $0x1a9] sm:$0xff] %vm7061, %v6946
    %7089 = vst.msk [vmem:[%s6994 + $0x1b1] sm:$0xff] %vm7061, %v6947
    %7090 = vst.msk [vmem:[%s6994 + $0x1c9] sm:$0xff] %vm7061, %v6948
    %7091 = vst.msk [vmem:[%s6994 + $0x1d1] sm:$0xff] %vm7061, %v6949
    %7092 = vst.msk [vmem:[%s6994 + $0x1e9] sm:$0xff] %vm7061, %v6950
    %7093 = vst.msk [vmem:[%s6994 + $0x1f1] sm:$0xff] %vm7061, %v6951
    %7094 = vst.msk [vmem:[%s6994 + $0x249] sm:$0xff] %vm7061, %v6952
    %7095 = vst.msk [vmem:[%s6994 + $0x251] sm:$0xff] %vm7061, %v6953
    %7096 = vst.msk [vmem:[%s6994 + $0x269] sm:$0xff] %vm7061, %v6954
    %7097 = vst.msk [vmem:[%s6994 + $0x271] sm:$0xff] %vm7061, %v6955
    %7098 = vst.msk [vmem:[%s6994 + $0x289] sm:$0xff] %vm7061, %v6956
    %7099 = vst.msk [vmem:[%s6994 + $0x291] sm:$0xff] %vm7061, %v6957
    %7100 = vst.msk [vmem:[%s6994 + $0x2a9] sm:$0xff] %vm7061, %v6958
    %7101 = vst.msk [vmem:[%s6994 + $0x2b1] sm:$0xff] %vm7061, %v6959
    %7102 = vst.msk [vmem:[%s6994 + $0x2c9] sm:$0xff] %vm7061, %v6960
    %7103 = vst.msk [vmem:[%s6994 + $0x2d1] sm:$0xff] %vm7061, %v6961
    %7104 = vst.msk [vmem:[%s6994 + $0x2e9] sm:$0xff] %vm7061, %v6962
    %7105 = vst.msk [vmem:[%s6994 + $0x2f1] sm:$0xff] %vm7061, %v6963
    %7106 = vst.msk [vmem:[%s6994 + $0x309] sm:$0xff] %vm7061, %v6964
    %7107 = vst.msk [vmem:[%s6994 + $0x311] sm:$0xff] %vm7061, %v6965
    %7108 = vst.msk [vmem:[%s6994 + $0x329] sm:$0xff] %vm7061, %v6966
    %7109 = vst.msk [vmem:[%s6994 + $0x331] sm:$0xff] %vm7061, %v6967
    %7110 = vst.msk [vmem:[%s6994 + $0x349] sm:$0xff] %vm7061, %v6968
    %7111 = vst.msk [vmem:[%s6994 + $0x351] sm:$0xff] %vm7061, %v6969
    %7112 = vst.msk [vmem:[%s6994 + $0x369] sm:$0xff] %vm7061, %v6970
    %7113 = vst.msk [vmem:[%s6994 + $0x371] sm:$0xff] %vm7061, %v6971
    %7114 = vst.msk [vmem:[%s6994 + $0x389] sm:$0xff] %vm7061, %v6972
    %7115 = vst.msk [vmem:[%s6994 + $0x391] sm:$0xff] %vm7061, %v6973
    %7116 = vst.msk [vmem:[%s6994 + $0x3a9] sm:$0xff] %vm7061, %v6974
    %7117 = vst.msk [vmem:[%s6994 + $0x3b1] sm:$0xff] %vm7061, %v6975
    %7118 = vst.msk [vmem:[%s6994 + $0x3c9] sm:$0xff] %vm7061, %v6976
    %7119 = vst.msk [vmem:[%s6994 + $0x3d1] sm:$0xff] %vm7061, %v6977
    %7120 = vst.msk [vmem:[%s6994 + $0x3e9] sm:$0xff] %vm7061, %v6978
    %7121 = vst.msk [vmem:[%s6994 + $0x3f1] sm:$0xff] %vm7061, %v6979
    %7122 = vst.msk [vmem:[%s6994 + $0x409] sm:$0xff] %vm7061, %v6980
    %7123 = vst.msk [vmem:[%s6994 + $0x411] sm:$0xff] %vm7061, %v6981
    %7124 = vst.msk [vmem:[%s6994 + $0x429] sm:$0xff] %vm7061, %v6982
    %7125 = vst.msk [vmem:[%s6994 + $0x431] sm:$0xff] %vm7061, %v6983
    %7190 = vrot.lane.b32.xlu0 %v6920, 32
    %v7191 = vpop.permute.xlu0 %7190
    %7192 = vrot.lane.b32.xlu0 %v6921, 32
    %v7193 = vpop.permute.xlu0 %7192
    %7194 = vrot.lane.b32.xlu0 %v6922, 32
    %v7195 = vpop.permute.xlu0 %7194
    %7196 = vrot.lane.b32.xlu0 %v6923, 32
    %v7197 = vpop.permute.xlu0 %7196
    %7198 = vrot.lane.b32.xlu0 %v6924, 32
    %v7199 = vpop.permute.xlu0 %7198
    %7200 = vrot.lane.b32.xlu0 %v6925, 32
    %v7201 = vpop.permute.xlu0 %7200
    %7202 = vrot.lane.b32.xlu0 %v6926, 32
    %v7203 = vpop.permute.xlu0 %7202
    %7204 = vrot.lane.b32.xlu0 %v6927, 32
    %v7205 = vpop.permute.xlu0 %7204
    %7206 = vrot.lane.b32.xlu0 %v6928, 32
    %v7207 = vpop.permute.xlu0 %7206
    %7208 = vrot.lane.b32.xlu0 %v6929, 32
    %v7209 = vpop.permute.xlu0 %7208
    %7210 = vrot.lane.b32.xlu0 %v6930, 32
    %v7211 = vpop.permute.xlu0 %7210
    %7212 = vrot.lane.b32.xlu0 %v6931, 32
    %v7213 = vpop.permute.xlu0 %7212
    %7214 = vrot.lane.b32.xlu0 %v6932, 32
    %v7215 = vpop.permute.xlu0 %7214
    %7216 = vrot.lane.b32.xlu0 %v6933, 32
    %v7217 = vpop.permute.xlu0 %7216
    %7218 = vrot.lane.b32.xlu0 %v6934, 32
    %v7219 = vpop.permute.xlu0 %7218
    %7220 = vrot.lane.b32.xlu0 %v6935, 32
    %v7221 = vpop.permute.xlu0 %7220
    %7222 = vrot.lane.b32.xlu0 %v6936, 32
    %v7223 = vpop.permute.xlu0 %7222
    %7224 = vrot.lane.b32.xlu0 %v6937, 32
    %v7225 = vpop.permute.xlu0 %7224
    %7226 = vrot.lane.b32.xlu0 %v6938, 32
    %v7227 = vpop.permute.xlu0 %7226
    %7228 = vrot.lane.b32.xlu0 %v6939, 32
    %v7229 = vpop.permute.xlu0 %7228
    %7230 = vrot.lane.b32.xlu0 %v6940, 32
    %v7231 = vpop.permute.xlu0 %7230
    %7232 = vrot.lane.b32.xlu0 %v6941, 32
    %v7233 = vpop.permute.xlu0 %7232
    %7234 = vrot.lane.b32.xlu0 %v6942, 32
    %v7235 = vpop.permute.xlu0 %7234
    %7236 = vrot.lane.b32.xlu0 %v6943, 32
    %v7237 = vpop.permute.xlu0 %7236
    %7238 = vrot.lane.b32.xlu0 %v6944, 32
    %v7239 = vpop.permute.xlu0 %7238
    %7240 = vrot.lane.b32.xlu0 %v6945, 32
    %v7241 = vpop.permute.xlu0 %7240
    %7242 = vrot.lane.b32.xlu0 %v6946, 32
    %v7243 = vpop.permute.xlu0 %7242
    %7244 = vrot.lane.b32.xlu0 %v6947, 32
    %v7245 = vpop.permute.xlu0 %7244
    %7246 = vrot.lane.b32.xlu0 %v6948, 32
    %v7247 = vpop.permute.xlu0 %7246
    %7248 = vrot.lane.b32.xlu0 %v6949, 32
    %v7249 = vpop.permute.xlu0 %7248
    %7250 = vrot.lane.b32.xlu0 %v6950, 32
    %v7251 = vpop.permute.xlu0 %7250
    %7252 = vrot.lane.b32.xlu0 %v6951, 32
    %v7253 = vpop.permute.xlu0 %7252
    %7254 = vrot.lane.b32.xlu0 %v6952, 32
    %v7255 = vpop.permute.xlu0 %7254
    %7256 = vrot.lane.b32.xlu0 %v6953, 32
    %v7257 = vpop.permute.xlu0 %7256
    %7258 = vrot.lane.b32.xlu0 %v6954, 32
    %v7259 = vpop.permute.xlu0 %7258
    %7260 = vrot.lane.b32.xlu0 %v6955, 32
    %v7261 = vpop.permute.xlu0 %7260
    %7262 = vrot.lane.b32.xlu0 %v6956, 32
    %v7263 = vpop.permute.xlu0 %7262
    %7264 = vrot.lane.b32.xlu0 %v6957, 32
    %v7265 = vpop.permute.xlu0 %7264
    %7266 = vrot.lane.b32.xlu0 %v6958, 32
    %v7267 = vpop.permute.xlu0 %7266
    %7268 = vrot.lane.b32.xlu0 %v6959, 32
    %v7269 = vpop.permute.xlu0 %7268
    %7270 = vrot.lane.b32.xlu0 %v6960, 32
    %v7271 = vpop.permute.xlu0 %7270
    %7272 = vrot.lane.b32.xlu0 %v6961, 32
    %v7273 = vpop.permute.xlu0 %7272
    %7274 = vrot.lane.b32.xlu0 %v6962, 32
    %v7275 = vpop.permute.xlu0 %7274
    %7276 = vrot.lane.b32.xlu0 %v6963, 32
    %v7277 = vpop.permute.xlu0 %7276
    %7278 = vrot.lane.b32.xlu0 %v6964, 32
    %v7279 = vpop.permute.xlu0 %7278
    %7280 = vrot.lane.b32.xlu0 %v6965, 32
    %v7281 = vpop.permute.xlu0 %7280
    %7282 = vrot.lane.b32.xlu0 %v6966, 32
    %v7283 = vpop.permute.xlu0 %7282
    %7284 = vrot.lane.b32.xlu0 %v6967, 32
    %v7285 = vpop.permute.xlu0 %7284
    %7286 = vrot.lane.b32.xlu0 %v6968, 32
    %v7287 = vpop.permute.xlu0 %7286
    %7288 = vrot.lane.b32.xlu0 %v6969, 32
    %v7289 = vpop.permute.xlu0 %7288
    %7290 = vrot.lane.b32.xlu0 %v6970, 32
    %v7291 = vpop.permute.xlu0 %7290
    %7292 = vrot.lane.b32.xlu0 %v6971, 32
    %v7293 = vpop.permute.xlu0 %7292
    %7294 = vrot.lane.b32.xlu0 %v6972, 32
    %v7295 = vpop.permute.xlu0 %7294
    %7296 = vrot.lane.b32.xlu0 %v6973, 32
    %v7297 = vpop.permute.xlu0 %7296
    %7298 = vrot.lane.b32.xlu0 %v6974, 32
    %v7299 = vpop.permute.xlu0 %7298
    %7300 = vrot.lane.b32.xlu0 %v6975, 32
    %v7301 = vpop.permute.xlu0 %7300
    %7302 = vrot.lane.b32.xlu0 %v6976, 32
    %v7303 = vpop.permute.xlu0 %7302
    %7304 = vrot.lane.b32.xlu0 %v6977, 32
    %v7305 = vpop.permute.xlu0 %7304
    %7306 = vrot.lane.b32.xlu0 %v6978, 32
    %v7307 = vpop.permute.xlu0 %7306
    %7308 = vrot.lane.b32.xlu0 %v6979, 32
    %v7309 = vpop.permute.xlu0 %7308
    %7310 = vrot.lane.b32.xlu0 %v6980, 32
    %v7311 = vpop.permute.xlu0 %7310
    %7312 = vrot.lane.b32.xlu0 %v6981, 32
    %v7313 = vpop.permute.xlu0 %7312
    %7314 = vrot.lane.b32.xlu0 %v6982, 32
    %v7315 = vpop.permute.xlu0 %7314
    %7316 = vrot.lane.b32.xlu0 %v6983, 32
    %v7317 = vpop.permute.xlu0 %7316
    %vm7382 = vcmask 523520
    %7383 = vst.msk [vmem:[%s6994 + $0x8] sm:$0xff] %vm7382, %v7191
    %7384 = vst.msk [vmem:[%s6994 + $0x10] sm:$0xff] %vm7382, %v7193
    %7385 = vst.msk [vmem:[%s6994 + $0x28] sm:$0xff] %vm7382, %v7195
    %7386 = vst.msk [vmem:[%s6994 + $0x30] sm:$0xff] %vm7382, %v7197
    %7387 = vst.msk [vmem:[%s6994 + $0x48] sm:$0xff] %vm7382, %v7199
    %7388 = vst.msk [vmem:[%s6994 + $0x50] sm:$0xff] %vm7382, %v7201
    %7389 = vst.msk [vmem:[%s6994 + $0x68] sm:$0xff] %vm7382, %v7203
    %7390 = vst.msk [vmem:[%s6994 + $0x70] sm:$0xff] %vm7382, %v7205
    %7391 = vst.msk [vmem:[%s6994 + $0x88] sm:$0xff] %vm7382, %v7207
    %7392 = vst.msk [vmem:[%s6994 + $0x90] sm:$0xff] %vm7382, %v7209
    %7393 = vst.msk [vmem:[%s6994 + $0xa8] sm:$0xff] %vm7382, %v7211
    %7394 = vst.msk [vmem:[%s6994 + $0xb0] sm:$0xff] %vm7382, %v7213
    %7395 = vst.msk [vmem:[%s6994 + $0xc8] sm:$0xff] %vm7382, %v7215
    %7396 = vst.msk [vmem:[%s6994 + $0xd0] sm:$0xff] %vm7382, %v7217
    %7397 = vst.msk [vmem:[%s6994 + $0xe8] sm:$0xff] %vm7382, %v7219
    %7398 = vst.msk [vmem:[%s6994 + $0xf0] sm:$0xff] %vm7382, %v7221
    %7399 = vst.msk [vmem:[%s6994 + $0x108] sm:$0xff] %vm7382, %v7223
    %7400 = vst.msk [vmem:[%s6994 + $0x110] sm:$0xff] %vm7382, %v7225
    %7401 = vst.msk [vmem:[%s6994 + $0x128] sm:$0xff] %vm7382, %v7227
    %7402 = vst.msk [vmem:[%s6994 + $0x130] sm:$0xff] %vm7382, %v7229
    %7403 = vst.msk [vmem:[%s6994 + $0x148] sm:$0xff] %vm7382, %v7231
    %7404 = vst.msk [vmem:[%s6994 + $0x150] sm:$0xff] %vm7382, %v7233
    %7405 = vst.msk [vmem:[%s6994 + $0x168] sm:$0xff] %vm7382, %v7235
    %7406 = vst.msk [vmem:[%s6994 + $0x170] sm:$0xff] %vm7382, %v7237
    %7407 = vst.msk [vmem:[%s6994 + $0x188] sm:$0xff] %vm7382, %v7239
    %7408 = vst.msk [vmem:[%s6994 + $0x190] sm:$0xff] %vm7382, %v7241
    %7409 = vst.msk [vmem:[%s6994 + $0x1a8] sm:$0xff] %vm7382, %v7243
    %7410 = vst.msk [vmem:[%s6994 + $0x1b0] sm:$0xff] %vm7382, %v7245
    %7411 = vst.msk [vmem:[%s6994 + $0x1c8] sm:$0xff] %vm7382, %v7247
    %7412 = vst.msk [vmem:[%s6994 + $0x1d0] sm:$0xff] %vm7382, %v7249
    %7413 = vst.msk [vmem:[%s6994 + $0x1e8] sm:$0xff] %vm7382, %v7251
    %7414 = vst.msk [vmem:[%s6994 + $0x1f0] sm:$0xff] %vm7382, %v7253
    %7415 = vst.msk [vmem:[%s6994 + $0x248] sm:$0xff] %vm7382, %v7255
    %7416 = vst.msk [vmem:[%s6994 + $0x250] sm:$0xff] %vm7382, %v7257
    %7417 = vst.msk [vmem:[%s6994 + $0x268] sm:$0xff] %vm7382, %v7259
    %7418 = vst.msk [vmem:[%s6994 + $0x270] sm:$0xff] %vm7382, %v7261
    %7419 = vst.msk [vmem:[%s6994 + $0x288] sm:$0xff] %vm7382, %v7263
    %7420 = vst.msk [vmem:[%s6994 + $0x290] sm:$0xff] %vm7382, %v7265
    %7421 = vst.msk [vmem:[%s6994 + $0x2a8] sm:$0xff] %vm7382, %v7267
    %7422 = vst.msk [vmem:[%s6994 + $0x2b0] sm:$0xff] %vm7382, %v7269
    %7423 = vst.msk [vmem:[%s6994 + $0x2c8] sm:$0xff] %vm7382, %v7271
    %7424 = vst.msk [vmem:[%s6994 + $0x2d0] sm:$0xff] %vm7382, %v7273
    %7425 = vst.msk [vmem:[%s6994 + $0x2e8] sm:$0xff] %vm7382, %v7275
    %7426 = vst.msk [vmem:[%s6994 + $0x2f0] sm:$0xff] %vm7382, %v7277
    %7427 = vst.msk [vmem:[%s6994 + $0x308] sm:$0xff] %vm7382, %v7279
    %7428 = vst.msk [vmem:[%s6994 + $0x310] sm:$0xff] %vm7382, %v7281
    %7429 = vst.msk [vmem:[%s6994 + $0x328] sm:$0xff] %vm7382, %v7283
    %7430 = vst.msk [vmem:[%s6994 + $0x330] sm:$0xff] %vm7382, %v7285
    %7431 = vst.msk [vmem:[%s6994 + $0x348] sm:$0xff] %vm7382, %v7287
    %7432 = vst.msk [vmem:[%s6994 + $0x350] sm:$0xff] %vm7382, %v7289
    %7433 = vst.msk [vmem:[%s6994 + $0x368] sm:$0xff] %vm7382, %v7291
    %7434 = vst.msk [vmem:[%s6994 + $0x370] sm:$0xff] %vm7382, %v7293
    %7435 = vst.msk [vmem:[%s6994 + $0x388] sm:$0xff] %vm7382, %v7295
    %7436 = vst.msk [vmem:[%s6994 + $0x390] sm:$0xff] %vm7382, %v7297
    %7437 = vst.msk [vmem:[%s6994 + $0x3a8] sm:$0xff] %vm7382, %v7299
    %7438 = vst.msk [vmem:[%s6994 + $0x3b0] sm:$0xff] %vm7382, %v7301
    %7439 = vst.msk [vmem:[%s6994 + $0x3c8] sm:$0xff] %vm7382, %v7303
    %7440 = vst.msk [vmem:[%s6994 + $0x3d0] sm:$0xff] %vm7382, %v7305
    %7441 = vst.msk [vmem:[%s6994 + $0x3e8] sm:$0xff] %vm7382, %v7307
    %7442 = vst.msk [vmem:[%s6994 + $0x3f0] sm:$0xff] %vm7382, %v7309
    %7443 = vst.msk [vmem:[%s6994 + $0x408] sm:$0xff] %vm7382, %v7311
    %7444 = vst.msk [vmem:[%s6994 + $0x410] sm:$0xff] %vm7382, %v7313
    %7445 = vst.msk [vmem:[%s6994 + $0x428] sm:$0xff] %vm7382, %v7315
    %7446 = vst.msk [vmem:[%s6994 + $0x430] sm:$0xff] %vm7382, %v7317
    %7447 = vrot.lane.b32.xlu0 %v6920, 64
    %v7448 = vpop.permute.xlu0 %7447
    %7449 = vrot.lane.b32.xlu0 %v6921, 64
    %v7450 = vpop.permute.xlu0 %7449
    %7451 = vrot.lane.b32.xlu0 %v6922, 64
    %v7452 = vpop.permute.xlu0 %7451
    %7453 = vrot.lane.b32.xlu0 %v6923, 64
    %v7454 = vpop.permute.xlu0 %7453
    %7455 = vrot.lane.b32.xlu0 %v6924, 64
    %v7456 = vpop.permute.xlu0 %7455
    %7457 = vrot.lane.b32.xlu0 %v6925, 64
    %v7458 = vpop.permute.xlu0 %7457
    %7459 = vrot.lane.b32.xlu0 %v6926, 64
    %v7460 = vpop.permute.xlu0 %7459
    %7461 = vrot.lane.b32.xlu0 %v6927, 64
    %v7462 = vpop.permute.xlu0 %7461
    %7463 = vrot.lane.b32.xlu0 %v6928, 64
    %v7464 = vpop.permute.xlu0 %7463
    %7465 = vrot.lane.b32.xlu0 %v6929, 64
    %v7466 = vpop.permute.xlu0 %7465
    %7467 = vrot.lane.b32.xlu0 %v6930, 64
    %v7468 = vpop.permute.xlu0 %7467
    %7469 = vrot.lane.b32.xlu0 %v6931, 64
    %v7470 = vpop.permute.xlu0 %7469
    %7471 = vrot.lane.b32.xlu0 %v6932, 64
    %v7472 = vpop.permute.xlu0 %7471
    %7473 = vrot.lane.b32.xlu0 %v6933, 64
    %v7474 = vpop.permute.xlu0 %7473
    %7475 = vrot.lane.b32.xlu0 %v6934, 64
    %v7476 = vpop.permute.xlu0 %7475
    %7477 = vrot.lane.b32.xlu0 %v6935, 64
    %v7478 = vpop.permute.xlu0 %7477
    %7479 = vrot.lane.b32.xlu0 %v6936, 64
    %v7480 = vpop.permute.xlu0 %7479
    %7481 = vrot.lane.b32.xlu0 %v6937, 64
    %v7482 = vpop.permute.xlu0 %7481
    %7483 = vrot.lane.b32.xlu0 %v6938, 64
    %v7484 = vpop.permute.xlu0 %7483
    %7485 = vrot.lane.b32.xlu0 %v6939, 64
    %v7486 = vpop.permute.xlu0 %7485
    %7487 = vrot.lane.b32.xlu0 %v6940, 64
    %v7488 = vpop.permute.xlu0 %7487
    %7489 = vrot.lane.b32.xlu0 %v6941, 64
    %v7490 = vpop.permute.xlu0 %7489
    %7491 = vrot.lane.b32.xlu0 %v6942, 64
    %v7492 = vpop.permute.xlu0 %7491
    %7493 = vrot.lane.b32.xlu0 %v6943, 64
    %v7494 = vpop.permute.xlu0 %7493
    %7495 = vrot.lane.b32.xlu0 %v6944, 64
    %v7496 = vpop.permute.xlu0 %7495
    %7497 = vrot.lane.b32.xlu0 %v6945, 64
    %v7498 = vpop.permute.xlu0 %7497
    %7499 = vrot.lane.b32.xlu0 %v6946, 64
    %v7500 = vpop.permute.xlu0 %7499
    %7501 = vrot.lane.b32.xlu0 %v6947, 64
    %v7502 = vpop.permute.xlu0 %7501
    %7503 = vrot.lane.b32.xlu0 %v6948, 64
    %v7504 = vpop.permute.xlu0 %7503
    %7505 = vrot.lane.b32.xlu0 %v6949, 64
    %v7506 = vpop.permute.xlu0 %7505
    %7507 = vrot.lane.b32.xlu0 %v6950, 64
    %v7508 = vpop.permute.xlu0 %7507
    %7509 = vrot.lane.b32.xlu0 %v6951, 64
    %v7510 = vpop.permute.xlu0 %7509
    %7511 = vrot.lane.b32.xlu0 %v6952, 64
    %v7512 = vpop.permute.xlu0 %7511
    %7513 = vrot.lane.b32.xlu0 %v6953, 64
    %v7514 = vpop.permute.xlu0 %7513
    %7515 = vrot.lane.b32.xlu0 %v6954, 64
    %v7516 = vpop.permute.xlu0 %7515
    %7517 = vrot.lane.b32.xlu0 %v6955, 64
    %v7518 = vpop.permute.xlu0 %7517
    %7519 = vrot.lane.b32.xlu0 %v6956, 64
    %v7520 = vpop.permute.xlu0 %7519
    %7521 = vrot.lane.b32.xlu0 %v6957, 64
    %v7522 = vpop.permute.xlu0 %7521
    %7523 = vrot.lane.b32.xlu0 %v6958, 64
    %v7524 = vpop.permute.xlu0 %7523
    %7525 = vrot.lane.b32.xlu0 %v6959, 64
    %v7526 = vpop.permute.xlu0 %7525
    %7527 = vrot.lane.b32.xlu0 %v6960, 64
    %v7528 = vpop.permute.xlu0 %7527
    %7529 = vrot.lane.b32.xlu0 %v6961, 64
    %v7530 = vpop.permute.xlu0 %7529
    %7531 = vrot.lane.b32.xlu0 %v6962, 64
    %v7532 = vpop.permute.xlu0 %7531
    %7533 = vrot.lane.b32.xlu0 %v6963, 64
    %v7534 = vpop.permute.xlu0 %7533
    %7535 = vrot.lane.b32.xlu0 %v6964, 64
    %v7536 = vpop.permute.xlu0 %7535
    %7537 = vrot.lane.b32.xlu0 %v6965, 64
    %v7538 = vpop.permute.xlu0 %7537
    %7539 = vrot.lane.b32.xlu0 %v6966, 64
    %v7540 = vpop.permute.xlu0 %7539
    %7541 = vrot.lane.b32.xlu0 %v6967, 64
    %v7542 = vpop.permute.xlu0 %7541
    %7543 = vrot.lane.b32.xlu0 %v6968, 64
    %v7544 = vpop.permute.xlu0 %7543
    %7545 = vrot.lane.b32.xlu0 %v6969, 64
    %v7546 = vpop.permute.xlu0 %7545
    %7547 = vrot.lane.b32.xlu0 %v6970, 64
    %v7548 = vpop.permute.xlu0 %7547
    %7549 = vrot.lane.b32.xlu0 %v6971, 64
    %v7550 = vpop.permute.xlu0 %7549
    %7551 = vrot.lane.b32.xlu0 %v6972, 64
    %v7552 = vpop.permute.xlu0 %7551
    %7553 = vrot.lane.b32.xlu0 %v6973, 64
    %v7554 = vpop.permute.xlu0 %7553
    %7555 = vrot.lane.b32.xlu0 %v6974, 64
    %v7556 = vpop.permute.xlu0 %7555
    %7557 = vrot.lane.b32.xlu0 %v6975, 64
    %v7558 = vpop.permute.xlu0 %7557
    %7559 = vrot.lane.b32.xlu0 %v6976, 64
    %v7560 = vpop.permute.xlu0 %7559
    %7561 = vrot.lane.b32.xlu0 %v6977, 64
    %v7562 = vpop.permute.xlu0 %7561
    %7563 = vrot.lane.b32.xlu0 %v6978, 64
    %v7564 = vpop.permute.xlu0 %7563
    %7565 = vrot.lane.b32.xlu0 %v6979, 64
    %v7566 = vpop.permute.xlu0 %7565
    %7567 = vrot.lane.b32.xlu0 %v6980, 64
    %v7568 = vpop.permute.xlu0 %7567
    %7569 = vrot.lane.b32.xlu0 %v6981, 64
    %v7570 = vpop.permute.xlu0 %7569
    %7571 = vrot.lane.b32.xlu0 %v6982, 64
    %v7572 = vpop.permute.xlu0 %7571
    %7573 = vrot.lane.b32.xlu0 %v6983, 64
    %v7574 = vpop.permute.xlu0 %7573
    %vm7639 = vcmask 785920
    %7640 = vst.msk [vmem:[%s6994 + $0x7] sm:$0xff] %vm7639, %v7448
    %7641 = vst.msk [vmem:[%s6994 + $0xf] sm:$0xff] %vm7639, %v7450
    %7642 = vst.msk [vmem:[%s6994 + $0x27] sm:$0xff] %vm7639, %v7452
    %7643 = vst.msk [vmem:[%s6994 + $0x2f] sm:$0xff] %vm7639, %v7454
    %7644 = vst.msk [vmem:[%s6994 + $0x47] sm:$0xff] %vm7639, %v7456
    %7645 = vst.msk [vmem:[%s6994 + $0x4f] sm:$0xff] %vm7639, %v7458
    %7646 = vst.msk [vmem:[%s6994 + $0x67] sm:$0xff] %vm7639, %v7460
    %7647 = vst.msk [vmem:[%s6994 + $0x6f] sm:$0xff] %vm7639, %v7462
    %7648 = vst.msk [vmem:[%s6994 + $0x87] sm:$0xff] %vm7639, %v7464
    %7649 = vst.msk [vmem:[%s6994 + $0x8f] sm:$0xff] %vm7639, %v7466
    %7650 = vst.msk [vmem:[%s6994 + $0xa7] sm:$0xff] %vm7639, %v7468
    %7651 = vst.msk [vmem:[%s6994 + $0xaf] sm:$0xff] %vm7639, %v7470
    %7652 = vst.msk [vmem:[%s6994 + $0xc7] sm:$0xff] %vm7639, %v7472
    %7653 = vst.msk [vmem:[%s6994 + $0xcf] sm:$0xff] %vm7639, %v7474
    %7654 = vst.msk [vmem:[%s6994 + $0xe7] sm:$0xff] %vm7639, %v7476
    %7655 = vst.msk [vmem:[%s6994 + $0xef] sm:$0xff] %vm7639, %v7478
    %7656 = vst.msk [vmem:[%s6994 + $0x107] sm:$0xff] %vm7639, %v7480
    %7657 = vst.msk [vmem:[%s6994 + $0x10f] sm:$0xff] %vm7639, %v7482
    %7658 = vst.msk [vmem:[%s6994 + $0x127] sm:$0xff] %vm7639, %v7484
    %7659 = vst.msk [vmem:[%s6994 + $0x12f] sm:$0xff] %vm7639, %v7486
    %7660 = vst.msk [vmem:[%s6994 + $0x147] sm:$0xff] %vm7639, %v7488
    %7661 = vst.msk [vmem:[%s6994 + $0x14f] sm:$0xff] %vm7639, %v7490
    %7662 = vst.msk [vmem:[%s6994 + $0x167] sm:$0xff] %vm7639, %v7492
    %7663 = vst.msk [vmem:[%s6994 + $0x16f] sm:$0xff] %vm7639, %v7494
    %7664 = vst.msk [vmem:[%s6994 + $0x187] sm:$0xff] %vm7639, %v7496
    %7665 = vst.msk [vmem:[%s6994 + $0x18f] sm:$0xff] %vm7639, %v7498
    %7666 = vst.msk [vmem:[%s6994 + $0x1a7] sm:$0xff] %vm7639, %v7500
    %7667 = vst.msk [vmem:[%s6994 + $0x1af] sm:$0xff] %vm7639, %v7502
    %7668 = vst.msk [vmem:[%s6994 + $0x1c7] sm:$0xff] %vm7639, %v7504
    %7669 = vst.msk [vmem:[%s6994 + $0x1cf] sm:$0xff] %vm7639, %v7506
    %7670 = vst.msk [vmem:[%s6994 + $0x1e7] sm:$0xff] %vm7639, %v7508
    %7671 = vst.msk [vmem:[%s6994 + $0x1ef] sm:$0xff] %vm7639, %v7510
    %7672 = vst.msk [vmem:[%s6994 + $0x247] sm:$0xff] %vm7639, %v7512
    %7673 = vst.msk [vmem:[%s6994 + $0x24f] sm:$0xff] %vm7639, %v7514
    %7674 = vst.msk [vmem:[%s6994 + $0x267] sm:$0xff] %vm7639, %v7516
    %7675 = vst.msk [vmem:[%s6994 + $0x26f] sm:$0xff] %vm7639, %v7518
    %7676 = vst.msk [vmem:[%s6994 + $0x287] sm:$0xff] %vm7639, %v7520
    %7677 = vst.msk [vmem:[%s6994 + $0x28f] sm:$0xff] %vm7639, %v7522
    %7678 = vst.msk [vmem:[%s6994 + $0x2a7] sm:$0xff] %vm7639, %v7524
    %7679 = vst.msk [vmem:[%s6994 + $0x2af] sm:$0xff] %vm7639, %v7526
    %7680 = vst.msk [vmem:[%s6994 + $0x2c7] sm:$0xff] %vm7639, %v7528
    %7681 = vst.msk [vmem:[%s6994 + $0x2cf] sm:$0xff] %vm7639, %v7530
    %7682 = vst.msk [vmem:[%s6994 + $0x2e7] sm:$0xff] %vm7639, %v7532
    %7683 = vst.msk [vmem:[%s6994 + $0x2ef] sm:$0xff] %vm7639, %v7534
    %7684 = vst.msk [vmem:[%s6994 + $0x307] sm:$0xff] %vm7639, %v7536
    %7685 = vst.msk [vmem:[%s6994 + $0x30f] sm:$0xff] %vm7639, %v7538
    %7686 = vst.msk [vmem:[%s6994 + $0x327] sm:$0xff] %vm7639, %v7540
    %7687 = vst.msk [vmem:[%s6994 + $0x32f] sm:$0xff] %vm7639, %v7542
    %7688 = vst.msk [vmem:[%s6994 + $0x347] sm:$0xff] %vm7639, %v7544
    %7689 = vst.msk [vmem:[%s6994 + $0x34f] sm:$0xff] %vm7639, %v7546
    %7690 = vst.msk [vmem:[%s6994 + $0x367] sm:$0xff] %vm7639, %v7548
    %7691 = vst.msk [vmem:[%s6994 + $0x36f] sm:$0xff] %vm7639, %v7550
    %7692 = vst.msk [vmem:[%s6994 + $0x387] sm:$0xff] %vm7639, %v7552
    %7693 = vst.msk [vmem:[%s6994 + $0x38f] sm:$0xff] %vm7639, %v7554
    %7694 = vst.msk [vmem:[%s6994 + $0x3a7] sm:$0xff] %vm7639, %v7556
    %7695 = vst.msk [vmem:[%s6994 + $0x3af] sm:$0xff] %vm7639, %v7558
    %7696 = vst.msk [vmem:[%s6994 + $0x3c7] sm:$0xff] %vm7639, %v7560
    %7697 = vst.msk [vmem:[%s6994 + $0x3cf] sm:$0xff] %vm7639, %v7562
    %7698 = vst.msk [vmem:[%s6994 + $0x3e7] sm:$0xff] %vm7639, %v7564
    %7699 = vst.msk [vmem:[%s6994 + $0x3ef] sm:$0xff] %vm7639, %v7566
    %7700 = vst.msk [vmem:[%s6994 + $0x407] sm:$0xff] %vm7639, %v7568
    %7701 = vst.msk [vmem:[%s6994 + $0x40f] sm:$0xff] %vm7639, %v7570
    %7702 = vst.msk [vmem:[%s6994 + $0x427] sm:$0xff] %vm7639, %v7572
    %7703 = vst.msk [vmem:[%s6994 + $0x42f] sm:$0xff] %vm7639, %v7574
    %v7704 = vld [vmem:[#allocation4 + $0x8] sm:$0xff]
    %v7705 = vld [vmem:[#allocation4 + $0x10] sm:$0xff]
    %v7706 = vld [vmem:[#allocation4 + $0x28] sm:$0xff]
    %v7707 = vld [vmem:[#allocation4 + $0x30] sm:$0xff]
    %v7708 = vld [vmem:[#allocation4 + $0x48] sm:$0xff]
    %v7709 = vld [vmem:[#allocation4 + $0x50] sm:$0xff]
    %v7710 = vld [vmem:[#allocation4 + $0x68] sm:$0xff]
    %v7711 = vld [vmem:[#allocation4 + $0x70] sm:$0xff]
    %v7712 = vld [vmem:[#allocation4 + $0x88] sm:$0xff]
    %v7713 = vld [vmem:[#allocation4 + $0x90] sm:$0xff]
    %v7714 = vld [vmem:[#allocation4 + $0xa8] sm:$0xff]
    %v7715 = vld [vmem:[#allocation4 + $0xb0] sm:$0xff]
    %v7716 = vld [vmem:[#allocation4 + $0xc8] sm:$0xff]
    %v7717 = vld [vmem:[#allocation4 + $0xd0] sm:$0xff]
    %v7718 = vld [vmem:[#allocation4 + $0xe8] sm:$0xff]
    %v7719 = vld [vmem:[#allocation4 + $0xf0] sm:$0xff]
    %v7720 = vld [vmem:[#allocation4 + $0x108] sm:$0xff]
    %v7721 = vld [vmem:[#allocation4 + $0x110] sm:$0xff]
    %v7722 = vld [vmem:[#allocation4 + $0x128] sm:$0xff]
    %v7723 = vld [vmem:[#allocation4 + $0x130] sm:$0xff]
    %v7724 = vld [vmem:[#allocation4 + $0x148] sm:$0xff]
    %v7725 = vld [vmem:[#allocation4 + $0x150] sm:$0xff]
    %v7726 = vld [vmem:[#allocation4 + $0x168] sm:$0xff]
    %v7727 = vld [vmem:[#allocation4 + $0x170] sm:$0xff]
    %v7728 = vld [vmem:[#allocation4 + $0x188] sm:$0xff]
    %v7729 = vld [vmem:[#allocation4 + $0x190] sm:$0xff]
    %v7730 = vld [vmem:[#allocation4 + $0x1a8] sm:$0xff]
    %v7731 = vld [vmem:[#allocation4 + $0x1b0] sm:$0xff]
    %v7732 = vld [vmem:[#allocation4 + $0x1c8] sm:$0xff]
    %v7733 = vld [vmem:[#allocation4 + $0x1d0] sm:$0xff]
    %v7734 = vld [vmem:[#allocation4 + $0x1e8] sm:$0xff]
    %v7735 = vld [vmem:[#allocation4 + $0x1f0] sm:$0xff]
    %v7736 = vld [vmem:[#allocation4 + $0x248] sm:$0xff]
    %v7737 = vld [vmem:[#allocation4 + $0x250] sm:$0xff]
    %v7738 = vld [vmem:[#allocation4 + $0x268] sm:$0xff]
    %v7739 = vld [vmem:[#allocation4 + $0x270] sm:$0xff]
    %v7740 = vld [vmem:[#allocation4 + $0x288] sm:$0xff]
    %v7741 = vld [vmem:[#allocation4 + $0x290] sm:$0xff]
    %v7742 = vld [vmem:[#allocation4 + $0x2a8] sm:$0xff]
    %v7743 = vld [vmem:[#allocation4 + $0x2b0] sm:$0xff]
    %v7744 = vld [vmem:[#allocation4 + $0x2c8] sm:$0xff]
    %v7745 = vld [vmem:[#allocation4 + $0x2d0] sm:$0xff]
    %v7746 = vld [vmem:[#allocation4 + $0x2e8] sm:$0xff]
    %v7747 = vld [vmem:[#allocation4 + $0x2f0] sm:$0xff]
    %v7748 = vld [vmem:[#allocation4 + $0x308] sm:$0xff]
    %v7749 = vld [vmem:[#allocation4 + $0x310] sm:$0xff]
    %v7750 = vld [vmem:[#allocation4 + $0x328] sm:$0xff]
    %v7751 = vld [vmem:[#allocation4 + $0x330] sm:$0xff]
    %v7752 = vld [vmem:[#allocation4 + $0x348] sm:$0xff]
    %v7753 = vld [vmem:[#allocation4 + $0x350] sm:$0xff]
    %v7754 = vld [vmem:[#allocation4 + $0x368] sm:$0xff]
    %v7755 = vld [vmem:[#allocation4 + $0x370] sm:$0xff]
    %v7756 = vld [vmem:[#allocation4 + $0x388] sm:$0xff]
    %v7757 = vld [vmem:[#allocation4 + $0x390] sm:$0xff]
    %v7758 = vld [vmem:[#allocation4 + $0x3a8] sm:$0xff]
    %v7759 = vld [vmem:[#allocation4 + $0x3b0] sm:$0xff]
    %v7760 = vld [vmem:[#allocation4 + $0x3c8] sm:$0xff]
    %v7761 = vld [vmem:[#allocation4 + $0x3d0] sm:$0xff]
    %v7762 = vld [vmem:[#allocation4 + $0x3e8] sm:$0xff]
    %v7763 = vld [vmem:[#allocation4 + $0x3f0] sm:$0xff]
    %v7764 = vld [vmem:[#allocation4 + $0x408] sm:$0xff]
    %v7765 = vld [vmem:[#allocation4 + $0x410] sm:$0xff]
    %v7766 = vld [vmem:[#allocation4 + $0x428] sm:$0xff]
    %v7767 = vld [vmem:[#allocation4 + $0x430] sm:$0xff]
    %v7768 = vld [vmem:[%s7] sm:$0xff]
    %v7769 = vld [vmem:[%s7 + $0x8] sm:$0xff]
    %v7770 = vld [vmem:[%s7 + $0x10] sm:$0xff]
    %v7771 = vld [vmem:[%s7 + $0x18] sm:$0xff]
    %v7772 = vld [vmem:[%s7 + $0x20] sm:$0xff]
    %v7773 = vld [vmem:[%s7 + $0x28] sm:$0xff]
    %v7774 = vld [vmem:[%s7 + $0x30] sm:$0xff]
    %v7775 = vld [vmem:[%s7 + $0x38] sm:$0xff]
    %v7776 = vld [vmem:[%s7 + $0x40] sm:$0xff]
    %v7777 = vld [vmem:[%s7 + $0x48] sm:$0xff]
    %v7778 = vld [vmem:[%s7 + $0x50] sm:$0xff]
    %v7779 = vld [vmem:[%s7 + $0x58] sm:$0xff]
    %v7780 = vld [vmem:[%s6994 + $0x8] sm:$0xff]
    %v7781 = vld [vmem:[%s6994 + $0x10] sm:$0xff]
    %v7782 = vld [vmem:[%s6994 + $0x28] sm:$0xff]
    %v7783 = vld [vmem:[%s6994 + $0x30] sm:$0xff]
    %v7784 = vld [vmem:[%s6994 + $0x48] sm:$0xff]
    %v7785 = vld [vmem:[%s6994 + $0x50] sm:$0xff]
    %v7786 = vld [vmem:[%s6994 + $0x68] sm:$0xff]
    %v7787 = vld [vmem:[%s6994 + $0x70] sm:$0xff]
    %v7788 = vld [vmem:[%s6994 + $0x88] sm:$0xff]
    %v7789 = vld [vmem:[%s6994 + $0x90] sm:$0xff]
    %v7790 = vld [vmem:[%s6994 + $0xa8] sm:$0xff]
    %v7791 = vld [vmem:[%s6994 + $0xb0] sm:$0xff]
    %v7792 = vld [vmem:[%s6994 + $0xc8] sm:$0xff]
    %v7793 = vld [vmem:[%s6994 + $0xd0] sm:$0xff]
    %v7794 = vld [vmem:[%s6994 + $0xe8] sm:$0xff]
    %v7795 = vld [vmem:[%s6994 + $0xf0] sm:$0xff]
    %v7796 = vld [vmem:[%s6994 + $0x108] sm:$0xff]
    %v7797 = vld [vmem:[%s6994 + $0x110] sm:$0xff]
    %v7798 = vld [vmem:[%s6994 + $0x128] sm:$0xff]
    %v7799 = vld [vmem:[%s6994 + $0x130] sm:$0xff]
    %v7800 = vld [vmem:[%s6994 + $0x148] sm:$0xff]
    %v7801 = vld [vmem:[%s6994 + $0x150] sm:$0xff]
    %v7802 = vld [vmem:[%s6994 + $0x168] sm:$0xff]
    %v7803 = vld [vmem:[%s6994 + $0x170] sm:$0xff]
    %v7804 = vld [vmem:[%s6994 + $0x188] sm:$0xff]
    %v7805 = vld [vmem:[%s6994 + $0x190] sm:$0xff]
    %v7806 = vld [vmem:[%s6994 + $0x1a8] sm:$0xff]
    %v7807 = vld [vmem:[%s6994 + $0x1b0] sm:$0xff]
    %v7808 = vld [vmem:[%s6994 + $0x1c8] sm:$0xff]
    %v7809 = vld [vmem:[%s6994 + $0x1d0] sm:$0xff]
    %v7810 = vld [vmem:[%s6994 + $0x1e8] sm:$0xff]
    %v7811 = vld [vmem:[%s6994 + $0x1f0] sm:$0xff]
    %v7812 = vld [vmem:[%s6994 + $0x248] sm:$0xff]
    %v7813 = vld [vmem:[%s6994 + $0x250] sm:$0xff]
    %v7814 = vld [vmem:[%s6994 + $0x268] sm:$0xff]
    %v7815 = vld [vmem:[%s6994 + $0x270] sm:$0xff]
    %v7816 = vld [vmem:[%s6994 + $0x288] sm:$0xff]
    %v7817 = vld [vmem:[%s6994 + $0x290] sm:$0xff]
    %v7818 = vld [vmem:[%s6994 + $0x2a8] sm:$0xff]
    %v7819 = vld [vmem:[%s6994 + $0x2b0] sm:$0xff]
    %v7820 = vld [vmem:[%s6994 + $0x2c8] sm:$0xff]
    %v7821 = vld [vmem:[%s6994 + $0x2d0] sm:$0xff]
    %v7822 = vld [vmem:[%s6994 + $0x2e8] sm:$0xff]
    %v7823 = vld [vmem:[%s6994 + $0x2f0] sm:$0xff]
    %v7824 = vld [vmem:[%s6994 + $0x308] sm:$0xff]
    %v7825 = vld [vmem:[%s6994 + $0x310] sm:$0xff]
    %v7826 = vld [vmem:[%s6994 + $0x328] sm:$0xff]
    %v7827 = vld [vmem:[%s6994 + $0x330] sm:$0xff]
    %v7828 = vld [vmem:[%s6994 + $0x348] sm:$0xff]
    %v7829 = vld [vmem:[%s6994 + $0x350] sm:$0xff]
    %v7830 = vld [vmem:[%s6994 + $0x368] sm:$0xff]
    %v7831 = vld [vmem:[%s6994 + $0x370] sm:$0xff]
    %v7832 = vld [vmem:[%s6994 + $0x388] sm:$0xff]
    %v7833 = vld [vmem:[%s6994 + $0x390] sm:$0xff]
    %v7834 = vld [vmem:[%s6994 + $0x3a8] sm:$0xff]
    %v7835 = vld [vmem:[%s6994 + $0x3b0] sm:$0xff]
    %v7836 = vld [vmem:[%s6994 + $0x3c8] sm:$0xff]
    %v7837 = vld [vmem:[%s6994 + $0x3d0] sm:$0xff]
    %v7838 = vld [vmem:[%s6994 + $0x3e8] sm:$0xff]
    %v7839 = vld [vmem:[%s6994 + $0x3f0] sm:$0xff]
    %v7840 = vld [vmem:[%s6994 + $0x408] sm:$0xff]
    %v7841 = vld [vmem:[%s6994 + $0x410] sm:$0xff]
    %v7842 = vld [vmem:[%s6994 + $0x428] sm:$0xff]
    %v7843 = vld [vmem:[%s6994 + $0x430] sm:$0xff]
    %s7844 = scalar_lea.vmem %s7, 96
    %v7845 = vld [vmem:[%s7844] sm:$0xff]
    %v7846 = vld [vmem:[%s7844 + $0x8] sm:$0xff]
    %v7847 = vld [vmem:[%s7844 + $0x10] sm:$0xff]
    %v7848 = vld [vmem:[%s7844 + $0x18] sm:$0xff]
    %v7849 = vld [vmem:[%s7844 + $0x20] sm:$0xff]
    %v7850 = vld [vmem:[%s7844 + $0x28] sm:$0xff]
    %v7851 = vld [vmem:[%s7844 + $0x30] sm:$0xff]
    %v7852 = vld [vmem:[%s7844 + $0x38] sm:$0xff]
    %v7853 = vld [vmem:[%s7844 + $0x40] sm:$0xff]
    %v7854 = vld [vmem:[%s7844 + $0x48] sm:$0xff]
    %v7855 = vld [vmem:[%s7844 + $0x50] sm:$0xff]
    %v7856 = vld [vmem:[%s7844 + $0x58] sm:$0xff]
    %v7858 = vsel %vm6984, %v7780, 0
    %v7861 = vsel %vm6984, %v7781, 0
    %v7864 = vsel %vm6984, %v7782, 0
    %v7867 = vsel %vm6984, %v7783, 0
    %v7870 = vsel %vm6984, %v7784, 0
    %v7873 = vsel %vm6984, %v7785, 0
    %v7876 = vsel %vm6984, %v7786, 0
    %v7879 = vsel %vm6984, %v7787, 0
    %v7882 = vsel %vm6984, %v7788, 0
    %v7885 = vsel %vm6984, %v7789, 0
    %v7888 = vsel %vm6984, %v7790, 0
    %v7891 = vsel %vm6984, %v7791, 0
    %v7894 = vsel %vm6984, %v7792, 0
    %v7897 = vsel %vm6984, %v7793, 0
    %v7900 = vsel %vm6984, %v7794, 0
    %v7903 = vsel %vm6984, %v7795, 0
    %v7906 = vsel %vm6984, %v7796, 0
    %v7909 = vsel %vm6984, %v7797, 0
    %v7912 = vsel %vm6984, %v7798, 0
    %v7915 = vsel %vm6984, %v7799, 0
    %v7918 = vsel %vm6984, %v7800, 0
    %v7921 = vsel %vm6984, %v7801, 0
    %v7924 = vsel %vm6984, %v7802, 0
    %v7927 = vsel %vm6984, %v7803, 0
    %v7930 = vsel %vm6984, %v7804, 0
    %v7933 = vsel %vm6984, %v7805, 0
    %v7936 = vsel %vm6984, %v7806, 0
    %v7939 = vsel %vm6984, %v7807, 0
    %v7942 = vsel %vm6984, %v7808, 0
    %v7945 = vsel %vm6984, %v7809, 0
    %v7948 = vsel %vm6984, %v7810, 0
    %v7951 = vsel %vm6984, %v7811, 0
    %v7954 = vsel %vm6984, %v7812, 0
    %v7957 = vsel %vm6984, %v7813, 0
    %v7960 = vsel %vm6984, %v7814, 0
    %v7963 = vsel %vm6984, %v7815, 0
    %v7966 = vsel %vm6984, %v7816, 0
    %v7969 = vsel %vm6984, %v7817, 0
    %v7972 = vsel %vm6984, %v7818, 0
    %v7975 = vsel %vm6984, %v7819, 0
    %v7978 = vsel %vm6984, %v7820, 0
    %v7981 = vsel %vm6984, %v7821, 0
    %v7984 = vsel %vm6984, %v7822, 0
    %v7987 = vsel %vm6984, %v7823, 0
    %v7990 = vsel %vm6984, %v7824, 0
    %v7993 = vsel %vm6984, %v7825, 0
    %v7996 = vsel %vm6984, %v7826, 0
    %v7999 = vsel %vm6984, %v7827, 0
    %v8002 = vsel %vm6984, %v7828, 0
    %v8005 = vsel %vm6984, %v7829, 0
    %v8008 = vsel %vm6984, %v7830, 0
    %v8011 = vsel %vm6984, %v7831, 0
    %v8014 = vsel %vm6984, %v7832, 0
    %v8017 = vsel %vm6984, %v7833, 0
    %v8020 = vsel %vm6984, %v7834, 0
    %v8023 = vsel %vm6984, %v7835, 0
    %v8026 = vsel %vm6984, %v7836, 0
    %v8029 = vsel %vm6984, %v7837, 0
    %v8032 = vsel %vm6984, %v7838, 0
    %v8035 = vsel %vm6984, %v7839, 0
    %v8038 = vsel %vm6984, %v7840, 0
    %v8041 = vsel %vm6984, %v7841, 0
    %v8044 = vsel %vm6984, %v7842, 0
    %v8047 = vsel %vm6984, %v7843, 0
    %8049 = vmatprep.subr.mxu0 0.0
    %8050 = vmatpush1.msra.mxu0 %v7845
    %8051 = vmatprep.subr.mxu0 0.0
    %8052 = vmatpush1.msra.mxu0 %v7846
    %8053 = vmatprep.subr.mxu0 0.0
    %8054 = vmatpush1.msra.mxu0 %v7847
    %8055 = vmatprep.subr.mxu0 0.0
    %8056 = vmatpush1.msra.mxu0 %v7848
    %8057 = vmatprep.subr.mxu0 0.0
    %8058 = vmatpush1.msra.mxu0 %v7849
    %8059 = vmatprep.subr.mxu0 0.0
    %8060 = vmatpush1.msra.mxu0 %v7850
    %8061 = vmatprep.subr.mxu0 0.0
    %8062 = vmatpush1.msra.mxu0 %v7851
    %8063 = vmatprep.subr.mxu0 0.0
    %8064 = vmatpush1.msra.mxu0 %v7852
    %8065 = vmatprep.subr.mxu0 0.0
    %8066 = vmatpush1.msra.mxu0 %v7853
    %8067 = vmatprep.subr.mxu0 0.0
    %8068 = vmatpush1.msra.mxu0 %v7854
    %8069 = vmatprep.subr.mxu0 0.0
    %8070 = vmatpush1.msra.mxu0 %v7855
    %8071 = vmatprep.subr.mxu0 0.0
    %8072 = vmatpush1.msra.mxu0 %v7856
    %8073 = vmatprep.subr.mxu0 0.0
    %8074 = vmatpush1.msra.mxu0 0.0
    %8075 = vmatprep.subr.mxu0 0.0
    %8076 = vmatpush1.msra.mxu0 0.0
    %8077 = vmatprep.subr.mxu0 0.0
    %8078 = vmatpush1.msra.mxu0 0.0
    %8079 = vmatprep.subr.mxu0 0.0
    %8080 = vmatpush1.msra.mxu0 0.0
    %8081 = vmatprep.subr.mxu0 0.0
    %8082 = vmatpush1.msra.mxu0 0.0
    %8083 = vmatprep.subr.mxu0 0.0
    %8084 = vmatpush1.msra.mxu0 0.0
    %8085 = vmatprep.subr.mxu0 0.0
    %8086 = vmatpush1.msra.mxu0 0.0
    %8087 = vmatprep.subr.mxu0 0.0
    %8088 = vmatpush1.msra.mxu0 0.0
    %8089 = vmatprep.subr.mxu0 0.0
    %8090 = vmatpush1.msra.mxu0 0.0
    %8091 = vmatprep.subr.mxu0 0.0
    %8092 = vmatpush1.msra.mxu0 0.0
    %8093 = vmatprep.subr.mxu0 0.0
    %8094 = vmatpush1.msra.mxu0 0.0
    %8095 = vmatprep.subr.mxu0 0.0
    %8096 = vmatpush1.msra.mxu0 0.0
    %8097 = vmatprep.subr.mxu0 0.0
    %8098 = vmatpush1.msra.mxu0 0.0
    %8099 = vmatprep.subr.mxu0 0.0
    %8100 = vmatpush1.msra.mxu0 0.0
    %8101 = vmatprep.subr.mxu0 0.0
    %8102 = vmatpush1.msra.mxu0 0.0
    %8103 = vmatprep.subr.mxu0 0.0
    %8104 = vmatpush1.msra.mxu0 0.0
    %8105 = vmatprep.subr.mxu0 0.0
    %8106 = vmatpush1.msra.mxu0 0.0
    %8107 = vmatprep.subr.mxu0 0.0
    %8108 = vmatpush1.msra.mxu0 0.0
    %8109 = vmatprep.subr.mxu0 0.0
    %8110 = vmatpush1.msra.mxu0 0.0
    %8111 = vmatprep.subr.mxu0 0.0
    %8112 = vmatpush1.msra.mxu0 0.0
    %8113 = vmatprep.mubr.f32.mxu0 0.0
    %8114 = vmatmul.mubr.f32.gmra.mrb[0].mxu0 %v7858
    %v8115 = vpop.f32.mrb[0].mxu0
    %v8116 = vadd.f32 0.0, %v8115
    %v8117 = vpop.f32.mrb[0].mxu0
    %8118 = vmatprep.mubr.f32.mxu0 0.0
    %8119 = vmatmul.mubr.f32.gmra.mrb[0].mxu0 %v7861
    %v8120 = vpop.f32.mrb[0].mxu0
    %v8121 = vadd.f32 0.0, %v8120
    %v8122 = vpop.f32.mrb[0].mxu0
    %8123 = vmatprep.mubr.f32.mxu0 0.0
    %8124 = vmatmul.mubr.f32.gmra.mrb[0].mxu0 %v7864
    %v8125 = vpop.f32.mrb[0].mxu0
    %v8126 = vadd.f32 0.0, %v8125
    %v8127 = vpop.f32.mrb[0].mxu0
    %8128 = vmatprep.mubr.f32.mxu0 0.0
    %8129 = vmatmul.mubr.f32.gmra.mrb[0].mxu0 %v7867
    %v8130 = vpop.f32.mrb[0].mxu0
    %v8131 = vadd.f32 0.0, %v8130
    %v8132 = vpop.f32.mrb[0].mxu0
    %8133 = vmatprep.mubr.f32.mxu0 0.0
    %8134 = vmatmul.mubr.f32.gmra.mrb[0].mxu0 %v7870
    %v8135 = vpop.f32.mrb[0].mxu0
    %v8136 = vadd.f32 0.0, %v8135
    %v8137 = vpop.f32.mrb[0].mxu0
    %8138 = vmatprep.mubr.f32.mxu0 0.0
    %8139 = vmatmul.mubr.f32.gmra.mrb[0].mxu0 %v7873
    %v8140 = vpop.f32.mrb[0].mxu0
    %v8141 = vadd.f32 0.0, %v8140
    %v8142 = vpop.f32.mrb[0].mxu0
    %8143 = vmatprep.mubr.f32.mxu0 0.0
    %8144 = vmatmul.mubr.f32.gmra.mrb[0].mxu0 %v7876
    %v8145 = vpop.f32.mrb[0].mxu0
    %v8146 = vadd.f32 0.0, %v8145
    %v8147 = vpop.f32.mrb[0].mxu0
    %8148 = vmatprep.mubr.f32.mxu0 0.0
    %8149 = vmatmul.mubr.f32.gmra.mrb[0].mxu0 %v7879
    %v8150 = vpop.f32.mrb[0].mxu0
    %v8151 = vadd.f32 0.0, %v8150
    %v8152 = vpop.f32.mrb[0].mxu0
    %8153 = vmatprep.mubr.f32.mxu0 0.0
    %8154 = vmatmul.mubr.f32.gmra.mrb[0].mxu0 %v7882
    %v8155 = vpop.f32.mrb[0].mxu0
    %v8156 = vadd.f32 0.0, %v8155
    %v8157 = vpop.f32.mrb[0].mxu0
    %8158 = vmatprep.mubr.f32.mxu0 0.0
    %8159 = vmatmul.mubr.f32.gmra.mrb[0].mxu0 %v7885
    %v8160 = vpop.f32.mrb[0].mxu0
    %v8161 = vadd.f32 0.0, %v8160
    %v8162 = vpop.f32.mrb[0].mxu0
    %8163 = vmatprep.mubr.f32.mxu0 0.0
    %8164 = vmatmul.mubr.f32.gmra.mrb[0].mxu0 %v7888
    %v8165 = vpop.f32.mrb[0].mxu0
    %v8166 = vadd.f32 0.0, %v8165
    %v8167 = vpop.f32.mrb[0].mxu0
    %8168 = vmatprep.mubr.f32.mxu0 0.0
    %8169 = vmatmul.mubr.f32.gmra.mrb[0].mxu0 %v7891
    %v8170 = vpop.f32.mrb[0].mxu0
    %v8171 = vadd.f32 0.0, %v8170
    %v8172 = vpop.f32.mrb[0].mxu0
    %8173 = vmatprep.mubr.f32.mxu0 0.0
    %8174 = vmatmul.mubr.f32.gmra.mrb[0].mxu0 %v7894
    %v8175 = vpop.f32.mrb[0].mxu0
    %v8176 = vadd.f32 0.0, %v8175
    %v8177 = vpop.f32.mrb[0].mxu0
    %8178 = vmatprep.mubr.f32.mxu0 0.0
    %8179 = vmatmul.mubr.f32.gmra.mrb[0].mxu0 %v7897
    %v8180 = vpop.f32.mrb[0].mxu0
    %v8181 = vadd.f32 0.0, %v8180
    %v8182 = vpop.f32.mrb[0].mxu0
    %8183 = vmatprep.mubr.f32.mxu0 0.0
    %8184 = vmatmul.mubr.f32.gmra.mrb[0].mxu0 %v7900
    %v8185 = vpop.f32.mrb[0].mxu0
    %v8186 = vadd.f32 0.0, %v8185
    %v8187 = vpop.f32.mrb[0].mxu0
    %8188 = vmatprep.mubr.f32.mxu0 0.0
    %8189 = vmatmul.mubr.f32.gmra.mrb[0].mxu0 %v7903
    %v8190 = vpop.f32.mrb[0].mxu0
    %v8191 = vadd.f32 0.0, %v8190
    %v8192 = vpop.f32.mrb[0].mxu0
    %8193 = vmatprep.mubr.f32.mxu0 0.0
    %8194 = vmatmul.mubr.f32.gmra.mrb[0].mxu0 %v7906
    %v8195 = vpop.f32.mrb[0].mxu0
    %v8196 = vadd.f32 0.0, %v8195
    %v8197 = vpop.f32.mrb[0].mxu0
    %8198 = vmatprep.mubr.f32.mxu0 0.0
    %8199 = vmatmul.mubr.f32.gmra.mrb[0].mxu0 %v7909
    %v8200 = vpop.f32.mrb[0].mxu0
    %v8201 = vadd.f32 0.0, %v8200
    %v8202 = vpop.f32.mrb[0].mxu0
    %8203 = vmatprep.mubr.f32.mxu0 0.0
    %8204 = vmatmul.mubr.f32.gmra.mrb[0].mxu0 %v7912
    %v8205 = vpop.f32.mrb[0].mxu0
    %v8206 = vadd.f32 0.0, %v8205
    %v8207 = vpop.f32.mrb[0].mxu0
    %8208 = vmatprep.mubr.f32.mxu0 0.0
    %8209 = vmatmul.mubr.f32.gmra.mrb[0].mxu0 %v7915
    %v8210 = vpop.f32.mrb[0].mxu0
    %v8211 = vadd.f32 0.0, %v8210
    %v8212 = vpop.f32.mrb[0].mxu0
    %8213 = vmatprep.mubr.f32.mxu0 0.0
    %8214 = vmatmul.mubr.f32.gmra.mrb[0].mxu0 %v7918
    %v8215 = vpop.f32.mrb[0].mxu0
    %v8216 = vadd.f32 0.0, %v8215
    %v8217 = vpop.f32.mrb[0].mxu0
    %8218 = vmatprep.mubr.f32.mxu0 0.0
    %8219 = vmatmul.mubr.f32.gmra.mrb[0].mxu0 %v7921
    %v8220 = vpop.f32.mrb[0].mxu0
    %v8221 = vadd.f32 0.0, %v8220
    %v8222 = vpop.f32.mrb[0].mxu0
    %8223 = vmatprep.mubr.f32.mxu0 0.0
    %8224 = vmatmul.mubr.f32.gmra.mrb[0].mxu0 %v7924
    %v8225 = vpop.f32.mrb[0].mxu0
    %v8226 = vadd.f32 0.0, %v8225
    %v8227 = vpop.f32.mrb[0].mxu0
    %8228 = vmatprep.mubr.f32.mxu0 0.0
    %8229 = vmatmul.mubr.f32.gmra.mrb[0].mxu0 %v7927
    %v8230 = vpop.f32.mrb[0].mxu0
    %v8231 = vadd.f32 0.0, %v8230
    %v8232 = vpop.f32.mrb[0].mxu0
    %8233 = vmatprep.mubr.f32.mxu0 0.0
    %8234 = vmatmul.mubr.f32.gmra.mrb[0].mxu0 %v7930
    %v8235 = vpop.f32.mrb[0].mxu0
    %v8236 = vadd.f32 0.0, %v8235
    %v8237 = vpop.f32.mrb[0].mxu0
    %8238 = vmatprep.mubr.f32.mxu0 0.0
    %8239 = vmatmul.mubr.f32.gmra.mrb[0].mxu0 %v7933
    %v8240 = vpop.f32.mrb[0].mxu0
    %v8241 = vadd.f32 0.0, %v8240
    %v8242 = vpop.f32.mrb[0].mxu0
    %8243 = vmatprep.mubr.f32.mxu0 0.0
    %8244 = vmatmul.mubr.f32.gmra.mrb[0].mxu0 %v7936
    %v8245 = vpop.f32.mrb[0].mxu0
    %v8246 = vadd.f32 0.0, %v8245
    %v8247 = vpop.f32.mrb[0].mxu0
    %8248 = vmatprep.mubr.f32.mxu0 0.0
    %8249 = vmatmul.mubr.f32.gmra.mrb[0].mxu0 %v7939
    %v8250 = vpop.f32.mrb[0].mxu0
    %v8251 = vadd.f32 0.0, %v8250
    %v8252 = vpop.f32.mrb[0].mxu0
    %8253 = vmatprep.mubr.f32.mxu0 0.0
    %8254 = vmatmul.mubr.f32.gmra.mrb[0].mxu0 %v7942
    %v8255 = vpop.f32.mrb[0].mxu0
    %v8256 = vadd.f32 0.0, %v8255
    %v8257 = vpop.f32.mrb[0].mxu0
    %8258 = vmatprep.mubr.f32.mxu0 0.0
    %8259 = vmatmul.mubr.f32.gmra.mrb[0].mxu0 %v7945
    %v8260 = vpop.f32.mrb[0].mxu0
    %v8261 = vadd.f32 0.0, %v8260
    %v8262 = vpop.f32.mrb[0].mxu0
    %8263 = vmatprep.mubr.f32.mxu0 0.0
    %8264 = vmatmul.mubr.f32.gmra.mrb[0].mxu0 %v7948
    %v8265 = vpop.f32.mrb[0].mxu0
    %v8266 = vadd.f32 0.0, %v8265
    %v8267 = vpop.f32.mrb[0].mxu0
    %8268 = vmatprep.mubr.f32.mxu0 0.0
    %8269 = vmatmul.mubr.f32.gmra.mrb[0].mxu0 %v7951
    %v8270 = vpop.f32.mrb[0].mxu0
    %v8271 = vadd.f32 0.0, %v8270
    %v8272 = vpop.f32.mrb[0].mxu0
    %8273 = vmatprep.mubr.f32.mxu0 0.0
    %8274 = vmatmul.mubr.f32.gmra.mrb[0].mxu0 %v7954
    %v8275 = vpop.f32.mrb[0].mxu0
    %v8276 = vadd.f32 0.0, %v8275
    %v8277 = vpop.f32.mrb[0].mxu0
    %8278 = vmatprep.mubr.f32.mxu0 0.0
    %8279 = vmatmul.mubr.f32.gmra.mrb[0].mxu0 %v7957
    %v8280 = vpop.f32.mrb[0].mxu0
    %v8281 = vadd.f32 0.0, %v8280
    %v8282 = vpop.f32.mrb[0].mxu0
    %8283 = vmatprep.mubr.f32.mxu0 0.0
    %8284 = vmatmul.mubr.f32.gmra.mrb[0].mxu0 %v7960
    %v8285 = vpop.f32.mrb[0].mxu0
    %v8286 = vadd.f32 0.0, %v8285
    %v8287 = vpop.f32.mrb[0].mxu0
    %8288 = vmatprep.mubr.f32.mxu0 0.0
    %8289 = vmatmul.mubr.f32.gmra.mrb[0].mxu0 %v7963
    %v8290 = vpop.f32.mrb[0].mxu0
    %v8291 = vadd.f32 0.0, %v8290
    %v8292 = vpop.f32.mrb[0].mxu0
    %8293 = vmatprep.mubr.f32.mxu0 0.0
    %8294 = vmatmul.mubr.f32.gmra.mrb[0].mxu0 %v7966
    %v8295 = vpop.f32.mrb[0].mxu0
    %v8296 = vadd.f32 0.0, %v8295
    %v8297 = vpop.f32.mrb[0].mxu0
    %8298 = vmatprep.mubr.f32.mxu0 0.0
    %8299 = vmatmul.mubr.f32.gmra.mrb[0].mxu0 %v7969
    %v8300 = vpop.f32.mrb[0].mxu0
    %v8301 = vadd.f32 0.0, %v8300
    %v8302 = vpop.f32.mrb[0].mxu0
    %8303 = vmatprep.mubr.f32.mxu0 0.0
    %8304 = vmatmul.mubr.f32.gmra.mrb[0].mxu0 %v7972
    %v8305 = vpop.f32.mrb[0].mxu0
    %v8306 = vadd.f32 0.0, %v8305
    %v8307 = vpop.f32.mrb[0].mxu0
    %8308 = vmatprep.mubr.f32.mxu0 0.0
    %8309 = vmatmul.mubr.f32.gmra.mrb[0].mxu0 %v7975
    %v8310 = vpop.f32.mrb[0].mxu0
    %v8311 = vadd.f32 0.0, %v8310
    %v8312 = vpop.f32.mrb[0].mxu0
    %8313 = vmatprep.mubr.f32.mxu0 0.0
    %8314 = vmatmul.mubr.f32.gmra.mrb[0].mxu0 %v7978
    %v8315 = vpop.f32.mrb[0].mxu0
    %v8316 = vadd.f32 0.0, %v8315
    %v8317 = vpop.f32.mrb[0].mxu0
    %8318 = vmatprep.mubr.f32.mxu0 0.0
    %8319 = vmatmul.mubr.f32.gmra.mrb[0].mxu0 %v7981
    %v8320 = vpop.f32.mrb[0].mxu0
    %v8321 = vadd.f32 0.0, %v8320
    %v8322 = vpop.f32.mrb[0].mxu0
    %8323 = vmatprep.mubr.f32.mxu0 0.0
    %8324 = vmatmul.mubr.f32.gmra.mrb[0].mxu0 %v7984
    %v8325 = vpop.f32.mrb[0].mxu0
    %v8326 = vadd.f32 0.0, %v8325
    %v8327 = vpop.f32.mrb[0].mxu0
    %8328 = vmatprep.mubr.f32.mxu0 0.0
    %8329 = vmatmul.mubr.f32.gmra.mrb[0].mxu0 %v7987
    %v8330 = vpop.f32.mrb[0].mxu0
    %v8331 = vadd.f32 0.0, %v8330
    %v8332 = vpop.f32.mrb[0].mxu0
    %8333 = vmatprep.mubr.f32.mxu0 0.0
    %8334 = vmatmul.mubr.f32.gmra.mrb[0].mxu0 %v7990
    %v8335 = vpop.f32.mrb[0].mxu0
    %v8336 = vadd.f32 0.0, %v8335
    %v8337 = vpop.f32.mrb[0].mxu0
    %8338 = vmatprep.mubr.f32.mxu0 0.0
    %8339 = vmatmul.mubr.f32.gmra.mrb[0].mxu0 %v7993
    %v8340 = vpop.f32.mrb[0].mxu0
    %v8341 = vadd.f32 0.0, %v8340
    %v8342 = vpop.f32.mrb[0].mxu0
    %8343 = vmatprep.mubr.f32.mxu0 0.0
    %8344 = vmatmul.mubr.f32.gmra.mrb[0].mxu0 %v7996
    %v8345 = vpop.f32.mrb[0].mxu0
    %v8346 = vadd.f32 0.0, %v8345
    %v8347 = vpop.f32.mrb[0].mxu0
    %8348 = vmatprep.mubr.f32.mxu0 0.0
    %8349 = vmatmul.mubr.f32.gmra.mrb[0].mxu0 %v7999
    %v8350 = vpop.f32.mrb[0].mxu0
    %v8351 = vadd.f32 0.0, %v8350
    %v8352 = vpop.f32.mrb[0].mxu0
    %8353 = vmatprep.mubr.f32.mxu0 0.0
    %8354 = vmatmul.mubr.f32.gmra.mrb[0].mxu0 %v8002
    %v8355 = vpop.f32.mrb[0].mxu0
    %v8356 = vadd.f32 0.0, %v8355
    %v8357 = vpop.f32.mrb[0].mxu0
    %8358 = vmatprep.mubr.f32.mxu0 0.0
    %8359 = vmatmul.mubr.f32.gmra.mrb[0].mxu0 %v8005
    %v8360 = vpop.f32.mrb[0].mxu0
    %v8361 = vadd.f32 0.0, %v8360
    %v8362 = vpop.f32.mrb[0].mxu0
    %8363 = vmatprep.mubr.f32.mxu0 0.0
    %8364 = vmatmul.mubr.f32.gmra.mrb[0].mxu0 %v8008
    %v8365 = vpop.f32.mrb[0].mxu0
    %v8366 = vadd.f32 0.0, %v8365
    %v8367 = vpop.f32.mrb[0].mxu0
    %8368 = vmatprep.mubr.f32.mxu0 0.0
    %8369 = vmatmul.mubr.f32.gmra.mrb[0].mxu0 %v8011
    %v8370 = vpop.f32.mrb[0].mxu0
    %v8371 = vadd.f32 0.0, %v8370
    %v8372 = vpop.f32.mrb[0].mxu0
    %8373 = vmatprep.mubr.f32.mxu0 0.0
    %8374 = vmatmul.mubr.f32.gmra.mrb[0].mxu0 %v8014
    %v8375 = vpop.f32.mrb[0].mxu0
    %v8376 = vadd.f32 0.0, %v8375
    %v8377 = vpop.f32.mrb[0].mxu0
    %8378 = vmatprep.mubr.f32.mxu0 0.0
    %8379 = vmatmul.mubr.f32.gmra.mrb[0].mxu0 %v8017
    %v8380 = vpop.f32.mrb[0].mxu0
    %v8381 = vadd.f32 0.0, %v8380
    %v8382 = vpop.f32.mrb[0].mxu0
    %8383 = vmatprep.mubr.f32.mxu0 0.0
    %8384 = vmatmul.mubr.f32.gmra.mrb[0].mxu0 %v8020
    %v8385 = vpop.f32.mrb[0].mxu0
    %v8386 = vadd.f32 0.0, %v8385
    %v8387 = vpop.f32.mrb[0].mxu0
    %8388 = vmatprep.mubr.f32.mxu0 0.0
    %8389 = vmatmul.mubr.f32.gmra.mrb[0].mxu0 %v8023
    %v8390 = vpop.f32.mrb[0].mxu0
    %v8391 = vadd.f32 0.0, %v8390
    %v8392 = vpop.f32.mrb[0].mxu0
    %8393 = vmatprep.mubr.f32.mxu0 0.0
    %8394 = vmatmul.mubr.f32.gmra.mrb[0].mxu0 %v8026
    %v8395 = vpop.f32.mrb[0].mxu0
    %v8396 = vadd.f32 0.0, %v8395
    %v8397 = vpop.f32.mrb[0].mxu0
    %8398 = vmatprep.mubr.f32.mxu0 0.0
    %8399 = vmatmul.mubr.f32.gmra.mrb[0].mxu0 %v8029
    %v8400 = vpop.f32.mrb[0].mxu0
    %v8401 = vadd.f32 0.0, %v8400
    %v8402 = vpop.f32.mrb[0].mxu0
    %8403 = vmatprep.mubr.f32.mxu0 0.0
    %8404 = vmatmul.mubr.f32.gmra.mrb[0].mxu0 %v8032
    %v8405 = vpop.f32.mrb[0].mxu0
    %v8406 = vadd.f32 0.0, %v8405
    %v8407 = vpop.f32.mrb[0].mxu0
    %8408 = vmatprep.mubr.f32.mxu0 0.0
    %8409 = vmatmul.mubr.f32.gmra.mrb[0].mxu0 %v8035
    %v8410 = vpop.f32.mrb[0].mxu0
    %v8411 = vadd.f32 0.0, %v8410
    %v8412 = vpop.f32.mrb[0].mxu0
    %8413 = vmatprep.mubr.f32.mxu0 0.0
    %8414 = vmatmul.mubr.f32.gmra.mrb[0].mxu0 %v8038
    %v8415 = vpop.f32.mrb[0].mxu0
    %v8416 = vadd.f32 0.0, %v8415
    %v8417 = vpop.f32.mrb[0].mxu0
    %8418 = vmatprep.mubr.f32.mxu0 0.0
    %8419 = vmatmul.mubr.f32.gmra.mrb[0].mxu0 %v8041
    %v8420 = vpop.f32.mrb[0].mxu0
    %v8421 = vadd.f32 0.0, %v8420
    %v8422 = vpop.f32.mrb[0].mxu0
    %8423 = vmatprep.mubr.f32.mxu0 0.0
    %8424 = vmatmul.mubr.f32.gmra.mrb[0].mxu0 %v8044
    %v8425 = vpop.f32.mrb[0].mxu0
    %v8426 = vadd.f32 0.0, %v8425
    %v8427 = vpop.f32.mrb[0].mxu0
    %8428 = vmatprep.mubr.f32.mxu0 0.0
    %8429 = vmatmul.mubr.f32.gmra.mrb[0].mxu0 %v8047
    %v8430 = vpop.f32.mrb[0].mxu0
    %v8431 = vadd.f32 0.0, %v8430
    %v8432 = vpop.f32.mrb[0].mxu0
    %8433 = vdwg.mxu0
    %v8435 = vsel %vm6984, %v7704, 0
    %v8438 = vsel %vm6984, %v7705, 0
    %v8441 = vsel %vm6984, %v7706, 0
    %v8444 = vsel %vm6984, %v7707, 0
    %v8447 = vsel %vm6984, %v7708, 0
    %v8450 = vsel %vm6984, %v7709, 0
    %v8453 = vsel %vm6984, %v7710, 0
    %v8456 = vsel %vm6984, %v7711, 0
    %v8459 = vsel %vm6984, %v7712, 0
    %v8462 = vsel %vm6984, %v7713, 0
    %v8465 = vsel %vm6984, %v7714, 0
    %v8468 = vsel %vm6984, %v7715, 0
    %v8471 = vsel %vm6984, %v7716, 0
    %v8474 = vsel %vm6984, %v7717, 0
    %v8477 = vsel %vm6984, %v7718, 0
    %v8480 = vsel %vm6984, %v7719, 0
    %v8483 = vsel %vm6984, %v7720, 0
    %v8486 = vsel %vm6984, %v7721, 0
    %v8489 = vsel %vm6984, %v7722, 0
    %v8492 = vsel %vm6984, %v7723, 0
    %v8495 = vsel %vm6984, %v7724, 0
    %v8498 = vsel %vm6984, %v7725, 0
    %v8501 = vsel %vm6984, %v7726, 0
    %v8504 = vsel %vm6984, %v7727, 0
    %v8507 = vsel %vm6984, %v7728, 0
    %v8510 = vsel %vm6984, %v7729, 0
    %v8513 = vsel %vm6984, %v7730, 0
    %v8516 = vsel %vm6984, %v7731, 0
    %v8519 = vsel %vm6984, %v7732, 0
    %v8522 = vsel %vm6984, %v7733, 0
    %v8525 = vsel %vm6984, %v7734, 0
    %v8528 = vsel %vm6984, %v7735, 0
    %v8531 = vsel %vm6984, %v7736, 0
    %v8534 = vsel %vm6984, %v7737, 0
    %v8537 = vsel %vm6984, %v7738, 0
    %v8540 = vsel %vm6984, %v7739, 0
    %v8543 = vsel %vm6984, %v7740, 0
    %v8546 = vsel %vm6984, %v7741, 0
    %v8549 = vsel %vm6984, %v7742, 0
    %v8552 = vsel %vm6984, %v7743, 0
    %v8555 = vsel %vm6984, %v7744, 0
    %v8558 = vsel %vm6984, %v7745, 0
    %v8561 = vsel %vm6984, %v7746, 0
    %v8564 = vsel %vm6984, %v7747, 0
    %v8567 = vsel %vm6984, %v7748, 0
    %v8570 = vsel %vm6984, %v7749, 0
    %v8573 = vsel %vm6984, %v7750, 0
    %v8576 = vsel %vm6984, %v7751, 0
    %v8579 = vsel %vm6984, %v7752, 0
    %v8582 = vsel %vm6984, %v7753, 0
    %v8585 = vsel %vm6984, %v7754, 0
    %v8588 = vsel %vm6984, %v7755, 0
    %v8591 = vsel %vm6984, %v7756, 0
    %v8594 = vsel %vm6984, %v7757, 0
    %v8597 = vsel %vm6984, %v7758, 0
    %v8600 = vsel %vm6984, %v7759, 0
    %v8603 = vsel %vm6984, %v7760, 0
    %v8606 = vsel %vm6984, %v7761, 0
    %v8609 = vsel %vm6984, %v7762, 0
    %v8612 = vsel %vm6984, %v7763, 0
    %v8615 = vsel %vm6984, %v7764, 0
    %v8618 = vsel %vm6984, %v7765, 0
    %v8621 = vsel %vm6984, %v7766, 0
    %v8624 = vsel %vm6984, %v7767, 0
    %8626 = vmatprep.subr.mxu0 0.0
    %8627 = vmatpush1.msra.mxu0 %v7768
    %8628 = vmatprep.subr.mxu0 0.0
    %8629 = vmatpush1.msra.mxu0 %v7769
    %8630 = vmatprep.subr.mxu0 0.0
    %8631 = vmatpush1.msra.mxu0 %v7770
    %8632 = vmatprep.subr.mxu0 0.0
    %8633 = vmatpush1.msra.mxu0 %v7771
    %8634 = vmatprep.subr.mxu0 0.0
    %8635 = vmatpush1.msra.mxu0 %v7772
    %8636 = vmatprep.subr.mxu0 0.0
    %8637 = vmatpush1.msra.mxu0 %v7773
    %8638 = vmatprep.subr.mxu0 0.0
    %8639 = vmatpush1.msra.mxu0 %v7774
    %8640 = vmatprep.subr.mxu0 0.0
    %8641 = vmatpush1.msra.mxu0 %v7775
    %8642 = vmatprep.subr.mxu0 0.0
    %8643 = vmatpush1.msra.mxu0 %v7776
    %8644 = vmatprep.subr.mxu0 0.0
    %8645 = vmatpush1.msra.mxu0 %v7777
    %8646 = vmatprep.subr.mxu0 0.0
    %8647 = vmatpush1.msra.mxu0 %v7778
    %8648 = vmatprep.subr.mxu0 0.0
    %8649 = vmatpush1.msra.mxu0 %v7779
    %8650 = vmatprep.subr.mxu0 0.0
    %8651 = vmatpush1.msra.mxu0 0.0
    %8652 = vmatprep.subr.mxu0 0.0
    %8653 = vmatpush1.msra.mxu0 0.0
    %8654 = vmatprep.subr.mxu0 0.0
    %8655 = vmatpush1.msra.mxu0 0.0
    %8656 = vmatprep.subr.mxu0 0.0
    %8657 = vmatpush1.msra.mxu0 0.0
    %8658 = vmatprep.subr.mxu0 0.0
    %8659 = vmatpush1.msra.mxu0 0.0
    %8660 = vmatprep.subr.mxu0 0.0
    %8661 = vmatpush1.msra.mxu0 0.0
    %8662 = vmatprep.subr.mxu0 0.0
    %8663 = vmatpush1.msra.mxu0 0.0
    %8664 = vmatprep.subr.mxu0 0.0
    %8665 = vmatpush1.msra.mxu0 0.0
    %8666 = vmatprep.subr.mxu0 0.0
    %8667 = vmatpush1.msra.mxu0 0.0
    %8668 = vmatprep.subr.mxu0 0.0
    %8669 = vmatpush1.msra.mxu0 0.0
    %8670 = vmatprep.subr.mxu0 0.0
    %8671 = vmatpush1.msra.mxu0 0.0
    %8672 = vmatprep.subr.mxu0 0.0
    %8673 = vmatpush1.msra.mxu0 0.0
    %8674 = vmatprep.subr.mxu0 0.0
    %8675 = vmatpush1.msra.mxu0 0.0
    %8676 = vmatprep.subr.mxu0 0.0
    %8677 = vmatpush1.msra.mxu0 0.0
    %8678 = vmatprep.subr.mxu0 0.0
    %8679 = vmatpush1.msra.mxu0 0.0
    %8680 = vmatprep.subr.mxu0 0.0
    %8681 = vmatpush1.msra.mxu0 0.0
    %8682 = vmatprep.subr.mxu0 0.0
    %8683 = vmatpush1.msra.mxu0 0.0
    %8684 = vmatprep.subr.mxu0 0.0
    %8685 = vmatpush1.msra.mxu0 0.0
    %8686 = vmatprep.subr.mxu0 0.0
    %8687 = vmatpush1.msra.mxu0 0.0
    %8688 = vmatprep.subr.mxu0 0.0
    %8689 = vmatpush1.msra.mxu0 0.0
    %8690 = vmatprep.mubr.f32.mxu0 0.0
    %8691 = vmatmul.mubr.f32.gmra.mrb[0].mxu0 %v8435
    %v8692 = vpop.f32.mrb[0].mxu0
    %v8693 = vadd.f32 %v8116, %v8692
    %v8694 = vpop.f32.mrb[0].mxu0
    %8695 = vmatprep.mubr.f32.mxu0 0.0
    %8696 = vmatmul.mubr.f32.gmra.mrb[0].mxu0 %v8438
    %v8697 = vpop.f32.mrb[0].mxu0
    %v8698 = vadd.f32 %v8121, %v8697
    %v8699 = vpop.f32.mrb[0].mxu0
    %8700 = vmatprep.mubr.f32.mxu0 0.0
    %8701 = vmatmul.mubr.f32.gmra.mrb[0].mxu0 %v8441
    %v8702 = vpop.f32.mrb[0].mxu0
    %v8703 = vadd.f32 %v8126, %v8702
    %v8704 = vpop.f32.mrb[0].mxu0
    %8705 = vmatprep.mubr.f32.mxu0 0.0
    %8706 = vmatmul.mubr.f32.gmra.mrb[0].mxu0 %v8444
    %v8707 = vpop.f32.mrb[0].mxu0
    %v8708 = vadd.f32 %v8131, %v8707
    %v8709 = vpop.f32.mrb[0].mxu0
    %8710 = vmatprep.mubr.f32.mxu0 0.0
    %8711 = vmatmul.mubr.f32.gmra.mrb[0].mxu0 %v8447
    %v8712 = vpop.f32.mrb[0].mxu0
    %v8713 = vadd.f32 %v8136, %v8712
    %v8714 = vpop.f32.mrb[0].mxu0
    %8715 = vmatprep.mubr.f32.mxu0 0.0
    %8716 = vmatmul.mubr.f32.gmra.mrb[0].mxu0 %v8450
    %v8717 = vpop.f32.mrb[0].mxu0
    %v8718 = vadd.f32 %v8141, %v8717
    %v8719 = vpop.f32.mrb[0].mxu0
    %8720 = vmatprep.mubr.f32.mxu0 0.0
    %8721 = vmatmul.mubr.f32.gmra.mrb[0].mxu0 %v8453
    %v8722 = vpop.f32.mrb[0].mxu0
    %v8723 = vadd.f32 %v8146, %v8722
    %v8724 = vpop.f32.mrb[0].mxu0
    %8725 = vmatprep.mubr.f32.mxu0 0.0
    %8726 = vmatmul.mubr.f32.gmra.mrb[0].mxu0 %v8456
    %v8727 = vpop.f32.mrb[0].mxu0
    %v8728 = vadd.f32 %v8151, %v8727
    %v8729 = vpop.f32.mrb[0].mxu0
    %8730 = vmatprep.mubr.f32.mxu0 0.0
    %8731 = vmatmul.mubr.f32.gmra.mrb[0].mxu0 %v8459
    %v8732 = vpop.f32.mrb[0].mxu0
    %v8733 = vadd.f32 %v8156, %v8732
    %v8734 = vpop.f32.mrb[0].mxu0
    %8735 = vmatprep.mubr.f32.mxu0 0.0
    %8736 = vmatmul.mubr.f32.gmra.mrb[0].mxu0 %v8462
    %v8737 = vpop.f32.mrb[0].mxu0
    %v8738 = vadd.f32 %v8161, %v8737
    %v8739 = vpop.f32.mrb[0].mxu0
    %8740 = vmatprep.mubr.f32.mxu0 0.0
    %8741 = vmatmul.mubr.f32.gmra.mrb[0].mxu0 %v8465
    %v8742 = vpop.f32.mrb[0].mxu0
    %v8743 = vadd.f32 %v8166, %v8742
    %v8744 = vpop.f32.mrb[0].mxu0
    %8745 = vmatprep.mubr.f32.mxu0 0.0
    %8746 = vmatmul.mubr.f32.gmra.mrb[0].mxu0 %v8468
    %v8747 = vpop.f32.mrb[0].mxu0
    %v8748 = vadd.f32 %v8171, %v8747
    %v8749 = vpop.f32.mrb[0].mxu0
    %8750 = vmatprep.mubr.f32.mxu0 0.0
    %8751 = vmatmul.mubr.f32.gmra.mrb[0].mxu0 %v8471
    %v8752 = vpop.f32.mrb[0].mxu0
    %v8753 = vadd.f32 %v8176, %v8752
    %v8754 = vpop.f32.mrb[0].mxu0
    %8755 = vmatprep.mubr.f32.mxu0 0.0
    %8756 = vmatmul.mubr.f32.gmra.mrb[0].mxu0 %v8474
    %v8757 = vpop.f32.mrb[0].mxu0
    %v8758 = vadd.f32 %v8181, %v8757
    %v8759 = vpop.f32.mrb[0].mxu0
    %8760 = vmatprep.mubr.f32.mxu0 0.0
    %8761 = vmatmul.mubr.f32.gmra.mrb[0].mxu0 %v8477
    %v8762 = vpop.f32.mrb[0].mxu0
    %v8763 = vadd.f32 %v8186, %v8762
    %v8764 = vpop.f32.mrb[0].mxu0
    %8765 = vmatprep.mubr.f32.mxu0 0.0
    %8766 = vmatmul.mubr.f32.gmra.mrb[0].mxu0 %v8480
    %v8767 = vpop.f32.mrb[0].mxu0
    %v8768 = vadd.f32 %v8191, %v8767
    %v8769 = vpop.f32.mrb[0].mxu0
    %8770 = vmatprep.mubr.f32.mxu0 0.0
    %8771 = vmatmul.mubr.f32.gmra.mrb[0].mxu0 %v8483
    %v8772 = vpop.f32.mrb[0].mxu0
    %v8773 = vadd.f32 %v8196, %v8772
    %v8774 = vpop.f32.mrb[0].mxu0
    %8775 = vmatprep.mubr.f32.mxu0 0.0
    %8776 = vmatmul.mubr.f32.gmra.mrb[0].mxu0 %v8486
    %v8777 = vpop.f32.mrb[0].mxu0
    %v8778 = vadd.f32 %v8201, %v8777
    %v8779 = vpop.f32.mrb[0].mxu0
    %8780 = vmatprep.mubr.f32.mxu0 0.0
    %8781 = vmatmul.mubr.f32.gmra.mrb[0].mxu0 %v8489
    %v8782 = vpop.f32.mrb[0].mxu0
    %v8783 = vadd.f32 %v8206, %v8782
    %v8784 = vpop.f32.mrb[0].mxu0
    %8785 = vmatprep.mubr.f32.mxu0 0.0
    %8786 = vmatmul.mubr.f32.gmra.mrb[0].mxu0 %v8492
    %v8787 = vpop.f32.mrb[0].mxu0
    %v8788 = vadd.f32 %v8211, %v8787
    %v8789 = vpop.f32.mrb[0].mxu0
    %8790 = vmatprep.mubr.f32.mxu0 0.0
    %8791 = vmatmul.mubr.f32.gmra.mrb[0].mxu0 %v8495
    %v8792 = vpop.f32.mrb[0].mxu0
    %v8793 = vadd.f32 %v8216, %v8792
    %v8794 = vpop.f32.mrb[0].mxu0
    %8795 = vmatprep.mubr.f32.mxu0 0.0
    %8796 = vmatmul.mubr.f32.gmra.mrb[0].mxu0 %v8498
    %v8797 = vpop.f32.mrb[0].mxu0
    %v8798 = vadd.f32 %v8221, %v8797
    %v8799 = vpop.f32.mrb[0].mxu0
    %8800 = vmatprep.mubr.f32.mxu0 0.0
    %8801 = vmatmul.mubr.f32.gmra.mrb[0].mxu0 %v8501
    %v8802 = vpop.f32.mrb[0].mxu0
    %v8803 = vadd.f32 %v8226, %v8802
    %v8804 = vpop.f32.mrb[0].mxu0
    %8805 = vmatprep.mubr.f32.mxu0 0.0
    %8806 = vmatmul.mubr.f32.gmra.mrb[0].mxu0 %v8504
    %v8807 = vpop.f32.mrb[0].mxu0
    %v8808 = vadd.f32 %v8231, %v8807
    %v8809 = vpop.f32.mrb[0].mxu0
    %8810 = vmatprep.mubr.f32.mxu0 0.0
    %8811 = vmatmul.mubr.f32.gmra.mrb[0].mxu0 %v8507
    %v8812 = vpop.f32.mrb[0].mxu0
    %v8813 = vadd.f32 %v8236, %v8812
    %v8814 = vpop.f32.mrb[0].mxu0
    %8815 = vmatprep.mubr.f32.mxu0 0.0
    %8816 = vmatmul.mubr.f32.gmra.mrb[0].mxu0 %v8510
    %v8817 = vpop.f32.mrb[0].mxu0
    %v8818 = vadd.f32 %v8241, %v8817
    %v8819 = vpop.f32.mrb[0].mxu0
    %8820 = vmatprep.mubr.f32.mxu0 0.0
    %8821 = vmatmul.mubr.f32.gmra.mrb[0].mxu0 %v8513
    %v8822 = vpop.f32.mrb[0].mxu0
    %v8823 = vadd.f32 %v8246, %v8822
    %v8824 = vpop.f32.mrb[0].mxu0
    %8825 = vmatprep.mubr.f32.mxu0 0.0
    %8826 = vmatmul.mubr.f32.gmra.mrb[0].mxu0 %v8516
    %v8827 = vpop.f32.mrb[0].mxu0
    %v8828 = vadd.f32 %v8251, %v8827
    %v8829 = vpop.f32.mrb[0].mxu0
    %8830 = vmatprep.mubr.f32.mxu0 0.0
    %8831 = vmatmul.mubr.f32.gmra.mrb[0].mxu0 %v8519
    %v8832 = vpop.f32.mrb[0].mxu0
    %v8833 = vadd.f32 %v8256, %v8832
    %v8834 = vpop.f32.mrb[0].mxu0
    %8835 = vmatprep.mubr.f32.mxu0 0.0
    %8836 = vmatmul.mubr.f32.gmra.mrb[0].mxu0 %v8522
    %v8837 = vpop.f32.mrb[0].mxu0
    %v8838 = vadd.f32 %v8261, %v8837
    %v8839 = vpop.f32.mrb[0].mxu0
    %8840 = vmatprep.mubr.f32.mxu0 0.0
    %8841 = vmatmul.mubr.f32.gmra.mrb[0].mxu0 %v8525
    %v8842 = vpop.f32.mrb[0].mxu0
    %v8843 = vadd.f32 %v8266, %v8842
    %v8844 = vpop.f32.mrb[0].mxu0
    %8845 = vmatprep.mubr.f32.mxu0 0.0
    %8846 = vmatmul.mubr.f32.gmra.mrb[0].mxu0 %v8528
    %v8847 = vpop.f32.mrb[0].mxu0
    %v8848 = vadd.f32 %v8271, %v8847
    %v8849 = vpop.f32.mrb[0].mxu0
    %8850 = vmatprep.mubr.f32.mxu0 0.0
    %8851 = vmatmul.mubr.f32.gmra.mrb[0].mxu0 %v8531
    %v8852 = vpop.f32.mrb[0].mxu0
    %v8853 = vadd.f32 %v8276, %v8852
    %v8854 = vpop.f32.mrb[0].mxu0
    %8855 = vmatprep.mubr.f32.mxu0 0.0
    %8856 = vmatmul.mubr.f32.gmra.mrb[0].mxu0 %v8534
    %v8857 = vpop.f32.mrb[0].mxu0
    %v8858 = vadd.f32 %v8281, %v8857
    %v8859 = vpop.f32.mrb[0].mxu0
    %8860 = vmatprep.mubr.f32.mxu0 0.0
    %8861 = vmatmul.mubr.f32.gmra.mrb[0].mxu0 %v8537
    %v8862 = vpop.f32.mrb[0].mxu0
    %v8863 = vadd.f32 %v8286, %v8862
    %v8864 = vpop.f32.mrb[0].mxu0
    %8865 = vmatprep.mubr.f32.mxu0 0.0
    %8866 = vmatmul.mubr.f32.gmra.mrb[0].mxu0 %v8540
    %v8867 = vpop.f32.mrb[0].mxu0
    %v8868 = vadd.f32 %v8291, %v8867
    %v8869 = vpop.f32.mrb[0].mxu0
    %8870 = vmatprep.mubr.f32.mxu0 0.0
    %8871 = vmatmul.mubr.f32.gmra.mrb[0].mxu0 %v8543
    %v8872 = vpop.f32.mrb[0].mxu0
    %v8873 = vadd.f32 %v8296, %v8872
    %v8874 = vpop.f32.mrb[0].mxu0
    %8875 = vmatprep.mubr.f32.mxu0 0.0
    %8876 = vmatmul.mubr.f32.gmra.mrb[0].mxu0 %v8546
    %v8877 = vpop.f32.mrb[0].mxu0
    %v8878 = vadd.f32 %v8301, %v8877
    %v8879 = vpop.f32.mrb[0].mxu0
    %8880 = vmatprep.mubr.f32.mxu0 0.0
    %8881 = vmatmul.mubr.f32.gmra.mrb[0].mxu0 %v8549
    %v8882 = vpop.f32.mrb[0].mxu0
    %v8883 = vadd.f32 %v8306, %v8882
    %v8884 = vpop.f32.mrb[0].mxu0
    %8885 = vmatprep.mubr.f32.mxu0 0.0
    %8886 = vmatmul.mubr.f32.gmra.mrb[0].mxu0 %v8552
    %v8887 = vpop.f32.mrb[0].mxu0
    %v8888 = vadd.f32 %v8311, %v8887
    %v8889 = vpop.f32.mrb[0].mxu0
    %8890 = vmatprep.mubr.f32.mxu0 0.0
    %8891 = vmatmul.mubr.f32.gmra.mrb[0].mxu0 %v8555
    %v8892 = vpop.f32.mrb[0].mxu0
    %v8893 = vadd.f32 %v8316, %v8892
    %v8894 = vpop.f32.mrb[0].mxu0
    %8895 = vmatprep.mubr.f32.mxu0 0.0
    %8896 = vmatmul.mubr.f32.gmra.mrb[0].mxu0 %v8558
    %v8897 = vpop.f32.mrb[0].mxu0
    %v8898 = vadd.f32 %v8321, %v8897
    %v8899 = vpop.f32.mrb[0].mxu0
    %8900 = vmatprep.mubr.f32.mxu0 0.0
    %8901 = vmatmul.mubr.f32.gmra.mrb[0].mxu0 %v8561
    %v8902 = vpop.f32.mrb[0].mxu0
    %v8903 = vadd.f32 %v8326, %v8902
    %v8904 = vpop.f32.mrb[0].mxu0
    %8905 = vmatprep.mubr.f32.mxu0 0.0
    %8906 = vmatmul.mubr.f32.gmra.mrb[0].mxu0 %v8564
    %v8907 = vpop.f32.mrb[0].mxu0
    %v8908 = vadd.f32 %v8331, %v8907
    %v8909 = vpop.f32.mrb[0].mxu0
    %8910 = vmatprep.mubr.f32.mxu0 0.0
    %8911 = vmatmul.mubr.f32.gmra.mrb[0].mxu0 %v8567
    %v8912 = vpop.f32.mrb[0].mxu0
    %v8913 = vadd.f32 %v8336, %v8912
    %v8914 = vpop.f32.mrb[0].mxu0
    %8915 = vmatprep.mubr.f32.mxu0 0.0
    %8916 = vmatmul.mubr.f32.gmra.mrb[0].mxu0 %v8570
    %v8917 = vpop.f32.mrb[0].mxu0
    %v8918 = vadd.f32 %v8341, %v8917
    %v8919 = vpop.f32.mrb[0].mxu0
    %8920 = vmatprep.mubr.f32.mxu0 0.0
    %8921 = vmatmul.mubr.f32.gmra.mrb[0].mxu0 %v8573
    %v8922 = vpop.f32.mrb[0].mxu0
    %v8923 = vadd.f32 %v8346, %v8922
    %v8924 = vpop.f32.mrb[0].mxu0
    %8925 = vmatprep.mubr.f32.mxu0 0.0
    %8926 = vmatmul.mubr.f32.gmra.mrb[0].mxu0 %v8576
    %v8927 = vpop.f32.mrb[0].mxu0
    %v8928 = vadd.f32 %v8351, %v8927
    %v8929 = vpop.f32.mrb[0].mxu0
    %8930 = vmatprep.mubr.f32.mxu0 0.0
    %8931 = vmatmul.mubr.f32.gmra.mrb[0].mxu0 %v8579
    %v8932 = vpop.f32.mrb[0].mxu0
    %v8933 = vadd.f32 %v8356, %v8932
    %v8934 = vpop.f32.mrb[0].mxu0
    %8935 = vmatprep.mubr.f32.mxu0 0.0
    %8936 = vmatmul.mubr.f32.gmra.mrb[0].mxu0 %v8582
    %v8937 = vpop.f32.mrb[0].mxu0
    %v8938 = vadd.f32 %v8361, %v8937
    %v8939 = vpop.f32.mrb[0].mxu0
    %8940 = vmatprep.mubr.f32.mxu0 0.0
    %8941 = vmatmul.mubr.f32.gmra.mrb[0].mxu0 %v8585
    %v8942 = vpop.f32.mrb[0].mxu0
    %v8943 = vadd.f32 %v8366, %v8942
    %v8944 = vpop.f32.mrb[0].mxu0
    %8945 = vmatprep.mubr.f32.mxu0 0.0
    %8946 = vmatmul.mubr.f32.gmra.mrb[0].mxu0 %v8588
    %v8947 = vpop.f32.mrb[0].mxu0
    %v8948 = vadd.f32 %v8371, %v8947
    %v8949 = vpop.f32.mrb[0].mxu0
    %8950 = vmatprep.mubr.f32.mxu0 0.0
    %8951 = vmatmul.mubr.f32.gmra.mrb[0].mxu0 %v8591
    %v8952 = vpop.f32.mrb[0].mxu0
    %v8953 = vadd.f32 %v8376, %v8952
    %v8954 = vpop.f32.mrb[0].mxu0
    %8955 = vmatprep.mubr.f32.mxu0 0.0
    %8956 = vmatmul.mubr.f32.gmra.mrb[0].mxu0 %v8594
    %v8957 = vpop.f32.mrb[0].mxu0
    %v8958 = vadd.f32 %v8381, %v8957
    %v8959 = vpop.f32.mrb[0].mxu0
    %8960 = vmatprep.mubr.f32.mxu0 0.0
    %8961 = vmatmul.mubr.f32.gmra.mrb[0].mxu0 %v8597
    %v8962 = vpop.f32.mrb[0].mxu0
    %v8963 = vadd.f32 %v8386, %v8962
    %v8964 = vpop.f32.mrb[0].mxu0
    %8965 = vmatprep.mubr.f32.mxu0 0.0
    %8966 = vmatmul.mubr.f32.gmra.mrb[0].mxu0 %v8600
    %v8967 = vpop.f32.mrb[0].mxu0
    %v8968 = vadd.f32 %v8391, %v8967
    %v8969 = vpop.f32.mrb[0].mxu0
    %8970 = vmatprep.mubr.f32.mxu0 0.0
    %8971 = vmatmul.mubr.f32.gmra.mrb[0].mxu0 %v8603
    %v8972 = vpop.f32.mrb[0].mxu0
    %v8973 = vadd.f32 %v8396, %v8972
    %v8974 = vpop.f32.mrb[0].mxu0
    %8975 = vmatprep.mubr.f32.mxu0 0.0
    %8976 = vmatmul.mubr.f32.gmra.mrb[0].mxu0 %v8606
    %v8977 = vpop.f32.mrb[0].mxu0
    %v8978 = vadd.f32 %v8401, %v8977
    %v8979 = vpop.f32.mrb[0].mxu0
    %8980 = vmatprep.mubr.f32.mxu0 0.0
    %8981 = vmatmul.mubr.f32.gmra.mrb[0].mxu0 %v8609
    %v8982 = vpop.f32.mrb[0].mxu0
    %v8983 = vadd.f32 %v8406, %v8982
    %v8984 = vpop.f32.mrb[0].mxu0
    %8985 = vmatprep.mubr.f32.mxu0 0.0
    %8986 = vmatmul.mubr.f32.gmra.mrb[0].mxu0 %v8612
    %v8987 = vpop.f32.mrb[0].mxu0
    %v8988 = vadd.f32 %v8411, %v8987
    %v8989 = vpop.f32.mrb[0].mxu0
    %8990 = vmatprep.mubr.f32.mxu0 0.0
    %8991 = vmatmul.mubr.f32.gmra.mrb[0].mxu0 %v8615
    %v8992 = vpop.f32.mrb[0].mxu0
    %v8993 = vadd.f32 %v8416, %v8992
    %v8994 = vpop.f32.mrb[0].mxu0
    %8995 = vmatprep.mubr.f32.mxu0 0.0
    %8996 = vmatmul.mubr.f32.gmra.mrb[0].mxu0 %v8618
    %v8997 = vpop.f32.mrb[0].mxu0
    %v8998 = vadd.f32 %v8421, %v8997
    %v8999 = vpop.f32.mrb[0].mxu0
    %9000 = vmatprep.mubr.f32.mxu0 0.0
    %9001 = vmatmul.mubr.f32.gmra.mrb[0].mxu0 %v8621
    %v9002 = vpop.f32.mrb[0].mxu0
    %v9003 = vadd.f32 %v8426, %v9002
    %v9004 = vpop.f32.mrb[0].mxu0
    %9005 = vmatprep.mubr.f32.mxu0 0.0
    %9006 = vmatmul.mubr.f32.gmra.mrb[0].mxu0 %v8624
    %v9007 = vpop.f32.mrb[0].mxu0
    %v9008 = vadd.f32 %v8431, %v9007
    %v9009 = vpop.f32.mrb[0].mxu0
    %9010 = vdwg.mxu0
    %s9011 = scalar_lea.vmem [#allocation4], 64
    %v9012 = vld [vmem:[%s9011 + $0x8] sm:$0xff]
    %v9013 = vld [vmem:[%s9011 + $0x10] sm:$0xff]
    %v9014 = vld [vmem:[%s9011 + $0x28] sm:$0xff]
    %v9015 = vld [vmem:[%s9011 + $0x30] sm:$0xff]
    %v9016 = vld [vmem:[%s9011 + $0x48] sm:$0xff]
    %v9017 = vld [vmem:[%s9011 + $0x50] sm:$0xff]
    %v9018 = vld [vmem:[%s9011 + $0x68] sm:$0xff]
    %v9019 = vld [vmem:[%s9011 + $0x70] sm:$0xff]
    %v9020 = vld [vmem:[%s9011 + $0x88] sm:$0xff]
    %v9021 = vld [vmem:[%s9011 + $0x90] sm:$0xff]
    %v9022 = vld [vmem:[%s9011 + $0xa8] sm:$0xff]
    %v9023 = vld [vmem:[%s9011 + $0xb0] sm:$0xff]
    %v9024 = vld [vmem:[%s9011 + $0xc8] sm:$0xff]
    %v9025 = vld [vmem:[%s9011 + $0xd0] sm:$0xff]
    %v9026 = vld [vmem:[%s9011 + $0xe8] sm:$0xff]
    %v9027 = vld [vmem:[%s9011 + $0xf0] sm:$0xff]
    %v9028 = vld [vmem:[%s9011 + $0x108] sm:$0xff]
    %v9029 = vld [vmem:[%s9011 + $0x110] sm:$0xff]
    %v9030 = vld [vmem:[%s9011 + $0x128] sm:$0xff]
    %v9031 = vld [vmem:[%s9011 + $0x130] sm:$0xff]
    %v9032 = vld [vmem:[%s9011 + $0x148] sm:$0xff]
    %v9033 = vld [vmem:[%s9011 + $0x150] sm:$0xff]
    %v9034 = vld [vmem:[%s9011 + $0x168] sm:$0xff]
    %v9035 = vld [vmem:[%s9011 + $0x170] sm:$0xff]
    %v9036 = vld [vmem:[%s9011 + $0x188] sm:$0xff]
    %v9037 = vld [vmem:[%s9011 + $0x190] sm:$0xff]
    %v9038 = vld [vmem:[%s9011 + $0x1a8] sm:$0xff]
    %v9039 = vld [vmem:[%s9011 + $0x1b0] sm:$0xff]
    %v9040 = vld [vmem:[%s9011 + $0x1c8] sm:$0xff]
    %v9041 = vld [vmem:[%s9011 + $0x1d0] sm:$0xff]
    %v9042 = vld [vmem:[%s9011 + $0x1e8] sm:$0xff]
    %v9043 = vld [vmem:[%s9011 + $0x1f0] sm:$0xff]
    %v9044 = vld [vmem:[%s9011 + $0x248] sm:$0xff]
    %v9045 = vld [vmem:[%s9011 + $0x250] sm:$0xff]
    %v9046 = vld [vmem:[%s9011 + $0x268] sm:$0xff]
    %v9047 = vld [vmem:[%s9011 + $0x270] sm:$0xff]
    %v9048 = vld [vmem:[%s9011 + $0x288] sm:$0xff]
    %v9049 = vld [vmem:[%s9011 + $0x290] sm:$0xff]
    %v9050 = vld [vmem:[%s9011 + $0x2a8] sm:$0xff]
    %v9051 = vld [vmem:[%s9011 + $0x2b0] sm:$0xff]
    %v9052 = vld [vmem:[%s9011 + $0x2c8] sm:$0xff]
    %v9053 = vld [vmem:[%s9011 + $0x2d0] sm:$0xff]
    %v9054 = vld [vmem:[%s9011 + $0x2e8] sm:$0xff]
    %v9055 = vld [vmem:[%s9011 + $0x2f0] sm:$0xff]
    %v9056 = vld [vmem:[%s9011 + $0x308] sm:$0xff]
    %v9057 = vld [vmem:[%s9011 + $0x310] sm:$0xff]
    %v9058 = vld [vmem:[%s9011 + $0x328] sm:$0xff]
    %v9059 = vld [vmem:[%s9011 + $0x330] sm:$0xff]
    %v9060 = vld [vmem:[%s9011 + $0x348] sm:$0xff]
    %v9061 = vld [vmem:[%s9011 + $0x350] sm:$0xff]
    %v9062 = vld [vmem:[%s9011 + $0x368] sm:$0xff]
    %v9063 = vld [vmem:[%s9011 + $0x370] sm:$0xff]
    %v9064 = vld [vmem:[%s9011 + $0x388] sm:$0xff]
    %v9065 = vld [vmem:[%s9011 + $0x390] sm:$0xff]
    %v9066 = vld [vmem:[%s9011 + $0x3a8] sm:$0xff]
    %v9067 = vld [vmem:[%s9011 + $0x3b0] sm:$0xff]
    %v9068 = vld [vmem:[%s9011 + $0x3c8] sm:$0xff]
    %v9069 = vld [vmem:[%s9011 + $0x3d0] sm:$0xff]
    %v9070 = vld [vmem:[%s9011 + $0x3e8] sm:$0xff]
    %v9071 = vld [vmem:[%s9011 + $0x3f0] sm:$0xff]
    %v9072 = vld [vmem:[%s9011 + $0x408] sm:$0xff]
    %v9073 = vld [vmem:[%s9011 + $0x410] sm:$0xff]
    %v9074 = vld [vmem:[%s9011 + $0x428] sm:$0xff]
    %v9075 = vld [vmem:[%s9011 + $0x430] sm:$0xff]
    %s9076 = scalar_lea.vmem %s7, 192
    %v9077 = vld [vmem:[%s9076] sm:$0xff]
    %v9078 = vld [vmem:[%s9076 + $0x8] sm:$0xff]
    %v9079 = vld [vmem:[%s9076 + $0x10] sm:$0xff]
    %v9080 = vld [vmem:[%s9076 + $0x18] sm:$0xff]
    %v9081 = vld [vmem:[%s9076 + $0x20] sm:$0xff]
    %v9082 = vld [vmem:[%s9076 + $0x28] sm:$0xff]
    %v9083 = vld [vmem:[%s9076 + $0x30] sm:$0xff]
    %v9084 = vld [vmem:[%s9076 + $0x38] sm:$0xff]
    %v9085 = vld [vmem:[%s9076 + $0x40] sm:$0xff]
    %v9086 = vld [vmem:[%s9076 + $0x48] sm:$0xff]
    %v9087 = vld [vmem:[%s9076 + $0x50] sm:$0xff]
    %v9088 = vld [vmem:[%s9076 + $0x58] sm:$0xff]
    %v9090 = vsel %vm6984, %v9012, 0
    %v9093 = vsel %vm6984, %v9013, 0
    %v9096 = vsel %vm6984, %v9014, 0
    %v9099 = vsel %vm6984, %v9015, 0
    %v9102 = vsel %vm6984, %v9016, 0
    %v9105 = vsel %vm6984, %v9017, 0
    %v9108 = vsel %vm6984, %v9018, 0
    %v9111 = vsel %vm6984, %v9019, 0
    %v9114 = vsel %vm6984, %v9020, 0
    %v9117 = vsel %vm6984, %v9021, 0
    %v9120 = vsel %vm6984, %v9022, 0
    %v9123 = vsel %vm6984, %v9023, 0
    %v9126 = vsel %vm6984, %v9024, 0
    %v9129 = vsel %vm6984, %v9025, 0
    %v9132 = vsel %vm6984, %v9026, 0
    %v9135 = vsel %vm6984, %v9027, 0
    %v9138 = vsel %vm6984, %v9028, 0
    %v9141 = vsel %vm6984, %v9029, 0
    %v9144 = vsel %vm6984, %v9030, 0
    %v9147 = vsel %vm6984, %v9031, 0
    %v9150 = vsel %vm6984, %v9032, 0
    %v9153 = vsel %vm6984, %v9033, 0
    %v9156 = vsel %vm6984, %v9034, 0
    %v9159 = vsel %vm6984, %v9035, 0
    %v9162 = vsel %vm6984, %v9036, 0
    %v9165 = vsel %vm6984, %v9037, 0
    %v9168 = vsel %vm6984, %v9038, 0
    %v9171 = vsel %vm6984, %v9039, 0
    %v9174 = vsel %vm6984, %v9040, 0
    %v9177 = vsel %vm6984, %v9041, 0
    %v9180 = vsel %vm6984, %v9042, 0
    %v9183 = vsel %vm6984, %v9043, 0
    %v9186 = vsel %vm6984, %v9044, 0
    %v9189 = vsel %vm6984, %v9045, 0
    %v9192 = vsel %vm6984, %v9046, 0
    %v9195 = vsel %vm6984, %v9047, 0
    %v9198 = vsel %vm6984, %v9048, 0
    %v9201 = vsel %vm6984, %v9049, 0
    %v9204 = vsel %vm6984, %v9050, 0
    %v9207 = vsel %vm6984, %v9051, 0
    %v9210 = vsel %vm6984, %v9052, 0
    %v9213 = vsel %vm6984, %v9053, 0
    %v9216 = vsel %vm6984, %v9054, 0
    %v9219 = vsel %vm6984, %v9055, 0
    %v9222 = vsel %vm6984, %v9056, 0
    %v9225 = vsel %vm6984, %v9057, 0
    %v9228 = vsel %vm6984, %v9058, 0
    %v9231 = vsel %vm6984, %v9059, 0
    %v9234 = vsel %vm6984, %v9060, 0
    %v9237 = vsel %vm6984, %v9061, 0
    %v9240 = vsel %vm6984, %v9062, 0
    %v9243 = vsel %vm6984, %v9063, 0
    %v9246 = vsel %vm6984, %v9064, 0
    %v9249 = vsel %vm6984, %v9065, 0
    %v9252 = vsel %vm6984, %v9066, 0
    %v9255 = vsel %vm6984, %v9067, 0
    %v9258 = vsel %vm6984, %v9068, 0
    %v9261 = vsel %vm6984, %v9069, 0
    %v9264 = vsel %vm6984, %v9070, 0
    %v9267 = vsel %vm6984, %v9071, 0
    %v9270 = vsel %vm6984, %v9072, 0
    %v9273 = vsel %vm6984, %v9073, 0
    %v9276 = vsel %vm6984, %v9074, 0
    %v9279 = vsel %vm6984, %v9075, 0
    %9281 = vmatprep.subr.mxu0 0.0
    %9282 = vmatpush1.msra.mxu0 %v9077
    %9283 = vmatprep.subr.mxu0 0.0
    %9284 = vmatpush1.msra.mxu0 %v9078
    %9285 = vmatprep.subr.mxu0 0.0
    %9286 = vmatpush1.msra.mxu0 %v9079
    %9287 = vmatprep.subr.mxu0 0.0
    %9288 = vmatpush1.msra.mxu0 %v9080
    %9289 = vmatprep.subr.mxu0 0.0
    %9290 = vmatpush1.msra.mxu0 %v9081
    %9291 = vmatprep.subr.mxu0 0.0
    %9292 = vmatpush1.msra.mxu0 %v9082
    %9293 = vmatprep.subr.mxu0 0.0
    %9294 = vmatpush1.msra.mxu0 %v9083
    %9295 = vmatprep.subr.mxu0 0.0
    %9296 = vmatpush1.msra.mxu0 %v9084
    %9297 = vmatprep.subr.mxu0 0.0
    %9298 = vmatpush1.msra.mxu0 %v9085
    %9299 = vmatprep.subr.mxu0 0.0
    %9300 = vmatpush1.msra.mxu0 %v9086
    %9301 = vmatprep.subr.mxu0 0.0
    %9302 = vmatpush1.msra.mxu0 %v9087
    %9303 = vmatprep.subr.mxu0 0.0
    %9304 = vmatpush1.msra.mxu0 %v9088
    %9305 = vmatprep.subr.mxu0 0.0
    %9306 = vmatpush1.msra.mxu0 0.0
    %9307 = vmatprep.subr.mxu0 0.0
    %9308 = vmatpush1.msra.mxu0 0.0
    %9309 = vmatprep.subr.mxu0 0.0
    %9310 = vmatpush1.msra.mxu0 0.0
    %9311 = vmatprep.subr.mxu0 0.0
    %9312 = vmatpush1.msra.mxu0 0.0
    %9313 = vmatprep.subr.mxu0 0.0
    %9314 = vmatpush1.msra.mxu0 0.0
    %9315 = vmatprep.subr.mxu0 0.0
    %9316 = vmatpush1.msra.mxu0 0.0
    %9317 = vmatprep.subr.mxu0 0.0
    %9318 = vmatpush1.msra.mxu0 0.0
    %9319 = vmatprep.subr.mxu0 0.0
    %9320 = vmatpush1.msra.mxu0 0.0
    %9321 = vmatprep.subr.mxu0 0.0
    %9322 = vmatpush1.msra.mxu0 0.0
    %9323 = vmatprep.subr.mxu0 0.0
    %9324 = vmatpush1.msra.mxu0 0.0
    %9325 = vmatprep.subr.mxu0 0.0
    %9326 = vmatpush1.msra.mxu0 0.0
    %9327 = vmatprep.subr.mxu0 0.0
    %9328 = vmatpush1.msra.mxu0 0.0
    %9329 = vmatprep.subr.mxu0 0.0
    %9330 = vmatpush1.msra.mxu0 0.0
    %9331 = vmatprep.subr.mxu0 0.0
    %9332 = vmatpush1.msra.mxu0 0.0
    %9333 = vmatprep.subr.mxu0 0.0
    %9334 = vmatpush1.msra.mxu0 0.0
    %9335 = vmatprep.subr.mxu0 0.0
    %9336 = vmatpush1.msra.mxu0 0.0
    %9337 = vmatprep.subr.mxu0 0.0
    %9338 = vmatpush1.msra.mxu0 0.0
    %9339 = vmatprep.subr.mxu0 0.0
    %9340 = vmatpush1.msra.mxu0 0.0
    %9341 = vmatprep.subr.mxu0 0.0
    %9342 = vmatpush1.msra.mxu0 0.0
    %9343 = vmatprep.subr.mxu0 0.0
    %9344 = vmatpush1.msra.mxu0 0.0
    %9345 = vmatprep.mubr.f32.mxu0 0.0
    %9346 = vmatmul.mubr.f32.gmra.mrb[0].mxu0 %v9090
    %v9347 = vpop.f32.mrb[0].mxu0
    %v9348 = vadd.f32 0.0, %v9347
    %v9349 = vpop.f32.mrb[0].mxu0
    %9350 = vmatprep.mubr.f32.mxu0 0.0
    %9351 = vmatmul.mubr.f32.gmra.mrb[0].mxu0 %v9093
    %v9352 = vpop.f32.mrb[0].mxu0
    %v9353 = vadd.f32 0.0, %v9352
    %v9354 = vpop.f32.mrb[0].mxu0
    %9355 = vmatprep.mubr.f32.mxu0 0.0
    %9356 = vmatmul.mubr.f32.gmra.mrb[0].mxu0 %v9096
    %v9357 = vpop.f32.mrb[0].mxu0
    %v9358 = vadd.f32 0.0, %v9357
    %v9359 = vpop.f32.mrb[0].mxu0
    %9360 = vmatprep.mubr.f32.mxu0 0.0
    %9361 = vmatmul.mubr.f32.gmra.mrb[0].mxu0 %v9099
    %v9362 = vpop.f32.mrb[0].mxu0
    %v9363 = vadd.f32 0.0, %v9362
    %v9364 = vpop.f32.mrb[0].mxu0
    %9365 = vmatprep.mubr.f32.mxu0 0.0
    %9366 = vmatmul.mubr.f32.gmra.mrb[0].mxu0 %v9102
    %v9367 = vpop.f32.mrb[0].mxu0
    %v9368 = vadd.f32 0.0, %v9367
    %v9369 = vpop.f32.mrb[0].mxu0
    %9370 = vmatprep.mubr.f32.mxu0 0.0
    %9371 = vmatmul.mubr.f32.gmra.mrb[0].mxu0 %v9105
    %v9372 = vpop.f32.mrb[0].mxu0
    %v9373 = vadd.f32 0.0, %v9372
    %v9374 = vpop.f32.mrb[0].mxu0
    %9375 = vmatprep.mubr.f32.mxu0 0.0
    %9376 = vmatmul.mubr.f32.gmra.mrb[0].mxu0 %v9108
    %v9377 = vpop.f32.mrb[0].mxu0
    %v9378 = vadd.f32 0.0, %v9377
    %v9379 = vpop.f32.mrb[0].mxu0
    %9380 = vmatprep.mubr.f32.mxu0 0.0
    %9381 = vmatmul.mubr.f32.gmra.mrb[0].mxu0 %v9111
    %v9382 = vpop.f32.mrb[0].mxu0
    %v9383 = vadd.f32 0.0, %v9382
    %v9384 = vpop.f32.mrb[0].mxu0
    %9385 = vmatprep.mubr.f32.mxu0 0.0
    %9386 = vmatmul.mubr.f32.gmra.mrb[0].mxu0 %v9114
    %v9387 = vpop.f32.mrb[0].mxu0
    %v9388 = vadd.f32 0.0, %v9387
    %v9389 = vpop.f32.mrb[0].mxu0
    %9390 = vmatprep.mubr.f32.mxu0 0.0
    %9391 = vmatmul.mubr.f32.gmra.mrb[0].mxu0 %v9117
    %v9392 = vpop.f32.mrb[0].mxu0
    %v9393 = vadd.f32 0.0, %v9392
    %v9394 = vpop.f32.mrb[0].mxu0
    %9395 = vmatprep.mubr.f32.mxu0 0.0
    %9396 = vmatmul.mubr.f32.gmra.mrb[0].mxu0 %v9120
    %v9397 = vpop.f32.mrb[0].mxu0
    %v9398 = vadd.f32 0.0, %v9397
    %v9399 = vpop.f32.mrb[0].mxu0
    %9400 = vmatprep.mubr.f32.mxu0 0.0
    %9401 = vmatmul.mubr.f32.gmra.mrb[0].mxu0 %v9123
    %v9402 = vpop.f32.mrb[0].mxu0
    %v9403 = vadd.f32 0.0, %v9402
    %v9404 = vpop.f32.mrb[0].mxu0
    %9405 = vmatprep.mubr.f32.mxu0 0.0
    %9406 = vmatmul.mubr.f32.gmra.mrb[0].mxu0 %v9126
    %v9407 = vpop.f32.mrb[0].mxu0
    %v9408 = vadd.f32 0.0, %v9407
    %v9409 = vpop.f32.mrb[0].mxu0
    %9410 = vmatprep.mubr.f32.mxu0 0.0
    %9411 = vmatmul.mubr.f32.gmra.mrb[0].mxu0 %v9129
    %v9412 = vpop.f32.mrb[0].mxu0
    %v9413 = vadd.f32 0.0, %v9412
    %v9414 = vpop.f32.mrb[0].mxu0
    %9415 = vmatprep.mubr.f32.mxu0 0.0
    %9416 = vmatmul.mubr.f32.gmra.mrb[0].mxu0 %v9132
    %v9417 = vpop.f32.mrb[0].mxu0
    %v9418 = vadd.f32 0.0, %v9417
    %v9419 = vpop.f32.mrb[0].mxu0
    %9420 = vmatprep.mubr.f32.mxu0 0.0
    %9421 = vmatmul.mubr.f32.gmra.mrb[0].mxu0 %v9135
    %v9422 = vpop.f32.mrb[0].mxu0
    %v9423 = vadd.f32 0.0, %v9422
    %v9424 = vpop.f32.mrb[0].mxu0
    %9425 = vmatprep.mubr.f32.mxu0 0.0
    %9426 = vmatmul.mubr.f32.gmra.mrb[0].mxu0 %v9138
    %v9427 = vpop.f32.mrb[0].mxu0
    %v9428 = vadd.f32 0.0, %v9427
    %v9429 = vpop.f32.mrb[0].mxu0
    %9430 = vmatprep.mubr.f32.mxu0 0.0
    %9431 = vmatmul.mubr.f32.gmra.mrb[0].mxu0 %v9141
    %v9432 = vpop.f32.mrb[0].mxu0
    %v9433 = vadd.f32 0.0, %v9432
    %v9434 = vpop.f32.mrb[0].mxu0
    %9435 = vmatprep.mubr.f32.mxu0 0.0
    %9436 = vmatmul.mubr.f32.gmra.mrb[0].mxu0 %v9144
    %v9437 = vpop.f32.mrb[0].mxu0
    %v9438 = vadd.f32 0.0, %v9437
    %v9439 = vpop.f32.mrb[0].mxu0
    %9440 = vmatprep.mubr.f32.mxu0 0.0
    %9441 = vmatmul.mubr.f32.gmra.mrb[0].mxu0 %v9147
    %v9442 = vpop.f32.mrb[0].mxu0
    %v9443 = vadd.f32 0.0, %v9442
    %v9444 = vpop.f32.mrb[0].mxu0
    %9445 = vmatprep.mubr.f32.mxu0 0.0
    %9446 = vmatmul.mubr.f32.gmra.mrb[0].mxu0 %v9150
    %v9447 = vpop.f32.mrb[0].mxu0
    %v9448 = vadd.f32 0.0, %v9447
    %v9449 = vpop.f32.mrb[0].mxu0
    %9450 = vmatprep.mubr.f32.mxu0 0.0
    %9451 = vmatmul.mubr.f32.gmra.mrb[0].mxu0 %v9153
    %v9452 = vpop.f32.mrb[0].mxu0
    %v9453 = vadd.f32 0.0, %v9452
    %v9454 = vpop.f32.mrb[0].mxu0
    %9455 = vmatprep.mubr.f32.mxu0 0.0
    %9456 = vmatmul.mubr.f32.gmra.mrb[0].mxu0 %v9156
    %v9457 = vpop.f32.mrb[0].mxu0
    %v9458 = vadd.f32 0.0, %v9457
    %v9459 = vpop.f32.mrb[0].mxu0
    %9460 = vmatprep.mubr.f32.mxu0 0.0
    %9461 = vmatmul.mubr.f32.gmra.mrb[0].mxu0 %v9159
    %v9462 = vpop.f32.mrb[0].mxu0
    %v9463 = vadd.f32 0.0, %v9462
    %v9464 = vpop.f32.mrb[0].mxu0
    %9465 = vmatprep.mubr.f32.mxu0 0.0
    %9466 = vmatmul.mubr.f32.gmra.mrb[0].mxu0 %v9162
    %v9467 = vpop.f32.mrb[0].mxu0
    %v9468 = vadd.f32 0.0, %v9467
    %v9469 = vpop.f32.mrb[0].mxu0
    %9470 = vmatprep.mubr.f32.mxu0 0.0
    %9471 = vmatmul.mubr.f32.gmra.mrb[0].mxu0 %v9165
    %v9472 = vpop.f32.mrb[0].mxu0
    %v9473 = vadd.f32 0.0, %v9472
    %v9474 = vpop.f32.mrb[0].mxu0
    %9475 = vmatprep.mubr.f32.mxu0 0.0
    %9476 = vmatmul.mubr.f32.gmra.mrb[0].mxu0 %v9168
    %v9477 = vpop.f32.mrb[0].mxu0
    %v9478 = vadd.f32 0.0, %v9477
    %v9479 = vpop.f32.mrb[0].mxu0
    %9480 = vmatprep.mubr.f32.mxu0 0.0
    %9481 = vmatmul.mubr.f32.gmra.mrb[0].mxu0 %v9171
    %v9482 = vpop.f32.mrb[0].mxu0
    %v9483 = vadd.f32 0.0, %v9482
    %v9484 = vpop.f32.mrb[0].mxu0
    %9485 = vmatprep.mubr.f32.mxu0 0.0
    %9486 = vmatmul.mubr.f32.gmra.mrb[0].mxu0 %v9174
    %v9487 = vpop.f32.mrb[0].mxu0
    %v9488 = vadd.f32 0.0, %v9487
    %v9489 = vpop.f32.mrb[0].mxu0
    %9490 = vmatprep.mubr.f32.mxu0 0.0
    %9491 = vmatmul.mubr.f32.gmra.mrb[0].mxu0 %v9177
    %v9492 = vpop.f32.mrb[0].mxu0
    %v9493 = vadd.f32 0.0, %v9492
    %v9494 = vpop.f32.mrb[0].mxu0
    %9495 = vmatprep.mubr.f32.mxu0 0.0
    %9496 = vmatmul.mubr.f32.gmra.mrb[0].mxu0 %v9180
    %v9497 = vpop.f32.mrb[0].mxu0
    %v9498 = vadd.f32 0.0, %v9497
    %v9499 = vpop.f32.mrb[0].mxu0
    %9500 = vmatprep.mubr.f32.mxu0 0.0
    %9501 = vmatmul.mubr.f32.gmra.mrb[0].mxu0 %v9183
    %v9502 = vpop.f32.mrb[0].mxu0
    %v9503 = vadd.f32 0.0, %v9502
    %v9504 = vpop.f32.mrb[0].mxu0
    %9505 = vmatprep.mubr.f32.mxu0 0.0
    %9506 = vmatmul.mubr.f32.gmra.mrb[0].mxu0 %v9186
    %v9507 = vpop.f32.mrb[0].mxu0
    %v9508 = vadd.f32 0.0, %v9507
    %v9509 = vpop.f32.mrb[0].mxu0
    %9510 = vmatprep.mubr.f32.mxu0 0.0
    %9511 = vmatmul.mubr.f32.gmra.mrb[0].mxu0 %v9189
    %v9512 = vpop.f32.mrb[0].mxu0
    %v9513 = vadd.f32 0.0, %v9512
    %v9514 = vpop.f32.mrb[0].mxu0
    %9515 = vmatprep.mubr.f32.mxu0 0.0
    %9516 = vmatmul.mubr.f32.gmra.mrb[0].mxu0 %v9192
    %v9517 = vpop.f32.mrb[0].mxu0
    %v9518 = vadd.f32 0.0, %v9517
    %v9519 = vpop.f32.mrb[0].mxu0
    %9520 = vmatprep.mubr.f32.mxu0 0.0
    %9521 = vmatmul.mubr.f32.gmra.mrb[0].mxu0 %v9195
    %v9522 = vpop.f32.mrb[0].mxu0
    %v9523 = vadd.f32 0.0, %v9522
    %v9524 = vpop.f32.mrb[0].mxu0
    %9525 = vmatprep.mubr.f32.mxu0 0.0
    %9526 = vmatmul.mubr.f32.gmra.mrb[0].mxu0 %v9198
    %v9527 = vpop.f32.mrb[0].mxu0
    %v9528 = vadd.f32 0.0, %v9527
    %v9529 = vpop.f32.mrb[0].mxu0
    %9530 = vmatprep.mubr.f32.mxu0 0.0
    %9531 = vmatmul.mubr.f32.gmra.mrb[0].mxu0 %v9201
    %v9532 = vpop.f32.mrb[0].mxu0
    %v9533 = vadd.f32 0.0, %v9532
    %v9534 = vpop.f32.mrb[0].mxu0
    %9535 = vmatprep.mubr.f32.mxu0 0.0
    %9536 = vmatmul.mubr.f32.gmra.mrb[0].mxu0 %v9204
    %v9537 = vpop.f32.mrb[0].mxu0
    %v9538 = vadd.f32 0.0, %v9537
    %v9539 = vpop.f32.mrb[0].mxu0
    %9540 = vmatprep.mubr.f32.mxu0 0.0
    %9541 = vmatmul.mubr.f32.gmra.mrb[0].mxu0 %v9207
    %v9542 = vpop.f32.mrb[0].mxu0
    %v9543 = vadd.f32 0.0, %v9542
    %v9544 = vpop.f32.mrb[0].mxu0
    %9545 = vmatprep.mubr.f32.mxu0 0.0
    %9546 = vmatmul.mubr.f32.gmra.mrb[0].mxu0 %v9210
    %v9547 = vpop.f32.mrb[0].mxu0
    %v9548 = vadd.f32 0.0, %v9547
    %v9549 = vpop.f32.mrb[0].mxu0
    %9550 = vmatprep.mubr.f32.mxu0 0.0
    %9551 = vmatmul.mubr.f32.gmra.mrb[0].mxu0 %v9213
    %v9552 = vpop.f32.mrb[0].mxu0
    %v9553 = vadd.f32 0.0, %v9552
    %v9554 = vpop.f32.mrb[0].mxu0
    %9555 = vmatprep.mubr.f32.mxu0 0.0
    %9556 = vmatmul.mubr.f32.gmra.mrb[0].mxu0 %v9216
    %v9557 = vpop.f32.mrb[0].mxu0
    %v9558 = vadd.f32 0.0, %v9557
    %v9559 = vpop.f32.mrb[0].mxu0
    %9560 = vmatprep.mubr.f32.mxu0 0.0
    %9561 = vmatmul.mubr.f32.gmra.mrb[0].mxu0 %v9219
    %v9562 = vpop.f32.mrb[0].mxu0
    %v9563 = vadd.f32 0.0, %v9562
    %v9564 = vpop.f32.mrb[0].mxu0
    %9565 = vmatprep.mubr.f32.mxu0 0.0
    %9566 = vmatmul.mubr.f32.gmra.mrb[0].mxu0 %v9222
    %v9567 = vpop.f32.mrb[0].mxu0
    %v9568 = vadd.f32 0.0, %v9567
    %v9569 = vpop.f32.mrb[0].mxu0
    %9570 = vmatprep.mubr.f32.mxu0 0.0
    %9571 = vmatmul.mubr.f32.gmra.mrb[0].mxu0 %v9225
    %v9572 = vpop.f32.mrb[0].mxu0
    %v9573 = vadd.f32 0.0, %v9572
    %v9574 = vpop.f32.mrb[0].mxu0
    %9575 = vmatprep.mubr.f32.mxu0 0.0
    %9576 = vmatmul.mubr.f32.gmra.mrb[0].mxu0 %v9228
    %v9577 = vpop.f32.mrb[0].mxu0
    %v9578 = vadd.f32 0.0, %v9577
    %v9579 = vpop.f32.mrb[0].mxu0
    %9580 = vmatprep.mubr.f32.mxu0 0.0
    %9581 = vmatmul.mubr.f32.gmra.mrb[0].mxu0 %v9231
    %v9582 = vpop.f32.mrb[0].mxu0
    %v9583 = vadd.f32 0.0, %v9582
    %v9584 = vpop.f32.mrb[0].mxu0
    %9585 = vmatprep.mubr.f32.mxu0 0.0
    %9586 = vmatmul.mubr.f32.gmra.mrb[0].mxu0 %v9234
    %v9587 = vpop.f32.mrb[0].mxu0
    %v9588 = vadd.f32 0.0, %v9587
    %v9589 = vpop.f32.mrb[0].mxu0
    %9590 = vmatprep.mubr.f32.mxu0 0.0
    %9591 = vmatmul.mubr.f32.gmra.mrb[0].mxu0 %v9237
    %v9592 = vpop.f32.mrb[0].mxu0
    %v9593 = vadd.f32 0.0, %v9592
    %v9594 = vpop.f32.mrb[0].mxu0
    %9595 = vmatprep.mubr.f32.mxu0 0.0
    %9596 = vmatmul.mubr.f32.gmra.mrb[0].mxu0 %v9240
    %v9597 = vpop.f32.mrb[0].mxu0
    %v9598 = vadd.f32 0.0, %v9597
    %v9599 = vpop.f32.mrb[0].mxu0
    %9600 = vmatprep.mubr.f32.mxu0 0.0
    %9601 = vmatmul.mubr.f32.gmra.mrb[0].mxu0 %v9243
    %v9602 = vpop.f32.mrb[0].mxu0
    %v9603 = vadd.f32 0.0, %v9602
    %v9604 = vpop.f32.mrb[0].mxu0
    %9605 = vmatprep.mubr.f32.mxu0 0.0
    %9606 = vmatmul.mubr.f32.gmra.mrb[0].mxu0 %v9246
    %v9607 = vpop.f32.mrb[0].mxu0
    %v9608 = vadd.f32 0.0, %v9607
    %v9609 = vpop.f32.mrb[0].mxu0
    %9610 = vmatprep.mubr.f32.mxu0 0.0
    %9611 = vmatmul.mubr.f32.gmra.mrb[0].mxu0 %v9249
    %v9612 = vpop.f32.mrb[0].mxu0
    %v9613 = vadd.f32 0.0, %v9612
    %v9614 = vpop.f32.mrb[0].mxu0
    %9615 = vmatprep.mubr.f32.mxu0 0.0
    %9616 = vmatmul.mubr.f32.gmra.mrb[0].mxu0 %v9252
    %v9617 = vpop.f32.mrb[0].mxu0
    %v9618 = vadd.f32 0.0, %v9617
    %v9619 = vpop.f32.mrb[0].mxu0
    %9620 = vmatprep.mubr.f32.mxu0 0.0
    %9621 = vmatmul.mubr.f32.gmra.mrb[0].mxu0 %v9255
    %v9622 = vpop.f32.mrb[0].mxu0
    %v9623 = vadd.f32 0.0, %v9622
    %v9624 = vpop.f32.mrb[0].mxu0
    %9625 = vmatprep.mubr.f32.mxu0 0.0
    %9626 = vmatmul.mubr.f32.gmra.mrb[0].mxu0 %v9258
    %v9627 = vpop.f32.mrb[0].mxu0
    %v9628 = vadd.f32 0.0, %v9627
    %v9629 = vpop.f32.mrb[0].mxu0
    %9630 = vmatprep.mubr.f32.mxu0 0.0
    %9631 = vmatmul.mubr.f32.gmra.mrb[0].mxu0 %v9261
    %v9632 = vpop.f32.mrb[0].mxu0
    %v9633 = vadd.f32 0.0, %v9632
    %v9634 = vpop.f32.mrb[0].mxu0
    %9635 = vmatprep.mubr.f32.mxu0 0.0
    %9636 = vmatmul.mubr.f32.gmra.mrb[0].mxu0 %v9264
    %v9637 = vpop.f32.mrb[0].mxu0
    %v9638 = vadd.f32 0.0, %v9637
    %v9639 = vpop.f32.mrb[0].mxu0
    %9640 = vmatprep.mubr.f32.mxu0 0.0
    %9641 = vmatmul.mubr.f32.gmra.mrb[0].mxu0 %v9267
    %v9642 = vpop.f32.mrb[0].mxu0
    %v9643 = vadd.f32 0.0, %v9642
    %v9644 = vpop.f32.mrb[0].mxu0
    %9645 = vmatprep.mubr.f32.mxu0 0.0
    %9646 = vmatmul.mubr.f32.gmra.mrb[0].mxu0 %v9270
    %v9647 = vpop.f32.mrb[0].mxu0
    %v9648 = vadd.f32 0.0, %v9647
    %v9649 = vpop.f32.mrb[0].mxu0
    %9650 = vmatprep.mubr.f32.mxu0 0.0
    %9651 = vmatmul.mubr.f32.gmra.mrb[0].mxu0 %v9273
    %v9652 = vpop.f32.mrb[0].mxu0
    %v9653 = vadd.f32 0.0, %v9652
    %v9654 = vpop.f32.mrb[0].mxu0
    %9655 = vmatprep.mubr.f32.mxu0 0.0
    %9656 = vmatmul.mubr.f32.gmra.mrb[0].mxu0 %v9276
    %v9657 = vpop.f32.mrb[0].mxu0
    %v9658 = vadd.f32 0.0, %v9657
    %v9659 = vpop.f32.mrb[0].mxu0
    %9660 = vmatprep.mubr.f32.mxu0 0.0
    %9661 = vmatmul.mubr.f32.gmra.mrb[0].mxu0 %v9279
    %v9662 = vpop.f32.mrb[0].mxu0
    %v9663 = vadd.f32 0.0, %v9662
    %v9664 = vpop.f32.mrb[0].mxu0
    %9665 = vdwg.mxu0
    %v9666 = vadd.f32 %v8693, %v9348
    %v9667 = vadd.f32 %v8698, %v9353
    %v9668 = vadd.f32 %v8703, %v9358
    %v9669 = vadd.f32 %v8708, %v9363
    %v9670 = vadd.f32 %v8713, %v9368
    %v9671 = vadd.f32 %v8718, %v9373
    %v9672 = vadd.f32 %v8723, %v9378
    %v9673 = vadd.f32 %v8728, %v9383
    %v9674 = vadd.f32 %v8733, %v9388
    %v9675 = vadd.f32 %v8738, %v9393
    %v9676 = vadd.f32 %v8743, %v9398
    %v9677 = vadd.f32 %v8748, %v9403
    %v9678 = vadd.f32 %v8753, %v9408
    %v9679 = vadd.f32 %v8758, %v9413
    %v9680 = vadd.f32 %v8763, %v9418
    %v9681 = vadd.f32 %v8768, %v9423
    %v9682 = vadd.f32 %v8773, %v9428
    %v9683 = vadd.f32 %v8778, %v9433
    %v9684 = vadd.f32 %v8783, %v9438
    %v9685 = vadd.f32 %v8788, %v9443
    %v9686 = vadd.f32 %v8793, %v9448
    %v9687 = vadd.f32 %v8798, %v9453
    %v9688 = vadd.f32 %v8803, %v9458
    %v9689 = vadd.f32 %v8808, %v9463
    %v9690 = vadd.f32 %v8813, %v9468
    %v9691 = vadd.f32 %v8818, %v9473
    %v9692 = vadd.f32 %v8823, %v9478
    %v9693 = vadd.f32 %v8828, %v9483
    %v9694 = vadd.f32 %v8833, %v9488
    %v9695 = vadd.f32 %v8838, %v9493
    %v9696 = vadd.f32 %v8843, %v9498
    %v9697 = vadd.f32 %v8848, %v9503
    %v9698 = vadd.f32 %v8853, %v9508
    %v9699 = vadd.f32 %v8858, %v9513
    %v9700 = vadd.f32 %v8863, %v9518
    %v9701 = vadd.f32 %v8868, %v9523
    %v9702 = vadd.f32 %v8873, %v9528
    %v9703 = vadd.f32 %v8878, %v9533
    %v9704 = vadd.f32 %v8883, %v9538
    %v9705 = vadd.f32 %v8888, %v9543
    %v9706 = vadd.f32 %v8893, %v9548
    %v9707 = vadd.f32 %v8898, %v9553
    %v9708 = vadd.f32 %v8903, %v9558
    %v9709 = vadd.f32 %v8908, %v9563
    %v9710 = vadd.f32 %v8913, %v9568
    %v9711 = vadd.f32 %v8918, %v9573
    %v9712 = vadd.f32 %v8923, %v9578
    %v9713 = vadd.f32 %v8928, %v9583
    %v9714 = vadd.f32 %v8933, %v9588
    %v9715 = vadd.f32 %v8938, %v9593
    %v9716 = vadd.f32 %v8943, %v9598
    %v9717 = vadd.f32 %v8948, %v9603
    %v9718 = vadd.f32 %v8953, %v9608
    %v9719 = vadd.f32 %v8958, %v9613
    %v9720 = vadd.f32 %v8963, %v9618
    %v9721 = vadd.f32 %v8968, %v9623
    %v9722 = vadd.f32 %v8973, %v9628
    %v9723 = vadd.f32 %v8978, %v9633
    %v9724 = vadd.f32 %v8983, %v9638
    %v9725 = vadd.f32 %v8988, %v9643
    %v9726 = vadd.f32 %v8993, %v9648
    %v9727 = vadd.f32 %v8998, %v9653
    %v9728 = vadd.f32 %v9003, %v9658
    %v9729 = vadd.f32 %v9008, %v9663
    %v9730 = vld [vmem:[%s8] sm:$0x1]
    %v9732 = vlaneseq
    %v9733 = vshrl.u32 %v9732, 7
    %v9734 = vsub.s32 0, %v9733
    %v9735 = vrot.slane %v9730, %v9734
    %v9737 = vmul.f32 %v9666, %v9735
    %v9738 = vmul.f32 %v9667, %v9735
    %v9739 = vmul.f32 %v9668, %v9735
    %v9740 = vmul.f32 %v9669, %v9735
    %v9741 = vmul.f32 %v9670, %v9735
    %v9742 = vmul.f32 %v9671, %v9735
    %v9743 = vmul.f32 %v9672, %v9735
    %v9744 = vmul.f32 %v9673, %v9735
    %v9745 = vmul.f32 %v9674, %v9735
    %v9746 = vmul.f32 %v9675, %v9735
    %v9747 = vmul.f32 %v9676, %v9735
    %v9748 = vmul.f32 %v9677, %v9735
    %v9749 = vmul.f32 %v9678, %v9735
    %v9750 = vmul.f32 %v9679, %v9735
    %v9751 = vmul.f32 %v9680, %v9735
    %v9752 = vmul.f32 %v9681, %v9735
    %v9753 = vmul.f32 %v9682, %v9735
    %v9754 = vmul.f32 %v9683, %v9735
    %v9755 = vmul.f32 %v9684, %v9735
    %v9756 = vmul.f32 %v9685, %v9735
    %v9757 = vmul.f32 %v9686, %v9735
    %v9758 = vmul.f32 %v9687, %v9735
    %v9759 = vmul.f32 %v9688, %v9735
    %v9760 = vmul.f32 %v9689, %v9735
    %v9761 = vmul.f32 %v9690, %v9735
    %v9762 = vmul.f32 %v9691, %v9735
    %v9763 = vmul.f32 %v9692, %v9735
    %v9764 = vmul.f32 %v9693, %v9735
    %v9765 = vmul.f32 %v9694, %v9735
    %v9766 = vmul.f32 %v9695, %v9735
    %v9767 = vmul.f32 %v9696, %v9735
    %v9768 = vmul.f32 %v9697, %v9735
    %v9769 = vmul.f32 %v9698, %v9735
    %v9770 = vmul.f32 %v9699, %v9735
    %v9771 = vmul.f32 %v9700, %v9735
    %v9772 = vmul.f32 %v9701, %v9735
    %v9773 = vmul.f32 %v9702, %v9735
    %v9774 = vmul.f32 %v9703, %v9735
    %v9775 = vmul.f32 %v9704, %v9735
    %v9776 = vmul.f32 %v9705, %v9735
    %v9777 = vmul.f32 %v9706, %v9735
    %v9778 = vmul.f32 %v9707, %v9735
    %v9779 = vmul.f32 %v9708, %v9735
    %v9780 = vmul.f32 %v9709, %v9735
    %v9781 = vmul.f32 %v9710, %v9735
    %v9782 = vmul.f32 %v9711, %v9735
    %v9783 = vmul.f32 %v9712, %v9735
    %v9784 = vmul.f32 %v9713, %v9735
    %v9785 = vmul.f32 %v9714, %v9735
    %v9786 = vmul.f32 %v9715, %v9735
    %v9787 = vmul.f32 %v9716, %v9735
    %v9788 = vmul.f32 %v9717, %v9735
    %v9789 = vmul.f32 %v9718, %v9735
    %v9790 = vmul.f32 %v9719, %v9735
    %v9791 = vmul.f32 %v9720, %v9735
    %v9792 = vmul.f32 %v9721, %v9735
    %v9793 = vmul.f32 %v9722, %v9735
    %v9794 = vmul.f32 %v9723, %v9735
    %v9795 = vmul.f32 %v9724, %v9735
    %v9796 = vmul.f32 %v9725, %v9735
    %v9797 = vmul.f32 %v9726, %v9735
    %v9798 = vmul.f32 %v9727, %v9735
    %v9799 = vmul.f32 %v9728, %v9735
    %v9800 = vmul.f32 %v9729, %v9735
    %v9801 = vld [vmem:[%s9] sm:$0x1]
    %v9803 = vlaneseq
    %v9804 = vshrl.u32 %v9803, 7
    %v9805 = vsub.s32 0, %v9804
    %v9806 = vrot.slane %v9801, %v9805
    %v9808 = vadd.f32 %v9737, %v9806
    %v9809 = vadd.f32 %v9738, %v9806
    %v9810 = vadd.f32 %v9739, %v9806
    %v9811 = vadd.f32 %v9740, %v9806
    %v9812 = vadd.f32 %v9741, %v9806
    %v9813 = vadd.f32 %v9742, %v9806
    %v9814 = vadd.f32 %v9743, %v9806
    %v9815 = vadd.f32 %v9744, %v9806
    %v9816 = vadd.f32 %v9745, %v9806
    %v9817 = vadd.f32 %v9746, %v9806
    %v9818 = vadd.f32 %v9747, %v9806
    %v9819 = vadd.f32 %v9748, %v9806
    %v9820 = vadd.f32 %v9749, %v9806
    %v9821 = vadd.f32 %v9750, %v9806
    %v9822 = vadd.f32 %v9751, %v9806
    %v9823 = vadd.f32 %v9752, %v9806
    %v9824 = vadd.f32 %v9753, %v9806
    %v9825 = vadd.f32 %v9754, %v9806
    %v9826 = vadd.f32 %v9755, %v9806
    %v9827 = vadd.f32 %v9756, %v9806
    %v9828 = vadd.f32 %v9757, %v9806
    %v9829 = vadd.f32 %v9758, %v9806
    %v9830 = vadd.f32 %v9759, %v9806
    %v9831 = vadd.f32 %v9760, %v9806
    %v9832 = vadd.f32 %v9761, %v9806
    %v9833 = vadd.f32 %v9762, %v9806
    %v9834 = vadd.f32 %v9763, %v9806
    %v9835 = vadd.f32 %v9764, %v9806
    %v9836 = vadd.f32 %v9765, %v9806
    %v9837 = vadd.f32 %v9766, %v9806
    %v9838 = vadd.f32 %v9767, %v9806
    %v9839 = vadd.f32 %v9768, %v9806
    %v9840 = vadd.f32 %v9769, %v9806
    %v9841 = vadd.f32 %v9770, %v9806
    %v9842 = vadd.f32 %v9771, %v9806
    %v9843 = vadd.f32 %v9772, %v9806
    %v9844 = vadd.f32 %v9773, %v9806
    %v9845 = vadd.f32 %v9774, %v9806
    %v9846 = vadd.f32 %v9775, %v9806
    %v9847 = vadd.f32 %v9776, %v9806
    %v9848 = vadd.f32 %v9777, %v9806
    %v9849 = vadd.f32 %v9778, %v9806
    %v9850 = vadd.f32 %v9779, %v9806
    %v9851 = vadd.f32 %v9780, %v9806
    %v9852 = vadd.f32 %v9781, %v9806
    %v9853 = vadd.f32 %v9782, %v9806
    %v9854 = vadd.f32 %v9783, %v9806
    %v9855 = vadd.f32 %v9784, %v9806
    %v9856 = vadd.f32 %v9785, %v9806
    %v9857 = vadd.f32 %v9786, %v9806
    %v9858 = vadd.f32 %v9787, %v9806
    %v9859 = vadd.f32 %v9788, %v9806
    %v9860 = vadd.f32 %v9789, %v9806
    %v9861 = vadd.f32 %v9790, %v9806
    %v9862 = vadd.f32 %v9791, %v9806
    %v9863 = vadd.f32 %v9792, %v9806
    %v9864 = vadd.f32 %v9793, %v9806
    %v9865 = vadd.f32 %v9794, %v9806
    %v9866 = vadd.f32 %v9795, %v9806
    %v9867 = vadd.f32 %v9796, %v9806
    %v9868 = vadd.f32 %v9797, %v9806
    %v9869 = vadd.f32 %v9798, %v9806
    %v9870 = vadd.f32 %v9799, %v9806
    %v9871 = vadd.f32 %v9800, %v9806
    %v9872 = vmax.f32 %v9808, 0.0
    %v9873 = vmax.f32 %v9809, 0.0
    %v9874 = vmax.f32 %v9810, 0.0
    %v9875 = vmax.f32 %v9811, 0.0
    %v9876 = vmax.f32 %v9812, 0.0
    %v9877 = vmax.f32 %v9813, 0.0
    %v9878 = vmax.f32 %v9814, 0.0
    %v9879 = vmax.f32 %v9815, 0.0
    %v9880 = vmax.f32 %v9816, 0.0
    %v9881 = vmax.f32 %v9817, 0.0
    %v9882 = vmax.f32 %v9818, 0.0
    %v9883 = vmax.f32 %v9819, 0.0
    %v9884 = vmax.f32 %v9820, 0.0
    %v9885 = vmax.f32 %v9821, 0.0
    %v9886 = vmax.f32 %v9822, 0.0
    %v9887 = vmax.f32 %v9823, 0.0
    %v9888 = vmax.f32 %v9824, 0.0
    %v9889 = vmax.f32 %v9825, 0.0
    %v9890 = vmax.f32 %v9826, 0.0
    %v9891 = vmax.f32 %v9827, 0.0
    %v9892 = vmax.f32 %v9828, 0.0
    %v9893 = vmax.f32 %v9829, 0.0
    %v9894 = vmax.f32 %v9830, 0.0
    %v9895 = vmax.f32 %v9831, 0.0
    %v9896 = vmax.f32 %v9832, 0.0
    %v9897 = vmax.f32 %v9833, 0.0
    %v9898 = vmax.f32 %v9834, 0.0
    %v9899 = vmax.f32 %v9835, 0.0
    %v9900 = vmax.f32 %v9836, 0.0
    %v9901 = vmax.f32 %v9837, 0.0
    %v9902 = vmax.f32 %v9838, 0.0
    %v9903 = vmax.f32 %v9839, 0.0
    %v9904 = vmax.f32 %v9840, 0.0
    %v9905 = vmax.f32 %v9841, 0.0
    %v9906 = vmax.f32 %v9842, 0.0
    %v9907 = vmax.f32 %v9843, 0.0
    %v9908 = vmax.f32 %v9844, 0.0
    %v9909 = vmax.f32 %v9845, 0.0
    %v9910 = vmax.f32 %v9846, 0.0
    %v9911 = vmax.f32 %v9847, 0.0
    %v9912 = vmax.f32 %v9848, 0.0
    %v9913 = vmax.f32 %v9849, 0.0
    %v9914 = vmax.f32 %v9850, 0.0
    %v9915 = vmax.f32 %v9851, 0.0
    %v9916 = vmax.f32 %v9852, 0.0
    %v9917 = vmax.f32 %v9853, 0.0
    %v9918 = vmax.f32 %v9854, 0.0
    %v9919 = vmax.f32 %v9855, 0.0
    %v9920 = vmax.f32 %v9856, 0.0
    %v9921 = vmax.f32 %v9857, 0.0
    %v9922 = vmax.f32 %v9858, 0.0
    %v9923 = vmax.f32 %v9859, 0.0
    %v9924 = vmax.f32 %v9860, 0.0
    %v9925 = vmax.f32 %v9861, 0.0
    %v9926 = vmax.f32 %v9862, 0.0
    %v9927 = vmax.f32 %v9863, 0.0
    %v9928 = vmax.f32 %v9864, 0.0
    %v9929 = vmax.f32 %v9865, 0.0
    %v9930 = vmax.f32 %v9866, 0.0
    %v9931 = vmax.f32 %v9867, 0.0
    %v9932 = vmax.f32 %v9868, 0.0
    %v9933 = vmax.f32 %v9869, 0.0
    %v9934 = vmax.f32 %v9870, 0.0
    %v9935 = vmax.f32 %v9871, 0.0
    %vm9936 = vcmask 408576
    %9937 = vst.msk [vmem:[#allocation5] sm:$0xff] %vm9936, %v9872
    %9938 = vst.msk [vmem:[#allocation5 + $0x8] sm:$0xff] %vm9936, %v9873
    %9939 = vst.msk [vmem:[#allocation5 + $0x10] sm:$0xff] %vm9936, %v9874
    %9940 = vst.msk [vmem:[#allocation5 + $0x18] sm:$0xff] %vm9936, %v9875
    %9941 = vst.msk [vmem:[#allocation5 + $0x20] sm:$0xff] %vm9936, %v9876
    %9942 = vst.msk [vmem:[#allocation5 + $0x28] sm:$0xff] %vm9936, %v9877
    %9943 = vst.msk [vmem:[#allocation5 + $0x30] sm:$0xff] %vm9936, %v9878
    %9944 = vst.msk [vmem:[#allocation5 + $0x38] sm:$0xff] %vm9936, %v9879
    %9945 = vst.msk [vmem:[#allocation5 + $0x40] sm:$0xff] %vm9936, %v9880
    %9946 = vst.msk [vmem:[#allocation5 + $0x48] sm:$0xff] %vm9936, %v9881
    %9947 = vst.msk [vmem:[#allocation5 + $0x50] sm:$0xff] %vm9936, %v9882
    %9948 = vst.msk [vmem:[#allocation5 + $0x58] sm:$0xff] %vm9936, %v9883
    %9949 = vst.msk [vmem:[#allocation5 + $0x60] sm:$0xff] %vm9936, %v9884
    %9950 = vst.msk [vmem:[#allocation5 + $0x68] sm:$0xff] %vm9936, %v9885
    %9951 = vst.msk [vmem:[#allocation5 + $0x70] sm:$0xff] %vm9936, %v9886
    %9952 = vst.msk [vmem:[#allocation5 + $0x78] sm:$0xff] %vm9936, %v9887
    %9953 = vst.msk [vmem:[#allocation5 + $0x80] sm:$0xff] %vm9936, %v9888
    %9954 = vst.msk [vmem:[#allocation5 + $0x88] sm:$0xff] %vm9936, %v9889
    %9955 = vst.msk [vmem:[#allocation5 + $0x90] sm:$0xff] %vm9936, %v9890
    %9956 = vst.msk [vmem:[#allocation5 + $0x98] sm:$0xff] %vm9936, %v9891
    %9957 = vst.msk [vmem:[#allocation5 + $0xa0] sm:$0xff] %vm9936, %v9892
    %9958 = vst.msk [vmem:[#allocation5 + $0xa8] sm:$0xff] %vm9936, %v9893
    %9959 = vst.msk [vmem:[#allocation5 + $0xb0] sm:$0xff] %vm9936, %v9894
    %9960 = vst.msk [vmem:[#allocation5 + $0xb8] sm:$0xff] %vm9936, %v9895
    %9961 = vst.msk [vmem:[#allocation5 + $0xc0] sm:$0xff] %vm9936, %v9896
    %9962 = vst.msk [vmem:[#allocation5 + $0xc8] sm:$0xff] %vm9936, %v9897
    %9963 = vst.msk [vmem:[#allocation5 + $0xd0] sm:$0xff] %vm9936, %v9898
    %9964 = vst.msk [vmem:[#allocation5 + $0xd8] sm:$0xff] %vm9936, %v9899
    %9965 = vst.msk [vmem:[#allocation5 + $0xe0] sm:$0xff] %vm9936, %v9900
    %9966 = vst.msk [vmem:[#allocation5 + $0xe8] sm:$0xff] %vm9936, %v9901
    %9967 = vst.msk [vmem:[#allocation5 + $0xf0] sm:$0xff] %vm9936, %v9902
    %9968 = vst.msk [vmem:[#allocation5 + $0xf8] sm:$0xff] %vm9936, %v9903
    %9969 = vst.msk [vmem:[#allocation5 + $0x100] sm:$0xff] %vm9936, %v9904
    %9970 = vst.msk [vmem:[#allocation5 + $0x108] sm:$0xff] %vm9936, %v9905
    %9971 = vst.msk [vmem:[#allocation5 + $0x110] sm:$0xff] %vm9936, %v9906
    %9972 = vst.msk [vmem:[#allocation5 + $0x118] sm:$0xff] %vm9936, %v9907
    %9973 = vst.msk [vmem:[#allocation5 + $0x120] sm:$0xff] %vm9936, %v9908
    %9974 = vst.msk [vmem:[#allocation5 + $0x128] sm:$0xff] %vm9936, %v9909
    %9975 = vst.msk [vmem:[#allocation5 + $0x130] sm:$0xff] %vm9936, %v9910
    %9976 = vst.msk [vmem:[#allocation5 + $0x138] sm:$0xff] %vm9936, %v9911
    %9977 = vst.msk [vmem:[#allocation5 + $0x140] sm:$0xff] %vm9936, %v9912
    %9978 = vst.msk [vmem:[#allocation5 + $0x148] sm:$0xff] %vm9936, %v9913
    %9979 = vst.msk [vmem:[#allocation5 + $0x150] sm:$0xff] %vm9936, %v9914
    %9980 = vst.msk [vmem:[#allocation5 + $0x158] sm:$0xff] %vm9936, %v9915
    %9981 = vst.msk [vmem:[#allocation5 + $0x160] sm:$0xff] %vm9936, %v9916
    %9982 = vst.msk [vmem:[#allocation5 + $0x168] sm:$0xff] %vm9936, %v9917
    %9983 = vst.msk [vmem:[#allocation5 + $0x170] sm:$0xff] %vm9936, %v9918
    %9984 = vst.msk [vmem:[#allocation5 + $0x178] sm:$0xff] %vm9936, %v9919
    %9985 = vst.msk [vmem:[#allocation5 + $0x180] sm:$0xff] %vm9936, %v9920
    %9986 = vst.msk [vmem:[#allocation5 + $0x188] sm:$0xff] %vm9936, %v9921
    %9987 = vst.msk [vmem:[#allocation5 + $0x190] sm:$0xff] %vm9936, %v9922
    %9988 = vst.msk [vmem:[#allocation5 + $0x198] sm:$0xff] %vm9936, %v9923
    %9989 = vst.msk [vmem:[#allocation5 + $0x1a0] sm:$0xff] %vm9936, %v9924
    %9990 = vst.msk [vmem:[#allocation5 + $0x1a8] sm:$0xff] %vm9936, %v9925
    %9991 = vst.msk [vmem:[#allocation5 + $0x1b0] sm:$0xff] %vm9936, %v9926
    %9992 = vst.msk [vmem:[#allocation5 + $0x1b8] sm:$0xff] %vm9936, %v9927
    %9993 = vst.msk [vmem:[#allocation5 + $0x1c0] sm:$0xff] %vm9936, %v9928
    %9994 = vst.msk [vmem:[#allocation5 + $0x1c8] sm:$0xff] %vm9936, %v9929
    %9995 = vst.msk [vmem:[#allocation5 + $0x1d0] sm:$0xff] %vm9936, %v9930
    %9996 = vst.msk [vmem:[#allocation5 + $0x1d8] sm:$0xff] %vm9936, %v9931
    %9997 = vst.msk [vmem:[#allocation5 + $0x1e0] sm:$0xff] %vm9936, %v9932
    %9998 = vst.msk [vmem:[#allocation5 + $0x1e8] sm:$0xff] %vm9936, %v9933
    %9999 = vst.msk [vmem:[#allocation5 + $0x1f0] sm:$0xff] %vm9936, %v9934
    %10000 = vst.msk [vmem:[#allocation5 + $0x1f8] sm:$0xff] %vm9936, %v9935
    // Predicated region
    $region42: #{decoder_ds_forward.1} parent=1 // pred_check
      _
    $region43: #{decoder_ds_forward.1} parent=1 // pred_check_branch
      %10002 = sbr.rel (0) target = $region45
    $region44: #{decoder_ds_forward.1} parent=1 // pred_region
      %s10004 = ssub.s32 8192, 8192
      %10005 = vsyncadd [#allocation6], %s10004
      %s10006 = sshll.u32 [#allocation5], 4
      %s10007 = int_to_ptr.vmem [resolvable:$true] %s10006
      %10012 = dma.vmem_to_hbm [thread:$0]  %s10007, 8192, %s10, [#allocation6], 128, 128, 8
    $region45: #{decoder_ds_forward.1} parent=1 // pred_fallthru
      _
    // Predicated region
    $region46: #{decoder_ds_forward.1} parent=1 // pred_check
      _
    $region47: #{decoder_ds_forward.1} parent=1 // pred_check_branch
      %10014 = sbr.rel (0) target = $region49
    $region48: #{decoder_ds_forward.1} parent=1 // pred_region
      %10015 = dma.done [#allocation6], 8192
    $region49: #{decoder_ds_forward.1} parent=1 // pred_fallthru
      _
    %10016 = vsyncpa [#allocation6], 1

</llo_original>
